<compile_context>
chip_gen: v6e
topology: v6e:2x2x1
jax: 0.10.0
libtpu: 0.0.40
codegen_flags: <defaults>
</compile_context>

<pallas_src>
import jax
import jax.numpy as jnp
from jax import lax
from jax.experimental import pallas as pl
from jax.experimental.pallas import tpu as pltpu  # noqa: F401  (kept for TPU-specific tuning hooks)

# ---- small synthetic config (BERT-like, shrunk) ----
B, S, H = 2, 128, 128          # batch, seq_len, hidden
NH, HD = 2, 64                 # heads, head_dim (NH * HD == H)
I = 256                        # FFN intermediate
L = 9                          # NER labels (BIO-style)
LPAD = 128                     # lane-dense padded label axis for the output
VOCAB, MAXPOS, NTYPE = 1000, 128, 2
NLAYERS = 2
LN_EPS = 1e-12
BS = B * S                     # stacked activation rows


# ----------------------------- kernel -----------------------------
def _layernorm(x, g, b):
    # single-pass statistics: var = E[x^2] - mu^2 (one fewer (rows,H) VPU subtract,
    # and the two XLU reductions are independent instead of serial)
    mu = jnp.mean(x, axis=-1, keepdims=True)
    ms = jnp.mean(x * x, axis=-1, keepdims=True)
    var = ms - mu * mu
    return (x - mu) * lax.rsqrt(var + LN_EPS) * g + b


def fused_forward_kernel(wemb_ref, mask_ref, pos_ref, typ_ref, eg_ref, eb_ref,
                         wqkv_ref, bqkv_ref, wo_ref, bo_ref,
                         ln1g_ref, ln1b_ref, w1_ref, b1_ref,
                         w2_ref, b2_ref, ln2g_ref, ln2b_ref,
                         clsw_ref, clsb_ref, o_ref):
    pos = pos_ref[...]                                   # (S, H) f32
    typ = typ_ref[...]                                   # (1, H) f32

    # embeddings (word gather done in XLA) + pos/type adds, stacked (B*S, H)
    xs, biases = [], []
    for b in range(B):                                   # B is tiny -> static unroll
        xs.append(wemb_ref[b] + pos + typ)               # (S, H)
        # HF-style extended attention mask, computed in-kernel from the raw int mask
        biases.append((1.0 - mask_ref[b:b + 1, :].astype(jnp.float32)) * -1e9)  # (1, S)
    x = jnp.concatenate(xs, axis=0)                      # (B*S, H) f32
    x = _layernorm(x, eg_ref[...], eb_ref[...])

    scale = 1.0 / (HD ** 0.5)
    qk_dims = (((1,), (1,)), ((), ()))                   # contract dim-1 of both: q @ k^T w/o relayout
    ones_col = jnp.ones((S, 1), jnp.bfloat16)            # hoisted: softmax-denominator column

    for l in range(NLAYERS):                             # static unroll (NLAYERS is tiny)
        xb = x.astype(jnp.bfloat16)
        # fused QKV projection: one (B*S, H) @ (H, 3H) MXU pass
        qkv = jnp.dot(xb, wqkv_ref[l],
                      preferred_element_type=jnp.float32) + bqkv_ref[l]      # (B*S, 3H) f32

        ctx_blocks = []
        for b in range(B):                               # per-sequence attention
            qkv_b = qkv[b * S:(b + 1) * S]               # (S, 3H)
            heads = []
            for h in range(NH):
                qh = qkv_b[:, h * HD:(h + 1) * HD].astype(jnp.bfloat16)
                kh = qkv_b[:, H + h * HD:H + (h + 1) * HD].astype(jnp.bfloat16)
                vh = qkv_b[:, 2 * H + h * HD:2 * H + (h + 1) * HD].astype(jnp.bfloat16)

                s = lax.dot_general(qh, kh, qk_dims,
                                    preferred_element_type=jnp.float32) * scale + biases[b]
                s = s - jnp.max(s, axis=-1, keepdims=True)
                p = jnp.exp(s)                            # unnormalized probs (f32)

                # fold the softmax denominator into the p@V matmul: append a ones
                # column to V, then scale by the reciprocal of the last column.
                vh_aug = jnp.concatenate([vh, ones_col], axis=-1)             # (S, HD+1)
                ctx_aug = jnp.dot(p.astype(jnp.bfloat16), vh_aug,
                                  preferred_element_type=jnp.float32)         # (S, HD+1)
                ctx_h = ctx_aug[:, :HD] * pl.reciprocal(ctx_aug[:, HD:HD + 1], approx=True)
                heads.append(ctx_h)
            ctx_blocks.append(jnp.concatenate(heads, axis=-1))                # (S, H)

        ctx = jnp.concatenate(ctx_blocks, axis=0)                             # (B*S, H)
        # single full-width output projection on the concatenated heads
        attn = jnp.dot(ctx.astype(jnp.bfloat16), wo_ref[l],
                       preferred_element_type=jnp.float32) + bo_ref[l]

        x1 = _layernorm(attn + x, ln1g_ref[l], ln1b_ref[l])

        hdn = jnp.dot(x1.astype(jnp.bfloat16), w1_ref[l],
                      preferred_element_type=jnp.float32) + b1_ref[l]
        hdn = jax.nn.gelu(hdn, approximate=True)          # tanh GELU (HF default is erf GELU)
        ff = jnp.dot(hdn.astype(jnp.bfloat16), w2_ref[l],
                     preferred_element_type=jnp.float32) + b2_ref[l]
        x = _layernorm(ff + x1, ln2g_ref[l], ln2b_ref[l])

    # classifier head + softmax over (padded) label axis; padded logits carry a
    # -1e9 bias so exp() underflows to exactly 0 and the real-label softmax is
    # unchanged.  Exact division keeps parity with torch.softmax.
    logits = jnp.dot(x.astype(jnp.bfloat16), clsw_ref[...],
                     preferred_element_type=jnp.float32) + clsb_ref[...]      # (B*S, LPAD)
    logits = logits - jnp.max(logits, axis=-1, keepdims=True)
    p = jnp.exp(logits)
    probs = p / jnp.sum(p, axis=-1, keepdims=True)

    for b in range(B):
        o_ref[b] = probs[b * S:(b + 1) * S]


# --------------------------- pallas wrapper ---------------------------
def forward(params, input_ids, attention_mask):
    # only remaining JAX-side glue: the vocab gather (no clean blocked form)
    word_g = params["word_emb"][input_ids].astype(jnp.float32)     # (B, S, H)
    mask_i = attention_mask.astype(jnp.int32)                      # (B, S), raw mask -> kernel

    weights = (params["pos_emb"][:S], params["type_emb"][:1],
               params["emb_ln_g"], params["emb_ln_b"],
               params["wqkv"], params["bqkv"], params["wo"], params["bo"],
               params["ln1g"], params["ln1b"], params["w1"], params["b1"],
               params["w2"], params["b2"], params["ln2g"], params["ln2b"],
               params["cls_w"], params["cls_b"])

    # no grid: the whole (tiny) problem is one kernel invocation with every array
    # mapped whole into VMEM (total footprint ~2 MB, far below any VMEM limit).
    probs_pad = pl.pallas_call(
        fused_forward_kernel,
        out_shape=jax.ShapeDtypeStruct((B, S, LPAD), jnp.float32),
    )(word_g, mask_i, *weights)

    return probs_pad[:, :, :L]


# ------------------------------ params ------------------------------
def init_params(key):
    def nrm(k, shape, scale=0.02):
        return (scale * jax.random.normal(k, shape)).astype(jnp.float32)

    keys = iter(jax.random.split(key, 32))

    cls_w = nrm(next(keys), (H, L))
    cls_w_pad = jnp.zeros((H, LPAD), jnp.float32).at[:, :L].set(cls_w).astype(jnp.bfloat16)
    cls_b_pad = jnp.full((1, LPAD), -1e9, jnp.float32).at[:, :L].set(0.0)

    return {
        "word_emb": nrm(next(keys), (VOCAB, H)),
        "pos_emb": nrm(next(keys), (MAXPOS, H)),
        "type_emb": nrm(next(keys), (NTYPE, H)),
        "emb_ln_g": jnp.ones((1, H), jnp.float32),
        "emb_ln_b": jnp.zeros((1, H), jnp.float32),
        # per-layer weights stacked on a leading (NLAYERS, ...) axis.
        # Matmul operands stored bf16 (MXU-native); biases & LN params stay f32.
        "wqkv": nrm(next(keys), (NLAYERS, H, 3 * H)).astype(jnp.bfloat16),
        "bqkv": jnp.zeros((NLAYERS, 1, 3 * H), jnp.float32),
        "wo": nrm(next(keys), (NLAYERS, H, H)).astype(jnp.bfloat16),
        "bo": jnp.zeros((NLAYERS, 1, H), jnp.float32),
        "ln1g": jnp.ones((NLAYERS, 1, H), jnp.float32),
        "ln1b": jnp.zeros((NLAYERS, 1, H), jnp.float32),
        "w1": nrm(next(keys), (NLAYERS, H, I)).astype(jnp.bfloat16),
        "b1": jnp.zeros((NLAYERS, 1, I), jnp.float32),
        "w2": nrm(next(keys), (NLAYERS, I, H)).astype(jnp.bfloat16),
        "b2": jnp.zeros((NLAYERS, 1, H), jnp.float32),
        "ln2g": jnp.ones((NLAYERS, 1, H), jnp.float32),
        "ln2b": jnp.zeros((NLAYERS, 1, H), jnp.float32),
        "cls_w": cls_w_pad,
        "cls_b": cls_b_pad,
    }


if __name__ == "__main__":
    key = jax.random.PRNGKey(0)
    k_params, k_ids = jax.random.split(key)
    params = init_params(k_params)

    input_ids = jax.random.randint(k_ids, (B, S), 0, VOCAB, dtype=jnp.int32)
    # second sequence is padded after position 96
    pos = jnp.arange(S)[None, :]
    attention_mask = jnp.where((jnp.arange(B)[:, None] == 1) & (pos >= 96), 0, 1).astype(jnp.int32)

    fwd = jax.jit(forward)
    probs = jax.block_until_ready(fwd(params, input_ids, attention_mask))

    assert probs.shape == (B, S, L) and probs.dtype == jnp.float32
    row_sums = jnp.sum(probs, axis=-1)
    assert bool(jnp.all(jnp.abs(row_sums - 1.0) < 1e-4))
    assert bool(jnp.all(probs >= 0.0))
    print("KERNEL_OK")
</pallas_src>

<mosaic_0001>
module attributes {stable_mosaic.version = 11 : i64} {
  func.func @fused_forward_kernel(%arg0: memref<2x128x128xf32, #tpu.memory_space<vmem>>, %arg1: memref<2x128xi32, #tpu.memory_space<vmem>>, %arg2: memref<128x128xf32, #tpu.memory_space<vmem>>, %arg3: memref<1x128xf32, #tpu.memory_space<vmem>>, %arg4: memref<1x128xf32, #tpu.memory_space<vmem>>, %arg5: memref<1x128xf32, #tpu.memory_space<vmem>>, %arg6: memref<2x128x384xbf16, #tpu.memory_space<vmem>>, %arg7: memref<2x1x384xf32, #tpu.memory_space<vmem>>, %arg8: memref<2x128x128xbf16, #tpu.memory_space<vmem>>, %arg9: memref<2x1x128xf32, #tpu.memory_space<vmem>>, %arg10: memref<2x1x128xf32, #tpu.memory_space<vmem>>, %arg11: memref<2x1x128xf32, #tpu.memory_space<vmem>>, %arg12: memref<2x128x256xbf16, #tpu.memory_space<vmem>>, %arg13: memref<2x1x256xf32, #tpu.memory_space<vmem>>, %arg14: memref<2x256x128xbf16, #tpu.memory_space<vmem>>, %arg15: memref<2x1x128xf32, #tpu.memory_space<vmem>>, %arg16: memref<2x1x128xf32, #tpu.memory_space<vmem>>, %arg17: memref<2x1x128xf32, #tpu.memory_space<vmem>>, %arg18: memref<128x128xbf16, #tpu.memory_space<vmem>>, %arg19: memref<1x128xf32, #tpu.memory_space<vmem>>, %arg20: memref<2x128x128xf32, #tpu.memory_space<vmem>>) attributes {dimension_semantics = [], scalar_prefetch = 0 : i64, scratch_operands = 0 : i64, tpu.core_type = #tpu.core_type<tc>} {
    %c0 = arith.constant 0 : index
    %c0_0 = arith.constant 0 : index
    %0 = vector.load %arg2[%c0, %c0_0] : memref<128x128xf32, #tpu.memory_space<vmem>>, vector<128x128xf32>
    %c0_1 = arith.constant 0 : index
    %c0_2 = arith.constant 0 : index
    %1 = vector.load %arg3[%c0_1, %c0_2] : memref<1x128xf32, #tpu.memory_space<vmem>>, vector<1x128xf32>
    %c0_3 = arith.constant 0 : index
    %c0_4 = arith.constant 0 : index
    %c0_5 = arith.constant 0 : index
    %2 = vector.load %arg0[%c0_3, %c0_4, %c0_5] : memref<2x128x128xf32, #tpu.memory_space<vmem>>, vector<1x128x128xf32>
    %3 = vector.shape_cast %2 : vector<1x128x128xf32> to vector<128x128xf32>
    %4 = arith.addf %3, %0 : vector<128x128xf32>
    %5 = vector.broadcast %1 : vector<1x128xf32> to vector<128x128xf32>
    %6 = arith.addf %4, %5 : vector<128x128xf32>
    %c0_6 = arith.constant 0 : index
    %c0_7 = arith.constant 0 : index
    %7 = vector.load %arg1[%c0_6, %c0_7] : memref<2x128xi32, #tpu.memory_space<vmem>>, vector<1x128xi32>
    %8 = arith.sitofp %7 : vector<1x128xi32> to vector<1x128xf32>
    %cst = arith.constant 1.000000e+00 : f32
    %9 = vector.broadcast %cst : f32 to vector<1x128xf32>
    %10 = arith.subf %9, %8 : vector<1x128xf32>
    %cst_8 = arith.constant -1.000000e+09 : f32
    %11 = vector.broadcast %cst_8 : f32 to vector<1x128xf32>
    %12 = arith.mulf %10, %11 : vector<1x128xf32>
    %c1 = arith.constant 1 : index
    %c0_9 = arith.constant 0 : index
    %c0_10 = arith.constant 0 : index
    %13 = vector.load %arg0[%c1, %c0_9, %c0_10] : memref<2x128x128xf32, #tpu.memory_space<vmem>>, vector<1x128x128xf32>
    %14 = vector.shape_cast %13 : vector<1x128x128xf32> to vector<128x128xf32>
    %15 = arith.addf %14, %0 : vector<128x128xf32>
    %16 = vector.broadcast %1 : vector<1x128xf32> to vector<128x128xf32>
    %17 = arith.addf %15, %16 : vector<128x128xf32>
    %c1_11 = arith.constant 1 : index
    %c0_12 = arith.constant 0 : index
    %18 = vector.load %arg1[%c1_11, %c0_12] : memref<2x128xi32, #tpu.memory_space<vmem>>, vector<1x128xi32>
    %19 = arith.sitofp %18 : vector<1x128xi32> to vector<1x128xf32>
    %cst_13 = arith.constant 1.000000e+00 : f32
    %20 = vector.broadcast %cst_13 : f32 to vector<1x128xf32>
    %21 = arith.subf %20, %19 : vector<1x128xf32>
    %cst_14 = arith.constant -1.000000e+09 : f32
    %22 = vector.broadcast %cst_14 : f32 to vector<1x128xf32>
    %23 = arith.mulf %21, %22 : vector<1x128xf32>
    %24 = tpu.concatenate %6, %17 in 0 : vector<128x128xf32>, vector<128x128xf32> -> vector<256x128xf32>
    %c0_15 = arith.constant 0 : index
    %c0_16 = arith.constant 0 : index
    %25 = vector.load %arg4[%c0_15, %c0_16] : memref<1x128xf32, #tpu.memory_space<vmem>>, vector<1x128xf32>
    %c0_17 = arith.constant 0 : index
    %c0_18 = arith.constant 0 : index
    %26 = vector.load %arg5[%c0_17, %c0_18] : memref<1x128xf32, #tpu.memory_space<vmem>>, vector<1x128xf32>
    %cst_19 = arith.constant dense<0.000000e+00> : vector<256xf32>
    %27 = vector.multi_reduction <add>, %24, %cst_19 [1] : vector<256x128xf32> to vector<256xf32>
    %28 = vector.shape_cast %27 : vector<256xf32> to vector<256x1xf32>
    %cst_20 = arith.constant 1.280000e+02 : f32
    %29 = vector.broadcast %cst_20 : f32 to vector<256x1xf32>
    %30 = arith.divf %28, %29 : vector<256x1xf32>
    %31 = arith.mulf %24, %24 : vector<256x128xf32>
    %cst_21 = arith.constant dense<0.000000e+00> : vector<256xf32>
    %32 = vector.multi_reduction <add>, %31, %cst_21 [1] : vector<256x128xf32> to vector<256xf32>
    %33 = vector.shape_cast %32 : vector<256xf32> to vector<256x1xf32>
    %cst_22 = arith.constant 1.280000e+02 : f32
    %34 = vector.broadcast %cst_22 : f32 to vector<256x1xf32>
    %35 = arith.divf %33, %34 : vector<256x1xf32>
    %36 = arith.mulf %30, %30 : vector<256x1xf32>
    %37 = arith.subf %35, %36 : vector<256x1xf32>
    %38 = vector.broadcast %30 : vector<256x1xf32> to vector<256x128xf32>
    %39 = arith.subf %24, %38 : vector<256x128xf32>
    %cst_23 = arith.constant 9.99999996E-13 : f32
    %40 = vector.broadcast %cst_23 : f32 to vector<256x1xf32>
    %41 = arith.addf %37, %40 : vector<256x1xf32>
    %42 = math.rsqrt %41 : vector<256x1xf32>
    %43 = vector.broadcast %42 : vector<256x1xf32> to vector<256x128xf32>
    %44 = arith.mulf %39, %43 : vector<256x128xf32>
    %45 = vector.broadcast %25 : vector<1x128xf32> to vector<256x128xf32>
    %46 = arith.mulf %44, %45 : vector<256x128xf32>
    %47 = vector.broadcast %26 : vector<1x128xf32> to vector<256x128xf32>
    %48 = arith.addf %46, %47 : vector<256x128xf32>
    %cst_24 = arith.constant 1.000000e+00 : bf16
    %49 = vector.broadcast %cst_24 : bf16 to vector<128x1xbf16>
    %50 = arith.truncf %48 : vector<256x128xf32> to vector<256x128xbf16>
    %c0_25 = arith.constant 0 : index
    %c0_26 = arith.constant 0 : index
    %c0_27 = arith.constant 0 : index
    %51 = vector.load %arg6[%c0_25, %c0_26, %c0_27] : memref<2x128x384xbf16, #tpu.memory_space<vmem>>, vector<1x128x384xbf16>
    %52 = vector.shape_cast %51 : vector<1x128x384xbf16> to vector<128x384xbf16>
    %cst_28 = arith.constant dense<0.000000e+00> : vector<256x384xf32>
    %53 = tpu.matmul %50, %52, %cst_28 {dimension_numbers = #tpu.dot_dimension_numbers<[1], [0], [0], [1], [0, 0, 1, 1], [], []>} : vector<256x128xbf16>, vector<128x384xbf16>, vector<256x384xf32> -> vector<256x384xf32>
    %c0_29 = arith.constant 0 : index
    %c0_30 = arith.constant 0 : index
    %c0_31 = arith.constant 0 : index
    %54 = vector.load %arg7[%c0_29, %c0_30, %c0_31] : memref<2x1x384xf32, #tpu.memory_space<vmem>>, vector<1x1x384xf32>
    %55 = vector.shape_cast %54 : vector<1x1x384xf32> to vector<1x384xf32>
    %56 = vector.broadcast %55 : vector<1x384xf32> to vector<256x384xf32>
    %57 = arith.addf %53, %56 : vector<256x384xf32>
    %58 = vector.extract_strided_slice %57 {offsets = [0, 0], sizes = [128, 384], strides = [1, 1]} : vector<256x384xf32> to vector<128x384xf32>
    %59 = vector.extract_strided_slice %58 {offsets = [0, 0], sizes = [128, 64], strides = [1, 1]} : vector<128x384xf32> to vector<128x64xf32>
    %60 = arith.truncf %59 : vector<128x64xf32> to vector<128x64xbf16>
    %61 = vector.extract_strided_slice %58 {offsets = [0, 128], sizes = [128, 64], strides = [1, 1]} : vector<128x384xf32> to vector<128x64xf32>
    %62 = arith.truncf %61 : vector<128x64xf32> to vector<128x64xbf16>
    %63 = vector.extract_strided_slice %58 {offsets = [0, 256], sizes = [128, 64], strides = [1, 1]} : vector<128x384xf32> to vector<128x64xf32>
    %64 = arith.truncf %63 : vector<128x64xf32> to vector<128x64xbf16>
    %cst_32 = arith.constant dense<0.000000e+00> : vector<128x128xf32>
    %65 = tpu.matmul %60, %62, %cst_32 {dimension_numbers = #tpu.dot_dimension_numbers<[1], [1], [0], [0], [0, 0, 1, 0], [], []>} : vector<128x64xbf16>, vector<128x64xbf16>, vector<128x128xf32> -> vector<128x128xf32>
    %cst_33 = arith.constant 1.250000e-01 : f32
    %66 = vector.broadcast %cst_33 : f32 to vector<128x128xf32>
    %67 = arith.mulf %65, %66 : vector<128x128xf32>
    %68 = vector.broadcast %12 : vector<1x128xf32> to vector<128x128xf32>
    %69 = arith.addf %67, %68 : vector<128x128xf32>
    %cst_34 = arith.constant dense<0xFF800000> : vector<128xf32>
    %70 = vector.multi_reduction <maximumf>, %69, %cst_34 [1] : vector<128x128xf32> to vector<128xf32>
    %71 = vector.shape_cast %70 : vector<128xf32> to vector<128x1xf32>
    %72 = vector.broadcast %71 : vector<128x1xf32> to vector<128x128xf32>
    %73 = arith.subf %69, %72 : vector<128x128xf32>
    %74 = math.exp %73 : vector<128x128xf32>
    %75 = tpu.concatenate %64, %49 in 1 : vector<128x64xbf16>, vector<128x1xbf16> -> vector<128x65xbf16>
    %76 = arith.truncf %74 : vector<128x128xf32> to vector<128x128xbf16>
    %cst_35 = arith.constant dense<0.000000e+00> : vector<128x65xf32>
    %77 = tpu.matmul %76, %75, %cst_35 {dimension_numbers = #tpu.dot_dimension_numbers<[1], [0], [0], [1], [0, 0, 1, 1], [], []>} : vector<128x128xbf16>, vector<128x65xbf16>, vector<128x65xf32> -> vector<128x65xf32>
    %78 = vector.extract_strided_slice %77 {offsets = [0, 0], sizes = [128, 64], strides = [1, 1]} : vector<128x65xf32> to vector<128x64xf32>
    %79 = vector.extract_strided_slice %77 {offsets = [0, 64], sizes = [128, 1], strides = [1, 1]} : vector<128x65xf32> to vector<128x1xf32>
    %80 = tpu.reciprocal %79 {approx = true} : vector<128x1xf32> -> vector<128x1xf32>
    %81 = vector.broadcast %80 : vector<128x1xf32> to vector<128x64xf32>
    %82 = arith.mulf %78, %81 : vector<128x64xf32>
    %83 = vector.extract_strided_slice %58 {offsets = [0, 64], sizes = [128, 64], strides = [1, 1]} : vector<128x384xf32> to vector<128x64xf32>
    %84 = arith.truncf %83 : vector<128x64xf32> to vector<128x64xbf16>
    %85 = vector.extract_strided_slice %58 {offsets = [0, 192], sizes = [128, 64], strides = [1, 1]} : vector<128x384xf32> to vector<128x64xf32>
    %86 = arith.truncf %85 : vector<128x64xf32> to vector<128x64xbf16>
    %87 = vector.extract_strided_slice %58 {offsets = [0, 320], sizes = [128, 64], strides = [1, 1]} : vector<128x384xf32> to vector<128x64xf32>
    %88 = arith.truncf %87 : vector<128x64xf32> to vector<128x64xbf16>
    %cst_36 = arith.constant dense<0.000000e+00> : vector<128x128xf32>
    %89 = tpu.matmul %84, %86, %cst_36 {dimension_numbers = #tpu.dot_dimension_numbers<[1], [1], [0], [0], [0, 0, 1, 0], [], []>} : vector<128x64xbf16>, vector<128x64xbf16>, vector<128x128xf32> -> vector<128x128xf32>
    %cst_37 = arith.constant 1.250000e-01 : f32
    %90 = vector.broadcast %cst_37 : f32 to vector<128x128xf32>
    %91 = arith.mulf %89, %90 : vector<128x128xf32>
    %92 = vector.broadcast %12 : vector<1x128xf32> to vector<128x128xf32>
    %93 = arith.addf %91, %92 : vector<128x128xf32>
    %cst_38 = arith.constant dense<0xFF800000> : vector<128xf32>
    %94 = vector.multi_reduction <maximumf>, %93, %cst_38 [1] : vector<128x128xf32> to vector<128xf32>
    %95 = vector.shape_cast %94 : vector<128xf32> to vector<128x1xf32>
    %96 = vector.broadcast %95 : vector<128x1xf32> to vector<128x128xf32>
    %97 = arith.subf %93, %96 : vector<128x128xf32>
    %98 = math.exp %97 : vector<128x128xf32>
    %99 = tpu.concatenate %88, %49 in 1 : vector<128x64xbf16>, vector<128x1xbf16> -> vector<128x65xbf16>
    %100 = arith.truncf %98 : vector<128x128xf32> to vector<128x128xbf16>
    %cst_39 = arith.constant dense<0.000000e+00> : vector<128x65xf32>
    %101 = tpu.matmul %100, %99, %cst_39 {dimension_numbers = #tpu.dot_dimension_numbers<[1], [0], [0], [1], [0, 0, 1, 1], [], []>} : vector<128x128xbf16>, vector<128x65xbf16>, vector<128x65xf32> -> vector<128x65xf32>
    %102 = vector.extract_strided_slice %101 {offsets = [0, 0], sizes = [128, 64], strides = [1, 1]} : vector<128x65xf32> to vector<128x64xf32>
    %103 = vector.extract_strided_slice %101 {offsets = [0, 64], sizes = [128, 1], strides = [1, 1]} : vector<128x65xf32> to vector<128x1xf32>
    %104 = tpu.reciprocal %103 {approx = true} : vector<128x1xf32> -> vector<128x1xf32>
    %105 = vector.broadcast %104 : vector<128x1xf32> to vector<128x64xf32>
    %106 = arith.mulf %102, %105 : vector<128x64xf32>
    %107 = tpu.concatenate %82, %106 in 1 : vector<128x64xf32>, vector<128x64xf32> -> vector<128x128xf32>
    %108 = vector.extract_strided_slice %57 {offsets = [128, 0], sizes = [128, 384], strides = [1, 1]} : vector<256x384xf32> to vector<128x384xf32>
    %109 = vector.extract_strided_slice %108 {offsets = [0, 0], sizes = [128, 64], strides = [1, 1]} : vector<128x384xf32> to vector<128x64xf32>
    %110 = arith.truncf %109 : vector<128x64xf32> to vector<128x64xbf16>
    %111 = vector.extract_strided_slice %108 {offsets = [0, 128], sizes = [128, 64], strides = [1, 1]} : vector<128x384xf32> to vector<128x64xf32>
    %112 = arith.truncf %111 : vector<128x64xf32> to vector<128x64xbf16>
    %113 = vector.extract_strided_slice %108 {offsets = [0, 256], sizes = [128, 64], strides = [1, 1]} : vector<128x384xf32> to vector<128x64xf32>
    %114 = arith.truncf %113 : vector<128x64xf32> to vector<128x64xbf16>
    %cst_40 = arith.constant dense<0.000000e+00> : vector<128x128xf32>
    %115 = tpu.matmul %110, %112, %cst_40 {dimension_numbers = #tpu.dot_dimension_numbers<[1], [1], [0], [0], [0, 0, 1, 0], [], []>} : vector<128x64xbf16>, vector<128x64xbf16>, vector<128x128xf32> -> vector<128x128xf32>
    %cst_41 = arith.constant 1.250000e-01 : f32
    %116 = vector.broadcast %cst_41 : f32 to vector<128x128xf32>
    %117 = arith.mulf %115, %116 : vector<128x128xf32>
    %118 = vector.broadcast %23 : vector<1x128xf32> to vector<128x128xf32>
    %119 = arith.addf %117, %118 : vector<128x128xf32>
    %cst_42 = arith.constant dense<0xFF800000> : vector<128xf32>
    %120 = vector.multi_reduction <maximumf>, %119, %cst_42 [1] : vector<128x128xf32> to vector<128xf32>
    %121 = vector.shape_cast %120 : vector<128xf32> to vector<128x1xf32>
    %122 = vector.broadcast %121 : vector<128x1xf32> to vector<128x128xf32>
    %123 = arith.subf %119, %122 : vector<128x128xf32>
    %124 = math.exp %123 : vector<128x128xf32>
    %125 = tpu.concatenate %114, %49 in 1 : vector<128x64xbf16>, vector<128x1xbf16> -> vector<128x65xbf16>
    %126 = arith.truncf %124 : vector<128x128xf32> to vector<128x128xbf16>
    %cst_43 = arith.constant dense<0.000000e+00> : vector<128x65xf32>
    %127 = tpu.matmul %126, %125, %cst_43 {dimension_numbers = #tpu.dot_dimension_numbers<[1], [0], [0], [1], [0, 0, 1, 1], [], []>} : vector<128x128xbf16>, vector<128x65xbf16>, vector<128x65xf32> -> vector<128x65xf32>
    %128 = vector.extract_strided_slice %127 {offsets = [0, 0], sizes = [128, 64], strides = [1, 1]} : vector<128x65xf32> to vector<128x64xf32>
    %129 = vector.extract_strided_slice %127 {offsets = [0, 64], sizes = [128, 1], strides = [1, 1]} : vector<128x65xf32> to vector<128x1xf32>
    %130 = tpu.reciprocal %129 {approx = true} : vector<128x1xf32> -> vector<128x1xf32>
    %131 = vector.broadcast %130 : vector<128x1xf32> to vector<128x64xf32>
    %132 = arith.mulf %128, %131 : vector<128x64xf32>
    %133 = vector.extract_strided_slice %108 {offsets = [0, 64], sizes = [128, 64], strides = [1, 1]} : vector<128x384xf32> to vector<128x64xf32>
    %134 = arith.truncf %133 : vector<128x64xf32> to vector<128x64xbf16>
    %135 = vector.extract_strided_slice %108 {offsets = [0, 192], sizes = [128, 64], strides = [1, 1]} : vector<128x384xf32> to vector<128x64xf32>
    %136 = arith.truncf %135 : vector<128x64xf32> to vector<128x64xbf16>
    %137 = vector.extract_strided_slice %108 {offsets = [0, 320], sizes = [128, 64], strides = [1, 1]} : vector<128x384xf32> to vector<128x64xf32>
    %138 = arith.truncf %137 : vector<128x64xf32> to vector<128x64xbf16>
    %cst_44 = arith.constant dense<0.000000e+00> : vector<128x128xf32>
    %139 = tpu.matmul %134, %136, %cst_44 {dimension_numbers = #tpu.dot_dimension_numbers<[1], [1], [0], [0], [0, 0, 1, 0], [], []>} : vector<128x64xbf16>, vector<128x64xbf16>, vector<128x128xf32> -> vector<128x128xf32>
    %cst_45 = arith.constant 1.250000e-01 : f32
    %140 = vector.broadcast %cst_45 : f32 to vector<128x128xf32>
    %141 = arith.mulf %139, %140 : vector<128x128xf32>
    %142 = vector.broadcast %23 : vector<1x128xf32> to vector<128x128xf32>
    %143 = arith.addf %141, %142 : vector<128x128xf32>
    %cst_46 = arith.constant dense<0xFF800000> : vector<128xf32>
    %144 = vector.multi_reduction <maximumf>, %143, %cst_46 [1] : vector<128x128xf32> to vector<128xf32>
    %145 = vector.shape_cast %144 : vector<128xf32> to vector<128x1xf32>
    %146 = vector.broadcast %145 : vector<128x1xf32> to vector<128x128xf32>
    %147 = arith.subf %143, %146 : vector<128x128xf32>
    %148 = math.exp %147 : vector<128x128xf32>
    %149 = tpu.concatenate %138, %49 in 1 : vector<128x64xbf16>, vector<128x1xbf16> -> vector<128x65xbf16>
    %150 = arith.truncf %148 : vector<128x128xf32> to vector<128x128xbf16>
    %cst_47 = arith.constant dense<0.000000e+00> : vector<128x65xf32>
    %151 = tpu.matmul %150, %149, %cst_47 {dimension_numbers = #tpu.dot_dimension_numbers<[1], [0], [0], [1], [0, 0, 1, 1], [], []>} : vector<128x128xbf16>, vector<128x65xbf16>, vector<128x65xf32> -> vector<128x65xf32>
    %152 = vector.extract_strided_slice %151 {offsets = [0, 0], sizes = [128, 64], strides = [1, 1]} : vector<128x65xf32> to vector<128x64xf32>
    %153 = vector.extract_strided_slice %151 {offsets = [0, 64], sizes = [128, 1], strides = [1, 1]} : vector<128x65xf32> to vector<128x1xf32>
    %154 = tpu.reciprocal %153 {approx = true} : vector<128x1xf32> -> vector<128x1xf32>
    %155 = vector.broadcast %154 : vector<128x1xf32> to vector<128x64xf32>
    %156 = arith.mulf %152, %155 : vector<128x64xf32>
    %157 = tpu.concatenate %132, %156 in 1 : vector<128x64xf32>, vector<128x64xf32> -> vector<128x128xf32>
    %158 = tpu.concatenate %107, %157 in 0 : vector<128x128xf32>, vector<128x128xf32> -> vector<256x128xf32>
    %159 = arith.truncf %158 : vector<256x128xf32> to vector<256x128xbf16>
    %c0_48 = arith.constant 0 : index
    %c0_49 = arith.constant 0 : index
    %c0_50 = arith.constant 0 : index
    %160 = vector.load %arg8[%c0_48, %c0_49, %c0_50] : memref<2x128x128xbf16, #tpu.memory_space<vmem>>, vector<1x128x128xbf16>
    %161 = vector.shape_cast %160 : vector<1x128x128xbf16> to vector<128x128xbf16>
    %cst_51 = arith.constant dense<0.000000e+00> : vector<256x128xf32>
    %162 = tpu.matmul %159, %161, %cst_51 {dimension_numbers = #tpu.dot_dimension_numbers<[1], [0], [0], [1], [0, 0, 1, 1], [], []>} : vector<256x128xbf16>, vector<128x128xbf16>, vector<256x128xf32> -> vector<256x128xf32>
    %c0_52 = arith.constant 0 : index
    %c0_53 = arith.constant 0 : index
    %c0_54 = arith.constant 0 : index
    %163 = vector.load %arg9[%c0_52, %c0_53, %c0_54] : memref<2x1x128xf32, #tpu.memory_space<vmem>>, vector<1x1x128xf32>
    %164 = vector.shape_cast %163 : vector<1x1x128xf32> to vector<1x128xf32>
    %165 = vector.broadcast %164 : vector<1x128xf32> to vector<256x128xf32>
    %166 = arith.addf %162, %165 : vector<256x128xf32>
    %167 = arith.addf %166, %48 : vector<256x128xf32>
    %c0_55 = arith.constant 0 : index
    %c0_56 = arith.constant 0 : index
    %c0_57 = arith.constant 0 : index
    %168 = vector.load %arg10[%c0_55, %c0_56, %c0_57] : memref<2x1x128xf32, #tpu.memory_space<vmem>>, vector<1x1x128xf32>
    %169 = vector.shape_cast %168 : vector<1x1x128xf32> to vector<1x128xf32>
    %c0_58 = arith.constant 0 : index
    %c0_59 = arith.constant 0 : index
    %c0_60 = arith.constant 0 : index
    %170 = vector.load %arg11[%c0_58, %c0_59, %c0_60] : memref<2x1x128xf32, #tpu.memory_space<vmem>>, vector<1x1x128xf32>
    %171 = vector.shape_cast %170 : vector<1x1x128xf32> to vector<1x128xf32>
    %cst_61 = arith.constant dense<0.000000e+00> : vector<256xf32>
    %172 = vector.multi_reduction <add>, %167, %cst_61 [1] : vector<256x128xf32> to vector<256xf32>
    %173 = vector.shape_cast %172 : vector<256xf32> to vector<256x1xf32>
    %cst_62 = arith.constant 1.280000e+02 : f32
    %174 = vector.broadcast %cst_62 : f32 to vector<256x1xf32>
    %175 = arith.divf %173, %174 : vector<256x1xf32>
    %176 = arith.mulf %167, %167 : vector<256x128xf32>
    %cst_63 = arith.constant dense<0.000000e+00> : vector<256xf32>
    %177 = vector.multi_reduction <add>, %176, %cst_63 [1] : vector<256x128xf32> to vector<256xf32>
    %178 = vector.shape_cast %177 : vector<256xf32> to vector<256x1xf32>
    %cst_64 = arith.constant 1.280000e+02 : f32
    %179 = vector.broadcast %cst_64 : f32 to vector<256x1xf32>
    %180 = arith.divf %178, %179 : vector<256x1xf32>
    %181 = arith.mulf %175, %175 : vector<256x1xf32>
    %182 = arith.subf %180, %181 : vector<256x1xf32>
    %183 = vector.broadcast %175 : vector<256x1xf32> to vector<256x128xf32>
    %184 = arith.subf %167, %183 : vector<256x128xf32>
    %cst_65 = arith.constant 9.99999996E-13 : f32
    %185 = vector.broadcast %cst_65 : f32 to vector<256x1xf32>
    %186 = arith.addf %182, %185 : vector<256x1xf32>
    %187 = math.rsqrt %186 : vector<256x1xf32>
    %188 = vector.broadcast %187 : vector<256x1xf32> to vector<256x128xf32>
    %189 = arith.mulf %184, %188 : vector<256x128xf32>
    %190 = vector.broadcast %169 : vector<1x128xf32> to vector<256x128xf32>
    %191 = arith.mulf %189, %190 : vector<256x128xf32>
    %192 = vector.broadcast %171 : vector<1x128xf32> to vector<256x128xf32>
    %193 = arith.addf %191, %192 : vector<256x128xf32>
    %194 = arith.truncf %193 : vector<256x128xf32> to vector<256x128xbf16>
    %c0_66 = arith.constant 0 : index
    %c0_67 = arith.constant 0 : index
    %c0_68 = arith.constant 0 : index
    %195 = vector.load %arg12[%c0_66, %c0_67, %c0_68] : memref<2x128x256xbf16, #tpu.memory_space<vmem>>, vector<1x128x256xbf16>
    %196 = vector.shape_cast %195 : vector<1x128x256xbf16> to vector<128x256xbf16>
    %cst_69 = arith.constant dense<0.000000e+00> : vector<256x256xf32>
    %197 = tpu.matmul %194, %196, %cst_69 {dimension_numbers = #tpu.dot_dimension_numbers<[1], [0], [0], [1], [0, 0, 1, 1], [], []>} : vector<256x128xbf16>, vector<128x256xbf16>, vector<256x256xf32> -> vector<256x256xf32>
    %c0_70 = arith.constant 0 : index
    %c0_71 = arith.constant 0 : index
    %c0_72 = arith.constant 0 : index
    %198 = vector.load %arg13[%c0_70, %c0_71, %c0_72] : memref<2x1x256xf32, #tpu.memory_space<vmem>>, vector<1x1x256xf32>
    %199 = vector.shape_cast %198 : vector<1x1x256xf32> to vector<1x256xf32>
    %200 = vector.broadcast %199 : vector<1x256xf32> to vector<256x256xf32>
    %201 = arith.addf %197, %200 : vector<256x256xf32>
    %202 = arith.mulf %201, %201 : vector<256x256xf32>
    %203 = arith.mulf %201, %202 : vector<256x256xf32>
    %cst_73 = arith.constant 4.471500e-02 : f32
    %204 = vector.broadcast %cst_73 : f32 to vector<256x256xf32>
    %205 = arith.mulf %204, %203 : vector<256x256xf32>
    %206 = arith.addf %201, %205 : vector<256x256xf32>
    %cst_74 = arith.constant 0.797884583 : f32
    %207 = vector.broadcast %cst_74 : f32 to vector<256x256xf32>
    %208 = arith.mulf %207, %206 : vector<256x256xf32>
    %209 = math.tanh %208 : vector<256x256xf32>
    %cst_75 = arith.constant 1.000000e+00 : f32
    %210 = vector.broadcast %cst_75 : f32 to vector<256x256xf32>
    %211 = arith.addf %210, %209 : vector<256x256xf32>
    %cst_76 = arith.constant 5.000000e-01 : f32
    %212 = vector.broadcast %cst_76 : f32 to vector<256x256xf32>
    %213 = arith.mulf %212, %211 : vector<256x256xf32>
    %214 = arith.mulf %201, %213 : vector<256x256xf32>
    %215 = arith.truncf %214 : vector<256x256xf32> to vector<256x256xbf16>
    %c0_77 = arith.constant 0 : index
    %c0_78 = arith.constant 0 : index
    %c0_79 = arith.constant 0 : index
    %216 = vector.load %arg14[%c0_77, %c0_78, %c0_79] : memref<2x256x128xbf16, #tpu.memory_space<vmem>>, vector<1x256x128xbf16>
    %217 = vector.shape_cast %216 : vector<1x256x128xbf16> to vector<256x128xbf16>
    %cst_80 = arith.constant dense<0.000000e+00> : vector<256x128xf32>
    %218 = tpu.matmul %215, %217, %cst_80 {dimension_numbers = #tpu.dot_dimension_numbers<[1], [0], [0], [1], [0, 0, 1, 1], [], []>} : vector<256x256xbf16>, vector<256x128xbf16>, vector<256x128xf32> -> vector<256x128xf32>
    %c0_81 = arith.constant 0 : index
    %c0_82 = arith.constant 0 : index
    %c0_83 = arith.constant 0 : index
    %219 = vector.load %arg15[%c0_81, %c0_82, %c0_83] : memref<2x1x128xf32, #tpu.memory_space<vmem>>, vector<1x1x128xf32>
    %220 = vector.shape_cast %219 : vector<1x1x128xf32> to vector<1x128xf32>
    %221 = vector.broadcast %220 : vector<1x128xf32> to vector<256x128xf32>
    %222 = arith.addf %218, %221 : vector<256x128xf32>
    %223 = arith.addf %222, %193 : vector<256x128xf32>
    %c0_84 = arith.constant 0 : index
    %c0_85 = arith.constant 0 : index
    %c0_86 = arith.constant 0 : index
    %224 = vector.load %arg16[%c0_84, %c0_85, %c0_86] : memref<2x1x128xf32, #tpu.memory_space<vmem>>, vector<1x1x128xf32>
    %225 = vector.shape_cast %224 : vector<1x1x128xf32> to vector<1x128xf32>
    %c0_87 = arith.constant 0 : index
    %c0_88 = arith.constant 0 : index
    %c0_89 = arith.constant 0 : index
    %226 = vector.load %arg17[%c0_87, %c0_88, %c0_89] : memref<2x1x128xf32, #tpu.memory_space<vmem>>, vector<1x1x128xf32>
    %227 = vector.shape_cast %226 : vector<1x1x128xf32> to vector<1x128xf32>
    %cst_90 = arith.constant dense<0.000000e+00> : vector<256xf32>
    %228 = vector.multi_reduction <add>, %223, %cst_90 [1] : vector<256x128xf32> to vector<256xf32>
    %229 = vector.shape_cast %228 : vector<256xf32> to vector<256x1xf32>
    %cst_91 = arith.constant 1.280000e+02 : f32
    %230 = vector.broadcast %cst_91 : f32 to vector<256x1xf32>
    %231 = arith.divf %229, %230 : vector<256x1xf32>
    %232 = arith.mulf %223, %223 : vector<256x128xf32>
    %cst_92 = arith.constant dense<0.000000e+00> : vector<256xf32>
    %233 = vector.multi_reduction <add>, %232, %cst_92 [1] : vector<256x128xf32> to vector<256xf32>
    %234 = vector.shape_cast %233 : vector<256xf32> to vector<256x1xf32>
    %cst_93 = arith.constant 1.280000e+02 : f32
    %235 = vector.broadcast %cst_93 : f32 to vector<256x1xf32>
    %236 = arith.divf %234, %235 : vector<256x1xf32>
    %237 = arith.mulf %231, %231 : vector<256x1xf32>
    %238 = arith.subf %236, %237 : vector<256x1xf32>
    %239 = vector.broadcast %231 : vector<256x1xf32> to vector<256x128xf32>
    %240 = arith.subf %223, %239 : vector<256x128xf32>
    %cst_94 = arith.constant 9.99999996E-13 : f32
    %241 = vector.broadcast %cst_94 : f32 to vector<256x1xf32>
    %242 = arith.addf %238, %241 : vector<256x1xf32>
    %243 = math.rsqrt %242 : vector<256x1xf32>
    %244 = vector.broadcast %243 : vector<256x1xf32> to vector<256x128xf32>
    %245 = arith.mulf %240, %244 : vector<256x128xf32>
    %246 = vector.broadcast %225 : vector<1x128xf32> to vector<256x128xf32>
    %247 = arith.mulf %245, %246 : vector<256x128xf32>
    %248 = vector.broadcast %227 : vector<1x128xf32> to vector<256x128xf32>
    %249 = arith.addf %247, %248 : vector<256x128xf32>
    %250 = arith.truncf %249 : vector<256x128xf32> to vector<256x128xbf16>
    %c1_95 = arith.constant 1 : index
    %c0_96 = arith.constant 0 : index
    %c0_97 = arith.constant 0 : index
    %251 = vector.load %arg6[%c1_95, %c0_96, %c0_97] : memref<2x128x384xbf16, #tpu.memory_space<vmem>>, vector<1x128x384xbf16>
    %252 = vector.shape_cast %251 : vector<1x128x384xbf16> to vector<128x384xbf16>
    %cst_98 = arith.constant dense<0.000000e+00> : vector<256x384xf32>
    %253 = tpu.matmul %250, %252, %cst_98 {dimension_numbers = #tpu.dot_dimension_numbers<[1], [0], [0], [1], [0, 0, 1, 1], [], []>} : vector<256x128xbf16>, vector<128x384xbf16>, vector<256x384xf32> -> vector<256x384xf32>
    %c1_99 = arith.constant 1 : index
    %c0_100 = arith.constant 0 : index
    %c0_101 = arith.constant 0 : index
    %254 = vector.load %arg7[%c1_99, %c0_100, %c0_101] : memref<2x1x384xf32, #tpu.memory_space<vmem>>, vector<1x1x384xf32>
    %255 = vector.shape_cast %254 : vector<1x1x384xf32> to vector<1x384xf32>
    %256 = vector.broadcast %255 : vector<1x384xf32> to vector<256x384xf32>
    %257 = arith.addf %253, %256 : vector<256x384xf32>
    %258 = vector.extract_strided_slice %257 {offsets = [0, 0], sizes = [128, 384], strides = [1, 1]} : vector<256x384xf32> to vector<128x384xf32>
    %259 = vector.extract_strided_slice %258 {offsets = [0, 0], sizes = [128, 64], strides = [1, 1]} : vector<128x384xf32> to vector<128x64xf32>
    %260 = arith.truncf %259 : vector<128x64xf32> to vector<128x64xbf16>
    %261 = vector.extract_strided_slice %258 {offsets = [0, 128], sizes = [128, 64], strides = [1, 1]} : vector<128x384xf32> to vector<128x64xf32>
    %262 = arith.truncf %261 : vector<128x64xf32> to vector<128x64xbf16>
    %263 = vector.extract_strided_slice %258 {offsets = [0, 256], sizes = [128, 64], strides = [1, 1]} : vector<128x384xf32> to vector<128x64xf32>
    %264 = arith.truncf %263 : vector<128x64xf32> to vector<128x64xbf16>
    %cst_102 = arith.constant dense<0.000000e+00> : vector<128x128xf32>
    %265 = tpu.matmul %260, %262, %cst_102 {dimension_numbers = #tpu.dot_dimension_numbers<[1], [1], [0], [0], [0, 0, 1, 0], [], []>} : vector<128x64xbf16>, vector<128x64xbf16>, vector<128x128xf32> -> vector<128x128xf32>
    %cst_103 = arith.constant 1.250000e-01 : f32
    %266 = vector.broadcast %cst_103 : f32 to vector<128x128xf32>
    %267 = arith.mulf %265, %266 : vector<128x128xf32>
    %268 = vector.broadcast %12 : vector<1x128xf32> to vector<128x128xf32>
    %269 = arith.addf %267, %268 : vector<128x128xf32>
    %cst_104 = arith.constant dense<0xFF800000> : vector<128xf32>
    %270 = vector.multi_reduction <maximumf>, %269, %cst_104 [1] : vector<128x128xf32> to vector<128xf32>
    %271 = vector.shape_cast %270 : vector<128xf32> to vector<128x1xf32>
    %272 = vector.broadcast %271 : vector<128x1xf32> to vector<128x128xf32>
    %273 = arith.subf %269, %272 : vector<128x128xf32>
    %274 = math.exp %273 : vector<128x128xf32>
    %275 = tpu.concatenate %264, %49 in 1 : vector<128x64xbf16>, vector<128x1xbf16> -> vector<128x65xbf16>
    %276 = arith.truncf %274 : vector<128x128xf32> to vector<128x128xbf16>
    %cst_105 = arith.constant dense<0.000000e+00> : vector<128x65xf32>
    %277 = tpu.matmul %276, %275, %cst_105 {dimension_numbers = #tpu.dot_dimension_numbers<[1], [0], [0], [1], [0, 0, 1, 1], [], []>} : vector<128x128xbf16>, vector<128x65xbf16>, vector<128x65xf32> -> vector<128x65xf32>
    %278 = vector.extract_strided_slice %277 {offsets = [0, 0], sizes = [128, 64], strides = [1, 1]} : vector<128x65xf32> to vector<128x64xf32>
    %279 = vector.extract_strided_slice %277 {offsets = [0, 64], sizes = [128, 1], strides = [1, 1]} : vector<128x65xf32> to vector<128x1xf32>
    %280 = tpu.reciprocal %279 {approx = true} : vector<128x1xf32> -> vector<128x1xf32>
    %281 = vector.broadcast %280 : vector<128x1xf32> to vector<128x64xf32>
    %282 = arith.mulf %278, %281 : vector<128x64xf32>
    %283 = vector.extract_strided_slice %258 {offsets = [0, 64], sizes = [128, 64], strides = [1, 1]} : vector<128x384xf32> to vector<128x64xf32>
    %284 = arith.truncf %283 : vector<128x64xf32> to vector<128x64xbf16>
    %285 = vector.extract_strided_slice %258 {offsets = [0, 192], sizes = [128, 64], strides = [1, 1]} : vector<128x384xf32> to vector<128x64xf32>
    %286 = arith.truncf %285 : vector<128x64xf32> to vector<128x64xbf16>
    %287 = vector.extract_strided_slice %258 {offsets = [0, 320], sizes = [128, 64], strides = [1, 1]} : vector<128x384xf32> to vector<128x64xf32>
    %288 = arith.truncf %287 : vector<128x64xf32> to vector<128x64xbf16>
    %cst_106 = arith.constant dense<0.000000e+00> : vector<128x128xf32>
    %289 = tpu.matmul %284, %286, %cst_106 {dimension_numbers = #tpu.dot_dimension_numbers<[1], [1], [0], [0], [0, 0, 1, 0], [], []>} : vector<128x64xbf16>, vector<128x64xbf16>, vector<128x128xf32> -> vector<128x128xf32>
    %cst_107 = arith.constant 1.250000e-01 : f32
    %290 = vector.broadcast %cst_107 : f32 to vector<128x128xf32>
    %291 = arith.mulf %289, %290 : vector<128x128xf32>
    %292 = vector.broadcast %12 : vector<1x128xf32> to vector<128x128xf32>
    %293 = arith.addf %291, %292 : vector<128x128xf32>
    %cst_108 = arith.constant dense<0xFF800000> : vector<128xf32>
    %294 = vector.multi_reduction <maximumf>, %293, %cst_108 [1] : vector<128x128xf32> to vector<128xf32>
    %295 = vector.shape_cast %294 : vector<128xf32> to vector<128x1xf32>
    %296 = vector.broadcast %295 : vector<128x1xf32> to vector<128x128xf32>
    %297 = arith.subf %293, %296 : vector<128x128xf32>
    %298 = math.exp %297 : vector<128x128xf32>
    %299 = tpu.concatenate %288, %49 in 1 : vector<128x64xbf16>, vector<128x1xbf16> -> vector<128x65xbf16>
    %300 = arith.truncf %298 : vector<128x128xf32> to vector<128x128xbf16>
    %cst_109 = arith.constant dense<0.000000e+00> : vector<128x65xf32>
    %301 = tpu.matmul %300, %299, %cst_109 {dimension_numbers = #tpu.dot_dimension_numbers<[1], [0], [0], [1], [0, 0, 1, 1], [], []>} : vector<128x128xbf16>, vector<128x65xbf16>, vector<128x65xf32> -> vector<128x65xf32>
    %302 = vector.extract_strided_slice %301 {offsets = [0, 0], sizes = [128, 64], strides = [1, 1]} : vector<128x65xf32> to vector<128x64xf32>
    %303 = vector.extract_strided_slice %301 {offsets = [0, 64], sizes = [128, 1], strides = [1, 1]} : vector<128x65xf32> to vector<128x1xf32>
    %304 = tpu.reciprocal %303 {approx = true} : vector<128x1xf32> -> vector<128x1xf32>
    %305 = vector.broadcast %304 : vector<128x1xf32> to vector<128x64xf32>
    %306 = arith.mulf %302, %305 : vector<128x64xf32>
    %307 = tpu.concatenate %282, %306 in 1 : vector<128x64xf32>, vector<128x64xf32> -> vector<128x128xf32>
    %308 = vector.extract_strided_slice %257 {offsets = [128, 0], sizes = [128, 384], strides = [1, 1]} : vector<256x384xf32> to vector<128x384xf32>
    %309 = vector.extract_strided_slice %308 {offsets = [0, 0], sizes = [128, 64], strides = [1, 1]} : vector<128x384xf32> to vector<128x64xf32>
    %310 = arith.truncf %309 : vector<128x64xf32> to vector<128x64xbf16>
    %311 = vector.extract_strided_slice %308 {offsets = [0, 128], sizes = [128, 64], strides = [1, 1]} : vector<128x384xf32> to vector<128x64xf32>
    %312 = arith.truncf %311 : vector<128x64xf32> to vector<128x64xbf16>
    %313 = vector.extract_strided_slice %308 {offsets = [0, 256], sizes = [128, 64], strides = [1, 1]} : vector<128x384xf32> to vector<128x64xf32>
    %314 = arith.truncf %313 : vector<128x64xf32> to vector<128x64xbf16>
    %cst_110 = arith.constant dense<0.000000e+00> : vector<128x128xf32>
    %315 = tpu.matmul %310, %312, %cst_110 {dimension_numbers = #tpu.dot_dimension_numbers<[1], [1], [0], [0], [0, 0, 1, 0], [], []>} : vector<128x64xbf16>, vector<128x64xbf16>, vector<128x128xf32> -> vector<128x128xf32>
    %cst_111 = arith.constant 1.250000e-01 : f32
    %316 = vector.broadcast %cst_111 : f32 to vector<128x128xf32>
    %317 = arith.mulf %315, %316 : vector<128x128xf32>
    %318 = vector.broadcast %23 : vector<1x128xf32> to vector<128x128xf32>
    %319 = arith.addf %317, %318 : vector<128x128xf32>
    %cst_112 = arith.constant dense<0xFF800000> : vector<128xf32>
    %320 = vector.multi_reduction <maximumf>, %319, %cst_112 [1] : vector<128x128xf32> to vector<128xf32>
    %321 = vector.shape_cast %320 : vector<128xf32> to vector<128x1xf32>
    %322 = vector.broadcast %321 : vector<128x1xf32> to vector<128x128xf32>
    %323 = arith.subf %319, %322 : vector<128x128xf32>
    %324 = math.exp %323 : vector<128x128xf32>
    %325 = tpu.concatenate %314, %49 in 1 : vector<128x64xbf16>, vector<128x1xbf16> -> vector<128x65xbf16>
    %326 = arith.truncf %324 : vector<128x128xf32> to vector<128x128xbf16>
    %cst_113 = arith.constant dense<0.000000e+00> : vector<128x65xf32>
    %327 = tpu.matmul %326, %325, %cst_113 {dimension_numbers = #tpu.dot_dimension_numbers<[1], [0], [0], [1], [0, 0, 1, 1], [], []>} : vector<128x128xbf16>, vector<128x65xbf16>, vector<128x65xf32> -> vector<128x65xf32>
    %328 = vector.extract_strided_slice %327 {offsets = [0, 0], sizes = [128, 64], strides = [1, 1]} : vector<128x65xf32> to vector<128x64xf32>
    %329 = vector.extract_strided_slice %327 {offsets = [0, 64], sizes = [128, 1], strides = [1, 1]} : vector<128x65xf32> to vector<128x1xf32>
    %330 = tpu.reciprocal %329 {approx = true} : vector<128x1xf32> -> vector<128x1xf32>
    %331 = vector.broadcast %330 : vector<128x1xf32> to vector<128x64xf32>
    %332 = arith.mulf %328, %331 : vector<128x64xf32>
    %333 = vector.extract_strided_slice %308 {offsets = [0, 64], sizes = [128, 64], strides = [1, 1]} : vector<128x384xf32> to vector<128x64xf32>
    %334 = arith.truncf %333 : vector<128x64xf32> to vector<128x64xbf16>
    %335 = vector.extract_strided_slice %308 {offsets = [0, 192], sizes = [128, 64], strides = [1, 1]} : vector<128x384xf32> to vector<128x64xf32>
    %336 = arith.truncf %335 : vector<128x64xf32> to vector<128x64xbf16>
    %337 = vector.extract_strided_slice %308 {offsets = [0, 320], sizes = [128, 64], strides = [1, 1]} : vector<128x384xf32> to vector<128x64xf32>
    %338 = arith.truncf %337 : vector<128x64xf32> to vector<128x64xbf16>
    %cst_114 = arith.constant dense<0.000000e+00> : vector<128x128xf32>
    %339 = tpu.matmul %334, %336, %cst_114 {dimension_numbers = #tpu.dot_dimension_numbers<[1], [1], [0], [0], [0, 0, 1, 0], [], []>} : vector<128x64xbf16>, vector<128x64xbf16>, vector<128x128xf32> -> vector<128x128xf32>
    %cst_115 = arith.constant 1.250000e-01 : f32
    %340 = vector.broadcast %cst_115 : f32 to vector<128x128xf32>
    %341 = arith.mulf %339, %340 : vector<128x128xf32>
    %342 = vector.broadcast %23 : vector<1x128xf32> to vector<128x128xf32>
    %343 = arith.addf %341, %342 : vector<128x128xf32>
    %cst_116 = arith.constant dense<0xFF800000> : vector<128xf32>
    %344 = vector.multi_reduction <maximumf>, %343, %cst_116 [1] : vector<128x128xf32> to vector<128xf32>
    %345 = vector.shape_cast %344 : vector<128xf32> to vector<128x1xf32>
    %346 = vector.broadcast %345 : vector<128x1xf32> to vector<128x128xf32>
    %347 = arith.subf %343, %346 : vector<128x128xf32>
    %348 = math.exp %347 : vector<128x128xf32>
    %349 = tpu.concatenate %338, %49 in 1 : vector<128x64xbf16>, vector<128x1xbf16> -> vector<128x65xbf16>
    %350 = arith.truncf %348 : vector<128x128xf32> to vector<128x128xbf16>
    %cst_117 = arith.constant dense<0.000000e+00> : vector<128x65xf32>
    %351 = tpu.matmul %350, %349, %cst_117 {dimension_numbers = #tpu.dot_dimension_numbers<[1], [0], [0], [1], [0, 0, 1, 1], [], []>} : vector<128x128xbf16>, vector<128x65xbf16>, vector<128x65xf32> -> vector<128x65xf32>
    %352 = vector.extract_strided_slice %351 {offsets = [0, 0], sizes = [128, 64], strides = [1, 1]} : vector<128x65xf32> to vector<128x64xf32>
    %353 = vector.extract_strided_slice %351 {offsets = [0, 64], sizes = [128, 1], strides = [1, 1]} : vector<128x65xf32> to vector<128x1xf32>
    %354 = tpu.reciprocal %353 {approx = true} : vector<128x1xf32> -> vector<128x1xf32>
    %355 = vector.broadcast %354 : vector<128x1xf32> to vector<128x64xf32>
    %356 = arith.mulf %352, %355 : vector<128x64xf32>
    %357 = tpu.concatenate %332, %356 in 1 : vector<128x64xf32>, vector<128x64xf32> -> vector<128x128xf32>
    %358 = tpu.concatenate %307, %357 in 0 : vector<128x128xf32>, vector<128x128xf32> -> vector<256x128xf32>
    %359 = arith.truncf %358 : vector<256x128xf32> to vector<256x128xbf16>
    %c1_118 = arith.constant 1 : index
    %c0_119 = arith.constant 0 : index
    %c0_120 = arith.constant 0 : index
    %360 = vector.load %arg8[%c1_118, %c0_119, %c0_120] : memref<2x128x128xbf16, #tpu.memory_space<vmem>>, vector<1x128x128xbf16>
    %361 = vector.shape_cast %360 : vector<1x128x128xbf16> to vector<128x128xbf16>
    %cst_121 = arith.constant dense<0.000000e+00> : vector<256x128xf32>
    %362 = tpu.matmul %359, %361, %cst_121 {dimension_numbers = #tpu.dot_dimension_numbers<[1], [0], [0], [1], [0, 0, 1, 1], [], []>} : vector<256x128xbf16>, vector<128x128xbf16>, vector<256x128xf32> -> vector<256x128xf32>
    %c1_122 = arith.constant 1 : index
    %c0_123 = arith.constant 0 : index
    %c0_124 = arith.constant 0 : index
    %363 = vector.load %arg9[%c1_122, %c0_123, %c0_124] : memref<2x1x128xf32, #tpu.memory_space<vmem>>, vector<1x1x128xf32>
    %364 = vector.shape_cast %363 : vector<1x1x128xf32> to vector<1x128xf32>
    %365 = vector.broadcast %364 : vector<1x128xf32> to vector<256x128xf32>
    %366 = arith.addf %362, %365 : vector<256x128xf32>
    %367 = arith.addf %366, %249 : vector<256x128xf32>
    %c1_125 = arith.constant 1 : index
    %c0_126 = arith.constant 0 : index
    %c0_127 = arith.constant 0 : index
    %368 = vector.load %arg10[%c1_125, %c0_126, %c0_127] : memref<2x1x128xf32, #tpu.memory_space<vmem>>, vector<1x1x128xf32>
    %369 = vector.shape_cast %368 : vector<1x1x128xf32> to vector<1x128xf32>
    %c1_128 = arith.constant 1 : index
    %c0_129 = arith.constant 0 : index
    %c0_130 = arith.constant 0 : index
    %370 = vector.load %arg11[%c1_128, %c0_129, %c0_130] : memref<2x1x128xf32, #tpu.memory_space<vmem>>, vector<1x1x128xf32>
    %371 = vector.shape_cast %370 : vector<1x1x128xf32> to vector<1x128xf32>
    %cst_131 = arith.constant dense<0.000000e+00> : vector<256xf32>
    %372 = vector.multi_reduction <add>, %367, %cst_131 [1] : vector<256x128xf32> to vector<256xf32>
    %373 = vector.shape_cast %372 : vector<256xf32> to vector<256x1xf32>
    %cst_132 = arith.constant 1.280000e+02 : f32
    %374 = vector.broadcast %cst_132 : f32 to vector<256x1xf32>
    %375 = arith.divf %373, %374 : vector<256x1xf32>
    %376 = arith.mulf %367, %367 : vector<256x128xf32>
    %cst_133 = arith.constant dense<0.000000e+00> : vector<256xf32>
    %377 = vector.multi_reduction <add>, %376, %cst_133 [1] : vector<256x128xf32> to vector<256xf32>
    %378 = vector.shape_cast %377 : vector<256xf32> to vector<256x1xf32>
    %cst_134 = arith.constant 1.280000e+02 : f32
    %379 = vector.broadcast %cst_134 : f32 to vector<256x1xf32>
    %380 = arith.divf %378, %379 : vector<256x1xf32>
    %381 = arith.mulf %375, %375 : vector<256x1xf32>
    %382 = arith.subf %380, %381 : vector<256x1xf32>
    %383 = vector.broadcast %375 : vector<256x1xf32> to vector<256x128xf32>
    %384 = arith.subf %367, %383 : vector<256x128xf32>
    %cst_135 = arith.constant 9.99999996E-13 : f32
    %385 = vector.broadcast %cst_135 : f32 to vector<256x1xf32>
    %386 = arith.addf %382, %385 : vector<256x1xf32>
    %387 = math.rsqrt %386 : vector<256x1xf32>
    %388 = vector.broadcast %387 : vector<256x1xf32> to vector<256x128xf32>
    %389 = arith.mulf %384, %388 : vector<256x128xf32>
    %390 = vector.broadcast %369 : vector<1x128xf32> to vector<256x128xf32>
    %391 = arith.mulf %389, %390 : vector<256x128xf32>
    %392 = vector.broadcast %371 : vector<1x128xf32> to vector<256x128xf32>
    %393 = arith.addf %391, %392 : vector<256x128xf32>
    %394 = arith.truncf %393 : vector<256x128xf32> to vector<256x128xbf16>
    %c1_136 = arith.constant 1 : index
    %c0_137 = arith.constant 0 : index
    %c0_138 = arith.constant 0 : index
    %395 = vector.load %arg12[%c1_136, %c0_137, %c0_138] : memref<2x128x256xbf16, #tpu.memory_space<vmem>>, vector<1x128x256xbf16>
    %396 = vector.shape_cast %395 : vector<1x128x256xbf16> to vector<128x256xbf16>
    %cst_139 = arith.constant dense<0.000000e+00> : vector<256x256xf32>
    %397 = tpu.matmul %394, %396, %cst_139 {dimension_numbers = #tpu.dot_dimension_numbers<[1], [0], [0], [1], [0, 0, 1, 1], [], []>} : vector<256x128xbf16>, vector<128x256xbf16>, vector<256x256xf32> -> vector<256x256xf32>
    %c1_140 = arith.constant 1 : index
    %c0_141 = arith.constant 0 : index
    %c0_142 = arith.constant 0 : index
    %398 = vector.load %arg13[%c1_140, %c0_141, %c0_142] : memref<2x1x256xf32, #tpu.memory_space<vmem>>, vector<1x1x256xf32>
    %399 = vector.shape_cast %398 : vector<1x1x256xf32> to vector<1x256xf32>
    %400 = vector.broadcast %399 : vector<1x256xf32> to vector<256x256xf32>
    %401 = arith.addf %397, %400 : vector<256x256xf32>
    %402 = arith.mulf %401, %401 : vector<256x256xf32>
    %403 = arith.mulf %401, %402 : vector<256x256xf32>
    %cst_143 = arith.constant 4.471500e-02 : f32
    %404 = vector.broadcast %cst_143 : f32 to vector<256x256xf32>
    %405 = arith.mulf %404, %403 : vector<256x256xf32>
    %406 = arith.addf %401, %405 : vector<256x256xf32>
    %cst_144 = arith.constant 0.797884583 : f32
    %407 = vector.broadcast %cst_144 : f32 to vector<256x256xf32>
    %408 = arith.mulf %407, %406 : vector<256x256xf32>
    %409 = math.tanh %408 : vector<256x256xf32>
    %cst_145 = arith.constant 1.000000e+00 : f32
    %410 = vector.broadcast %cst_145 : f32 to vector<256x256xf32>
    %411 = arith.addf %410, %409 : vector<256x256xf32>
    %cst_146 = arith.constant 5.000000e-01 : f32
    %412 = vector.broadcast %cst_146 : f32 to vector<256x256xf32>
    %413 = arith.mulf %412, %411 : vector<256x256xf32>
    %414 = arith.mulf %401, %413 : vector<256x256xf32>
    %415 = arith.truncf %414 : vector<256x256xf32> to vector<256x256xbf16>
    %c1_147 = arith.constant 1 : index
    %c0_148 = arith.constant 0 : index
    %c0_149 = arith.constant 0 : index
    %416 = vector.load %arg14[%c1_147, %c0_148, %c0_149] : memref<2x256x128xbf16, #tpu.memory_space<vmem>>, vector<1x256x128xbf16>
    %417 = vector.shape_cast %416 : vector<1x256x128xbf16> to vector<256x128xbf16>
    %cst_150 = arith.constant dense<0.000000e+00> : vector<256x128xf32>
    %418 = tpu.matmul %415, %417, %cst_150 {dimension_numbers = #tpu.dot_dimension_numbers<[1], [0], [0], [1], [0, 0, 1, 1], [], []>} : vector<256x256xbf16>, vector<256x128xbf16>, vector<256x128xf32> -> vector<256x128xf32>
    %c1_151 = arith.constant 1 : index
    %c0_152 = arith.constant 0 : index
    %c0_153 = arith.constant 0 : index
    %419 = vector.load %arg15[%c1_151, %c0_152, %c0_153] : memref<2x1x128xf32, #tpu.memory_space<vmem>>, vector<1x1x128xf32>
    %420 = vector.shape_cast %419 : vector<1x1x128xf32> to vector<1x128xf32>
    %421 = vector.broadcast %420 : vector<1x128xf32> to vector<256x128xf32>
    %422 = arith.addf %418, %421 : vector<256x128xf32>
    %423 = arith.addf %422, %393 : vector<256x128xf32>
    %c1_154 = arith.constant 1 : index
    %c0_155 = arith.constant 0 : index
    %c0_156 = arith.constant 0 : index
    %424 = vector.load %arg16[%c1_154, %c0_155, %c0_156] : memref<2x1x128xf32, #tpu.memory_space<vmem>>, vector<1x1x128xf32>
    %425 = vector.shape_cast %424 : vector<1x1x128xf32> to vector<1x128xf32>
    %c1_157 = arith.constant 1 : index
    %c0_158 = arith.constant 0 : index
    %c0_159 = arith.constant 0 : index
    %426 = vector.load %arg17[%c1_157, %c0_158, %c0_159] : memref<2x1x128xf32, #tpu.memory_space<vmem>>, vector<1x1x128xf32>
    %427 = vector.shape_cast %426 : vector<1x1x128xf32> to vector<1x128xf32>
    %cst_160 = arith.constant dense<0.000000e+00> : vector<256xf32>
    %428 = vector.multi_reduction <add>, %423, %cst_160 [1] : vector<256x128xf32> to vector<256xf32>
    %429 = vector.shape_cast %428 : vector<256xf32> to vector<256x1xf32>
    %cst_161 = arith.constant 1.280000e+02 : f32
    %430 = vector.broadcast %cst_161 : f32 to vector<256x1xf32>
    %431 = arith.divf %429, %430 : vector<256x1xf32>
    %432 = arith.mulf %423, %423 : vector<256x128xf32>
    %cst_162 = arith.constant dense<0.000000e+00> : vector<256xf32>
    %433 = vector.multi_reduction <add>, %432, %cst_162 [1] : vector<256x128xf32> to vector<256xf32>
    %434 = vector.shape_cast %433 : vector<256xf32> to vector<256x1xf32>
    %cst_163 = arith.constant 1.280000e+02 : f32
    %435 = vector.broadcast %cst_163 : f32 to vector<256x1xf32>
    %436 = arith.divf %434, %435 : vector<256x1xf32>
    %437 = arith.mulf %431, %431 : vector<256x1xf32>
    %438 = arith.subf %436, %437 : vector<256x1xf32>
    %439 = vector.broadcast %431 : vector<256x1xf32> to vector<256x128xf32>
    %440 = arith.subf %423, %439 : vector<256x128xf32>
    %cst_164 = arith.constant 9.99999996E-13 : f32
    %441 = vector.broadcast %cst_164 : f32 to vector<256x1xf32>
    %442 = arith.addf %438, %441 : vector<256x1xf32>
    %443 = math.rsqrt %442 : vector<256x1xf32>
    %444 = vector.broadcast %443 : vector<256x1xf32> to vector<256x128xf32>
    %445 = arith.mulf %440, %444 : vector<256x128xf32>
    %446 = vector.broadcast %425 : vector<1x128xf32> to vector<256x128xf32>
    %447 = arith.mulf %445, %446 : vector<256x128xf32>
    %448 = vector.broadcast %427 : vector<1x128xf32> to vector<256x128xf32>
    %449 = arith.addf %447, %448 : vector<256x128xf32>
    %450 = arith.truncf %449 : vector<256x128xf32> to vector<256x128xbf16>
    %c0_165 = arith.constant 0 : index
    %c0_166 = arith.constant 0 : index
    %451 = vector.load %arg18[%c0_165, %c0_166] : memref<128x128xbf16, #tpu.memory_space<vmem>>, vector<128x128xbf16>
    %cst_167 = arith.constant dense<0.000000e+00> : vector<256x128xf32>
    %452 = tpu.matmul %450, %451, %cst_167 {dimension_numbers = #tpu.dot_dimension_numbers<[1], [0], [0], [1], [0, 0, 1, 1], [], []>} : vector<256x128xbf16>, vector<128x128xbf16>, vector<256x128xf32> -> vector<256x128xf32>
    %c0_168 = arith.constant 0 : index
    %c0_169 = arith.constant 0 : index
    %453 = vector.load %arg19[%c0_168, %c0_169] : memref<1x128xf32, #tpu.memory_space<vmem>>, vector<1x128xf32>
    %454 = vector.broadcast %453 : vector<1x128xf32> to vector<256x128xf32>
    %455 = arith.addf %452, %454 : vector<256x128xf32>
    %cst_170 = arith.constant dense<0xFF800000> : vector<256xf32>
    %456 = vector.multi_reduction <maximumf>, %455, %cst_170 [1] : vector<256x128xf32> to vector<256xf32>
    %457 = vector.shape_cast %456 : vector<256xf32> to vector<256x1xf32>
    %458 = vector.broadcast %457 : vector<256x1xf32> to vector<256x128xf32>
    %459 = arith.subf %455, %458 : vector<256x128xf32>
    %460 = math.exp %459 : vector<256x128xf32>
    %cst_171 = arith.constant dense<0.000000e+00> : vector<256xf32>
    %461 = vector.multi_reduction <add>, %460, %cst_171 [1] : vector<256x128xf32> to vector<256xf32>
    %462 = vector.shape_cast %461 : vector<256xf32> to vector<256x1xf32>
    %463 = vector.broadcast %462 : vector<256x1xf32> to vector<256x128xf32>
    %464 = arith.divf %460, %463 : vector<256x128xf32>
    %465 = vector.extract_strided_slice %464 {offsets = [0, 0], sizes = [128, 128], strides = [1, 1]} : vector<256x128xf32> to vector<128x128xf32>
    %c0_172 = arith.constant 0 : index
    %c0_173 = arith.constant 0 : index
    %c0_174 = arith.constant 0 : index
    %466 = vector.load %arg20[%c0_172, %c0_173, %c0_174] : memref<2x128x128xf32, #tpu.memory_space<vmem>>, vector<1x128x128xf32>
    %467 = vector.shape_cast %466 : vector<1x128x128xf32> to vector<128x128xf32>
    %468 = vector.shape_cast %465 : vector<128x128xf32> to vector<1x128x128xf32>
    tpu.vector_store %arg20[%c0_172, %c0_173, %c0_174], %468 {strides = array<i32>} : memref<2x128x128xf32, #tpu.memory_space<vmem>>, vector<1x128x128xf32>,
    %469 = vector.extract_strided_slice %464 {offsets = [128, 0], sizes = [128, 128], strides = [1, 1]} : vector<256x128xf32> to vector<128x128xf32>
    %c1_175 = arith.constant 1 : index
    %c0_176 = arith.constant 0 : index
    %c0_177 = arith.constant 0 : index
    %470 = vector.load %arg20[%c1_175, %c0_176, %c0_177] : memref<2x128x128xf32, #tpu.memory_space<vmem>>, vector<1x128x128xf32>
    %471 = vector.shape_cast %470 : vector<1x128x128xf32> to vector<128x128xf32>
    %472 = vector.shape_cast %469 : vector<128x128xf32> to vector<1x128x128xf32>
    tpu.vector_store %arg20[%c1_175, %c0_176, %c0_177], %472 {strides = array<i32>} : memref<2x128x128xf32, #tpu.memory_space<vmem>>, vector<1x128x128xf32>,
    return
  }
}

</mosaic_0001>

<llo_original>
// kernel: forward.1
$region0: #{forward.1}
  #allocation0 [shape = 'u32[]', space=smem, size = 0x4, offset = 0x4, fixed_abs, tag = 'smem constant byte address 0x4 - core index']
  #allocation1 [shape = 'u32[144,128]{1,0:T(1,128)}', space=vmem, size = 0x12000, scoped, tag = 'internal scratch']
  %s0 = inlined_call_operand.vmem [shape: f32[2,128,128], index: 0, kind: input, shape index: {}]
  %s1 = inlined_call_operand.vmem [shape: s32[2,128], index: 1, kind: input, shape index: {}]
  %s2 = inlined_call_operand.vmem [shape: f32[128,128], index: 2, kind: input, shape index: {}]
  %s3 = inlined_call_operand.vmem [shape: f32[1,128], index: 3, kind: input, shape index: {}]
  %s4 = inlined_call_operand.vmem [shape: f32[1,128], index: 4, kind: input, shape index: {}]
  %s5 = inlined_call_operand.vmem [shape: f32[1,128], index: 5, kind: input, shape index: {}]
  %s6 = inlined_call_operand.vmem [shape: bf16[2,128,384], index: 6, kind: input, shape index: {}]
  %s7 = inlined_call_operand.vmem [shape: f32[2,1,384], index: 7, kind: input, shape index: {}]
  %s8 = inlined_call_operand.vmem [shape: bf16[2,128,128], index: 8, kind: input, shape index: {}]
  %s9 = inlined_call_operand.vmem [shape: f32[2,1,128], index: 9, kind: input, shape index: {}]
  %s10 = inlined_call_operand.vmem [shape: f32[2,1,128], index: 10, kind: input, shape index: {}]
  %s11 = inlined_call_operand.vmem [shape: f32[2,1,128], index: 11, kind: input, shape index: {}]
  %s12 = inlined_call_operand.vmem [shape: bf16[2,128,256], index: 12, kind: input, shape index: {}]
  %s13 = inlined_call_operand.vmem [shape: f32[2,1,256], index: 13, kind: input, shape index: {}]
  %s14 = inlined_call_operand.vmem [shape: bf16[2,256,128], index: 14, kind: input, shape index: {}]
  %s15 = inlined_call_operand.vmem [shape: f32[2,1,128], index: 15, kind: input, shape index: {}]
  %s16 = inlined_call_operand.vmem [shape: f32[2,1,128], index: 16, kind: input, shape index: {}]
  %s17 = inlined_call_operand.vmem [shape: f32[2,1,128], index: 17, kind: input, shape index: {}]
  %s18 = inlined_call_operand.vmem [shape: bf16[128,128], index: 18, kind: input, shape index: {}]
  %s19 = inlined_call_operand.vmem [shape: f32[1,128], index: 19, kind: input, shape index: {}]
  %s20 = inlined_call_operand.vmem [shape: f32[2,128,128], index: 20, kind: output, shape index: {}]
  %s21 = sld [smem:[#allocation0]]
  $region90: #{forward.1} parent=0
    _
  %s23 = ssub.s32 1, %s21
  %s24 = scalar_select 0, %s23, %s21
  // Predicated region
  $region2: #{forward.1} parent=0 // pred_check
    _
  $region3: #{forward.1} parent=0 // pred_check_branch
    %26 = sbr.rel (0) target = $region5
  $region4: #{forward.1} parent=0 // pred_region
    _
  $region5: #{forward.1} parent=0 // pred_fallthru
    _
  // Predicated region
  $region6: #{forward.1} parent=0 // pred_check
    _
  $region7: #{forward.1} parent=0 // pred_check_branch
    %28 = sbr.rel (0) target = $region9
  $region8: #{forward.1} parent=0 // pred_region
    _
  $region9: #{forward.1} parent=0 // pred_fallthru
    _
  // Predicated region
  $region10: #{forward.1} parent=0 // pred_check
    _
  $region11: #{forward.1} parent=0 // pred_check_branch
    %30 = sbr.rel (0) target = $region13
  $region12: #{forward.1} parent=0 // pred_region
    _
  $region13: #{forward.1} parent=0 // pred_fallthru
    _
  // Predicated region
  $region14: #{forward.1} parent=0 // pred_check
    _
  $region15: #{forward.1} parent=0 // pred_check_branch
    %32 = sbr.rel (0) target = $region17
  $region16: #{forward.1} parent=0 // pred_region
    _
  $region17: #{forward.1} parent=0 // pred_fallthru
    _
  // Predicated region
  $region18: #{forward.1} parent=0 // pred_check
    _
  $region19: #{forward.1} parent=0 // pred_check_branch
    %34 = sbr.rel (0) target = $region21
  $region20: #{forward.1} parent=0 // pred_region
    _
  $region21: #{forward.1} parent=0 // pred_fallthru
    _
  // Predicated region
  $region22: #{forward.1} parent=0 // pred_check
    _
  $region23: #{forward.1} parent=0 // pred_check_branch
    %36 = sbr.rel (0) target = $region25
  $region24: #{forward.1} parent=0 // pred_region
    _
  $region25: #{forward.1} parent=0 // pred_fallthru
    _
  // Predicated region
  $region26: #{forward.1} parent=0 // pred_check
    _
  $region27: #{forward.1} parent=0 // pred_check_branch
    %38 = sbr.rel (0) target = $region29
  $region28: #{forward.1} parent=0 // pred_region
    _
  $region29: #{forward.1} parent=0 // pred_fallthru
    _
  // Predicated region
  $region30: #{forward.1} parent=0 // pred_check
    _
  $region31: #{forward.1} parent=0 // pred_check_branch
    %40 = sbr.rel (0) target = $region33
  $region32: #{forward.1} parent=0 // pred_region
    _
  $region33: #{forward.1} parent=0 // pred_fallthru
    _
  // Predicated region
  $region34: #{forward.1} parent=0 // pred_check
    _
  $region35: #{forward.1} parent=0 // pred_check_branch
    %42 = sbr.rel (0) target = $region37
  $region36: #{forward.1} parent=0 // pred_region
    _
  $region37: #{forward.1} parent=0 // pred_fallthru
    _
  // Predicated region
  $region38: #{forward.1} parent=0 // pred_check
    _
  $region39: #{forward.1} parent=0 // pred_check_branch
    %44 = sbr.rel (0) target = $region41
  $region40: #{forward.1} parent=0 // pred_region
    _
  $region41: #{forward.1} parent=0 // pred_fallthru
    _
  // Predicated region
  $region42: #{forward.1} parent=0 // pred_check
    _
  $region43: #{forward.1} parent=0 // pred_check_branch
    %46 = sbr.rel (0) target = $region45
  $region44: #{forward.1} parent=0 // pred_region
    _
  $region45: #{forward.1} parent=0 // pred_fallthru
    _
  // Predicated region
  $region46: #{forward.1} parent=0 // pred_check
    _
  $region47: #{forward.1} parent=0 // pred_check_branch
    %48 = sbr.rel (0) target = $region49
  $region48: #{forward.1} parent=0 // pred_region
    _
  $region49: #{forward.1} parent=0 // pred_fallthru
    _
  // Predicated region
  $region50: #{forward.1} parent=0 // pred_check
    _
  $region51: #{forward.1} parent=0 // pred_check_branch
    %50 = sbr.rel (0) target = $region53
  $region52: #{forward.1} parent=0 // pred_region
    _
  $region53: #{forward.1} parent=0 // pred_fallthru
    _
  // Predicated region
  $region54: #{forward.1} parent=0 // pred_check
    _
  $region55: #{forward.1} parent=0 // pred_check_branch
    %52 = sbr.rel (0) target = $region57
  $region56: #{forward.1} parent=0 // pred_region
    _
  $region57: #{forward.1} parent=0 // pred_fallthru
    _
  // Predicated region
  $region58: #{forward.1} parent=0 // pred_check
    _
  $region59: #{forward.1} parent=0 // pred_check_branch
    %54 = sbr.rel (0) target = $region61
  $region60: #{forward.1} parent=0 // pred_region
    _
  $region61: #{forward.1} parent=0 // pred_fallthru
    _
  // Predicated region
  $region62: #{forward.1} parent=0 // pred_check
    _
  $region63: #{forward.1} parent=0 // pred_check_branch
    %56 = sbr.rel (0) target = $region65
  $region64: #{forward.1} parent=0 // pred_region
    _
  $region65: #{forward.1} parent=0 // pred_fallthru
    _
  // Predicated region
  $region66: #{forward.1} parent=0 // pred_check
    _
  $region67: #{forward.1} parent=0 // pred_check_branch
    %58 = sbr.rel (0) target = $region69
  $region68: #{forward.1} parent=0 // pred_region
    _
  $region69: #{forward.1} parent=0 // pred_fallthru
    _
  // Predicated region
  $region70: #{forward.1} parent=0 // pred_check
    _
  $region71: #{forward.1} parent=0 // pred_check_branch
    %60 = sbr.rel (0) target = $region73
  $region72: #{forward.1} parent=0 // pred_region
    _
  $region73: #{forward.1} parent=0 // pred_fallthru
    _
  // Predicated region
  $region74: #{forward.1} parent=0 // pred_check
    _
  $region75: #{forward.1} parent=0 // pred_check_branch
    %62 = sbr.rel (0) target = $region77
  $region76: #{forward.1} parent=0 // pred_region
    _
  $region77: #{forward.1} parent=0 // pred_fallthru
    _
  // Predicated region
  $region78: #{forward.1} parent=0 // pred_check
    _
  $region79: #{forward.1} parent=0 // pred_check_branch
    %64 = sbr.rel (0) target = $region81
  $region80: #{forward.1} parent=0 // pred_region
    _
  $region81: #{forward.1} parent=0 // pred_fallthru
    _
  %v67 = vld [vmem:[%s2] sm:$0xff]
  %v68 = vld [vmem:[%s2 + $0x8] sm:$0xff]
  %v69 = vld [vmem:[%s2 + $0x10] sm:$0xff]
  %v70 = vld [vmem:[%s2 + $0x18] sm:$0xff]
  %v71 = vld [vmem:[%s2 + $0x20] sm:$0xff]
  %v72 = vld [vmem:[%s2 + $0x28] sm:$0xff]
  %v73 = vld [vmem:[%s2 + $0x30] sm:$0xff]
  %v74 = vld [vmem:[%s2 + $0x38] sm:$0xff]
  %v75 = vld [vmem:[%s2 + $0x40] sm:$0xff]
  %v76 = vld [vmem:[%s2 + $0x48] sm:$0xff]
  %v77 = vld [vmem:[%s2 + $0x50] sm:$0xff]
  %v78 = vld [vmem:[%s2 + $0x58] sm:$0xff]
  %v79 = vld [vmem:[%s2 + $0x60] sm:$0xff]
  %v80 = vld [vmem:[%s2 + $0x68] sm:$0xff]
  %v81 = vld [vmem:[%s2 + $0x70] sm:$0xff]
  %v82 = vld [vmem:[%s2 + $0x78] sm:$0xff]
  %v83 = vld [vmem:[%s3] sm:$0x1]
  %v84 = vld [vmem:[%s0] sm:$0xff]
  %v85 = vld [vmem:[%s0 + $0x8] sm:$0xff]
  %v86 = vld [vmem:[%s0 + $0x10] sm:$0xff]
  %v87 = vld [vmem:[%s0 + $0x18] sm:$0xff]
  %v88 = vld [vmem:[%s0 + $0x20] sm:$0xff]
  %v89 = vld [vmem:[%s0 + $0x28] sm:$0xff]
  %v90 = vld [vmem:[%s0 + $0x30] sm:$0xff]
  %v91 = vld [vmem:[%s0 + $0x38] sm:$0xff]
  %v92 = vld [vmem:[%s0 + $0x40] sm:$0xff]
  %v93 = vld [vmem:[%s0 + $0x48] sm:$0xff]
  %v94 = vld [vmem:[%s0 + $0x50] sm:$0xff]
  %v95 = vld [vmem:[%s0 + $0x58] sm:$0xff]
  %v96 = vld [vmem:[%s0 + $0x60] sm:$0xff]
  %v97 = vld [vmem:[%s0 + $0x68] sm:$0xff]
  %v98 = vld [vmem:[%s0 + $0x70] sm:$0xff]
  %v99 = vld [vmem:[%s0 + $0x78] sm:$0xff]
  %v100 = vadd.f32 %v84, %v67
  %v101 = vadd.f32 %v85, %v68
  %v102 = vadd.f32 %v86, %v69
  %v103 = vadd.f32 %v87, %v70
  %v104 = vadd.f32 %v88, %v71
  %v105 = vadd.f32 %v89, %v72
  %v106 = vadd.f32 %v90, %v73
  %v107 = vadd.f32 %v91, %v74
  %v108 = vadd.f32 %v92, %v75
  %v109 = vadd.f32 %v93, %v76
  %v110 = vadd.f32 %v94, %v77
  %v111 = vadd.f32 %v95, %v78
  %v112 = vadd.f32 %v96, %v79
  %v113 = vadd.f32 %v97, %v80
  %v114 = vadd.f32 %v98, %v81
  %v115 = vadd.f32 %v99, %v82
  %v117 = vlaneseq
  %v118 = vshrl.u32 %v117, 7
  %v119 = vsub.s32 0, %v118
  %v120 = vrot.slane %v83, %v119
  %v122 = vadd.f32 %v100, %v120
  %v123 = vadd.f32 %v101, %v120
  %v124 = vadd.f32 %v102, %v120
  %v125 = vadd.f32 %v103, %v120
  %v126 = vadd.f32 %v104, %v120
  %v127 = vadd.f32 %v105, %v120
  %v128 = vadd.f32 %v106, %v120
  %v129 = vadd.f32 %v107, %v120
  %v130 = vadd.f32 %v108, %v120
  %v131 = vadd.f32 %v109, %v120
  %v132 = vadd.f32 %v110, %v120
  %v133 = vadd.f32 %v111, %v120
  %v134 = vadd.f32 %v112, %v120
  %v135 = vadd.f32 %v113, %v120
  %v136 = vadd.f32 %v114, %v120
  %v137 = vadd.f32 %v115, %v120
  %v138 = vld [vmem:[%s1] sm:$0x1]
  %v139 = vcvt.s32.f32 %v138
  %v140 = vsub.f32 1.0, %v139
  %v141 = vmul.f32 %v140, -1e+09
  %s142 = scalar_lea.vmem %s0, 128
  %v143 = vld [vmem:[%s142] sm:$0xff]
  %v144 = vld [vmem:[%s142 + $0x8] sm:$0xff]
  %v145 = vld [vmem:[%s142 + $0x10] sm:$0xff]
  %v146 = vld [vmem:[%s142 + $0x18] sm:$0xff]
  %v147 = vld [vmem:[%s142 + $0x20] sm:$0xff]
  %v148 = vld [vmem:[%s142 + $0x28] sm:$0xff]
  %v149 = vld [vmem:[%s142 + $0x30] sm:$0xff]
  %v150 = vld [vmem:[%s142 + $0x38] sm:$0xff]
  %v151 = vld [vmem:[%s142 + $0x40] sm:$0xff]
  %v152 = vld [vmem:[%s142 + $0x48] sm:$0xff]
  %v153 = vld [vmem:[%s142 + $0x50] sm:$0xff]
  %v154 = vld [vmem:[%s142 + $0x58] sm:$0xff]
  %v155 = vld [vmem:[%s142 + $0x60] sm:$0xff]
  %v156 = vld [vmem:[%s142 + $0x68] sm:$0xff]
  %v157 = vld [vmem:[%s142 + $0x70] sm:$0xff]
  %v158 = vld [vmem:[%s142 + $0x78] sm:$0xff]
  %v159 = vadd.f32 %v143, %v67
  %v160 = vadd.f32 %v144, %v68
  %v161 = vadd.f32 %v145, %v69
  %v162 = vadd.f32 %v146, %v70
  %v163 = vadd.f32 %v147, %v71
  %v164 = vadd.f32 %v148, %v72
  %v165 = vadd.f32 %v149, %v73
  %v166 = vadd.f32 %v150, %v74
  %v167 = vadd.f32 %v151, %v75
  %v168 = vadd.f32 %v152, %v76
  %v169 = vadd.f32 %v153, %v77
  %v170 = vadd.f32 %v154, %v78
  %v171 = vadd.f32 %v155, %v79
  %v172 = vadd.f32 %v156, %v80
  %v173 = vadd.f32 %v157, %v81
  %v174 = vadd.f32 %v158, %v82
  %v175 = vadd.f32 %v159, %v120
  %v176 = vadd.f32 %v160, %v120
  %v177 = vadd.f32 %v161, %v120
  %v178 = vadd.f32 %v162, %v120
  %v179 = vadd.f32 %v163, %v120
  %v180 = vadd.f32 %v164, %v120
  %v181 = vadd.f32 %v165, %v120
  %v182 = vadd.f32 %v166, %v120
  %v183 = vadd.f32 %v167, %v120
  %v184 = vadd.f32 %v168, %v120
  %v185 = vadd.f32 %v169, %v120
  %v186 = vadd.f32 %v170, %v120
  %v187 = vadd.f32 %v171, %v120
  %v188 = vadd.f32 %v172, %v120
  %v189 = vadd.f32 %v173, %v120
  %v190 = vadd.f32 %v174, %v120
  %v191 = vld [vmem:[%s1 + $0x1] sm:$0x1]
  %v192 = vcvt.s32.f32 %v191
  %v193 = vsub.f32 1.0, %v192
  %v194 = vmul.f32 %v193, -1e+09
  %v195 = vld [vmem:[%s4] sm:$0x1]
  %v196 = vld [vmem:[%s5] sm:$0x1]
  %197 = vadd.xlane.f32.xlu0 %v122
  %v198 = vpop.xlane.xlu0 %197
  %199 = vadd.xlane.f32.xlu0 %v123
  %v200 = vpop.xlane.xlu0 %199
  %201 = vadd.xlane.f32.xlu0 %v124
  %v202 = vpop.xlane.xlu0 %201
  %203 = vadd.xlane.f32.xlu0 %v125
  %v204 = vpop.xlane.xlu0 %203
  %205 = vadd.xlane.f32.xlu0 %v126
  %v206 = vpop.xlane.xlu0 %205
  %207 = vadd.xlane.f32.xlu0 %v127
  %v208 = vpop.xlane.xlu0 %207
  %209 = vadd.xlane.f32.xlu0 %v128
  %v210 = vpop.xlane.xlu0 %209
  %211 = vadd.xlane.f32.xlu0 %v129
  %v212 = vpop.xlane.xlu0 %211
  %213 = vadd.xlane.f32.xlu0 %v130
  %v214 = vpop.xlane.xlu0 %213
  %215 = vadd.xlane.f32.xlu0 %v131
  %v216 = vpop.xlane.xlu0 %215
  %217 = vadd.xlane.f32.xlu0 %v132
  %v218 = vpop.xlane.xlu0 %217
  %219 = vadd.xlane.f32.xlu0 %v133
  %v220 = vpop.xlane.xlu0 %219
  %221 = vadd.xlane.f32.xlu0 %v134
  %v222 = vpop.xlane.xlu0 %221
  %223 = vadd.xlane.f32.xlu0 %v135
  %v224 = vpop.xlane.xlu0 %223
  %225 = vadd.xlane.f32.xlu0 %v136
  %v226 = vpop.xlane.xlu0 %225
  %227 = vadd.xlane.f32.xlu0 %v137
  %v228 = vpop.xlane.xlu0 %227
  %229 = vadd.xlane.f32.xlu0 %v175
  %v230 = vpop.xlane.xlu0 %229
  %231 = vadd.xlane.f32.xlu0 %v176
  %v232 = vpop.xlane.xlu0 %231
  %233 = vadd.xlane.f32.xlu0 %v177
  %v234 = vpop.xlane.xlu0 %233
  %235 = vadd.xlane.f32.xlu0 %v178
  %v236 = vpop.xlane.xlu0 %235
  %237 = vadd.xlane.f32.xlu0 %v179
  %v238 = vpop.xlane.xlu0 %237
  %239 = vadd.xlane.f32.xlu0 %v180
  %v240 = vpop.xlane.xlu0 %239
  %241 = vadd.xlane.f32.xlu0 %v181
  %v242 = vpop.xlane.xlu0 %241
  %243 = vadd.xlane.f32.xlu0 %v182
  %v244 = vpop.xlane.xlu0 %243
  %245 = vadd.xlane.f32.xlu0 %v183
  %v246 = vpop.xlane.xlu0 %245
  %247 = vadd.xlane.f32.xlu0 %v184
  %v248 = vpop.xlane.xlu0 %247
  %249 = vadd.xlane.f32.xlu0 %v185
  %v250 = vpop.xlane.xlu0 %249
  %251 = vadd.xlane.f32.xlu0 %v186
  %v252 = vpop.xlane.xlu0 %251
  %253 = vadd.xlane.f32.xlu0 %v187
  %v254 = vpop.xlane.xlu0 %253
  %255 = vadd.xlane.f32.xlu0 %v188
  %v256 = vpop.xlane.xlu0 %255
  %257 = vadd.xlane.f32.xlu0 %v189
  %v258 = vpop.xlane.xlu0 %257
  %259 = vadd.xlane.f32.xlu0 %v190
  %v260 = vpop.xlane.xlu0 %259
  %v261 = vrcp.pop 128.0
  %v262 = vmul.f32 %v198, %v261
  %v263 = vmul.f32 %v200, %v261
  %v264 = vmul.f32 %v202, %v261
  %v265 = vmul.f32 %v204, %v261
  %v266 = vmul.f32 %v206, %v261
  %v267 = vmul.f32 %v208, %v261
  %v268 = vmul.f32 %v210, %v261
  %v269 = vmul.f32 %v212, %v261
  %v270 = vmul.f32 %v214, %v261
  %v271 = vmul.f32 %v216, %v261
  %v272 = vmul.f32 %v218, %v261
  %v273 = vmul.f32 %v220, %v261
  %v274 = vmul.f32 %v222, %v261
  %v275 = vmul.f32 %v224, %v261
  %v276 = vmul.f32 %v226, %v261
  %v277 = vmul.f32 %v228, %v261
  %v278 = vmul.f32 %v230, %v261
  %v279 = vmul.f32 %v232, %v261
  %v280 = vmul.f32 %v234, %v261
  %v281 = vmul.f32 %v236, %v261
  %v282 = vmul.f32 %v238, %v261
  %v283 = vmul.f32 %v240, %v261
  %v284 = vmul.f32 %v242, %v261
  %v285 = vmul.f32 %v244, %v261
  %v286 = vmul.f32 %v246, %v261
  %v287 = vmul.f32 %v248, %v261
  %v288 = vmul.f32 %v250, %v261
  %v289 = vmul.f32 %v252, %v261
  %v290 = vmul.f32 %v254, %v261
  %v291 = vmul.f32 %v256, %v261
  %v292 = vmul.f32 %v258, %v261
  %v293 = vmul.f32 %v260, %v261
  %v294 = vmul.f32 %v122, %v122
  %v295 = vmul.f32 %v123, %v123
  %v296 = vmul.f32 %v124, %v124
  %v297 = vmul.f32 %v125, %v125
  %v298 = vmul.f32 %v126, %v126
  %v299 = vmul.f32 %v127, %v127
  %v300 = vmul.f32 %v128, %v128
  %v301 = vmul.f32 %v129, %v129
  %v302 = vmul.f32 %v130, %v130
  %v303 = vmul.f32 %v131, %v131
  %v304 = vmul.f32 %v132, %v132
  %v305 = vmul.f32 %v133, %v133
  %v306 = vmul.f32 %v134, %v134
  %v307 = vmul.f32 %v135, %v135
  %v308 = vmul.f32 %v136, %v136
  %v309 = vmul.f32 %v137, %v137
  %v310 = vmul.f32 %v175, %v175
  %v311 = vmul.f32 %v176, %v176
  %v312 = vmul.f32 %v177, %v177
  %v313 = vmul.f32 %v178, %v178
  %v314 = vmul.f32 %v179, %v179
  %v315 = vmul.f32 %v180, %v180
  %v316 = vmul.f32 %v181, %v181
  %v317 = vmul.f32 %v182, %v182
  %v318 = vmul.f32 %v183, %v183
  %v319 = vmul.f32 %v184, %v184
  %v320 = vmul.f32 %v185, %v185
  %v321 = vmul.f32 %v186, %v186
  %v322 = vmul.f32 %v187, %v187
  %v323 = vmul.f32 %v188, %v188
  %v324 = vmul.f32 %v189, %v189
  %v325 = vmul.f32 %v190, %v190
  %326 = vadd.xlane.f32.xlu0 %v294
  %v327 = vpop.xlane.xlu0 %326
  %328 = vadd.xlane.f32.xlu0 %v295
  %v329 = vpop.xlane.xlu0 %328
  %330 = vadd.xlane.f32.xlu0 %v296
  %v331 = vpop.xlane.xlu0 %330
  %332 = vadd.xlane.f32.xlu0 %v297
  %v333 = vpop.xlane.xlu0 %332
  %334 = vadd.xlane.f32.xlu0 %v298
  %v335 = vpop.xlane.xlu0 %334
  %336 = vadd.xlane.f32.xlu0 %v299
  %v337 = vpop.xlane.xlu0 %336
  %338 = vadd.xlane.f32.xlu0 %v300
  %v339 = vpop.xlane.xlu0 %338
  %340 = vadd.xlane.f32.xlu0 %v301
  %v341 = vpop.xlane.xlu0 %340
  %342 = vadd.xlane.f32.xlu0 %v302
  %v343 = vpop.xlane.xlu0 %342
  %344 = vadd.xlane.f32.xlu0 %v303
  %v345 = vpop.xlane.xlu0 %344
  %346 = vadd.xlane.f32.xlu0 %v304
  %v347 = vpop.xlane.xlu0 %346
  %348 = vadd.xlane.f32.xlu0 %v305
  %v349 = vpop.xlane.xlu0 %348
  %350 = vadd.xlane.f32.xlu0 %v306
  %v351 = vpop.xlane.xlu0 %350
  %352 = vadd.xlane.f32.xlu0 %v307
  %v353 = vpop.xlane.xlu0 %352
  %354 = vadd.xlane.f32.xlu0 %v308
  %v355 = vpop.xlane.xlu0 %354
  %356 = vadd.xlane.f32.xlu0 %v309
  %v357 = vpop.xlane.xlu0 %356
  %358 = vadd.xlane.f32.xlu0 %v310
  %v359 = vpop.xlane.xlu0 %358
  %360 = vadd.xlane.f32.xlu0 %v311
  %v361 = vpop.xlane.xlu0 %360
  %362 = vadd.xlane.f32.xlu0 %v312
  %v363 = vpop.xlane.xlu0 %362
  %364 = vadd.xlane.f32.xlu0 %v313
  %v365 = vpop.xlane.xlu0 %364
  %366 = vadd.xlane.f32.xlu0 %v314
  %v367 = vpop.xlane.xlu0 %366
  %368 = vadd.xlane.f32.xlu0 %v315
  %v369 = vpop.xlane.xlu0 %368
  %370 = vadd.xlane.f32.xlu0 %v316
  %v371 = vpop.xlane.xlu0 %370
  %372 = vadd.xlane.f32.xlu0 %v317
  %v373 = vpop.xlane.xlu0 %372
  %374 = vadd.xlane.f32.xlu0 %v318
  %v375 = vpop.xlane.xlu0 %374
  %376 = vadd.xlane.f32.xlu0 %v319
  %v377 = vpop.xlane.xlu0 %376
  %378 = vadd.xlane.f32.xlu0 %v320
  %v379 = vpop.xlane.xlu0 %378
  %380 = vadd.xlane.f32.xlu0 %v321
  %v381 = vpop.xlane.xlu0 %380
  %382 = vadd.xlane.f32.xlu0 %v322
  %v383 = vpop.xlane.xlu0 %382
  %384 = vadd.xlane.f32.xlu0 %v323
  %v385 = vpop.xlane.xlu0 %384
  %386 = vadd.xlane.f32.xlu0 %v324
  %v387 = vpop.xlane.xlu0 %386
  %388 = vadd.xlane.f32.xlu0 %v325
  %v389 = vpop.xlane.xlu0 %388
  %v390 = vmul.f32 %v327, %v261
  %v391 = vmul.f32 %v329, %v261
  %v392 = vmul.f32 %v331, %v261
  %v393 = vmul.f32 %v333, %v261
  %v394 = vmul.f32 %v335, %v261
  %v395 = vmul.f32 %v337, %v261
  %v396 = vmul.f32 %v339, %v261
  %v397 = vmul.f32 %v341, %v261
  %v398 = vmul.f32 %v343, %v261
  %v399 = vmul.f32 %v345, %v261
  %v400 = vmul.f32 %v347, %v261
  %v401 = vmul.f32 %v349, %v261
  %v402 = vmul.f32 %v351, %v261
  %v403 = vmul.f32 %v353, %v261
  %v404 = vmul.f32 %v355, %v261
  %v405 = vmul.f32 %v357, %v261
  %v406 = vmul.f32 %v359, %v261
  %v407 = vmul.f32 %v361, %v261
  %v408 = vmul.f32 %v363, %v261
  %v409 = vmul.f32 %v365, %v261
  %v410 = vmul.f32 %v367, %v261
  %v411 = vmul.f32 %v369, %v261
  %v412 = vmul.f32 %v371, %v261
  %v413 = vmul.f32 %v373, %v261
  %v414 = vmul.f32 %v375, %v261
  %v415 = vmul.f32 %v377, %v261
  %v416 = vmul.f32 %v379, %v261
  %v417 = vmul.f32 %v381, %v261
  %v418 = vmul.f32 %v383, %v261
  %v419 = vmul.f32 %v385, %v261
  %v420 = vmul.f32 %v387, %v261
  %v421 = vmul.f32 %v389, %v261
  %v422 = vmul.f32 %v262, %v262
  %v423 = vmul.f32 %v263, %v263
  %v424 = vmul.f32 %v264, %v264
  %v425 = vmul.f32 %v265, %v265
  %v426 = vmul.f32 %v266, %v266
  %v427 = vmul.f32 %v267, %v267
  %v428 = vmul.f32 %v268, %v268
  %v429 = vmul.f32 %v269, %v269
  %v430 = vmul.f32 %v270, %v270
  %v431 = vmul.f32 %v271, %v271
  %v432 = vmul.f32 %v272, %v272
  %v433 = vmul.f32 %v273, %v273
  %v434 = vmul.f32 %v274, %v274
  %v435 = vmul.f32 %v275, %v275
  %v436 = vmul.f32 %v276, %v276
  %v437 = vmul.f32 %v277, %v277
  %v438 = vmul.f32 %v278, %v278
  %v439 = vmul.f32 %v279, %v279
  %v440 = vmul.f32 %v280, %v280
  %v441 = vmul.f32 %v281, %v281
  %v442 = vmul.f32 %v282, %v282
  %v443 = vmul.f32 %v283, %v283
  %v444 = vmul.f32 %v284, %v284
  %v445 = vmul.f32 %v285, %v285
  %v446 = vmul.f32 %v286, %v286
  %v447 = vmul.f32 %v287, %v287
  %v448 = vmul.f32 %v288, %v288
  %v449 = vmul.f32 %v289, %v289
  %v450 = vmul.f32 %v290, %v290
  %v451 = vmul.f32 %v291, %v291
  %v452 = vmul.f32 %v292, %v292
  %v453 = vmul.f32 %v293, %v293
  %v454 = vsub.f32 %v390, %v422
  %v455 = vsub.f32 %v391, %v423
  %v456 = vsub.f32 %v392, %v424
  %v457 = vsub.f32 %v393, %v425
  %v458 = vsub.f32 %v394, %v426
  %v459 = vsub.f32 %v395, %v427
  %v460 = vsub.f32 %v396, %v428
  %v461 = vsub.f32 %v397, %v429
  %v462 = vsub.f32 %v398, %v430
  %v463 = vsub.f32 %v399, %v431
  %v464 = vsub.f32 %v400, %v432
  %v465 = vsub.f32 %v401, %v433
  %v466 = vsub.f32 %v402, %v434
  %v467 = vsub.f32 %v403, %v435
  %v468 = vsub.f32 %v404, %v436
  %v469 = vsub.f32 %v405, %v437
  %v470 = vsub.f32 %v406, %v438
  %v471 = vsub.f32 %v407, %v439
  %v472 = vsub.f32 %v408, %v440
  %v473 = vsub.f32 %v409, %v441
  %v474 = vsub.f32 %v410, %v442
  %v475 = vsub.f32 %v411, %v443
  %v476 = vsub.f32 %v412, %v444
  %v477 = vsub.f32 %v413, %v445
  %v478 = vsub.f32 %v414, %v446
  %v479 = vsub.f32 %v415, %v447
  %v480 = vsub.f32 %v416, %v448
  %v481 = vsub.f32 %v417, %v449
  %v482 = vsub.f32 %v418, %v450
  %v483 = vsub.f32 %v419, %v451
  %v484 = vsub.f32 %v420, %v452
  %v485 = vsub.f32 %v421, %v453
  %v486 = vsub.f32 %v122, %v262
  %v487 = vsub.f32 %v123, %v263
  %v488 = vsub.f32 %v124, %v264
  %v489 = vsub.f32 %v125, %v265
  %v490 = vsub.f32 %v126, %v266
  %v491 = vsub.f32 %v127, %v267
  %v492 = vsub.f32 %v128, %v268
  %v493 = vsub.f32 %v129, %v269
  %v494 = vsub.f32 %v130, %v270
  %v495 = vsub.f32 %v131, %v271
  %v496 = vsub.f32 %v132, %v272
  %v497 = vsub.f32 %v133, %v273
  %v498 = vsub.f32 %v134, %v274
  %v499 = vsub.f32 %v135, %v275
  %v500 = vsub.f32 %v136, %v276
  %v501 = vsub.f32 %v137, %v277
  %v502 = vsub.f32 %v175, %v278
  %v503 = vsub.f32 %v176, %v279
  %v504 = vsub.f32 %v177, %v280
  %v505 = vsub.f32 %v178, %v281
  %v506 = vsub.f32 %v179, %v282
  %v507 = vsub.f32 %v180, %v283
  %v508 = vsub.f32 %v181, %v284
  %v509 = vsub.f32 %v182, %v285
  %v510 = vsub.f32 %v183, %v286
  %v511 = vsub.f32 %v184, %v287
  %v512 = vsub.f32 %v185, %v288
  %v513 = vsub.f32 %v186, %v289
  %v514 = vsub.f32 %v187, %v290
  %v515 = vsub.f32 %v188, %v291
  %v516 = vsub.f32 %v189, %v292
  %v517 = vsub.f32 %v190, %v293
  %v518 = vadd.f32 %v454, 1e-12
  %v519 = vadd.f32 %v455, 1e-12
  %v520 = vadd.f32 %v456, 1e-12
  %v521 = vadd.f32 %v457, 1e-12
  %v522 = vadd.f32 %v458, 1e-12
  %v523 = vadd.f32 %v459, 1e-12
  %v524 = vadd.f32 %v460, 1e-12
  %v525 = vadd.f32 %v461, 1e-12
  %v526 = vadd.f32 %v462, 1e-12
  %v527 = vadd.f32 %v463, 1e-12
  %v528 = vadd.f32 %v464, 1e-12
  %v529 = vadd.f32 %v465, 1e-12
  %v530 = vadd.f32 %v466, 1e-12
  %v531 = vadd.f32 %v467, 1e-12
  %v532 = vadd.f32 %v468, 1e-12
  %v533 = vadd.f32 %v469, 1e-12
  %v534 = vadd.f32 %v470, 1e-12
  %v535 = vadd.f32 %v471, 1e-12
  %v536 = vadd.f32 %v472, 1e-12
  %v537 = vadd.f32 %v473, 1e-12
  %v538 = vadd.f32 %v474, 1e-12
  %v539 = vadd.f32 %v475, 1e-12
  %v540 = vadd.f32 %v476, 1e-12
  %v541 = vadd.f32 %v477, 1e-12
  %v542 = vadd.f32 %v478, 1e-12
  %v543 = vadd.f32 %v479, 1e-12
  %v544 = vadd.f32 %v480, 1e-12
  %v545 = vadd.f32 %v481, 1e-12
  %v546 = vadd.f32 %v482, 1e-12
  %v547 = vadd.f32 %v483, 1e-12
  %v548 = vadd.f32 %v484, 1e-12
  %v549 = vadd.f32 %v485, 1e-12
  %v550 = vrsqrt.pop %v518
  %v551 = vrsqrt.pop %v519
  %v552 = vrsqrt.pop %v520
  %v553 = vrsqrt.pop %v521
  %v554 = vrsqrt.pop %v522
  %v555 = vrsqrt.pop %v523
  %v556 = vrsqrt.pop %v524
  %v557 = vrsqrt.pop %v525
  %v558 = vrsqrt.pop %v526
  %v559 = vrsqrt.pop %v527
  %v560 = vrsqrt.pop %v528
  %v561 = vrsqrt.pop %v529
  %v562 = vrsqrt.pop %v530
  %v563 = vrsqrt.pop %v531
  %v564 = vrsqrt.pop %v532
  %v565 = vrsqrt.pop %v533
  %v566 = vrsqrt.pop %v534
  %v567 = vrsqrt.pop %v535
  %v568 = vrsqrt.pop %v536
  %v569 = vrsqrt.pop %v537
  %v570 = vrsqrt.pop %v538
  %v571 = vrsqrt.pop %v539
  %v572 = vrsqrt.pop %v540
  %v573 = vrsqrt.pop %v541
  %v574 = vrsqrt.pop %v542
  %v575 = vrsqrt.pop %v543
  %v576 = vrsqrt.pop %v544
  %v577 = vrsqrt.pop %v545
  %v578 = vrsqrt.pop %v546
  %v579 = vrsqrt.pop %v547
  %v580 = vrsqrt.pop %v548
  %v581 = vrsqrt.pop %v549
  %v582 = vmul.f32 %v486, %v550
  %v583 = vmul.f32 %v487, %v551
  %v584 = vmul.f32 %v488, %v552
  %v585 = vmul.f32 %v489, %v553
  %v586 = vmul.f32 %v490, %v554
  %v587 = vmul.f32 %v491, %v555
  %v588 = vmul.f32 %v492, %v556
  %v589 = vmul.f32 %v493, %v557
  %v590 = vmul.f32 %v494, %v558
  %v591 = vmul.f32 %v495, %v559
  %v592 = vmul.f32 %v496, %v560
  %v593 = vmul.f32 %v497, %v561
  %v594 = vmul.f32 %v498, %v562
  %v595 = vmul.f32 %v499, %v563
  %v596 = vmul.f32 %v500, %v564
  %v597 = vmul.f32 %v501, %v565
  %v598 = vmul.f32 %v502, %v566
  %v599 = vmul.f32 %v503, %v567
  %v600 = vmul.f32 %v504, %v568
  %v601 = vmul.f32 %v505, %v569
  %v602 = vmul.f32 %v506, %v570
  %v603 = vmul.f32 %v507, %v571
  %v604 = vmul.f32 %v508, %v572
  %v605 = vmul.f32 %v509, %v573
  %v606 = vmul.f32 %v510, %v574
  %v607 = vmul.f32 %v511, %v575
  %v608 = vmul.f32 %v512, %v576
  %v609 = vmul.f32 %v513, %v577
  %v610 = vmul.f32 %v514, %v578
  %v611 = vmul.f32 %v515, %v579
  %v612 = vmul.f32 %v516, %v580
  %v613 = vmul.f32 %v517, %v581
  %v615 = vlaneseq
  %v616 = vshrl.u32 %v615, 7
  %v617 = vsub.s32 0, %v616
  %v618 = vrot.slane %v195, %v617
  %v620 = vmul.f32 %v582, %v618
  %v621 = vmul.f32 %v583, %v618
  %v622 = vmul.f32 %v584, %v618
  %v623 = vmul.f32 %v585, %v618
  %v624 = vmul.f32 %v586, %v618
  %v625 = vmul.f32 %v587, %v618
  %v626 = vmul.f32 %v588, %v618
  %v627 = vmul.f32 %v589, %v618
  %v628 = vmul.f32 %v590, %v618
  %v629 = vmul.f32 %v591, %v618
  %v630 = vmul.f32 %v592, %v618
  %v631 = vmul.f32 %v593, %v618
  %v632 = vmul.f32 %v594, %v618
  %v633 = vmul.f32 %v595, %v618
  %v634 = vmul.f32 %v596, %v618
  %v635 = vmul.f32 %v597, %v618
  %v636 = vmul.f32 %v598, %v618
  %v637 = vmul.f32 %v599, %v618
  %v638 = vmul.f32 %v600, %v618
  %v639 = vmul.f32 %v601, %v618
  %v640 = vmul.f32 %v602, %v618
  %v641 = vmul.f32 %v603, %v618
  %v642 = vmul.f32 %v604, %v618
  %v643 = vmul.f32 %v605, %v618
  %v644 = vmul.f32 %v606, %v618
  %v645 = vmul.f32 %v607, %v618
  %v646 = vmul.f32 %v608, %v618
  %v647 = vmul.f32 %v609, %v618
  %v648 = vmul.f32 %v610, %v618
  %v649 = vmul.f32 %v611, %v618
  %v650 = vmul.f32 %v612, %v618
  %v651 = vmul.f32 %v613, %v618
  %v653 = vlaneseq
  %v654 = vshrl.u32 %v653, 7
  %v655 = vsub.s32 0, %v654
  %v656 = vrot.slane %v196, %v655
  %v658 = vadd.f32 %v620, %v656
  %v659 = vadd.f32 %v621, %v656
  %v660 = vadd.f32 %v622, %v656
  %v661 = vadd.f32 %v623, %v656
  %v662 = vadd.f32 %v624, %v656
  %v663 = vadd.f32 %v625, %v656
  %v664 = vadd.f32 %v626, %v656
  %v665 = vadd.f32 %v627, %v656
  %v666 = vadd.f32 %v628, %v656
  %v667 = vadd.f32 %v629, %v656
  %v668 = vadd.f32 %v630, %v656
  %v669 = vadd.f32 %v631, %v656
  %v670 = vadd.f32 %v632, %v656
  %v671 = vadd.f32 %v633, %v656
  %v672 = vadd.f32 %v634, %v656
  %v673 = vadd.f32 %v635, %v656
  %v674 = vadd.f32 %v636, %v656
  %v675 = vadd.f32 %v637, %v656
  %v676 = vadd.f32 %v638, %v656
  %v677 = vadd.f32 %v639, %v656
  %v678 = vadd.f32 %v640, %v656
  %v679 = vadd.f32 %v641, %v656
  %v680 = vadd.f32 %v642, %v656
  %v681 = vadd.f32 %v643, %v656
  %v682 = vadd.f32 %v644, %v656
  %v683 = vadd.f32 %v645, %v656
  %v684 = vadd.f32 %v646, %v656
  %v685 = vadd.f32 %v647, %v656
  %v686 = vadd.f32 %v648, %v656
  %v687 = vadd.f32 %v649, %v656
  %v688 = vadd.f32 %v650, %v656
  %v689 = vadd.f32 %v651, %v656
  %v690 = vpack.c.bf16 %v659, %v658
  %v691 = vpack.c.bf16 %v661, %v660
  %v692 = vpack.c.bf16 %v663, %v662
  %v693 = vpack.c.bf16 %v665, %v664
  %v694 = vpack.c.bf16 %v667, %v666
  %v695 = vpack.c.bf16 %v669, %v668
  %v696 = vpack.c.bf16 %v671, %v670
  %v697 = vpack.c.bf16 %v673, %v672
  %v698 = vpack.c.bf16 %v675, %v674
  %v699 = vpack.c.bf16 %v677, %v676
  %v700 = vpack.c.bf16 %v679, %v678
  %v701 = vpack.c.bf16 %v681, %v680
  %v702 = vpack.c.bf16 %v683, %v682
  %v703 = vpack.c.bf16 %v685, %v684
  %v704 = vpack.c.bf16 %v687, %v686
  %v705 = vpack.c.bf16 %v689, %v688
  %v706 = vld [vmem:[%s6] sm:$0xff]
  %v707 = vld [vmem:[%s6 + $0x8] sm:$0xf]
  %v708 = vld [vmem:[%s6 + $0xc] sm:$0xff]
  %v709 = vld [vmem:[%s6 + $0x14] sm:$0xf]
  %v710 = vld [vmem:[%s6 + $0x18] sm:$0xff]
  %v711 = vld [vmem:[%s6 + $0x20] sm:$0xf]
  %v712 = vld [vmem:[%s6 + $0x24] sm:$0xff]
  %v713 = vld [vmem:[%s6 + $0x2c] sm:$0xf]
  %v714 = vld [vmem:[%s6 + $0x30] sm:$0xff]
  %v715 = vld [vmem:[%s6 + $0x38] sm:$0xf]
  %v716 = vld [vmem:[%s6 + $0x3c] sm:$0xff]
  %v717 = vld [vmem:[%s6 + $0x44] sm:$0xf]
  %v718 = vld [vmem:[%s6 + $0x48] sm:$0xff]
  %v719 = vld [vmem:[%s6 + $0x50] sm:$0xf]
  %v720 = vld [vmem:[%s6 + $0x54] sm:$0xff]
  %v721 = vld [vmem:[%s6 + $0x5c] sm:$0xf]
  %v722 = vld [vmem:[%s6 + $0x60] sm:$0xff]
  %v723 = vld [vmem:[%s6 + $0x68] sm:$0xf]
  %v724 = vld [vmem:[%s6 + $0x6c] sm:$0xff]
  %v725 = vld [vmem:[%s6 + $0x74] sm:$0xf]
  %v726 = vld [vmem:[%s6 + $0x78] sm:$0xff]
  %v727 = vld [vmem:[%s6 + $0x80] sm:$0xf]
  %v728 = vld [vmem:[%s6 + $0x84] sm:$0xff]
  %v729 = vld [vmem:[%s6 + $0x8c] sm:$0xf]
  %v730 = vld [vmem:[%s6 + $0x90] sm:$0xff]
  %v731 = vld [vmem:[%s6 + $0x98] sm:$0xf]
  %v732 = vld [vmem:[%s6 + $0x9c] sm:$0xff]
  %v733 = vld [vmem:[%s6 + $0xa4] sm:$0xf]
  %v734 = vld [vmem:[%s6 + $0xa8] sm:$0xff]
  %v735 = vld [vmem:[%s6 + $0xb0] sm:$0xf]
  %v736 = vld [vmem:[%s6 + $0xb4] sm:$0xff]
  %v737 = vld [vmem:[%s6 + $0xbc] sm:$0xf]
  %v738 = vld [vmem:[%s7] sm:$0x7]
  %v740 = vlaneseq
  %v741 = vshrl.u32 %v740, 7
  %v742 = vsub.s32 0, %v741
  %v743 = vrot.slane %v738, %v742
  %v744 = vlaneseq
  %v745 = vshrl.u32 %v744, 7
  %v746 = vsub.s32 1, %v745
  %v747 = vrot.slane %v738, %v746
  %v748 = vlaneseq
  %v749 = vshrl.u32 %v748, 7
  %v750 = vsub.s32 2, %v749
  %v751 = vrot.slane %v738, %v750
  %v787 = vunpack.c.l.b16 %v706
  %v788 = vunpack.c.h.b16 %v706
  %v789 = vunpack.c.l.b16 %v707
  %v790 = vunpack.c.l.b16 %v708
  %v791 = vunpack.c.h.b16 %v708
  %v792 = vunpack.c.l.b16 %v709
  %v793 = vunpack.c.l.b16 %v710
  %v794 = vunpack.c.h.b16 %v710
  %v795 = vunpack.c.l.b16 %v711
  %v796 = vunpack.c.l.b16 %v712
  %v797 = vunpack.c.h.b16 %v712
  %v798 = vunpack.c.l.b16 %v713
  %v799 = vunpack.c.l.b16 %v714
  %v800 = vunpack.c.h.b16 %v714
  %v801 = vunpack.c.l.b16 %v715
  %v802 = vunpack.c.l.b16 %v716
  %v803 = vunpack.c.h.b16 %v716
  %v804 = vunpack.c.l.b16 %v717
  %v805 = vunpack.c.l.b16 %v718
  %v806 = vunpack.c.h.b16 %v718
  %v807 = vunpack.c.l.b16 %v719
  %v808 = vunpack.c.l.b16 %v720
  %v809 = vunpack.c.h.b16 %v720
  %v810 = vunpack.c.l.b16 %v721
  %v811 = vunpack.c.l.b16 %v722
  %v812 = vunpack.c.h.b16 %v722
  %v813 = vunpack.c.l.b16 %v723
  %v814 = vunpack.c.l.b16 %v724
  %v815 = vunpack.c.h.b16 %v724
  %v816 = vunpack.c.l.b16 %v725
  %v817 = vunpack.c.l.b16 %v726
  %v818 = vunpack.c.h.b16 %v726
  %v819 = vunpack.c.l.b16 %v727
  %v820 = vunpack.c.l.b16 %v728
  %v821 = vunpack.c.h.b16 %v728
  %v822 = vunpack.c.l.b16 %v729
  %v823 = vunpack.c.l.b16 %v730
  %v824 = vunpack.c.h.b16 %v730
  %v825 = vunpack.c.l.b16 %v731
  %v826 = vunpack.c.l.b16 %v732
  %v827 = vunpack.c.h.b16 %v732
  %v828 = vunpack.c.l.b16 %v733
  %v829 = vunpack.c.l.b16 %v734
  %v830 = vunpack.c.h.b16 %v734
  %v831 = vunpack.c.l.b16 %v735
  %v832 = vunpack.c.l.b16 %v736
  %v833 = vunpack.c.h.b16 %v736
  %v834 = vunpack.c.l.b16 %v737
  %v835 = vpack.c.b16 %v790, %v787
  %v836 = vpack.c.b16 %v791, %v788
  %v837 = vpack.c.b16 %v792, %v789
  %v838 = vpack.c.b16 %v796, %v793
  %v839 = vpack.c.b16 %v797, %v794
  %v840 = vpack.c.b16 %v798, %v795
  %v841 = vpack.c.b16 %v802, %v799
  %v842 = vpack.c.b16 %v803, %v800
  %v843 = vpack.c.b16 %v804, %v801
  %v844 = vpack.c.b16 %v808, %v805
  %v845 = vpack.c.b16 %v809, %v806
  %v846 = vpack.c.b16 %v810, %v807
  %v847 = vpack.c.b16 %v814, %v811
  %v848 = vpack.c.b16 %v815, %v812
  %v849 = vpack.c.b16 %v816, %v813
  %v850 = vpack.c.b16 %v820, %v817
  %v851 = vpack.c.b16 %v821, %v818
  %v852 = vpack.c.b16 %v822, %v819
  %v853 = vpack.c.b16 %v826, %v823
  %v854 = vpack.c.b16 %v827, %v824
  %v855 = vpack.c.b16 %v828, %v825
  %v856 = vpack.c.b16 %v832, %v829
  %v857 = vpack.c.b16 %v833, %v830
  %v858 = vpack.c.b16 %v834, %v831
  %883 = vmatprep.subr.bf16.mxu0 %v857
  %884 = vmatpush1.bf16.msra.mxu0 %v856
  %885 = vmatprep.subr.bf16.mxu0 %v854
  %886 = vmatpush1.bf16.msra.mxu0 %v853
  %887 = vmatprep.subr.bf16.mxu0 %v851
  %888 = vmatpush1.bf16.msra.mxu0 %v850
  %889 = vmatprep.subr.bf16.mxu0 %v848
  %890 = vmatpush1.bf16.msra.mxu0 %v847
  %891 = vmatprep.subr.bf16.mxu0 %v845
  %892 = vmatpush1.bf16.msra.mxu0 %v844
  %893 = vmatprep.subr.bf16.mxu0 %v842
  %894 = vmatpush1.bf16.msra.mxu0 %v841
  %895 = vmatprep.subr.bf16.mxu0 %v839
  %896 = vmatpush1.bf16.msra.mxu0 %v838
  %897 = vmatprep.subr.bf16.mxu0 %v836
  %898 = vmatpush1.bf16.msra.mxu0 %v835
  %899 = vmatprep.subr.bf16.mxu0 0
  %900 = vmatpush2.bf16.msra.mxu0 0
  %901 = vmatprep.subr.bf16.mxu0 0
  %902 = vmatpush2.bf16.msra.mxu0 0
  %903 = vmatprep.subr.bf16.mxu0 0
  %904 = vmatpush2.bf16.msra.mxu0 0
  %905 = vmatprep.subr.bf16.mxu0 0
  %906 = vmatpush2.bf16.msra.mxu0 0
  %907 = vmatprep.subr.bf16.mxu0 0
  %908 = vmatpush2.bf16.msra.mxu0 0
  %909 = vmatprep.subr.bf16.mxu0 0
  %910 = vmatpush2.bf16.msra.mxu0 0
  %911 = vmatprep.subr.bf16.mxu0 0
  %912 = vmatpush2.bf16.msra.mxu0 0
  %913 = vmatprep.subr.bf16.mxu0 0
  %914 = vmatpush2.bf16.msra.mxu0 0
  %915 = vmatprep.mubr.bf16.mxu0 0
  %916 = vmatmul.mubr.bf16.gmra.mxu0 %v690
  %v917 = vpop.f32.mrf.mxu0
  %v918 = vadd.f32 %v743, %v917
  %v919 = vpop.f32.mrf.mxu0
  %v920 = vadd.f32 %v747, %v919
  %v921 = vpop.f32.mrf.mxu0
  %v922 = vadd.f32 %v743, %v921
  %v923 = vpop.f32.mrf.mxu0
  %v924 = vadd.f32 %v747, %v923
  %925 = vmatprep.mubr.bf16.mxu0 0
  %926 = vmatmul.mubr.bf16.gmra.mxu0 %v691
  %v927 = vpop.f32.mrf.mxu0
  %v928 = vadd.f32 %v743, %v927
  %v929 = vpop.f32.mrf.mxu0
  %v930 = vadd.f32 %v747, %v929
  %v931 = vpop.f32.mrf.mxu0
  %v932 = vadd.f32 %v743, %v931
  %v933 = vpop.f32.mrf.mxu0
  %v934 = vadd.f32 %v747, %v933
  %935 = vmatprep.mubr.bf16.mxu0 0
  %936 = vmatmul.mubr.bf16.gmra.mxu0 %v692
  %v937 = vpop.f32.mrf.mxu0
  %v938 = vadd.f32 %v743, %v937
  %v939 = vpop.f32.mrf.mxu0
  %v940 = vadd.f32 %v747, %v939
  %v941 = vpop.f32.mrf.mxu0
  %v942 = vadd.f32 %v743, %v941
  %v943 = vpop.f32.mrf.mxu0
  %v944 = vadd.f32 %v747, %v943
  %945 = vmatprep.mubr.bf16.mxu0 0
  %946 = vmatmul.mubr.bf16.gmra.mxu0 %v693
  %v947 = vpop.f32.mrf.mxu0
  %v948 = vadd.f32 %v743, %v947
  %v949 = vpop.f32.mrf.mxu0
  %v950 = vadd.f32 %v747, %v949
  %v951 = vpop.f32.mrf.mxu0
  %v952 = vadd.f32 %v743, %v951
  %v953 = vpop.f32.mrf.mxu0
  %v954 = vadd.f32 %v747, %v953
  %955 = vmatprep.mubr.bf16.mxu0 0
  %956 = vmatmul.mubr.bf16.gmra.mxu0 %v694
  %v957 = vpop.f32.mrf.mxu0
  %v958 = vadd.f32 %v743, %v957
  %v959 = vpop.f32.mrf.mxu0
  %v960 = vadd.f32 %v747, %v959
  %v961 = vpop.f32.mrf.mxu0
  %v962 = vadd.f32 %v743, %v961
  %v963 = vpop.f32.mrf.mxu0
  %v964 = vadd.f32 %v747, %v963
  %965 = vmatprep.mubr.bf16.mxu0 0
  %966 = vmatmul.mubr.bf16.gmra.mxu0 %v695
  %v967 = vpop.f32.mrf.mxu0
  %v968 = vadd.f32 %v743, %v967
  %v969 = vpop.f32.mrf.mxu0
  %v970 = vadd.f32 %v747, %v969
  %v971 = vpop.f32.mrf.mxu0
  %v972 = vadd.f32 %v743, %v971
  %v973 = vpop.f32.mrf.mxu0
  %v974 = vadd.f32 %v747, %v973
  %975 = vmatprep.mubr.bf16.mxu0 0
  %976 = vmatmul.mubr.bf16.gmra.mxu0 %v696
  %v977 = vpop.f32.mrf.mxu0
  %v978 = vadd.f32 %v743, %v977
  %v979 = vpop.f32.mrf.mxu0
  %v980 = vadd.f32 %v747, %v979
  %v981 = vpop.f32.mrf.mxu0
  %v982 = vadd.f32 %v743, %v981
  %v983 = vpop.f32.mrf.mxu0
  %v984 = vadd.f32 %v747, %v983
  %985 = vmatprep.mubr.bf16.mxu0 0
  %986 = vmatmul.mubr.bf16.gmra.mxu0 %v697
  %v987 = vpop.f32.mrf.mxu0
  %v988 = vadd.f32 %v743, %v987
  %v989 = vpop.f32.mrf.mxu0
  %v990 = vadd.f32 %v747, %v989
  %v991 = vpop.f32.mrf.mxu0
  %v992 = vadd.f32 %v743, %v991
  %v993 = vpop.f32.mrf.mxu0
  %v994 = vadd.f32 %v747, %v993
  %995 = vmatprep.mubr.bf16.mxu0 0
  %996 = vmatmul.mubr.bf16.gmra.mxu0 %v698
  %v997 = vpop.f32.mrf.mxu0
  %v998 = vadd.f32 %v743, %v997
  %v999 = vpop.f32.mrf.mxu0
  %v1000 = vadd.f32 %v747, %v999
  %v1001 = vpop.f32.mrf.mxu0
  %v1002 = vadd.f32 %v743, %v1001
  %v1003 = vpop.f32.mrf.mxu0
  %v1004 = vadd.f32 %v747, %v1003
  %1005 = vmatprep.mubr.bf16.mxu0 0
  %1006 = vmatmul.mubr.bf16.gmra.mxu0 %v699
  %v1007 = vpop.f32.mrf.mxu0
  %v1008 = vadd.f32 %v743, %v1007
  %v1009 = vpop.f32.mrf.mxu0
  %v1010 = vadd.f32 %v747, %v1009
  %v1011 = vpop.f32.mrf.mxu0
  %v1012 = vadd.f32 %v743, %v1011
  %v1013 = vpop.f32.mrf.mxu0
  %v1014 = vadd.f32 %v747, %v1013
  %1015 = vmatprep.mubr.bf16.mxu0 0
  %1016 = vmatmul.mubr.bf16.gmra.mxu0 %v700
  %v1017 = vpop.f32.mrf.mxu0
  %v1018 = vadd.f32 %v743, %v1017
  %v1019 = vpop.f32.mrf.mxu0
  %v1020 = vadd.f32 %v747, %v1019
  %v1021 = vpop.f32.mrf.mxu0
  %v1022 = vadd.f32 %v743, %v1021
  %v1023 = vpop.f32.mrf.mxu0
  %v1024 = vadd.f32 %v747, %v1023
  %1025 = vmatprep.mubr.bf16.mxu0 0
  %1026 = vmatmul.mubr.bf16.gmra.mxu0 %v701
  %v1027 = vpop.f32.mrf.mxu0
  %v1028 = vadd.f32 %v743, %v1027
  %v1029 = vpop.f32.mrf.mxu0
  %v1030 = vadd.f32 %v747, %v1029
  %v1031 = vpop.f32.mrf.mxu0
  %v1032 = vadd.f32 %v743, %v1031
  %v1033 = vpop.f32.mrf.mxu0
  %v1034 = vadd.f32 %v747, %v1033
  %1035 = vmatprep.mubr.bf16.mxu0 0
  %1036 = vmatmul.mubr.bf16.gmra.mxu0 %v702
  %v1037 = vpop.f32.mrf.mxu0
  %v1038 = vadd.f32 %v743, %v1037
  %v1039 = vpop.f32.mrf.mxu0
  %v1040 = vadd.f32 %v747, %v1039
  %v1041 = vpop.f32.mrf.mxu0
  %v1042 = vadd.f32 %v743, %v1041
  %v1043 = vpop.f32.mrf.mxu0
  %v1044 = vadd.f32 %v747, %v1043
  %1045 = vmatprep.mubr.bf16.mxu0 0
  %1046 = vmatmul.mubr.bf16.gmra.mxu0 %v703
  %v1047 = vpop.f32.mrf.mxu0
  %v1048 = vadd.f32 %v743, %v1047
  %v1049 = vpop.f32.mrf.mxu0
  %v1050 = vadd.f32 %v747, %v1049
  %v1051 = vpop.f32.mrf.mxu0
  %v1052 = vadd.f32 %v743, %v1051
  %v1053 = vpop.f32.mrf.mxu0
  %v1054 = vadd.f32 %v747, %v1053
  %1055 = vmatprep.mubr.bf16.mxu0 0
  %1056 = vmatmul.mubr.bf16.gmra.mxu0 %v704
  %v1057 = vpop.f32.mrf.mxu0
  %v1058 = vadd.f32 %v743, %v1057
  %v1059 = vpop.f32.mrf.mxu0
  %v1060 = vadd.f32 %v747, %v1059
  %v1061 = vpop.f32.mrf.mxu0
  %v1062 = vadd.f32 %v743, %v1061
  %v1063 = vpop.f32.mrf.mxu0
  %v1064 = vadd.f32 %v747, %v1063
  %1065 = vmatprep.mubr.bf16.mxu0 0
  %1066 = vmatmul.mubr.bf16.gmra.mxu0 %v705
  %v1067 = vpop.f32.mrf.mxu0
  %v1068 = vadd.f32 %v743, %v1067
  %v1069 = vpop.f32.mrf.mxu0
  %v1070 = vadd.f32 %v747, %v1069
  %v1071 = vpop.f32.mrf.mxu0
  %v1072 = vadd.f32 %v743, %v1071
  %v1073 = vpop.f32.mrf.mxu0
  %v1074 = vadd.f32 %v747, %v1073
  %1075 = vdwg.mxu0
  %1076 = vmatprep.subr.bf16.mxu0 0
  %1077 = vmatpush1.bf16.msra.mxu0 %v858
  %1078 = vmatprep.subr.bf16.mxu0 0
  %1079 = vmatpush1.bf16.msra.mxu0 %v855
  %1080 = vmatprep.subr.bf16.mxu0 0
  %1081 = vmatpush1.bf16.msra.mxu0 %v852
  %1082 = vmatprep.subr.bf16.mxu0 0
  %1083 = vmatpush1.bf16.msra.mxu0 %v849
  %1084 = vmatprep.subr.bf16.mxu0 0
  %1085 = vmatpush1.bf16.msra.mxu0 %v846
  %1086 = vmatprep.subr.bf16.mxu0 0
  %1087 = vmatpush1.bf16.msra.mxu0 %v843
  %1088 = vmatprep.subr.bf16.mxu0 0
  %1089 = vmatpush1.bf16.msra.mxu0 %v840
  %1090 = vmatprep.subr.bf16.mxu0 0
  %1091 = vmatpush1.bf16.msra.mxu0 %v837
  %1092 = vmatprep.subr.bf16.mxu0 0
  %1093 = vmatpush2.bf16.msra.mxu0 0
  %1094 = vmatprep.subr.bf16.mxu0 0
  %1095 = vmatpush2.bf16.msra.mxu0 0
  %1096 = vmatprep.subr.bf16.mxu0 0
  %1097 = vmatpush2.bf16.msra.mxu0 0
  %1098 = vmatprep.subr.bf16.mxu0 0
  %1099 = vmatpush2.bf16.msra.mxu0 0
  %1100 = vmatprep.subr.bf16.mxu0 0
  %1101 = vmatpush2.bf16.msra.mxu0 0
  %1102 = vmatprep.subr.bf16.mxu0 0
  %1103 = vmatpush2.bf16.msra.mxu0 0
  %1104 = vmatprep.subr.bf16.mxu0 0
  %1105 = vmatpush2.bf16.msra.mxu0 0
  %1106 = vmatprep.subr.bf16.mxu0 0
  %1107 = vmatpush2.bf16.msra.mxu0 0
  %1108 = vmatprep.mubr.bf16.mxu0 0
  %1109 = vmatmul.mubr.bf16.gmra.mxu0 %v690
  %v1110 = vpop.f32.mrf.mxu0
  %v1111 = vadd.f32 %v751, %v1110
  %v1112 = vpop.f32.mrf.mxu0
  %v1113 = vpop.f32.mrf.mxu0
  %v1114 = vadd.f32 %v751, %v1113
  %v1115 = vpop.f32.mrf.mxu0
  %1116 = vmatprep.mubr.bf16.mxu0 0
  %1117 = vmatmul.mubr.bf16.gmra.mxu0 %v691
  %v1118 = vpop.f32.mrf.mxu0
  %v1119 = vadd.f32 %v751, %v1118
  %v1120 = vpop.f32.mrf.mxu0
  %v1121 = vpop.f32.mrf.mxu0
  %v1122 = vadd.f32 %v751, %v1121
  %v1123 = vpop.f32.mrf.mxu0
  %1124 = vmatprep.mubr.bf16.mxu0 0
  %1125 = vmatmul.mubr.bf16.gmra.mxu0 %v692
  %v1126 = vpop.f32.mrf.mxu0
  %v1127 = vadd.f32 %v751, %v1126
  %v1128 = vpop.f32.mrf.mxu0
  %v1129 = vpop.f32.mrf.mxu0
  %v1130 = vadd.f32 %v751, %v1129
  %v1131 = vpop.f32.mrf.mxu0
  %1132 = vmatprep.mubr.bf16.mxu0 0
  %1133 = vmatmul.mubr.bf16.gmra.mxu0 %v693
  %v1134 = vpop.f32.mrf.mxu0
  %v1135 = vadd.f32 %v751, %v1134
  %v1136 = vpop.f32.mrf.mxu0
  %v1137 = vpop.f32.mrf.mxu0
  %v1138 = vadd.f32 %v751, %v1137
  %v1139 = vpop.f32.mrf.mxu0
  %1140 = vmatprep.mubr.bf16.mxu0 0
  %1141 = vmatmul.mubr.bf16.gmra.mxu0 %v694
  %v1142 = vpop.f32.mrf.mxu0
  %v1143 = vadd.f32 %v751, %v1142
  %v1144 = vpop.f32.mrf.mxu0
  %v1145 = vpop.f32.mrf.mxu0
  %v1146 = vadd.f32 %v751, %v1145
  %v1147 = vpop.f32.mrf.mxu0
  %1148 = vmatprep.mubr.bf16.mxu0 0
  %1149 = vmatmul.mubr.bf16.gmra.mxu0 %v695
  %v1150 = vpop.f32.mrf.mxu0
  %v1151 = vadd.f32 %v751, %v1150
  %v1152 = vpop.f32.mrf.mxu0
  %v1153 = vpop.f32.mrf.mxu0
  %v1154 = vadd.f32 %v751, %v1153
  %v1155 = vpop.f32.mrf.mxu0
  %1156 = vmatprep.mubr.bf16.mxu0 0
  %1157 = vmatmul.mubr.bf16.gmra.mxu0 %v696
  %v1158 = vpop.f32.mrf.mxu0
  %v1159 = vadd.f32 %v751, %v1158
  %v1160 = vpop.f32.mrf.mxu0
  %v1161 = vpop.f32.mrf.mxu0
  %v1162 = vadd.f32 %v751, %v1161
  %v1163 = vpop.f32.mrf.mxu0
  %1164 = vmatprep.mubr.bf16.mxu0 0
  %1165 = vmatmul.mubr.bf16.gmra.mxu0 %v697
  %v1166 = vpop.f32.mrf.mxu0
  %v1167 = vadd.f32 %v751, %v1166
  %v1168 = vpop.f32.mrf.mxu0
  %v1169 = vpop.f32.mrf.mxu0
  %v1170 = vadd.f32 %v751, %v1169
  %v1171 = vpop.f32.mrf.mxu0
  %1172 = vmatprep.mubr.bf16.mxu0 0
  %1173 = vmatmul.mubr.bf16.gmra.mxu0 %v698
  %v1174 = vpop.f32.mrf.mxu0
  %v1175 = vadd.f32 %v751, %v1174
  %v1176 = vpop.f32.mrf.mxu0
  %v1177 = vpop.f32.mrf.mxu0
  %v1178 = vadd.f32 %v751, %v1177
  %v1179 = vpop.f32.mrf.mxu0
  %1180 = vmatprep.mubr.bf16.mxu0 0
  %1181 = vmatmul.mubr.bf16.gmra.mxu0 %v699
  %v1182 = vpop.f32.mrf.mxu0
  %v1183 = vadd.f32 %v751, %v1182
  %v1184 = vpop.f32.mrf.mxu0
  %v1185 = vpop.f32.mrf.mxu0
  %v1186 = vadd.f32 %v751, %v1185
  %v1187 = vpop.f32.mrf.mxu0
  %1188 = vmatprep.mubr.bf16.mxu0 0
  %1189 = vmatmul.mubr.bf16.gmra.mxu0 %v700
  %v1190 = vpop.f32.mrf.mxu0
  %v1191 = vadd.f32 %v751, %v1190
  %v1192 = vpop.f32.mrf.mxu0
  %v1193 = vpop.f32.mrf.mxu0
  %v1194 = vadd.f32 %v751, %v1193
  %v1195 = vpop.f32.mrf.mxu0
  %1196 = vmatprep.mubr.bf16.mxu0 0
  %1197 = vmatmul.mubr.bf16.gmra.mxu0 %v701
  %v1198 = vpop.f32.mrf.mxu0
  %v1199 = vadd.f32 %v751, %v1198
  %v1200 = vpop.f32.mrf.mxu0
  %v1201 = vpop.f32.mrf.mxu0
  %v1202 = vadd.f32 %v751, %v1201
  %v1203 = vpop.f32.mrf.mxu0
  %1204 = vmatprep.mubr.bf16.mxu0 0
  %1205 = vmatmul.mubr.bf16.gmra.mxu0 %v702
  %v1206 = vpop.f32.mrf.mxu0
  %v1207 = vadd.f32 %v751, %v1206
  %v1208 = vpop.f32.mrf.mxu0
  %v1209 = vpop.f32.mrf.mxu0
  %v1210 = vadd.f32 %v751, %v1209
  %v1211 = vpop.f32.mrf.mxu0
  %1212 = vmatprep.mubr.bf16.mxu0 0
  %1213 = vmatmul.mubr.bf16.gmra.mxu0 %v703
  %v1214 = vpop.f32.mrf.mxu0
  %v1215 = vadd.f32 %v751, %v1214
  %v1216 = vpop.f32.mrf.mxu0
  %v1217 = vpop.f32.mrf.mxu0
  %v1218 = vadd.f32 %v751, %v1217
  %v1219 = vpop.f32.mrf.mxu0
  %1220 = vmatprep.mubr.bf16.mxu0 0
  %1221 = vmatmul.mubr.bf16.gmra.mxu0 %v704
  %v1222 = vpop.f32.mrf.mxu0
  %v1223 = vadd.f32 %v751, %v1222
  %v1224 = vpop.f32.mrf.mxu0
  %v1225 = vpop.f32.mrf.mxu0
  %v1226 = vadd.f32 %v751, %v1225
  %v1227 = vpop.f32.mrf.mxu0
  %1228 = vmatprep.mubr.bf16.mxu0 0
  %1229 = vmatmul.mubr.bf16.gmra.mxu0 %v705
  %v1230 = vpop.f32.mrf.mxu0
  %v1231 = vadd.f32 %v751, %v1230
  %v1232 = vpop.f32.mrf.mxu0
  %v1233 = vpop.f32.mrf.mxu0
  %v1234 = vadd.f32 %v751, %v1233
  %v1235 = vpop.f32.mrf.mxu0
  %1236 = vdwg.mxu0
  %v1237 = vpack.c.bf16 %v922, %v918
  %v1238 = vpack.c.bf16 %v932, %v928
  %v1239 = vpack.c.bf16 %v942, %v938
  %v1240 = vpack.c.bf16 %v952, %v948
  %v1241 = vpack.c.bf16 %v962, %v958
  %v1242 = vpack.c.bf16 %v972, %v968
  %v1243 = vpack.c.bf16 %v982, %v978
  %v1244 = vpack.c.bf16 %v992, %v988
  %v1245 = vpack.c.bf16 %v924, %v920
  %v1246 = vpack.c.bf16 %v934, %v930
  %v1247 = vpack.c.bf16 %v944, %v940
  %v1248 = vpack.c.bf16 %v954, %v950
  %v1249 = vpack.c.bf16 %v964, %v960
  %v1250 = vpack.c.bf16 %v974, %v970
  %v1251 = vpack.c.bf16 %v984, %v980
  %v1252 = vpack.c.bf16 %v994, %v990
  %v1253 = vpack.c.bf16 %v1114, %v1111
  %v1254 = vpack.c.bf16 %v1122, %v1119
  %v1255 = vpack.c.bf16 %v1130, %v1127
  %v1256 = vpack.c.bf16 %v1138, %v1135
  %v1257 = vpack.c.bf16 %v1146, %v1143
  %v1258 = vpack.c.bf16 %v1154, %v1151
  %v1259 = vpack.c.bf16 %v1162, %v1159
  %v1260 = vpack.c.bf16 %v1170, %v1167
  %vm1261 = vcmask 523264
  %v1263 = vsel %vm1261, %v1237, 0
  %v1266 = vsel %vm1261, %v1238, 0
  %v1269 = vsel %vm1261, %v1239, 0
  %v1272 = vsel %vm1261, %v1240, 0
  %v1275 = vsel %vm1261, %v1241, 0
  %v1278 = vsel %vm1261, %v1242, 0
  %v1281 = vsel %vm1261, %v1243, 0
  %v1284 = vsel %vm1261, %v1244, 0
  %v1287 = vsel %vm1261, %v1245, 0
  %v1290 = vsel %vm1261, %v1246, 0
  %v1293 = vsel %vm1261, %v1247, 0
  %v1296 = vsel %vm1261, %v1248, 0
  %v1299 = vsel %vm1261, %v1249, 0
  %v1302 = vsel %vm1261, %v1250, 0
  %v1305 = vsel %vm1261, %v1251, 0
  %v1308 = vsel %vm1261, %v1252, 0
  %1310 = vmatprep.subr.bf16.mxu0 0
  %1311 = vmatpush1.bf16.xpose.msra.mxu0 %v1308
  %1312 = vmatprep.subr.bf16.mxu0 0
  %1313 = vmatpush1.bf16.xpose.msra.mxu0 %v1305
  %1314 = vmatprep.subr.bf16.mxu0 0
  %1315 = vmatpush1.bf16.xpose.msra.mxu0 %v1302
  %1316 = vmatprep.subr.bf16.mxu0 0
  %1317 = vmatpush1.bf16.xpose.msra.mxu0 %v1299
  %1318 = vmatprep.subr.bf16.mxu0 0
  %1319 = vmatpush1.bf16.xpose.msra.mxu0 %v1296
  %1320 = vmatprep.subr.bf16.mxu0 0
  %1321 = vmatpush1.bf16.xpose.msra.mxu0 %v1293
  %1322 = vmatprep.subr.bf16.mxu0 0
  %1323 = vmatpush1.bf16.xpose.msra.mxu0 %v1290
  %1324 = vmatprep.subr.bf16.mxu0 0
  %1325 = vmatpush1.bf16.xpose.msra.mxu0 %v1287
  %1326 = vmatprep.subr.bf16.mxu0 0
  %1327 = vmatpush2.bf16.xpose.msra.mxu0 0
  %1328 = vmatprep.subr.bf16.mxu0 0
  %1329 = vmatpush2.bf16.xpose.msra.mxu0 0
  %1330 = vmatprep.subr.bf16.mxu0 0
  %1331 = vmatpush2.bf16.xpose.msra.mxu0 0
  %1332 = vmatprep.subr.bf16.mxu0 0
  %1333 = vmatpush2.bf16.xpose.msra.mxu0 0
  %1334 = vmatprep.subr.bf16.mxu0 0
  %1335 = vmatpush2.bf16.xpose.msra.mxu0 0
  %1336 = vmatprep.subr.bf16.mxu0 0
  %1337 = vmatpush2.bf16.xpose.msra.mxu0 0
  %1338 = vmatprep.subr.bf16.mxu0 0
  %1339 = vmatpush2.bf16.xpose.msra.mxu0 0
  %1340 = vmatprep.subr.bf16.mxu0 0
  %1341 = vmatpush2.bf16.xpose.msra.mxu0 0
  %1342 = vmatprep.mubr.bf16.mxu0 0
  %1343 = vmatmul.mubr.bf16.gmra.mxu0 %v1263
  %v1344 = vpop.f32.mrf.mxu0
  %v1345 = vadd.f32 0.0, %v1344
  %v1346 = vpop.f32.mrf.mxu0
  %v1347 = vpop.f32.mrf.mxu0
  %v1348 = vadd.f32 0.0, %v1347
  %v1349 = vpop.f32.mrf.mxu0
  %1350 = vmatprep.mubr.bf16.mxu0 0
  %1351 = vmatmul.mubr.bf16.gmra.mxu0 %v1266
  %v1352 = vpop.f32.mrf.mxu0
  %v1353 = vadd.f32 0.0, %v1352
  %v1354 = vpop.f32.mrf.mxu0
  %v1355 = vpop.f32.mrf.mxu0
  %v1356 = vadd.f32 0.0, %v1355
  %v1357 = vpop.f32.mrf.mxu0
  %1358 = vmatprep.mubr.bf16.mxu0 0
  %1359 = vmatmul.mubr.bf16.gmra.mxu0 %v1269
  %v1360 = vpop.f32.mrf.mxu0
  %v1361 = vadd.f32 0.0, %v1360
  %v1362 = vpop.f32.mrf.mxu0
  %v1363 = vpop.f32.mrf.mxu0
  %v1364 = vadd.f32 0.0, %v1363
  %v1365 = vpop.f32.mrf.mxu0
  %1366 = vmatprep.mubr.bf16.mxu0 0
  %1367 = vmatmul.mubr.bf16.gmra.mxu0 %v1272
  %v1368 = vpop.f32.mrf.mxu0
  %v1369 = vadd.f32 0.0, %v1368
  %v1370 = vpop.f32.mrf.mxu0
  %v1371 = vpop.f32.mrf.mxu0
  %v1372 = vadd.f32 0.0, %v1371
  %v1373 = vpop.f32.mrf.mxu0
  %1374 = vmatprep.mubr.bf16.mxu0 0
  %1375 = vmatmul.mubr.bf16.gmra.mxu0 %v1275
  %v1376 = vpop.f32.mrf.mxu0
  %v1377 = vadd.f32 0.0, %v1376
  %v1378 = vpop.f32.mrf.mxu0
  %v1379 = vpop.f32.mrf.mxu0
  %v1380 = vadd.f32 0.0, %v1379
  %v1381 = vpop.f32.mrf.mxu0
  %1382 = vmatprep.mubr.bf16.mxu0 0
  %1383 = vmatmul.mubr.bf16.gmra.mxu0 %v1278
  %v1384 = vpop.f32.mrf.mxu0
  %v1385 = vadd.f32 0.0, %v1384
  %v1386 = vpop.f32.mrf.mxu0
  %v1387 = vpop.f32.mrf.mxu0
  %v1388 = vadd.f32 0.0, %v1387
  %v1389 = vpop.f32.mrf.mxu0
  %1390 = vmatprep.mubr.bf16.mxu0 0
  %1391 = vmatmul.mubr.bf16.gmra.mxu0 %v1281
  %v1392 = vpop.f32.mrf.mxu0
  %v1393 = vadd.f32 0.0, %v1392
  %v1394 = vpop.f32.mrf.mxu0
  %v1395 = vpop.f32.mrf.mxu0
  %v1396 = vadd.f32 0.0, %v1395
  %v1397 = vpop.f32.mrf.mxu0
  %1398 = vmatprep.mubr.bf16.mxu0 0
  %1399 = vmatmul.mubr.bf16.gmra.mxu0 %v1284
  %v1400 = vpop.f32.mrf.mxu0
  %v1401 = vadd.f32 0.0, %v1400
  %v1402 = vpop.f32.mrf.mxu0
  %v1403 = vpop.f32.mrf.mxu0
  %v1404 = vadd.f32 0.0, %v1403
  %v1405 = vpop.f32.mrf.mxu0
  %1406 = vdwg.mxu0
  %v1407 = vmul.f32 %v1345, 0.125
  %v1408 = vmul.f32 %v1348, 0.125
  %v1409 = vmul.f32 %v1353, 0.125
  %v1410 = vmul.f32 %v1356, 0.125
  %v1411 = vmul.f32 %v1361, 0.125
  %v1412 = vmul.f32 %v1364, 0.125
  %v1413 = vmul.f32 %v1369, 0.125
  %v1414 = vmul.f32 %v1372, 0.125
  %v1415 = vmul.f32 %v1377, 0.125
  %v1416 = vmul.f32 %v1380, 0.125
  %v1417 = vmul.f32 %v1385, 0.125
  %v1418 = vmul.f32 %v1388, 0.125
  %v1419 = vmul.f32 %v1393, 0.125
  %v1420 = vmul.f32 %v1396, 0.125
  %v1421 = vmul.f32 %v1401, 0.125
  %v1422 = vmul.f32 %v1404, 0.125
  %v1423 = vlaneseq
  %v1424 = vshrl.u32 %v1423, 7
  %v1425 = vsub.s32 0, %v1424
  %v1426 = vrot.slane %v141, %v1425
  %v1427 = vadd.f32 %v1407, %v1426
  %v1428 = vadd.f32 %v1408, %v1426
  %v1429 = vadd.f32 %v1409, %v1426
  %v1430 = vadd.f32 %v1410, %v1426
  %v1431 = vadd.f32 %v1411, %v1426
  %v1432 = vadd.f32 %v1412, %v1426
  %v1433 = vadd.f32 %v1413, %v1426
  %v1434 = vadd.f32 %v1414, %v1426
  %v1435 = vadd.f32 %v1415, %v1426
  %v1436 = vadd.f32 %v1416, %v1426
  %v1437 = vadd.f32 %v1417, %v1426
  %v1438 = vadd.f32 %v1418, %v1426
  %v1439 = vadd.f32 %v1419, %v1426
  %v1440 = vadd.f32 %v1420, %v1426
  %v1441 = vadd.f32 %v1421, %v1426
  %v1442 = vadd.f32 %v1422, %v1426
  %1443 = vmax.xlane.f32.xlu0 %v1427
  %v1444 = vpop.xlane.xlu0 %1443
  %1445 = vmax.xlane.f32.xlu0 %v1428
  %v1446 = vpop.xlane.xlu0 %1445
  %1447 = vmax.xlane.f32.xlu0 %v1429
  %v1448 = vpop.xlane.xlu0 %1447
  %1449 = vmax.xlane.f32.xlu0 %v1430
  %v1450 = vpop.xlane.xlu0 %1449
  %1451 = vmax.xlane.f32.xlu0 %v1431
  %v1452 = vpop.xlane.xlu0 %1451
  %1453 = vmax.xlane.f32.xlu0 %v1432
  %v1454 = vpop.xlane.xlu0 %1453
  %1455 = vmax.xlane.f32.xlu0 %v1433
  %v1456 = vpop.xlane.xlu0 %1455
  %1457 = vmax.xlane.f32.xlu0 %v1434
  %v1458 = vpop.xlane.xlu0 %1457
  %1459 = vmax.xlane.f32.xlu0 %v1435
  %v1460 = vpop.xlane.xlu0 %1459
  %1461 = vmax.xlane.f32.xlu0 %v1436
  %v1462 = vpop.xlane.xlu0 %1461
  %1463 = vmax.xlane.f32.xlu0 %v1437
  %v1464 = vpop.xlane.xlu0 %1463
  %1465 = vmax.xlane.f32.xlu0 %v1438
  %v1466 = vpop.xlane.xlu0 %1465
  %1467 = vmax.xlane.f32.xlu0 %v1439
  %v1468 = vpop.xlane.xlu0 %1467
  %1469 = vmax.xlane.f32.xlu0 %v1440
  %v1470 = vpop.xlane.xlu0 %1469
  %1471 = vmax.xlane.f32.xlu0 %v1441
  %v1472 = vpop.xlane.xlu0 %1471
  %1473 = vmax.xlane.f32.xlu0 %v1442
  %v1474 = vpop.xlane.xlu0 %1473
  %v1475 = vsub.f32 %v1427, %v1444
  %v1476 = vsub.f32 %v1428, %v1446
  %v1477 = vsub.f32 %v1429, %v1448
  %v1478 = vsub.f32 %v1430, %v1450
  %v1479 = vsub.f32 %v1431, %v1452
  %v1480 = vsub.f32 %v1432, %v1454
  %v1481 = vsub.f32 %v1433, %v1456
  %v1482 = vsub.f32 %v1434, %v1458
  %v1483 = vsub.f32 %v1435, %v1460
  %v1484 = vsub.f32 %v1436, %v1462
  %v1485 = vsub.f32 %v1437, %v1464
  %v1486 = vsub.f32 %v1438, %v1466
  %v1487 = vsub.f32 %v1439, %v1468
  %v1488 = vsub.f32 %v1440, %v1470
  %v1489 = vsub.f32 %v1441, %v1472
  %v1490 = vsub.f32 %v1442, %v1474
  %v1491 = vmul.f32 %v1475, 1.442695
  %v1492 = vpow.pop %v1491
  %v1493 = vmul.f32 %v1476, 1.442695
  %v1494 = vpow.pop %v1493
  %v1495 = vmul.f32 %v1477, 1.442695
  %v1496 = vpow.pop %v1495
  %v1497 = vmul.f32 %v1478, 1.442695
  %v1498 = vpow.pop %v1497
  %v1499 = vmul.f32 %v1479, 1.442695
  %v1500 = vpow.pop %v1499
  %v1501 = vmul.f32 %v1480, 1.442695
  %v1502 = vpow.pop %v1501
  %v1503 = vmul.f32 %v1481, 1.442695
  %v1504 = vpow.pop %v1503
  %v1505 = vmul.f32 %v1482, 1.442695
  %v1506 = vpow.pop %v1505
  %v1507 = vmul.f32 %v1483, 1.442695
  %v1508 = vpow.pop %v1507
  %v1509 = vmul.f32 %v1484, 1.442695
  %v1510 = vpow.pop %v1509
  %v1511 = vmul.f32 %v1485, 1.442695
  %v1512 = vpow.pop %v1511
  %v1513 = vmul.f32 %v1486, 1.442695
  %v1514 = vpow.pop %v1513
  %v1515 = vmul.f32 %v1487, 1.442695
  %v1516 = vpow.pop %v1515
  %v1517 = vmul.f32 %v1488, 1.442695
  %v1518 = vpow.pop %v1517
  %v1519 = vmul.f32 %v1489, 1.442695
  %v1520 = vpow.pop %v1519
  %v1521 = vmul.f32 %v1490, 1.442695
  %v1522 = vpow.pop %v1521
  %v1525 = vsel %vm1261, %v1253, 1065369472
  %v1528 = vsel %vm1261, %v1254, 1065369472
  %v1531 = vsel %vm1261, %v1255, 1065369472
  %v1534 = vsel %vm1261, %v1256, 1065369472
  %v1537 = vsel %vm1261, %v1257, 1065369472
  %v1540 = vsel %vm1261, %v1258, 1065369472
  %v1543 = vsel %vm1261, %v1259, 1065369472
  %v1546 = vsel %vm1261, %v1260, 1065369472
  %v1548 = vpack.c.bf16 %v1494, %v1492
  %v1549 = vpack.c.bf16 %v1498, %v1496
  %v1550 = vpack.c.bf16 %v1502, %v1500
  %v1551 = vpack.c.bf16 %v1506, %v1504
  %v1552 = vpack.c.bf16 %v1510, %v1508
  %v1553 = vpack.c.bf16 %v1514, %v1512
  %v1554 = vpack.c.bf16 %v1518, %v1516
  %v1555 = vpack.c.bf16 %v1522, %v1520
  %1556 = vmatprep.subr.bf16.mxu0 0
  %1557 = vmatpush1.bf16.msra.mxu0 %v1546
  %1558 = vmatprep.subr.bf16.mxu0 0
  %1559 = vmatpush1.bf16.msra.mxu0 %v1543
  %1560 = vmatprep.subr.bf16.mxu0 0
  %1561 = vmatpush1.bf16.msra.mxu0 %v1540
  %1562 = vmatprep.subr.bf16.mxu0 0
  %1563 = vmatpush1.bf16.msra.mxu0 %v1537
  %1564 = vmatprep.subr.bf16.mxu0 0
  %1565 = vmatpush1.bf16.msra.mxu0 %v1534
  %1566 = vmatprep.subr.bf16.mxu0 0
  %1567 = vmatpush1.bf16.msra.mxu0 %v1531
  %1568 = vmatprep.subr.bf16.mxu0 0
  %1569 = vmatpush1.bf16.msra.mxu0 %v1528
  %1570 = vmatprep.subr.bf16.mxu0 0
  %1571 = vmatpush1.bf16.msra.mxu0 %v1525
  %1572 = vmatprep.subr.bf16.mxu0 0
  %1573 = vmatpush2.bf16.msra.mxu0 0
  %1574 = vmatprep.subr.bf16.mxu0 0
  %1575 = vmatpush2.bf16.msra.mxu0 0
  %1576 = vmatprep.subr.bf16.mxu0 0
  %1577 = vmatpush2.bf16.msra.mxu0 0
  %1578 = vmatprep.subr.bf16.mxu0 0
  %1579 = vmatpush2.bf16.msra.mxu0 0
  %1580 = vmatprep.subr.bf16.mxu0 0
  %1581 = vmatpush2.bf16.msra.mxu0 0
  %1582 = vmatprep.subr.bf16.mxu0 0
  %1583 = vmatpush2.bf16.msra.mxu0 0
  %1584 = vmatprep.subr.bf16.mxu0 0
  %1585 = vmatpush2.bf16.msra.mxu0 0
  %1586 = vmatprep.subr.bf16.mxu0 0
  %1587 = vmatpush2.bf16.msra.mxu0 0
  %1588 = vmatprep.mubr.bf16.mxu0 0
  %1589 = vmatmul.mubr.bf16.gmra.mxu0 %v1548
  %v1590 = vpop.f32.mrf.mxu0
  %v1591 = vadd.f32 0.0, %v1590
  %v1592 = vpop.f32.mrf.mxu0
  %v1593 = vpop.f32.mrf.mxu0
  %v1594 = vadd.f32 0.0, %v1593
  %v1595 = vpop.f32.mrf.mxu0
  %1596 = vmatprep.mubr.bf16.mxu0 0
  %1597 = vmatmul.mubr.bf16.gmra.mxu0 %v1549
  %v1598 = vpop.f32.mrf.mxu0
  %v1599 = vadd.f32 0.0, %v1598
  %v1600 = vpop.f32.mrf.mxu0
  %v1601 = vpop.f32.mrf.mxu0
  %v1602 = vadd.f32 0.0, %v1601
  %v1603 = vpop.f32.mrf.mxu0
  %1604 = vmatprep.mubr.bf16.mxu0 0
  %1605 = vmatmul.mubr.bf16.gmra.mxu0 %v1550
  %v1606 = vpop.f32.mrf.mxu0
  %v1607 = vadd.f32 0.0, %v1606
  %v1608 = vpop.f32.mrf.mxu0
  %v1609 = vpop.f32.mrf.mxu0
  %v1610 = vadd.f32 0.0, %v1609
  %v1611 = vpop.f32.mrf.mxu0
  %1612 = vmatprep.mubr.bf16.mxu0 0
  %1613 = vmatmul.mubr.bf16.gmra.mxu0 %v1551
  %v1614 = vpop.f32.mrf.mxu0
  %v1615 = vadd.f32 0.0, %v1614
  %v1616 = vpop.f32.mrf.mxu0
  %v1617 = vpop.f32.mrf.mxu0
  %v1618 = vadd.f32 0.0, %v1617
  %v1619 = vpop.f32.mrf.mxu0
  %1620 = vmatprep.mubr.bf16.mxu0 0
  %1621 = vmatmul.mubr.bf16.gmra.mxu0 %v1552
  %v1622 = vpop.f32.mrf.mxu0
  %v1623 = vadd.f32 0.0, %v1622
  %v1624 = vpop.f32.mrf.mxu0
  %v1625 = vpop.f32.mrf.mxu0
  %v1626 = vadd.f32 0.0, %v1625
  %v1627 = vpop.f32.mrf.mxu0
  %1628 = vmatprep.mubr.bf16.mxu0 0
  %1629 = vmatmul.mubr.bf16.gmra.mxu0 %v1553
  %v1630 = vpop.f32.mrf.mxu0
  %v1631 = vadd.f32 0.0, %v1630
  %v1632 = vpop.f32.mrf.mxu0
  %v1633 = vpop.f32.mrf.mxu0
  %v1634 = vadd.f32 0.0, %v1633
  %v1635 = vpop.f32.mrf.mxu0
  %1636 = vmatprep.mubr.bf16.mxu0 0
  %1637 = vmatmul.mubr.bf16.gmra.mxu0 %v1554
  %v1638 = vpop.f32.mrf.mxu0
  %v1639 = vadd.f32 0.0, %v1638
  %v1640 = vpop.f32.mrf.mxu0
  %v1641 = vpop.f32.mrf.mxu0
  %v1642 = vadd.f32 0.0, %v1641
  %v1643 = vpop.f32.mrf.mxu0
  %1644 = vmatprep.mubr.bf16.mxu0 0
  %1645 = vmatmul.mubr.bf16.gmra.mxu0 %v1555
  %v1646 = vpop.f32.mrf.mxu0
  %v1647 = vadd.f32 0.0, %v1646
  %v1648 = vpop.f32.mrf.mxu0
  %v1649 = vpop.f32.mrf.mxu0
  %v1650 = vadd.f32 0.0, %v1649
  %v1651 = vpop.f32.mrf.mxu0
  %1652 = vdwg.mxu0
  %v1653 = vrcp.pop %v1591
  %v1654 = vrcp.pop %v1594
  %v1655 = vrcp.pop %v1599
  %v1656 = vrcp.pop %v1602
  %v1657 = vrcp.pop %v1607
  %v1658 = vrcp.pop %v1610
  %v1659 = vrcp.pop %v1615
  %v1660 = vrcp.pop %v1618
  %v1661 = vrcp.pop %v1623
  %v1662 = vrcp.pop %v1626
  %v1663 = vrcp.pop %v1631
  %v1664 = vrcp.pop %v1634
  %v1665 = vrcp.pop %v1639
  %v1666 = vrcp.pop %v1642
  %v1667 = vrcp.pop %v1647
  %v1668 = vrcp.pop %v1650
  %1670 = vset.pattern.permute.xlu0 64
  %1671 = vperm.xlu0 %1670, %v1653
  %v1672 = vpop.permute.xlu0 %1671
  %1675 = vset.pattern.permute.xlu0 64
  %1676 = vperm.xlu0 %1675, %v1654
  %v1677 = vpop.permute.xlu0 %1676
  %1680 = vset.pattern.permute.xlu0 64
  %1681 = vperm.xlu0 %1680, %v1655
  %v1682 = vpop.permute.xlu0 %1681
  %1685 = vset.pattern.permute.xlu0 64
  %1686 = vperm.xlu0 %1685, %v1656
  %v1687 = vpop.permute.xlu0 %1686
  %1690 = vset.pattern.permute.xlu0 64
  %1691 = vperm.xlu0 %1690, %v1657
  %v1692 = vpop.permute.xlu0 %1691
  %1695 = vset.pattern.permute.xlu0 64
  %1696 = vperm.xlu0 %1695, %v1658
  %v1697 = vpop.permute.xlu0 %1696
  %1700 = vset.pattern.permute.xlu0 64
  %1701 = vperm.xlu0 %1700, %v1659
  %v1702 = vpop.permute.xlu0 %1701
  %1705 = vset.pattern.permute.xlu0 64
  %1706 = vperm.xlu0 %1705, %v1660
  %v1707 = vpop.permute.xlu0 %1706
  %1710 = vset.pattern.permute.xlu0 64
  %1711 = vperm.xlu0 %1710, %v1661
  %v1712 = vpop.permute.xlu0 %1711
  %1715 = vset.pattern.permute.xlu0 64
  %1716 = vperm.xlu0 %1715, %v1662
  %v1717 = vpop.permute.xlu0 %1716
  %1720 = vset.pattern.permute.xlu0 64
  %1721 = vperm.xlu0 %1720, %v1663
  %v1722 = vpop.permute.xlu0 %1721
  %1725 = vset.pattern.permute.xlu0 64
  %1726 = vperm.xlu0 %1725, %v1664
  %v1727 = vpop.permute.xlu0 %1726
  %1730 = vset.pattern.permute.xlu0 64
  %1731 = vperm.xlu0 %1730, %v1665
  %v1732 = vpop.permute.xlu0 %1731
  %1735 = vset.pattern.permute.xlu0 64
  %1736 = vperm.xlu0 %1735, %v1666
  %v1737 = vpop.permute.xlu0 %1736
  %1740 = vset.pattern.permute.xlu0 64
  %1741 = vperm.xlu0 %1740, %v1667
  %v1742 = vpop.permute.xlu0 %1741
  %1745 = vset.pattern.permute.xlu0 64
  %1746 = vperm.xlu0 %1745, %v1668
  %v1747 = vpop.permute.xlu0 %1746
  %v1749 = vmul.f32 %v1591, %v1672
  %v1750 = vmul.f32 %v1594, %v1677
  %v1751 = vmul.f32 %v1599, %v1682
  %v1752 = vmul.f32 %v1602, %v1687
  %v1753 = vmul.f32 %v1607, %v1692
  %v1754 = vmul.f32 %v1610, %v1697
  %v1755 = vmul.f32 %v1615, %v1702
  %v1756 = vmul.f32 %v1618, %v1707
  %v1757 = vmul.f32 %v1623, %v1712
  %v1758 = vmul.f32 %v1626, %v1717
  %v1759 = vmul.f32 %v1631, %v1722
  %v1760 = vmul.f32 %v1634, %v1727
  %v1761 = vmul.f32 %v1639, %v1732
  %v1762 = vmul.f32 %v1642, %v1737
  %v1763 = vmul.f32 %v1647, %v1742
  %v1764 = vmul.f32 %v1650, %v1747
  %1773 = vrot.lane.b32.xlu0 %v1237, 64
  %v1774 = vpop.permute.xlu0 %1773
  %1775 = vrot.lane.b32.xlu0 %v1238, 64
  %v1776 = vpop.permute.xlu0 %1775
  %1777 = vrot.lane.b32.xlu0 %v1239, 64
  %v1778 = vpop.permute.xlu0 %1777
  %1779 = vrot.lane.b32.xlu0 %v1240, 64
  %v1780 = vpop.permute.xlu0 %1779
  %1781 = vrot.lane.b32.xlu0 %v1241, 64
  %v1782 = vpop.permute.xlu0 %1781
  %1783 = vrot.lane.b32.xlu0 %v1242, 64
  %v1784 = vpop.permute.xlu0 %1783
  %1785 = vrot.lane.b32.xlu0 %v1243, 64
  %v1786 = vpop.permute.xlu0 %1785
  %1787 = vrot.lane.b32.xlu0 %v1244, 64
  %v1788 = vpop.permute.xlu0 %1787
  %1797 = vrot.lane.b32.xlu0 %v1245, 64
  %v1798 = vpop.permute.xlu0 %1797
  %1799 = vrot.lane.b32.xlu0 %v1246, 64
  %v1800 = vpop.permute.xlu0 %1799
  %1801 = vrot.lane.b32.xlu0 %v1247, 64
  %v1802 = vpop.permute.xlu0 %1801
  %1803 = vrot.lane.b32.xlu0 %v1248, 64
  %v1804 = vpop.permute.xlu0 %1803
  %1805 = vrot.lane.b32.xlu0 %v1249, 64
  %v1806 = vpop.permute.xlu0 %1805
  %1807 = vrot.lane.b32.xlu0 %v1250, 64
  %v1808 = vpop.permute.xlu0 %1807
  %1809 = vrot.lane.b32.xlu0 %v1251, 64
  %v1810 = vpop.permute.xlu0 %1809
  %1811 = vrot.lane.b32.xlu0 %v1252, 64
  %v1812 = vpop.permute.xlu0 %1811
  %v1814 = vsel %vm1261, %v1774, 0
  %v1817 = vsel %vm1261, %v1776, 0
  %v1820 = vsel %vm1261, %v1778, 0
  %v1823 = vsel %vm1261, %v1780, 0
  %v1826 = vsel %vm1261, %v1782, 0
  %v1829 = vsel %vm1261, %v1784, 0
  %v1832 = vsel %vm1261, %v1786, 0
  %v1835 = vsel %vm1261, %v1788, 0
  %v1838 = vsel %vm1261, %v1798, 0
  %v1841 = vsel %vm1261, %v1800, 0
  %v1844 = vsel %vm1261, %v1802, 0
  %v1847 = vsel %vm1261, %v1804, 0
  %v1850 = vsel %vm1261, %v1806, 0
  %v1853 = vsel %vm1261, %v1808, 0
  %v1856 = vsel %vm1261, %v1810, 0
  %v1859 = vsel %vm1261, %v1812, 0
  %1861 = vmatprep.subr.bf16.mxu0 0
  %1862 = vmatpush1.bf16.xpose.msra.mxu0 %v1859
  %1863 = vmatprep.subr.bf16.mxu0 0
  %1864 = vmatpush1.bf16.xpose.msra.mxu0 %v1856
  %1865 = vmatprep.subr.bf16.mxu0 0
  %1866 = vmatpush1.bf16.xpose.msra.mxu0 %v1853
  %1867 = vmatprep.subr.bf16.mxu0 0
  %1868 = vmatpush1.bf16.xpose.msra.mxu0 %v1850
  %1869 = vmatprep.subr.bf16.mxu0 0
  %1870 = vmatpush1.bf16.xpose.msra.mxu0 %v1847
  %1871 = vmatprep.subr.bf16.mxu0 0
  %1872 = vmatpush1.bf16.xpose.msra.mxu0 %v1844
  %1873 = vmatprep.subr.bf16.mxu0 0
  %1874 = vmatpush1.bf16.xpose.msra.mxu0 %v1841
  %1875 = vmatprep.subr.bf16.mxu0 0
  %1876 = vmatpush1.bf16.xpose.msra.mxu0 %v1838
  %1877 = vmatprep.subr.bf16.mxu0 0
  %1878 = vmatpush2.bf16.xpose.msra.mxu0 0
  %1879 = vmatprep.subr.bf16.mxu0 0
  %1880 = vmatpush2.bf16.xpose.msra.mxu0 0
  %1881 = vmatprep.subr.bf16.mxu0 0
  %1882 = vmatpush2.bf16.xpose.msra.mxu0 0
  %1883 = vmatprep.subr.bf16.mxu0 0
  %1884 = vmatpush2.bf16.xpose.msra.mxu0 0
  %1885 = vmatprep.subr.bf16.mxu0 0
  %1886 = vmatpush2.bf16.xpose.msra.mxu0 0
  %1887 = vmatprep.subr.bf16.mxu0 0
  %1888 = vmatpush2.bf16.xpose.msra.mxu0 0
  %1889 = vmatprep.subr.bf16.mxu0 0
  %1890 = vmatpush2.bf16.xpose.msra.mxu0 0
  %1891 = vmatprep.subr.bf16.mxu0 0
  %1892 = vmatpush2.bf16.xpose.msra.mxu0 0
  %1893 = vmatprep.mubr.bf16.mxu0 0
  %1894 = vmatmul.mubr.bf16.gmra.mxu0 %v1814
  %v1895 = vpop.f32.mrf.mxu0
  %v1896 = vadd.f32 0.0, %v1895
  %v1897 = vpop.f32.mrf.mxu0
  %v1898 = vpop.f32.mrf.mxu0
  %v1899 = vadd.f32 0.0, %v1898
  %v1900 = vpop.f32.mrf.mxu0
  %1901 = vmatprep.mubr.bf16.mxu0 0
  %1902 = vmatmul.mubr.bf16.gmra.mxu0 %v1817
  %v1903 = vpop.f32.mrf.mxu0
  %v1904 = vadd.f32 0.0, %v1903
  %v1905 = vpop.f32.mrf.mxu0
  %v1906 = vpop.f32.mrf.mxu0
  %v1907 = vadd.f32 0.0, %v1906
  %v1908 = vpop.f32.mrf.mxu0
  %1909 = vmatprep.mubr.bf16.mxu0 0
  %1910 = vmatmul.mubr.bf16.gmra.mxu0 %v1820
  %v1911 = vpop.f32.mrf.mxu0
  %v1912 = vadd.f32 0.0, %v1911
  %v1913 = vpop.f32.mrf.mxu0
  %v1914 = vpop.f32.mrf.mxu0
  %v1915 = vadd.f32 0.0, %v1914
  %v1916 = vpop.f32.mrf.mxu0
  %1917 = vmatprep.mubr.bf16.mxu0 0
  %1918 = vmatmul.mubr.bf16.gmra.mxu0 %v1823
  %v1919 = vpop.f32.mrf.mxu0
  %v1920 = vadd.f32 0.0, %v1919
  %v1921 = vpop.f32.mrf.mxu0
  %v1922 = vpop.f32.mrf.mxu0
  %v1923 = vadd.f32 0.0, %v1922
  %v1924 = vpop.f32.mrf.mxu0
  %1925 = vmatprep.mubr.bf16.mxu0 0
  %1926 = vmatmul.mubr.bf16.gmra.mxu0 %v1826
  %v1927 = vpop.f32.mrf.mxu0
  %v1928 = vadd.f32 0.0, %v1927
  %v1929 = vpop.f32.mrf.mxu0
  %v1930 = vpop.f32.mrf.mxu0
  %v1931 = vadd.f32 0.0, %v1930
  %v1932 = vpop.f32.mrf.mxu0
  %1933 = vmatprep.mubr.bf16.mxu0 0
  %1934 = vmatmul.mubr.bf16.gmra.mxu0 %v1829
  %v1935 = vpop.f32.mrf.mxu0
  %v1936 = vadd.f32 0.0, %v1935
  %v1937 = vpop.f32.mrf.mxu0
  %v1938 = vpop.f32.mrf.mxu0
  %v1939 = vadd.f32 0.0, %v1938
  %v1940 = vpop.f32.mrf.mxu0
  %1941 = vmatprep.mubr.bf16.mxu0 0
  %1942 = vmatmul.mubr.bf16.gmra.mxu0 %v1832
  %v1943 = vpop.f32.mrf.mxu0
  %v1944 = vadd.f32 0.0, %v1943
  %v1945 = vpop.f32.mrf.mxu0
  %v1946 = vpop.f32.mrf.mxu0
  %v1947 = vadd.f32 0.0, %v1946
  %v1948 = vpop.f32.mrf.mxu0
  %1949 = vmatprep.mubr.bf16.mxu0 0
  %1950 = vmatmul.mubr.bf16.gmra.mxu0 %v1835
  %v1951 = vpop.f32.mrf.mxu0
  %v1952 = vadd.f32 0.0, %v1951
  %v1953 = vpop.f32.mrf.mxu0
  %v1954 = vpop.f32.mrf.mxu0
  %v1955 = vadd.f32 0.0, %v1954
  %v1956 = vpop.f32.mrf.mxu0
  %1957 = vdwg.mxu0
  %v1958 = vmul.f32 %v1896, 0.125
  %v1959 = vmul.f32 %v1899, 0.125
  %v1960 = vmul.f32 %v1904, 0.125
  %v1961 = vmul.f32 %v1907, 0.125
  %v1962 = vmul.f32 %v1912, 0.125
  %v1963 = vmul.f32 %v1915, 0.125
  %v1964 = vmul.f32 %v1920, 0.125
  %v1965 = vmul.f32 %v1923, 0.125
  %v1966 = vmul.f32 %v1928, 0.125
  %v1967 = vmul.f32 %v1931, 0.125
  %v1968 = vmul.f32 %v1936, 0.125
  %v1969 = vmul.f32 %v1939, 0.125
  %v1970 = vmul.f32 %v1944, 0.125
  %v1971 = vmul.f32 %v1947, 0.125
  %v1972 = vmul.f32 %v1952, 0.125
  %v1973 = vmul.f32 %v1955, 0.125
  %v1974 = vadd.f32 %v1958, %v1426
  %v1975 = vadd.f32 %v1959, %v1426
  %v1976 = vadd.f32 %v1960, %v1426
  %v1977 = vadd.f32 %v1961, %v1426
  %v1978 = vadd.f32 %v1962, %v1426
  %v1979 = vadd.f32 %v1963, %v1426
  %v1980 = vadd.f32 %v1964, %v1426
  %v1981 = vadd.f32 %v1965, %v1426
  %v1982 = vadd.f32 %v1966, %v1426
  %v1983 = vadd.f32 %v1967, %v1426
  %v1984 = vadd.f32 %v1968, %v1426
  %v1985 = vadd.f32 %v1969, %v1426
  %v1986 = vadd.f32 %v1970, %v1426
  %v1987 = vadd.f32 %v1971, %v1426
  %v1988 = vadd.f32 %v1972, %v1426
  %v1989 = vadd.f32 %v1973, %v1426
  %1990 = vmax.xlane.f32.xlu0 %v1974
  %v1991 = vpop.xlane.xlu0 %1990
  %1992 = vmax.xlane.f32.xlu0 %v1975
  %v1993 = vpop.xlane.xlu0 %1992
  %1994 = vmax.xlane.f32.xlu0 %v1976
  %v1995 = vpop.xlane.xlu0 %1994
  %1996 = vmax.xlane.f32.xlu0 %v1977
  %v1997 = vpop.xlane.xlu0 %1996
  %1998 = vmax.xlane.f32.xlu0 %v1978
  %v1999 = vpop.xlane.xlu0 %1998
  %2000 = vmax.xlane.f32.xlu0 %v1979
  %v2001 = vpop.xlane.xlu0 %2000
  %2002 = vmax.xlane.f32.xlu0 %v1980
  %v2003 = vpop.xlane.xlu0 %2002
  %2004 = vmax.xlane.f32.xlu0 %v1981
  %v2005 = vpop.xlane.xlu0 %2004
  %2006 = vmax.xlane.f32.xlu0 %v1982
  %v2007 = vpop.xlane.xlu0 %2006
  %2008 = vmax.xlane.f32.xlu0 %v1983
  %v2009 = vpop.xlane.xlu0 %2008
  %2010 = vmax.xlane.f32.xlu0 %v1984
  %v2011 = vpop.xlane.xlu0 %2010
  %2012 = vmax.xlane.f32.xlu0 %v1985
  %v2013 = vpop.xlane.xlu0 %2012
  %2014 = vmax.xlane.f32.xlu0 %v1986
  %v2015 = vpop.xlane.xlu0 %2014
  %2016 = vmax.xlane.f32.xlu0 %v1987
  %v2017 = vpop.xlane.xlu0 %2016
  %2018 = vmax.xlane.f32.xlu0 %v1988
  %v2019 = vpop.xlane.xlu0 %2018
  %2020 = vmax.xlane.f32.xlu0 %v1989
  %v2021 = vpop.xlane.xlu0 %2020
  %v2022 = vsub.f32 %v1974, %v1991
  %v2023 = vsub.f32 %v1975, %v1993
  %v2024 = vsub.f32 %v1976, %v1995
  %v2025 = vsub.f32 %v1977, %v1997
  %v2026 = vsub.f32 %v1978, %v1999
  %v2027 = vsub.f32 %v1979, %v2001
  %v2028 = vsub.f32 %v1980, %v2003
  %v2029 = vsub.f32 %v1981, %v2005
  %v2030 = vsub.f32 %v1982, %v2007
  %v2031 = vsub.f32 %v1983, %v2009
  %v2032 = vsub.f32 %v1984, %v2011
  %v2033 = vsub.f32 %v1985, %v2013
  %v2034 = vsub.f32 %v1986, %v2015
  %v2035 = vsub.f32 %v1987, %v2017
  %v2036 = vsub.f32 %v1988, %v2019
  %v2037 = vsub.f32 %v1989, %v2021
  %v2038 = vmul.f32 %v2022, 1.442695
  %v2039 = vpow.pop %v2038
  %v2040 = vmul.f32 %v2023, 1.442695
  %v2041 = vpow.pop %v2040
  %v2042 = vmul.f32 %v2024, 1.442695
  %v2043 = vpow.pop %v2042
  %v2044 = vmul.f32 %v2025, 1.442695
  %v2045 = vpow.pop %v2044
  %v2046 = vmul.f32 %v2026, 1.442695
  %v2047 = vpow.pop %v2046
  %v2048 = vmul.f32 %v2027, 1.442695
  %v2049 = vpow.pop %v2048
  %v2050 = vmul.f32 %v2028, 1.442695
  %v2051 = vpow.pop %v2050
  %v2052 = vmul.f32 %v2029, 1.442695
  %v2053 = vpow.pop %v2052
  %v2054 = vmul.f32 %v2030, 1.442695
  %v2055 = vpow.pop %v2054
  %v2056 = vmul.f32 %v2031, 1.442695
  %v2057 = vpow.pop %v2056
  %v2058 = vmul.f32 %v2032, 1.442695
  %v2059 = vpow.pop %v2058
  %v2060 = vmul.f32 %v2033, 1.442695
  %v2061 = vpow.pop %v2060
  %v2062 = vmul.f32 %v2034, 1.442695
  %v2063 = vpow.pop %v2062
  %v2064 = vmul.f32 %v2035, 1.442695
  %v2065 = vpow.pop %v2064
  %v2066 = vmul.f32 %v2036, 1.442695
  %v2067 = vpow.pop %v2066
  %v2068 = vmul.f32 %v2037, 1.442695
  %v2069 = vpow.pop %v2068
  %2078 = vrot.lane.b32.xlu0 %v1253, 64
  %v2079 = vpop.permute.xlu0 %2078
  %2080 = vrot.lane.b32.xlu0 %v1254, 64
  %v2081 = vpop.permute.xlu0 %2080
  %2082 = vrot.lane.b32.xlu0 %v1255, 64
  %v2083 = vpop.permute.xlu0 %2082
  %2084 = vrot.lane.b32.xlu0 %v1256, 64
  %v2085 = vpop.permute.xlu0 %2084
  %2086 = vrot.lane.b32.xlu0 %v1257, 64
  %v2087 = vpop.permute.xlu0 %2086
  %2088 = vrot.lane.b32.xlu0 %v1258, 64
  %v2089 = vpop.permute.xlu0 %2088
  %2090 = vrot.lane.b32.xlu0 %v1259, 64
  %v2091 = vpop.permute.xlu0 %2090
  %2092 = vrot.lane.b32.xlu0 %v1260, 64
  %v2093 = vpop.permute.xlu0 %2092
  %v2095 = vsel %vm1261, %v2079, 1065369472
  %v2098 = vsel %vm1261, %v2081, 1065369472
  %v2101 = vsel %vm1261, %v2083, 1065369472
  %v2104 = vsel %vm1261, %v2085, 1065369472
  %v2107 = vsel %vm1261, %v2087, 1065369472
  %v2110 = vsel %vm1261, %v2089, 1065369472
  %v2113 = vsel %vm1261, %v2091, 1065369472
  %v2116 = vsel %vm1261, %v2093, 1065369472
  %v2118 = vpack.c.bf16 %v2041, %v2039
  %v2119 = vpack.c.bf16 %v2045, %v2043
  %v2120 = vpack.c.bf16 %v2049, %v2047
  %v2121 = vpack.c.bf16 %v2053, %v2051
  %v2122 = vpack.c.bf16 %v2057, %v2055
  %v2123 = vpack.c.bf16 %v2061, %v2059
  %v2124 = vpack.c.bf16 %v2065, %v2063
  %v2125 = vpack.c.bf16 %v2069, %v2067
  %2126 = vmatprep.subr.bf16.mxu0 0
  %2127 = vmatpush1.bf16.msra.mxu0 %v2116
  %2128 = vmatprep.subr.bf16.mxu0 0
  %2129 = vmatpush1.bf16.msra.mxu0 %v2113
  %2130 = vmatprep.subr.bf16.mxu0 0
  %2131 = vmatpush1.bf16.msra.mxu0 %v2110
  %2132 = vmatprep.subr.bf16.mxu0 0
  %2133 = vmatpush1.bf16.msra.mxu0 %v2107
  %2134 = vmatprep.subr.bf16.mxu0 0
  %2135 = vmatpush1.bf16.msra.mxu0 %v2104
  %2136 = vmatprep.subr.bf16.mxu0 0
  %2137 = vmatpush1.bf16.msra.mxu0 %v2101
  %2138 = vmatprep.subr.bf16.mxu0 0
  %2139 = vmatpush1.bf16.msra.mxu0 %v2098
  %2140 = vmatprep.subr.bf16.mxu0 0
  %2141 = vmatpush1.bf16.msra.mxu0 %v2095
  %2142 = vmatprep.subr.bf16.mxu0 0
  %2143 = vmatpush2.bf16.msra.mxu0 0
  %2144 = vmatprep.subr.bf16.mxu0 0
  %2145 = vmatpush2.bf16.msra.mxu0 0
  %2146 = vmatprep.subr.bf16.mxu0 0
  %2147 = vmatpush2.bf16.msra.mxu0 0
  %2148 = vmatprep.subr.bf16.mxu0 0
  %2149 = vmatpush2.bf16.msra.mxu0 0
  %2150 = vmatprep.subr.bf16.mxu0 0
  %2151 = vmatpush2.bf16.msra.mxu0 0
  %2152 = vmatprep.subr.bf16.mxu0 0
  %2153 = vmatpush2.bf16.msra.mxu0 0
  %2154 = vmatprep.subr.bf16.mxu0 0
  %2155 = vmatpush2.bf16.msra.mxu0 0
  %2156 = vmatprep.subr.bf16.mxu0 0
  %2157 = vmatpush2.bf16.msra.mxu0 0
  %2158 = vmatprep.mubr.bf16.mxu0 0
  %2159 = vmatmul.mubr.bf16.gmra.mxu0 %v2118
  %v2160 = vpop.f32.mrf.mxu0
  %v2161 = vadd.f32 0.0, %v2160
  %v2162 = vpop.f32.mrf.mxu0
  %v2163 = vpop.f32.mrf.mxu0
  %v2164 = vadd.f32 0.0, %v2163
  %v2165 = vpop.f32.mrf.mxu0
  %2166 = vmatprep.mubr.bf16.mxu0 0
  %2167 = vmatmul.mubr.bf16.gmra.mxu0 %v2119
  %v2168 = vpop.f32.mrf.mxu0
  %v2169 = vadd.f32 0.0, %v2168
  %v2170 = vpop.f32.mrf.mxu0
  %v2171 = vpop.f32.mrf.mxu0
  %v2172 = vadd.f32 0.0, %v2171
  %v2173 = vpop.f32.mrf.mxu0
  %2174 = vmatprep.mubr.bf16.mxu0 0
  %2175 = vmatmul.mubr.bf16.gmra.mxu0 %v2120
  %v2176 = vpop.f32.mrf.mxu0
  %v2177 = vadd.f32 0.0, %v2176
  %v2178 = vpop.f32.mrf.mxu0
  %v2179 = vpop.f32.mrf.mxu0
  %v2180 = vadd.f32 0.0, %v2179
  %v2181 = vpop.f32.mrf.mxu0
  %2182 = vmatprep.mubr.bf16.mxu0 0
  %2183 = vmatmul.mubr.bf16.gmra.mxu0 %v2121
  %v2184 = vpop.f32.mrf.mxu0
  %v2185 = vadd.f32 0.0, %v2184
  %v2186 = vpop.f32.mrf.mxu0
  %v2187 = vpop.f32.mrf.mxu0
  %v2188 = vadd.f32 0.0, %v2187
  %v2189 = vpop.f32.mrf.mxu0
  %2190 = vmatprep.mubr.bf16.mxu0 0
  %2191 = vmatmul.mubr.bf16.gmra.mxu0 %v2122
  %v2192 = vpop.f32.mrf.mxu0
  %v2193 = vadd.f32 0.0, %v2192
  %v2194 = vpop.f32.mrf.mxu0
  %v2195 = vpop.f32.mrf.mxu0
  %v2196 = vadd.f32 0.0, %v2195
  %v2197 = vpop.f32.mrf.mxu0
  %2198 = vmatprep.mubr.bf16.mxu0 0
  %2199 = vmatmul.mubr.bf16.gmra.mxu0 %v2123
  %v2200 = vpop.f32.mrf.mxu0
  %v2201 = vadd.f32 0.0, %v2200
  %v2202 = vpop.f32.mrf.mxu0
  %v2203 = vpop.f32.mrf.mxu0
  %v2204 = vadd.f32 0.0, %v2203
  %v2205 = vpop.f32.mrf.mxu0
  %2206 = vmatprep.mubr.bf16.mxu0 0
  %2207 = vmatmul.mubr.bf16.gmra.mxu0 %v2124
  %v2208 = vpop.f32.mrf.mxu0
  %v2209 = vadd.f32 0.0, %v2208
  %v2210 = vpop.f32.mrf.mxu0
  %v2211 = vpop.f32.mrf.mxu0
  %v2212 = vadd.f32 0.0, %v2211
  %v2213 = vpop.f32.mrf.mxu0
  %2214 = vmatprep.mubr.bf16.mxu0 0
  %2215 = vmatmul.mubr.bf16.gmra.mxu0 %v2125
  %v2216 = vpop.f32.mrf.mxu0
  %v2217 = vadd.f32 0.0, %v2216
  %v2218 = vpop.f32.mrf.mxu0
  %v2219 = vpop.f32.mrf.mxu0
  %v2220 = vadd.f32 0.0, %v2219
  %v2221 = vpop.f32.mrf.mxu0
  %2222 = vdwg.mxu0
  %v2223 = vrcp.pop %v2161
  %v2224 = vrcp.pop %v2164
  %v2225 = vrcp.pop %v2169
  %v2226 = vrcp.pop %v2172
  %v2227 = vrcp.pop %v2177
  %v2228 = vrcp.pop %v2180
  %v2229 = vrcp.pop %v2185
  %v2230 = vrcp.pop %v2188
  %v2231 = vrcp.pop %v2193
  %v2232 = vrcp.pop %v2196
  %v2233 = vrcp.pop %v2201
  %v2234 = vrcp.pop %v2204
  %v2235 = vrcp.pop %v2209
  %v2236 = vrcp.pop %v2212
  %v2237 = vrcp.pop %v2217
  %v2238 = vrcp.pop %v2220
  %2240 = vset.pattern.permute.xlu0 64
  %2241 = vperm.xlu0 %2240, %v2223
  %v2242 = vpop.permute.xlu0 %2241
  %2245 = vset.pattern.permute.xlu0 64
  %2246 = vperm.xlu0 %2245, %v2224
  %v2247 = vpop.permute.xlu0 %2246
  %2250 = vset.pattern.permute.xlu0 64
  %2251 = vperm.xlu0 %2250, %v2225
  %v2252 = vpop.permute.xlu0 %2251
  %2255 = vset.pattern.permute.xlu0 64
  %2256 = vperm.xlu0 %2255, %v2226
  %v2257 = vpop.permute.xlu0 %2256
  %2260 = vset.pattern.permute.xlu0 64
  %2261 = vperm.xlu0 %2260, %v2227
  %v2262 = vpop.permute.xlu0 %2261
  %2265 = vset.pattern.permute.xlu0 64
  %2266 = vperm.xlu0 %2265, %v2228
  %v2267 = vpop.permute.xlu0 %2266
  %2270 = vset.pattern.permute.xlu0 64
  %2271 = vperm.xlu0 %2270, %v2229
  %v2272 = vpop.permute.xlu0 %2271
  %2275 = vset.pattern.permute.xlu0 64
  %2276 = vperm.xlu0 %2275, %v2230
  %v2277 = vpop.permute.xlu0 %2276
  %2280 = vset.pattern.permute.xlu0 64
  %2281 = vperm.xlu0 %2280, %v2231
  %v2282 = vpop.permute.xlu0 %2281
  %2285 = vset.pattern.permute.xlu0 64
  %2286 = vperm.xlu0 %2285, %v2232
  %v2287 = vpop.permute.xlu0 %2286
  %2290 = vset.pattern.permute.xlu0 64
  %2291 = vperm.xlu0 %2290, %v2233
  %v2292 = vpop.permute.xlu0 %2291
  %2295 = vset.pattern.permute.xlu0 64
  %2296 = vperm.xlu0 %2295, %v2234
  %v2297 = vpop.permute.xlu0 %2296
  %2300 = vset.pattern.permute.xlu0 64
  %2301 = vperm.xlu0 %2300, %v2235
  %v2302 = vpop.permute.xlu0 %2301
  %2305 = vset.pattern.permute.xlu0 64
  %2306 = vperm.xlu0 %2305, %v2236
  %v2307 = vpop.permute.xlu0 %2306
  %2310 = vset.pattern.permute.xlu0 64
  %2311 = vperm.xlu0 %2310, %v2237
  %v2312 = vpop.permute.xlu0 %2311
  %2315 = vset.pattern.permute.xlu0 64
  %2316 = vperm.xlu0 %2315, %v2238
  %v2317 = vpop.permute.xlu0 %2316
  %v2319 = vmul.f32 %v2161, %v2242
  %v2320 = vmul.f32 %v2164, %v2247
  %v2321 = vmul.f32 %v2169, %v2252
  %v2322 = vmul.f32 %v2172, %v2257
  %v2323 = vmul.f32 %v2177, %v2262
  %v2324 = vmul.f32 %v2180, %v2267
  %v2325 = vmul.f32 %v2185, %v2272
  %v2326 = vmul.f32 %v2188, %v2277
  %v2327 = vmul.f32 %v2193, %v2282
  %v2328 = vmul.f32 %v2196, %v2287
  %v2329 = vmul.f32 %v2201, %v2292
  %v2330 = vmul.f32 %v2204, %v2297
  %v2331 = vmul.f32 %v2209, %v2302
  %v2332 = vmul.f32 %v2212, %v2307
  %v2333 = vmul.f32 %v2217, %v2312
  %v2334 = vmul.f32 %v2220, %v2317
  %2351 = vrot.lane.b32.xlu0 %v2319, 64
  %v2352 = vpop.permute.xlu0 %2351
  %2353 = vrot.lane.b32.xlu0 %v2320, 64
  %v2354 = vpop.permute.xlu0 %2353
  %2355 = vrot.lane.b32.xlu0 %v2321, 64
  %v2356 = vpop.permute.xlu0 %2355
  %2357 = vrot.lane.b32.xlu0 %v2322, 64
  %v2358 = vpop.permute.xlu0 %2357
  %2359 = vrot.lane.b32.xlu0 %v2323, 64
  %v2360 = vpop.permute.xlu0 %2359
  %2361 = vrot.lane.b32.xlu0 %v2324, 64
  %v2362 = vpop.permute.xlu0 %2361
  %2363 = vrot.lane.b32.xlu0 %v2325, 64
  %v2364 = vpop.permute.xlu0 %2363
  %2365 = vrot.lane.b32.xlu0 %v2326, 64
  %v2366 = vpop.permute.xlu0 %2365
  %2367 = vrot.lane.b32.xlu0 %v2327, 64
  %v2368 = vpop.permute.xlu0 %2367
  %2369 = vrot.lane.b32.xlu0 %v2328, 64
  %v2370 = vpop.permute.xlu0 %2369
  %2371 = vrot.lane.b32.xlu0 %v2329, 64
  %v2372 = vpop.permute.xlu0 %2371
  %2373 = vrot.lane.b32.xlu0 %v2330, 64
  %v2374 = vpop.permute.xlu0 %2373
  %2375 = vrot.lane.b32.xlu0 %v2331, 64
  %v2376 = vpop.permute.xlu0 %2375
  %2377 = vrot.lane.b32.xlu0 %v2332, 64
  %v2378 = vpop.permute.xlu0 %2377
  %2379 = vrot.lane.b32.xlu0 %v2333, 64
  %v2380 = vpop.permute.xlu0 %2379
  %2381 = vrot.lane.b32.xlu0 %v2334, 64
  %v2382 = vpop.permute.xlu0 %2381
  %v2399 = vsel %vm1261, %v1749, %v2352
  %v2400 = vsel %vm1261, %v1750, %v2354
  %v2401 = vsel %vm1261, %v1751, %v2356
  %v2402 = vsel %vm1261, %v1752, %v2358
  %v2403 = vsel %vm1261, %v1753, %v2360
  %v2404 = vsel %vm1261, %v1754, %v2362
  %v2405 = vsel %vm1261, %v1755, %v2364
  %v2406 = vsel %vm1261, %v1756, %v2366
  %v2407 = vsel %vm1261, %v1757, %v2368
  %v2408 = vsel %vm1261, %v1758, %v2370
  %v2409 = vsel %vm1261, %v1759, %v2372
  %v2410 = vsel %vm1261, %v1760, %v2374
  %v2411 = vsel %vm1261, %v1761, %v2376
  %v2412 = vsel %vm1261, %v1762, %v2378
  %v2413 = vsel %vm1261, %v1763, %v2380
  %v2414 = vsel %vm1261, %v1764, %v2382
  %v2415 = vpack.c.bf16 %v1002, %v998
  %v2416 = vpack.c.bf16 %v1012, %v1008
  %v2417 = vpack.c.bf16 %v1022, %v1018
  %v2418 = vpack.c.bf16 %v1032, %v1028
  %v2419 = vpack.c.bf16 %v1042, %v1038
  %v2420 = vpack.c.bf16 %v1052, %v1048
  %v2421 = vpack.c.bf16 %v1062, %v1058
  %v2422 = vpack.c.bf16 %v1072, %v1068
  %v2423 = vpack.c.bf16 %v1004, %v1000
  %v2424 = vpack.c.bf16 %v1014, %v1010
  %v2425 = vpack.c.bf16 %v1024, %v1020
  %v2426 = vpack.c.bf16 %v1034, %v1030
  %v2427 = vpack.c.bf16 %v1044, %v1040
  %v2428 = vpack.c.bf16 %v1054, %v1050
  %v2429 = vpack.c.bf16 %v1064, %v1060
  %v2430 = vpack.c.bf16 %v1074, %v1070
  %v2431 = vpack.c.bf16 %v1178, %v1175
  %v2432 = vpack.c.bf16 %v1186, %v1183
  %v2433 = vpack.c.bf16 %v1194, %v1191
  %v2434 = vpack.c.bf16 %v1202, %v1199
  %v2435 = vpack.c.bf16 %v1210, %v1207
  %v2436 = vpack.c.bf16 %v1218, %v1215
  %v2437 = vpack.c.bf16 %v1226, %v1223
  %v2438 = vpack.c.bf16 %v1234, %v1231
  %v2440 = vsel %vm1261, %v2415, 0
  %v2443 = vsel %vm1261, %v2416, 0
  %v2446 = vsel %vm1261, %v2417, 0
  %v2449 = vsel %vm1261, %v2418, 0
  %v2452 = vsel %vm1261, %v2419, 0
  %v2455 = vsel %vm1261, %v2420, 0
  %v2458 = vsel %vm1261, %v2421, 0
  %v2461 = vsel %vm1261, %v2422, 0
  %v2464 = vsel %vm1261, %v2423, 0
  %v2467 = vsel %vm1261, %v2424, 0
  %v2470 = vsel %vm1261, %v2425, 0
  %v2473 = vsel %vm1261, %v2426, 0
  %v2476 = vsel %vm1261, %v2427, 0
  %v2479 = vsel %vm1261, %v2428, 0
  %v2482 = vsel %vm1261, %v2429, 0
  %v2485 = vsel %vm1261, %v2430, 0
  %2487 = vmatprep.subr.bf16.mxu0 0
  %2488 = vmatpush1.bf16.xpose.msra.mxu0 %v2485
  %2489 = vmatprep.subr.bf16.mxu0 0
  %2490 = vmatpush1.bf16.xpose.msra.mxu0 %v2482
  %2491 = vmatprep.subr.bf16.mxu0 0
  %2492 = vmatpush1.bf16.xpose.msra.mxu0 %v2479
  %2493 = vmatprep.subr.bf16.mxu0 0
  %2494 = vmatpush1.bf16.xpose.msra.mxu0 %v2476
  %2495 = vmatprep.subr.bf16.mxu0 0
  %2496 = vmatpush1.bf16.xpose.msra.mxu0 %v2473
  %2497 = vmatprep.subr.bf16.mxu0 0
  %2498 = vmatpush1.bf16.xpose.msra.mxu0 %v2470
  %2499 = vmatprep.subr.bf16.mxu0 0
  %2500 = vmatpush1.bf16.xpose.msra.mxu0 %v2467
  %2501 = vmatprep.subr.bf16.mxu0 0
  %2502 = vmatpush1.bf16.xpose.msra.mxu0 %v2464
  %2503 = vmatprep.subr.bf16.mxu0 0
  %2504 = vmatpush2.bf16.xpose.msra.mxu0 0
  %2505 = vmatprep.subr.bf16.mxu0 0
  %2506 = vmatpush2.bf16.xpose.msra.mxu0 0
  %2507 = vmatprep.subr.bf16.mxu0 0
  %2508 = vmatpush2.bf16.xpose.msra.mxu0 0
  %2509 = vmatprep.subr.bf16.mxu0 0
  %2510 = vmatpush2.bf16.xpose.msra.mxu0 0
  %2511 = vmatprep.subr.bf16.mxu0 0
  %2512 = vmatpush2.bf16.xpose.msra.mxu0 0
  %2513 = vmatprep.subr.bf16.mxu0 0
  %2514 = vmatpush2.bf16.xpose.msra.mxu0 0
  %2515 = vmatprep.subr.bf16.mxu0 0
  %2516 = vmatpush2.bf16.xpose.msra.mxu0 0
  %2517 = vmatprep.subr.bf16.mxu0 0
  %2518 = vmatpush2.bf16.xpose.msra.mxu0 0
  %2519 = vmatprep.mubr.bf16.mxu0 0
  %2520 = vmatmul.mubr.bf16.gmra.mxu0 %v2440
  %v2521 = vpop.f32.mrf.mxu0
  %v2522 = vadd.f32 0.0, %v2521
  %v2523 = vpop.f32.mrf.mxu0
  %v2524 = vpop.f32.mrf.mxu0
  %v2525 = vadd.f32 0.0, %v2524
  %v2526 = vpop.f32.mrf.mxu0
  %2527 = vmatprep.mubr.bf16.mxu0 0
  %2528 = vmatmul.mubr.bf16.gmra.mxu0 %v2443
  %v2529 = vpop.f32.mrf.mxu0
  %v2530 = vadd.f32 0.0, %v2529
  %v2531 = vpop.f32.mrf.mxu0
  %v2532 = vpop.f32.mrf.mxu0
  %v2533 = vadd.f32 0.0, %v2532
  %v2534 = vpop.f32.mrf.mxu0
  %2535 = vmatprep.mubr.bf16.mxu0 0
  %2536 = vmatmul.mubr.bf16.gmra.mxu0 %v2446
  %v2537 = vpop.f32.mrf.mxu0
  %v2538 = vadd.f32 0.0, %v2537
  %v2539 = vpop.f32.mrf.mxu0
  %v2540 = vpop.f32.mrf.mxu0
  %v2541 = vadd.f32 0.0, %v2540
  %v2542 = vpop.f32.mrf.mxu0
  %2543 = vmatprep.mubr.bf16.mxu0 0
  %2544 = vmatmul.mubr.bf16.gmra.mxu0 %v2449
  %v2545 = vpop.f32.mrf.mxu0
  %v2546 = vadd.f32 0.0, %v2545
  %v2547 = vpop.f32.mrf.mxu0
  %v2548 = vpop.f32.mrf.mxu0
  %v2549 = vadd.f32 0.0, %v2548
  %v2550 = vpop.f32.mrf.mxu0
  %2551 = vmatprep.mubr.bf16.mxu0 0
  %2552 = vmatmul.mubr.bf16.gmra.mxu0 %v2452
  %v2553 = vpop.f32.mrf.mxu0
  %v2554 = vadd.f32 0.0, %v2553
  %v2555 = vpop.f32.mrf.mxu0
  %v2556 = vpop.f32.mrf.mxu0
  %v2557 = vadd.f32 0.0, %v2556
  %v2558 = vpop.f32.mrf.mxu0
  %2559 = vmatprep.mubr.bf16.mxu0 0
  %2560 = vmatmul.mubr.bf16.gmra.mxu0 %v2455
  %v2561 = vpop.f32.mrf.mxu0
  %v2562 = vadd.f32 0.0, %v2561
  %v2563 = vpop.f32.mrf.mxu0
  %v2564 = vpop.f32.mrf.mxu0
  %v2565 = vadd.f32 0.0, %v2564
  %v2566 = vpop.f32.mrf.mxu0
  %2567 = vmatprep.mubr.bf16.mxu0 0
  %2568 = vmatmul.mubr.bf16.gmra.mxu0 %v2458
  %v2569 = vpop.f32.mrf.mxu0
  %v2570 = vadd.f32 0.0, %v2569
  %v2571 = vpop.f32.mrf.mxu0
  %v2572 = vpop.f32.mrf.mxu0
  %v2573 = vadd.f32 0.0, %v2572
  %v2574 = vpop.f32.mrf.mxu0
  %2575 = vmatprep.mubr.bf16.mxu0 0
  %2576 = vmatmul.mubr.bf16.gmra.mxu0 %v2461
  %v2577 = vpop.f32.mrf.mxu0
  %v2578 = vadd.f32 0.0, %v2577
  %v2579 = vpop.f32.mrf.mxu0
  %v2580 = vpop.f32.mrf.mxu0
  %v2581 = vadd.f32 0.0, %v2580
  %v2582 = vpop.f32.mrf.mxu0
  %2583 = vdwg.mxu0
  %v2584 = vmul.f32 %v2522, 0.125
  %v2585 = vmul.f32 %v2525, 0.125
  %v2586 = vmul.f32 %v2530, 0.125
  %v2587 = vmul.f32 %v2533, 0.125
  %v2588 = vmul.f32 %v2538, 0.125
  %v2589 = vmul.f32 %v2541, 0.125
  %v2590 = vmul.f32 %v2546, 0.125
  %v2591 = vmul.f32 %v2549, 0.125
  %v2592 = vmul.f32 %v2554, 0.125
  %v2593 = vmul.f32 %v2557, 0.125
  %v2594 = vmul.f32 %v2562, 0.125
  %v2595 = vmul.f32 %v2565, 0.125
  %v2596 = vmul.f32 %v2570, 0.125
  %v2597 = vmul.f32 %v2573, 0.125
  %v2598 = vmul.f32 %v2578, 0.125
  %v2599 = vmul.f32 %v2581, 0.125
  %v2600 = vlaneseq
  %v2601 = vshrl.u32 %v2600, 7
  %v2602 = vsub.s32 0, %v2601
  %v2603 = vrot.slane %v194, %v2602
  %v2604 = vadd.f32 %v2584, %v2603
  %v2605 = vadd.f32 %v2585, %v2603
  %v2606 = vadd.f32 %v2586, %v2603
  %v2607 = vadd.f32 %v2587, %v2603
  %v2608 = vadd.f32 %v2588, %v2603
  %v2609 = vadd.f32 %v2589, %v2603
  %v2610 = vadd.f32 %v2590, %v2603
  %v2611 = vadd.f32 %v2591, %v2603
  %v2612 = vadd.f32 %v2592, %v2603
  %v2613 = vadd.f32 %v2593, %v2603
  %v2614 = vadd.f32 %v2594, %v2603
  %v2615 = vadd.f32 %v2595, %v2603
  %v2616 = vadd.f32 %v2596, %v2603
  %v2617 = vadd.f32 %v2597, %v2603
  %v2618 = vadd.f32 %v2598, %v2603
  %v2619 = vadd.f32 %v2599, %v2603
  %2620 = vmax.xlane.f32.xlu0 %v2604
  %v2621 = vpop.xlane.xlu0 %2620
  %2622 = vmax.xlane.f32.xlu0 %v2605
  %v2623 = vpop.xlane.xlu0 %2622
  %2624 = vmax.xlane.f32.xlu0 %v2606
  %v2625 = vpop.xlane.xlu0 %2624
  %2626 = vmax.xlane.f32.xlu0 %v2607
  %v2627 = vpop.xlane.xlu0 %2626
  %2628 = vmax.xlane.f32.xlu0 %v2608
  %v2629 = vpop.xlane.xlu0 %2628
  %2630 = vmax.xlane.f32.xlu0 %v2609
  %v2631 = vpop.xlane.xlu0 %2630
  %2632 = vmax.xlane.f32.xlu0 %v2610
  %v2633 = vpop.xlane.xlu0 %2632
  %2634 = vmax.xlane.f32.xlu0 %v2611
  %v2635 = vpop.xlane.xlu0 %2634
  %2636 = vmax.xlane.f32.xlu0 %v2612
  %v2637 = vpop.xlane.xlu0 %2636
  %2638 = vmax.xlane.f32.xlu0 %v2613
  %v2639 = vpop.xlane.xlu0 %2638
  %2640 = vmax.xlane.f32.xlu0 %v2614
  %v2641 = vpop.xlane.xlu0 %2640
  %2642 = vmax.xlane.f32.xlu0 %v2615
  %v2643 = vpop.xlane.xlu0 %2642
  %2644 = vmax.xlane.f32.xlu0 %v2616
  %v2645 = vpop.xlane.xlu0 %2644
  %2646 = vmax.xlane.f32.xlu0 %v2617
  %v2647 = vpop.xlane.xlu0 %2646
  %2648 = vmax.xlane.f32.xlu0 %v2618
  %v2649 = vpop.xlane.xlu0 %2648
  %2650 = vmax.xlane.f32.xlu0 %v2619
  %v2651 = vpop.xlane.xlu0 %2650
  %v2652 = vsub.f32 %v2604, %v2621
  %v2653 = vsub.f32 %v2605, %v2623
  %v2654 = vsub.f32 %v2606, %v2625
  %v2655 = vsub.f32 %v2607, %v2627
  %v2656 = vsub.f32 %v2608, %v2629
  %v2657 = vsub.f32 %v2609, %v2631
  %v2658 = vsub.f32 %v2610, %v2633
  %v2659 = vsub.f32 %v2611, %v2635
  %v2660 = vsub.f32 %v2612, %v2637
  %v2661 = vsub.f32 %v2613, %v2639
  %v2662 = vsub.f32 %v2614, %v2641
  %v2663 = vsub.f32 %v2615, %v2643
  %v2664 = vsub.f32 %v2616, %v2645
  %v2665 = vsub.f32 %v2617, %v2647
  %v2666 = vsub.f32 %v2618, %v2649
  %v2667 = vsub.f32 %v2619, %v2651
  %v2668 = vmul.f32 %v2652, 1.442695
  %v2669 = vpow.pop %v2668
  %v2670 = vmul.f32 %v2653, 1.442695
  %v2671 = vpow.pop %v2670
  %v2672 = vmul.f32 %v2654, 1.442695
  %v2673 = vpow.pop %v2672
  %v2674 = vmul.f32 %v2655, 1.442695
  %v2675 = vpow.pop %v2674
  %v2676 = vmul.f32 %v2656, 1.442695
  %v2677 = vpow.pop %v2676
  %v2678 = vmul.f32 %v2657, 1.442695
  %v2679 = vpow.pop %v2678
  %v2680 = vmul.f32 %v2658, 1.442695
  %v2681 = vpow.pop %v2680
  %v2682 = vmul.f32 %v2659, 1.442695
  %v2683 = vpow.pop %v2682
  %v2684 = vmul.f32 %v2660, 1.442695
  %v2685 = vpow.pop %v2684
  %v2686 = vmul.f32 %v2661, 1.442695
  %v2687 = vpow.pop %v2686
  %v2688 = vmul.f32 %v2662, 1.442695
  %v2689 = vpow.pop %v2688
  %v2690 = vmul.f32 %v2663, 1.442695
  %v2691 = vpow.pop %v2690
  %v2692 = vmul.f32 %v2664, 1.442695
  %v2693 = vpow.pop %v2692
  %v2694 = vmul.f32 %v2665, 1.442695
  %v2695 = vpow.pop %v2694
  %v2696 = vmul.f32 %v2666, 1.442695
  %v2697 = vpow.pop %v2696
  %v2698 = vmul.f32 %v2667, 1.442695
  %v2699 = vpow.pop %v2698
  %v2701 = vsel %vm1261, %v2431, 1065369472
  %v2704 = vsel %vm1261, %v2432, 1065369472
  %v2707 = vsel %vm1261, %v2433, 1065369472
  %v2710 = vsel %vm1261, %v2434, 1065369472
  %v2713 = vsel %vm1261, %v2435, 1065369472
  %v2716 = vsel %vm1261, %v2436, 1065369472
  %v2719 = vsel %vm1261, %v2437, 1065369472
  %v2722 = vsel %vm1261, %v2438, 1065369472
  %v2724 = vpack.c.bf16 %v2671, %v2669
  %v2725 = vpack.c.bf16 %v2675, %v2673
  %v2726 = vpack.c.bf16 %v2679, %v2677
  %v2727 = vpack.c.bf16 %v2683, %v2681
  %v2728 = vpack.c.bf16 %v2687, %v2685
  %v2729 = vpack.c.bf16 %v2691, %v2689
  %v2730 = vpack.c.bf16 %v2695, %v2693
  %v2731 = vpack.c.bf16 %v2699, %v2697
  %2732 = vmatprep.subr.bf16.mxu0 0
  %2733 = vmatpush1.bf16.msra.mxu0 %v2722
  %2734 = vmatprep.subr.bf16.mxu0 0
  %2735 = vmatpush1.bf16.msra.mxu0 %v2719
  %2736 = vmatprep.subr.bf16.mxu0 0
  %2737 = vmatpush1.bf16.msra.mxu0 %v2716
  %2738 = vmatprep.subr.bf16.mxu0 0
  %2739 = vmatpush1.bf16.msra.mxu0 %v2713
  %2740 = vmatprep.subr.bf16.mxu0 0
  %2741 = vmatpush1.bf16.msra.mxu0 %v2710
  %2742 = vmatprep.subr.bf16.mxu0 0
  %2743 = vmatpush1.bf16.msra.mxu0 %v2707
  %2744 = vmatprep.subr.bf16.mxu0 0
  %2745 = vmatpush1.bf16.msra.mxu0 %v2704
  %2746 = vmatprep.subr.bf16.mxu0 0
  %2747 = vmatpush1.bf16.msra.mxu0 %v2701
  %2748 = vmatprep.subr.bf16.mxu0 0
  %2749 = vmatpush2.bf16.msra.mxu0 0
  %2750 = vmatprep.subr.bf16.mxu0 0
  %2751 = vmatpush2.bf16.msra.mxu0 0
  %2752 = vmatprep.subr.bf16.mxu0 0
  %2753 = vmatpush2.bf16.msra.mxu0 0
  %2754 = vmatprep.subr.bf16.mxu0 0
  %2755 = vmatpush2.bf16.msra.mxu0 0
  %2756 = vmatprep.subr.bf16.mxu0 0
  %2757 = vmatpush2.bf16.msra.mxu0 0
  %2758 = vmatprep.subr.bf16.mxu0 0
  %2759 = vmatpush2.bf16.msra.mxu0 0
  %2760 = vmatprep.subr.bf16.mxu0 0
  %2761 = vmatpush2.bf16.msra.mxu0 0
  %2762 = vmatprep.subr.bf16.mxu0 0
  %2763 = vmatpush2.bf16.msra.mxu0 0
  %2764 = vmatprep.mubr.bf16.mxu0 0
  %2765 = vmatmul.mubr.bf16.gmra.mxu0 %v2724
  %v2766 = vpop.f32.mrf.mxu0
  %v2767 = vadd.f32 0.0, %v2766
  %v2768 = vpop.f32.mrf.mxu0
  %v2769 = vpop.f32.mrf.mxu0
  %v2770 = vadd.f32 0.0, %v2769
  %v2771 = vpop.f32.mrf.mxu0
  %2772 = vmatprep.mubr.bf16.mxu0 0
  %2773 = vmatmul.mubr.bf16.gmra.mxu0 %v2725
  %v2774 = vpop.f32.mrf.mxu0
  %v2775 = vadd.f32 0.0, %v2774
  %v2776 = vpop.f32.mrf.mxu0
  %v2777 = vpop.f32.mrf.mxu0
  %v2778 = vadd.f32 0.0, %v2777
  %v2779 = vpop.f32.mrf.mxu0
  %2780 = vmatprep.mubr.bf16.mxu0 0
  %2781 = vmatmul.mubr.bf16.gmra.mxu0 %v2726
  %v2782 = vpop.f32.mrf.mxu0
  %v2783 = vadd.f32 0.0, %v2782
  %v2784 = vpop.f32.mrf.mxu0
  %v2785 = vpop.f32.mrf.mxu0
  %v2786 = vadd.f32 0.0, %v2785
  %v2787 = vpop.f32.mrf.mxu0
  %2788 = vmatprep.mubr.bf16.mxu0 0
  %2789 = vmatmul.mubr.bf16.gmra.mxu0 %v2727
  %v2790 = vpop.f32.mrf.mxu0
  %v2791 = vadd.f32 0.0, %v2790
  %v2792 = vpop.f32.mrf.mxu0
  %v2793 = vpop.f32.mrf.mxu0
  %v2794 = vadd.f32 0.0, %v2793
  %v2795 = vpop.f32.mrf.mxu0
  %2796 = vmatprep.mubr.bf16.mxu0 0
  %2797 = vmatmul.mubr.bf16.gmra.mxu0 %v2728
  %v2798 = vpop.f32.mrf.mxu0
  %v2799 = vadd.f32 0.0, %v2798
  %v2800 = vpop.f32.mrf.mxu0
  %v2801 = vpop.f32.mrf.mxu0
  %v2802 = vadd.f32 0.0, %v2801
  %v2803 = vpop.f32.mrf.mxu0
  %2804 = vmatprep.mubr.bf16.mxu0 0
  %2805 = vmatmul.mubr.bf16.gmra.mxu0 %v2729
  %v2806 = vpop.f32.mrf.mxu0
  %v2807 = vadd.f32 0.0, %v2806
  %v2808 = vpop.f32.mrf.mxu0
  %v2809 = vpop.f32.mrf.mxu0
  %v2810 = vadd.f32 0.0, %v2809
  %v2811 = vpop.f32.mrf.mxu0
  %2812 = vmatprep.mubr.bf16.mxu0 0
  %2813 = vmatmul.mubr.bf16.gmra.mxu0 %v2730
  %v2814 = vpop.f32.mrf.mxu0
  %v2815 = vadd.f32 0.0, %v2814
  %v2816 = vpop.f32.mrf.mxu0
  %v2817 = vpop.f32.mrf.mxu0
  %v2818 = vadd.f32 0.0, %v2817
  %v2819 = vpop.f32.mrf.mxu0
  %2820 = vmatprep.mubr.bf16.mxu0 0
  %2821 = vmatmul.mubr.bf16.gmra.mxu0 %v2731
  %v2822 = vpop.f32.mrf.mxu0
  %v2823 = vadd.f32 0.0, %v2822
  %v2824 = vpop.f32.mrf.mxu0
  %v2825 = vpop.f32.mrf.mxu0
  %v2826 = vadd.f32 0.0, %v2825
  %v2827 = vpop.f32.mrf.mxu0
  %2828 = vdwg.mxu0
  %v2829 = vrcp.pop %v2767
  %v2830 = vrcp.pop %v2770
  %v2831 = vrcp.pop %v2775
  %v2832 = vrcp.pop %v2778
  %v2833 = vrcp.pop %v2783
  %v2834 = vrcp.pop %v2786
  %v2835 = vrcp.pop %v2791
  %v2836 = vrcp.pop %v2794
  %v2837 = vrcp.pop %v2799
  %v2838 = vrcp.pop %v2802
  %v2839 = vrcp.pop %v2807
  %v2840 = vrcp.pop %v2810
  %v2841 = vrcp.pop %v2815
  %v2842 = vrcp.pop %v2818
  %v2843 = vrcp.pop %v2823
  %v2844 = vrcp.pop %v2826
  %2846 = vset.pattern.permute.xlu0 64
  %2847 = vperm.xlu0 %2846, %v2829
  %v2848 = vpop.permute.xlu0 %2847
  %2851 = vset.pattern.permute.xlu0 64
  %2852 = vperm.xlu0 %2851, %v2830
  %v2853 = vpop.permute.xlu0 %2852
  %2856 = vset.pattern.permute.xlu0 64
  %2857 = vperm.xlu0 %2856, %v2831
  %v2858 = vpop.permute.xlu0 %2857
  %2861 = vset.pattern.permute.xlu0 64
  %2862 = vperm.xlu0 %2861, %v2832
  %v2863 = vpop.permute.xlu0 %2862
  %2866 = vset.pattern.permute.xlu0 64
  %2867 = vperm.xlu0 %2866, %v2833
  %v2868 = vpop.permute.xlu0 %2867
  %2871 = vset.pattern.permute.xlu0 64
  %2872 = vperm.xlu0 %2871, %v2834
  %v2873 = vpop.permute.xlu0 %2872
  %2876 = vset.pattern.permute.xlu0 64
  %2877 = vperm.xlu0 %2876, %v2835
  %v2878 = vpop.permute.xlu0 %2877
  %2881 = vset.pattern.permute.xlu0 64
  %2882 = vperm.xlu0 %2881, %v2836
  %v2883 = vpop.permute.xlu0 %2882
  %2886 = vset.pattern.permute.xlu0 64
  %2887 = vperm.xlu0 %2886, %v2837
  %v2888 = vpop.permute.xlu0 %2887
  %2891 = vset.pattern.permute.xlu0 64
  %2892 = vperm.xlu0 %2891, %v2838
  %v2893 = vpop.permute.xlu0 %2892
  %2896 = vset.pattern.permute.xlu0 64
  %2897 = vperm.xlu0 %2896, %v2839
  %v2898 = vpop.permute.xlu0 %2897
  %2901 = vset.pattern.permute.xlu0 64
  %2902 = vperm.xlu0 %2901, %v2840
  %v2903 = vpop.permute.xlu0 %2902
  %2906 = vset.pattern.permute.xlu0 64
  %2907 = vperm.xlu0 %2906, %v2841
  %v2908 = vpop.permute.xlu0 %2907
  %2911 = vset.pattern.permute.xlu0 64
  %2912 = vperm.xlu0 %2911, %v2842
  %v2913 = vpop.permute.xlu0 %2912
  %2916 = vset.pattern.permute.xlu0 64
  %2917 = vperm.xlu0 %2916, %v2843
  %v2918 = vpop.permute.xlu0 %2917
  %2921 = vset.pattern.permute.xlu0 64
  %2922 = vperm.xlu0 %2921, %v2844
  %v2923 = vpop.permute.xlu0 %2922
  %v2925 = vmul.f32 %v2767, %v2848
  %v2926 = vmul.f32 %v2770, %v2853
  %v2927 = vmul.f32 %v2775, %v2858
  %v2928 = vmul.f32 %v2778, %v2863
  %v2929 = vmul.f32 %v2783, %v2868
  %v2930 = vmul.f32 %v2786, %v2873
  %v2931 = vmul.f32 %v2791, %v2878
  %v2932 = vmul.f32 %v2794, %v2883
  %v2933 = vmul.f32 %v2799, %v2888
  %v2934 = vmul.f32 %v2802, %v2893
  %v2935 = vmul.f32 %v2807, %v2898
  %v2936 = vmul.f32 %v2810, %v2903
  %v2937 = vmul.f32 %v2815, %v2908
  %v2938 = vmul.f32 %v2818, %v2913
  %v2939 = vmul.f32 %v2823, %v2918
  %v2940 = vmul.f32 %v2826, %v2923
  %2949 = vrot.lane.b32.xlu0 %v2415, 64
  %v2950 = vpop.permute.xlu0 %2949
  %2951 = vrot.lane.b32.xlu0 %v2416, 64
  %v2952 = vpop.permute.xlu0 %2951
  %2953 = vrot.lane.b32.xlu0 %v2417, 64
  %v2954 = vpop.permute.xlu0 %2953
  %2955 = vrot.lane.b32.xlu0 %v2418, 64
  %v2956 = vpop.permute.xlu0 %2955
  %2957 = vrot.lane.b32.xlu0 %v2419, 64
  %v2958 = vpop.permute.xlu0 %2957
  %2959 = vrot.lane.b32.xlu0 %v2420, 64
  %v2960 = vpop.permute.xlu0 %2959
  %2961 = vrot.lane.b32.xlu0 %v2421, 64
  %v2962 = vpop.permute.xlu0 %2961
  %2963 = vrot.lane.b32.xlu0 %v2422, 64
  %v2964 = vpop.permute.xlu0 %2963
  %2973 = vrot.lane.b32.xlu0 %v2423, 64
  %v2974 = vpop.permute.xlu0 %2973
  %2975 = vrot.lane.b32.xlu0 %v2424, 64
  %v2976 = vpop.permute.xlu0 %2975
  %2977 = vrot.lane.b32.xlu0 %v2425, 64
  %v2978 = vpop.permute.xlu0 %2977
  %2979 = vrot.lane.b32.xlu0 %v2426, 64
  %v2980 = vpop.permute.xlu0 %2979
  %2981 = vrot.lane.b32.xlu0 %v2427, 64
  %v2982 = vpop.permute.xlu0 %2981
  %2983 = vrot.lane.b32.xlu0 %v2428, 64
  %v2984 = vpop.permute.xlu0 %2983
  %2985 = vrot.lane.b32.xlu0 %v2429, 64
  %v2986 = vpop.permute.xlu0 %2985
  %2987 = vrot.lane.b32.xlu0 %v2430, 64
  %v2988 = vpop.permute.xlu0 %2987
  %v2990 = vsel %vm1261, %v2950, 0
  %v2993 = vsel %vm1261, %v2952, 0
  %v2996 = vsel %vm1261, %v2954, 0
  %v2999 = vsel %vm1261, %v2956, 0
  %v3002 = vsel %vm1261, %v2958, 0
  %v3005 = vsel %vm1261, %v2960, 0
  %v3008 = vsel %vm1261, %v2962, 0
  %v3011 = vsel %vm1261, %v2964, 0
  %v3014 = vsel %vm1261, %v2974, 0
  %v3017 = vsel %vm1261, %v2976, 0
  %v3020 = vsel %vm1261, %v2978, 0
  %v3023 = vsel %vm1261, %v2980, 0
  %v3026 = vsel %vm1261, %v2982, 0
  %v3029 = vsel %vm1261, %v2984, 0
  %v3032 = vsel %vm1261, %v2986, 0
  %v3035 = vsel %vm1261, %v2988, 0
  %3037 = vmatprep.subr.bf16.mxu0 0
  %3038 = vmatpush1.bf16.xpose.msra.mxu0 %v3035
  %3039 = vmatprep.subr.bf16.mxu0 0
  %3040 = vmatpush1.bf16.xpose.msra.mxu0 %v3032
  %3041 = vmatprep.subr.bf16.mxu0 0
  %3042 = vmatpush1.bf16.xpose.msra.mxu0 %v3029
  %3043 = vmatprep.subr.bf16.mxu0 0
  %3044 = vmatpush1.bf16.xpose.msra.mxu0 %v3026
  %3045 = vmatprep.subr.bf16.mxu0 0
  %3046 = vmatpush1.bf16.xpose.msra.mxu0 %v3023
  %3047 = vmatprep.subr.bf16.mxu0 0
  %3048 = vmatpush1.bf16.xpose.msra.mxu0 %v3020
  %3049 = vmatprep.subr.bf16.mxu0 0
  %3050 = vmatpush1.bf16.xpose.msra.mxu0 %v3017
  %3051 = vmatprep.subr.bf16.mxu0 0
  %3052 = vmatpush1.bf16.xpose.msra.mxu0 %v3014
  %3053 = vmatprep.subr.bf16.mxu0 0
  %3054 = vmatpush2.bf16.xpose.msra.mxu0 0
  %3055 = vmatprep.subr.bf16.mxu0 0
  %3056 = vmatpush2.bf16.xpose.msra.mxu0 0
  %3057 = vmatprep.subr.bf16.mxu0 0
  %3058 = vmatpush2.bf16.xpose.msra.mxu0 0
  %3059 = vmatprep.subr.bf16.mxu0 0
  %3060 = vmatpush2.bf16.xpose.msra.mxu0 0
  %3061 = vmatprep.subr.bf16.mxu0 0
  %3062 = vmatpush2.bf16.xpose.msra.mxu0 0
  %3063 = vmatprep.subr.bf16.mxu0 0
  %3064 = vmatpush2.bf16.xpose.msra.mxu0 0
  %3065 = vmatprep.subr.bf16.mxu0 0
  %3066 = vmatpush2.bf16.xpose.msra.mxu0 0
  %3067 = vmatprep.subr.bf16.mxu0 0
  %3068 = vmatpush2.bf16.xpose.msra.mxu0 0
  %3069 = vmatprep.mubr.bf16.mxu0 0
  %3070 = vmatmul.mubr.bf16.gmra.mxu0 %v2990
  %v3071 = vpop.f32.mrf.mxu0
  %v3072 = vadd.f32 0.0, %v3071
  %v3073 = vpop.f32.mrf.mxu0
  %v3074 = vpop.f32.mrf.mxu0
  %v3075 = vadd.f32 0.0, %v3074
  %v3076 = vpop.f32.mrf.mxu0
  %3077 = vmatprep.mubr.bf16.mxu0 0
  %3078 = vmatmul.mubr.bf16.gmra.mxu0 %v2993
  %v3079 = vpop.f32.mrf.mxu0
  %v3080 = vadd.f32 0.0, %v3079
  %v3081 = vpop.f32.mrf.mxu0
  %v3082 = vpop.f32.mrf.mxu0
  %v3083 = vadd.f32 0.0, %v3082
  %v3084 = vpop.f32.mrf.mxu0
  %3085 = vmatprep.mubr.bf16.mxu0 0
  %3086 = vmatmul.mubr.bf16.gmra.mxu0 %v2996
  %v3087 = vpop.f32.mrf.mxu0
  %v3088 = vadd.f32 0.0, %v3087
  %v3089 = vpop.f32.mrf.mxu0
  %v3090 = vpop.f32.mrf.mxu0
  %v3091 = vadd.f32 0.0, %v3090
  %v3092 = vpop.f32.mrf.mxu0
  %3093 = vmatprep.mubr.bf16.mxu0 0
  %3094 = vmatmul.mubr.bf16.gmra.mxu0 %v2999
  %v3095 = vpop.f32.mrf.mxu0
  %v3096 = vadd.f32 0.0, %v3095
  %v3097 = vpop.f32.mrf.mxu0
  %v3098 = vpop.f32.mrf.mxu0
  %v3099 = vadd.f32 0.0, %v3098
  %v3100 = vpop.f32.mrf.mxu0
  %3101 = vmatprep.mubr.bf16.mxu0 0
  %3102 = vmatmul.mubr.bf16.gmra.mxu0 %v3002
  %v3103 = vpop.f32.mrf.mxu0
  %v3104 = vadd.f32 0.0, %v3103
  %v3105 = vpop.f32.mrf.mxu0
  %v3106 = vpop.f32.mrf.mxu0
  %v3107 = vadd.f32 0.0, %v3106
  %v3108 = vpop.f32.mrf.mxu0
  %3109 = vmatprep.mubr.bf16.mxu0 0
  %3110 = vmatmul.mubr.bf16.gmra.mxu0 %v3005
  %v3111 = vpop.f32.mrf.mxu0
  %v3112 = vadd.f32 0.0, %v3111
  %v3113 = vpop.f32.mrf.mxu0
  %v3114 = vpop.f32.mrf.mxu0
  %v3115 = vadd.f32 0.0, %v3114
  %v3116 = vpop.f32.mrf.mxu0
  %3117 = vmatprep.mubr.bf16.mxu0 0
  %3118 = vmatmul.mubr.bf16.gmra.mxu0 %v3008
  %v3119 = vpop.f32.mrf.mxu0
  %v3120 = vadd.f32 0.0, %v3119
  %v3121 = vpop.f32.mrf.mxu0
  %v3122 = vpop.f32.mrf.mxu0
  %v3123 = vadd.f32 0.0, %v3122
  %v3124 = vpop.f32.mrf.mxu0
  %3125 = vmatprep.mubr.bf16.mxu0 0
  %3126 = vmatmul.mubr.bf16.gmra.mxu0 %v3011
  %v3127 = vpop.f32.mrf.mxu0
  %v3128 = vadd.f32 0.0, %v3127
  %v3129 = vpop.f32.mrf.mxu0
  %v3130 = vpop.f32.mrf.mxu0
  %v3131 = vadd.f32 0.0, %v3130
  %v3132 = vpop.f32.mrf.mxu0
  %3133 = vdwg.mxu0
  %v3134 = vmul.f32 %v3072, 0.125
  %v3135 = vmul.f32 %v3075, 0.125
  %v3136 = vmul.f32 %v3080, 0.125
  %v3137 = vmul.f32 %v3083, 0.125
  %v3138 = vmul.f32 %v3088, 0.125
  %v3139 = vmul.f32 %v3091, 0.125
  %v3140 = vmul.f32 %v3096, 0.125
  %v3141 = vmul.f32 %v3099, 0.125
  %v3142 = vmul.f32 %v3104, 0.125
  %v3143 = vmul.f32 %v3107, 0.125
  %v3144 = vmul.f32 %v3112, 0.125
  %v3145 = vmul.f32 %v3115, 0.125
  %v3146 = vmul.f32 %v3120, 0.125
  %v3147 = vmul.f32 %v3123, 0.125
  %v3148 = vmul.f32 %v3128, 0.125
  %v3149 = vmul.f32 %v3131, 0.125
  %v3150 = vadd.f32 %v3134, %v2603
  %v3151 = vadd.f32 %v3135, %v2603
  %v3152 = vadd.f32 %v3136, %v2603
  %v3153 = vadd.f32 %v3137, %v2603
  %v3154 = vadd.f32 %v3138, %v2603
  %v3155 = vadd.f32 %v3139, %v2603
  %v3156 = vadd.f32 %v3140, %v2603
  %v3157 = vadd.f32 %v3141, %v2603
  %v3158 = vadd.f32 %v3142, %v2603
  %v3159 = vadd.f32 %v3143, %v2603
  %v3160 = vadd.f32 %v3144, %v2603
  %v3161 = vadd.f32 %v3145, %v2603
  %v3162 = vadd.f32 %v3146, %v2603
  %v3163 = vadd.f32 %v3147, %v2603
  %v3164 = vadd.f32 %v3148, %v2603
  %v3165 = vadd.f32 %v3149, %v2603
  %3166 = vmax.xlane.f32.xlu0 %v3150
  %v3167 = vpop.xlane.xlu0 %3166
  %3168 = vmax.xlane.f32.xlu0 %v3151
  %v3169 = vpop.xlane.xlu0 %3168
  %3170 = vmax.xlane.f32.xlu0 %v3152
  %v3171 = vpop.xlane.xlu0 %3170
  %3172 = vmax.xlane.f32.xlu0 %v3153
  %v3173 = vpop.xlane.xlu0 %3172
  %3174 = vmax.xlane.f32.xlu0 %v3154
  %v3175 = vpop.xlane.xlu0 %3174
  %3176 = vmax.xlane.f32.xlu0 %v3155
  %v3177 = vpop.xlane.xlu0 %3176
  %3178 = vmax.xlane.f32.xlu0 %v3156
  %v3179 = vpop.xlane.xlu0 %3178
  %3180 = vmax.xlane.f32.xlu0 %v3157
  %v3181 = vpop.xlane.xlu0 %3180
  %3182 = vmax.xlane.f32.xlu0 %v3158
  %v3183 = vpop.xlane.xlu0 %3182
  %3184 = vmax.xlane.f32.xlu0 %v3159
  %v3185 = vpop.xlane.xlu0 %3184
  %3186 = vmax.xlane.f32.xlu0 %v3160
  %v3187 = vpop.xlane.xlu0 %3186
  %3188 = vmax.xlane.f32.xlu0 %v3161
  %v3189 = vpop.xlane.xlu0 %3188
  %3190 = vmax.xlane.f32.xlu0 %v3162
  %v3191 = vpop.xlane.xlu0 %3190
  %3192 = vmax.xlane.f32.xlu0 %v3163
  %v3193 = vpop.xlane.xlu0 %3192
  %3194 = vmax.xlane.f32.xlu0 %v3164
  %v3195 = vpop.xlane.xlu0 %3194
  %3196 = vmax.xlane.f32.xlu0 %v3165
  %v3197 = vpop.xlane.xlu0 %3196
  %v3198 = vsub.f32 %v3150, %v3167
  %v3199 = vsub.f32 %v3151, %v3169
  %v3200 = vsub.f32 %v3152, %v3171
  %v3201 = vsub.f32 %v3153, %v3173
  %v3202 = vsub.f32 %v3154, %v3175
  %v3203 = vsub.f32 %v3155, %v3177
  %v3204 = vsub.f32 %v3156, %v3179
  %v3205 = vsub.f32 %v3157, %v3181
  %v3206 = vsub.f32 %v3158, %v3183
  %v3207 = vsub.f32 %v3159, %v3185
  %v3208 = vsub.f32 %v3160, %v3187
  %v3209 = vsub.f32 %v3161, %v3189
  %v3210 = vsub.f32 %v3162, %v3191
  %v3211 = vsub.f32 %v3163, %v3193
  %v3212 = vsub.f32 %v3164, %v3195
  %v3213 = vsub.f32 %v3165, %v3197
  %v3214 = vmul.f32 %v3198, 1.442695
  %v3215 = vpow.pop %v3214
  %v3216 = vmul.f32 %v3199, 1.442695
  %v3217 = vpow.pop %v3216
  %v3218 = vmul.f32 %v3200, 1.442695
  %v3219 = vpow.pop %v3218
  %v3220 = vmul.f32 %v3201, 1.442695
  %v3221 = vpow.pop %v3220
  %v3222 = vmul.f32 %v3202, 1.442695
  %v3223 = vpow.pop %v3222
  %v3224 = vmul.f32 %v3203, 1.442695
  %v3225 = vpow.pop %v3224
  %v3226 = vmul.f32 %v3204, 1.442695
  %v3227 = vpow.pop %v3226
  %v3228 = vmul.f32 %v3205, 1.442695
  %v3229 = vpow.pop %v3228
  %v3230 = vmul.f32 %v3206, 1.442695
  %v3231 = vpow.pop %v3230
  %v3232 = vmul.f32 %v3207, 1.442695
  %v3233 = vpow.pop %v3232
  %v3234 = vmul.f32 %v3208, 1.442695
  %v3235 = vpow.pop %v3234
  %v3236 = vmul.f32 %v3209, 1.442695
  %v3237 = vpow.pop %v3236
  %v3238 = vmul.f32 %v3210, 1.442695
  %v3239 = vpow.pop %v3238
  %v3240 = vmul.f32 %v3211, 1.442695
  %v3241 = vpow.pop %v3240
  %v3242 = vmul.f32 %v3212, 1.442695
  %v3243 = vpow.pop %v3242
  %v3244 = vmul.f32 %v3213, 1.442695
  %v3245 = vpow.pop %v3244
  %3254 = vrot.lane.b32.xlu0 %v2431, 64
  %v3255 = vpop.permute.xlu0 %3254
  %3256 = vrot.lane.b32.xlu0 %v2432, 64
  %v3257 = vpop.permute.xlu0 %3256
  %3258 = vrot.lane.b32.xlu0 %v2433, 64
  %v3259 = vpop.permute.xlu0 %3258
  %3260 = vrot.lane.b32.xlu0 %v2434, 64
  %v3261 = vpop.permute.xlu0 %3260
  %3262 = vrot.lane.b32.xlu0 %v2435, 64
  %v3263 = vpop.permute.xlu0 %3262
  %3264 = vrot.lane.b32.xlu0 %v2436, 64
  %v3265 = vpop.permute.xlu0 %3264
  %3266 = vrot.lane.b32.xlu0 %v2437, 64
  %v3267 = vpop.permute.xlu0 %3266
  %3268 = vrot.lane.b32.xlu0 %v2438, 64
  %v3269 = vpop.permute.xlu0 %3268
  %v3271 = vsel %vm1261, %v3255, 1065369472
  %v3274 = vsel %vm1261, %v3257, 1065369472
  %v3277 = vsel %vm1261, %v3259, 1065369472
  %v3280 = vsel %vm1261, %v3261, 1065369472
  %v3283 = vsel %vm1261, %v3263, 1065369472
  %v3286 = vsel %vm1261, %v3265, 1065369472
  %v3289 = vsel %vm1261, %v3267, 1065369472
  %v3292 = vsel %vm1261, %v3269, 1065369472
  %v3294 = vpack.c.bf16 %v3217, %v3215
  %v3295 = vpack.c.bf16 %v3221, %v3219
  %v3296 = vpack.c.bf16 %v3225, %v3223
  %v3297 = vpack.c.bf16 %v3229, %v3227
  %v3298 = vpack.c.bf16 %v3233, %v3231
  %v3299 = vpack.c.bf16 %v3237, %v3235
  %v3300 = vpack.c.bf16 %v3241, %v3239
  %v3301 = vpack.c.bf16 %v3245, %v3243
  %3302 = vmatprep.subr.bf16.mxu0 0
  %3303 = vmatpush1.bf16.msra.mxu0 %v3292
  %3304 = vmatprep.subr.bf16.mxu0 0
  %3305 = vmatpush1.bf16.msra.mxu0 %v3289
  %3306 = vmatprep.subr.bf16.mxu0 0
  %3307 = vmatpush1.bf16.msra.mxu0 %v3286
  %3308 = vmatprep.subr.bf16.mxu0 0
  %3309 = vmatpush1.bf16.msra.mxu0 %v3283
  %3310 = vmatprep.subr.bf16.mxu0 0
  %3311 = vmatpush1.bf16.msra.mxu0 %v3280
  %3312 = vmatprep.subr.bf16.mxu0 0
  %3313 = vmatpush1.bf16.msra.mxu0 %v3277
  %3314 = vmatprep.subr.bf16.mxu0 0
  %3315 = vmatpush1.bf16.msra.mxu0 %v3274
  %3316 = vmatprep.subr.bf16.mxu0 0
  %3317 = vmatpush1.bf16.msra.mxu0 %v3271
  %3318 = vmatprep.subr.bf16.mxu0 0
  %3319 = vmatpush2.bf16.msra.mxu0 0
  %3320 = vmatprep.subr.bf16.mxu0 0
  %3321 = vmatpush2.bf16.msra.mxu0 0
  %3322 = vmatprep.subr.bf16.mxu0 0
  %3323 = vmatpush2.bf16.msra.mxu0 0
  %3324 = vmatprep.subr.bf16.mxu0 0
  %3325 = vmatpush2.bf16.msra.mxu0 0
  %3326 = vmatprep.subr.bf16.mxu0 0
  %3327 = vmatpush2.bf16.msra.mxu0 0
  %3328 = vmatprep.subr.bf16.mxu0 0
  %3329 = vmatpush2.bf16.msra.mxu0 0
  %3330 = vmatprep.subr.bf16.mxu0 0
  %3331 = vmatpush2.bf16.msra.mxu0 0
  %3332 = vmatprep.subr.bf16.mxu0 0
  %3333 = vmatpush2.bf16.msra.mxu0 0
  %3334 = vmatprep.mubr.bf16.mxu0 0
  %3335 = vmatmul.mubr.bf16.gmra.mxu0 %v3294
  %v3336 = vpop.f32.mrf.mxu0
  %v3337 = vadd.f32 0.0, %v3336
  %v3338 = vpop.f32.mrf.mxu0
  %v3339 = vpop.f32.mrf.mxu0
  %v3340 = vadd.f32 0.0, %v3339
  %v3341 = vpop.f32.mrf.mxu0
  %3342 = vmatprep.mubr.bf16.mxu0 0
  %3343 = vmatmul.mubr.bf16.gmra.mxu0 %v3295
  %v3344 = vpop.f32.mrf.mxu0
  %v3345 = vadd.f32 0.0, %v3344
  %v3346 = vpop.f32.mrf.mxu0
  %v3347 = vpop.f32.mrf.mxu0
  %v3348 = vadd.f32 0.0, %v3347
  %v3349 = vpop.f32.mrf.mxu0
  %3350 = vmatprep.mubr.bf16.mxu0 0
  %3351 = vmatmul.mubr.bf16.gmra.mxu0 %v3296
  %v3352 = vpop.f32.mrf.mxu0
  %v3353 = vadd.f32 0.0, %v3352
  %v3354 = vpop.f32.mrf.mxu0
  %v3355 = vpop.f32.mrf.mxu0
  %v3356 = vadd.f32 0.0, %v3355
  %v3357 = vpop.f32.mrf.mxu0
  %3358 = vmatprep.mubr.bf16.mxu0 0
  %3359 = vmatmul.mubr.bf16.gmra.mxu0 %v3297
  %v3360 = vpop.f32.mrf.mxu0
  %v3361 = vadd.f32 0.0, %v3360
  %v3362 = vpop.f32.mrf.mxu0
  %v3363 = vpop.f32.mrf.mxu0
  %v3364 = vadd.f32 0.0, %v3363
  %v3365 = vpop.f32.mrf.mxu0
  %3366 = vmatprep.mubr.bf16.mxu0 0
  %3367 = vmatmul.mubr.bf16.gmra.mxu0 %v3298
  %v3368 = vpop.f32.mrf.mxu0
  %v3369 = vadd.f32 0.0, %v3368
  %v3370 = vpop.f32.mrf.mxu0
  %v3371 = vpop.f32.mrf.mxu0
  %v3372 = vadd.f32 0.0, %v3371
  %v3373 = vpop.f32.mrf.mxu0
  %3374 = vmatprep.mubr.bf16.mxu0 0
  %3375 = vmatmul.mubr.bf16.gmra.mxu0 %v3299
  %v3376 = vpop.f32.mrf.mxu0
  %v3377 = vadd.f32 0.0, %v3376
  %v3378 = vpop.f32.mrf.mxu0
  %v3379 = vpop.f32.mrf.mxu0
  %v3380 = vadd.f32 0.0, %v3379
  %v3381 = vpop.f32.mrf.mxu0
  %3382 = vmatprep.mubr.bf16.mxu0 0
  %3383 = vmatmul.mubr.bf16.gmra.mxu0 %v3300
  %v3384 = vpop.f32.mrf.mxu0
  %v3385 = vadd.f32 0.0, %v3384
  %v3386 = vpop.f32.mrf.mxu0
  %v3387 = vpop.f32.mrf.mxu0
  %v3388 = vadd.f32 0.0, %v3387
  %v3389 = vpop.f32.mrf.mxu0
  %3390 = vmatprep.mubr.bf16.mxu0 0
  %3391 = vmatmul.mubr.bf16.gmra.mxu0 %v3301
  %v3392 = vpop.f32.mrf.mxu0
  %v3393 = vadd.f32 0.0, %v3392
  %v3394 = vpop.f32.mrf.mxu0
  %v3395 = vpop.f32.mrf.mxu0
  %v3396 = vadd.f32 0.0, %v3395
  %v3397 = vpop.f32.mrf.mxu0
  %3398 = vdwg.mxu0
  %v3399 = vrcp.pop %v3337
  %v3400 = vrcp.pop %v3340
  %v3401 = vrcp.pop %v3345
  %v3402 = vrcp.pop %v3348
  %v3403 = vrcp.pop %v3353
  %v3404 = vrcp.pop %v3356
  %v3405 = vrcp.pop %v3361
  %v3406 = vrcp.pop %v3364
  %v3407 = vrcp.pop %v3369
  %v3408 = vrcp.pop %v3372
  %v3409 = vrcp.pop %v3377
  %v3410 = vrcp.pop %v3380
  %v3411 = vrcp.pop %v3385
  %v3412 = vrcp.pop %v3388
  %v3413 = vrcp.pop %v3393
  %v3414 = vrcp.pop %v3396
  %3416 = vset.pattern.permute.xlu0 64
  %3417 = vperm.xlu0 %3416, %v3399
  %v3418 = vpop.permute.xlu0 %3417
  %3421 = vset.pattern.permute.xlu0 64
  %3422 = vperm.xlu0 %3421, %v3400
  %v3423 = vpop.permute.xlu0 %3422
  %3426 = vset.pattern.permute.xlu0 64
  %3427 = vperm.xlu0 %3426, %v3401
  %v3428 = vpop.permute.xlu0 %3427
  %3431 = vset.pattern.permute.xlu0 64
  %3432 = vperm.xlu0 %3431, %v3402
  %v3433 = vpop.permute.xlu0 %3432
  %3436 = vset.pattern.permute.xlu0 64
  %3437 = vperm.xlu0 %3436, %v3403
  %v3438 = vpop.permute.xlu0 %3437
  %3441 = vset.pattern.permute.xlu0 64
  %3442 = vperm.xlu0 %3441, %v3404
  %v3443 = vpop.permute.xlu0 %3442
  %3446 = vset.pattern.permute.xlu0 64
  %3447 = vperm.xlu0 %3446, %v3405
  %v3448 = vpop.permute.xlu0 %3447
  %3451 = vset.pattern.permute.xlu0 64
  %3452 = vperm.xlu0 %3451, %v3406
  %v3453 = vpop.permute.xlu0 %3452
  %3456 = vset.pattern.permute.xlu0 64
  %3457 = vperm.xlu0 %3456, %v3407
  %v3458 = vpop.permute.xlu0 %3457
  %3461 = vset.pattern.permute.xlu0 64
  %3462 = vperm.xlu0 %3461, %v3408
  %v3463 = vpop.permute.xlu0 %3462
  %3466 = vset.pattern.permute.xlu0 64
  %3467 = vperm.xlu0 %3466, %v3409
  %v3468 = vpop.permute.xlu0 %3467
  %3471 = vset.pattern.permute.xlu0 64
  %3472 = vperm.xlu0 %3471, %v3410
  %v3473 = vpop.permute.xlu0 %3472
  %3476 = vset.pattern.permute.xlu0 64
  %3477 = vperm.xlu0 %3476, %v3411
  %v3478 = vpop.permute.xlu0 %3477
  %3481 = vset.pattern.permute.xlu0 64
  %3482 = vperm.xlu0 %3481, %v3412
  %v3483 = vpop.permute.xlu0 %3482
  %3486 = vset.pattern.permute.xlu0 64
  %3487 = vperm.xlu0 %3486, %v3413
  %v3488 = vpop.permute.xlu0 %3487
  %3491 = vset.pattern.permute.xlu0 64
  %3492 = vperm.xlu0 %3491, %v3414
  %v3493 = vpop.permute.xlu0 %3492
  %v3495 = vmul.f32 %v3337, %v3418
  %v3496 = vmul.f32 %v3340, %v3423
  %v3497 = vmul.f32 %v3345, %v3428
  %v3498 = vmul.f32 %v3348, %v3433
  %v3499 = vmul.f32 %v3353, %v3438
  %v3500 = vmul.f32 %v3356, %v3443
  %v3501 = vmul.f32 %v3361, %v3448
  %v3502 = vmul.f32 %v3364, %v3453
  %v3503 = vmul.f32 %v3369, %v3458
  %v3504 = vmul.f32 %v3372, %v3463
  %v3505 = vmul.f32 %v3377, %v3468
  %v3506 = vmul.f32 %v3380, %v3473
  %v3507 = vmul.f32 %v3385, %v3478
  %v3508 = vmul.f32 %v3388, %v3483
  %v3509 = vmul.f32 %v3393, %v3488
  %v3510 = vmul.f32 %v3396, %v3493
  %3527 = vrot.lane.b32.xlu0 %v3495, 64
  %v3528 = vpop.permute.xlu0 %3527
  %3529 = vrot.lane.b32.xlu0 %v3496, 64
  %v3530 = vpop.permute.xlu0 %3529
  %3531 = vrot.lane.b32.xlu0 %v3497, 64
  %v3532 = vpop.permute.xlu0 %3531
  %3533 = vrot.lane.b32.xlu0 %v3498, 64
  %v3534 = vpop.permute.xlu0 %3533
  %3535 = vrot.lane.b32.xlu0 %v3499, 64
  %v3536 = vpop.permute.xlu0 %3535
  %3537 = vrot.lane.b32.xlu0 %v3500, 64
  %v3538 = vpop.permute.xlu0 %3537
  %3539 = vrot.lane.b32.xlu0 %v3501, 64
  %v3540 = vpop.permute.xlu0 %3539
  %3541 = vrot.lane.b32.xlu0 %v3502, 64
  %v3542 = vpop.permute.xlu0 %3541
  %3543 = vrot.lane.b32.xlu0 %v3503, 64
  %v3544 = vpop.permute.xlu0 %3543
  %3545 = vrot.lane.b32.xlu0 %v3504, 64
  %v3546 = vpop.permute.xlu0 %3545
  %3547 = vrot.lane.b32.xlu0 %v3505, 64
  %v3548 = vpop.permute.xlu0 %3547
  %3549 = vrot.lane.b32.xlu0 %v3506, 64
  %v3550 = vpop.permute.xlu0 %3549
  %3551 = vrot.lane.b32.xlu0 %v3507, 64
  %v3552 = vpop.permute.xlu0 %3551
  %3553 = vrot.lane.b32.xlu0 %v3508, 64
  %v3554 = vpop.permute.xlu0 %3553
  %3555 = vrot.lane.b32.xlu0 %v3509, 64
  %v3556 = vpop.permute.xlu0 %3555
  %3557 = vrot.lane.b32.xlu0 %v3510, 64
  %v3558 = vpop.permute.xlu0 %3557
  %v3575 = vsel %vm1261, %v2925, %v3528
  %v3576 = vsel %vm1261, %v2926, %v3530
  %v3577 = vsel %vm1261, %v2927, %v3532
  %v3578 = vsel %vm1261, %v2928, %v3534
  %v3579 = vsel %vm1261, %v2929, %v3536
  %v3580 = vsel %vm1261, %v2930, %v3538
  %v3581 = vsel %vm1261, %v2931, %v3540
  %v3582 = vsel %vm1261, %v2932, %v3542
  %v3583 = vsel %vm1261, %v2933, %v3544
  %v3584 = vsel %vm1261, %v2934, %v3546
  %v3585 = vsel %vm1261, %v2935, %v3548
  %v3586 = vsel %vm1261, %v2936, %v3550
  %v3587 = vsel %vm1261, %v2937, %v3552
  %v3588 = vsel %vm1261, %v2938, %v3554
  %v3589 = vsel %vm1261, %v2939, %v3556
  %v3590 = vsel %vm1261, %v2940, %v3558
  %v3591 = vpack.c.bf16 %v2400, %v2399
  %v3592 = vpack.c.bf16 %v2402, %v2401
  %v3593 = vpack.c.bf16 %v2404, %v2403
  %v3594 = vpack.c.bf16 %v2406, %v2405
  %v3595 = vpack.c.bf16 %v2408, %v2407
  %v3596 = vpack.c.bf16 %v2410, %v2409
  %v3597 = vpack.c.bf16 %v2412, %v2411
  %v3598 = vpack.c.bf16 %v2414, %v2413
  %v3599 = vpack.c.bf16 %v3576, %v3575
  %v3600 = vpack.c.bf16 %v3578, %v3577
  %v3601 = vpack.c.bf16 %v3580, %v3579
  %v3602 = vpack.c.bf16 %v3582, %v3581
  %v3603 = vpack.c.bf16 %v3584, %v3583
  %v3604 = vpack.c.bf16 %v3586, %v3585
  %v3605 = vpack.c.bf16 %v3588, %v3587
  %v3606 = vpack.c.bf16 %v3590, %v3589
  %v3607 = vld [vmem:[%s8] sm:$0xf]
  %v3608 = vld [vmem:[%s8 + $0x4] sm:$0xf]
  %v3609 = vld [vmem:[%s8 + $0x8] sm:$0xf]
  %v3610 = vld [vmem:[%s8 + $0xc] sm:$0xf]
  %v3611 = vld [vmem:[%s8 + $0x10] sm:$0xf]
  %v3612 = vld [vmem:[%s8 + $0x14] sm:$0xf]
  %v3613 = vld [vmem:[%s8 + $0x18] sm:$0xf]
  %v3614 = vld [vmem:[%s8 + $0x1c] sm:$0xf]
  %v3615 = vld [vmem:[%s8 + $0x20] sm:$0xf]
  %v3616 = vld [vmem:[%s8 + $0x24] sm:$0xf]
  %v3617 = vld [vmem:[%s8 + $0x28] sm:$0xf]
  %v3618 = vld [vmem:[%s8 + $0x2c] sm:$0xf]
  %v3619 = vld [vmem:[%s8 + $0x30] sm:$0xf]
  %v3620 = vld [vmem:[%s8 + $0x34] sm:$0xf]
  %v3621 = vld [vmem:[%s8 + $0x38] sm:$0xf]
  %v3622 = vld [vmem:[%s8 + $0x3c] sm:$0xf]
  %v3623 = vld [vmem:[%s9] sm:$0x1]
  %v3625 = vlaneseq
  %v3626 = vshrl.u32 %v3625, 7
  %v3627 = vsub.s32 0, %v3626
  %v3628 = vrot.slane %v3623, %v3627
  %v3646 = vunpack.c.l.b16 %v3607
  %v3647 = vunpack.c.l.b16 %v3608
  %v3648 = vunpack.c.l.b16 %v3609
  %v3649 = vunpack.c.l.b16 %v3610
  %v3650 = vunpack.c.l.b16 %v3611
  %v3651 = vunpack.c.l.b16 %v3612
  %v3652 = vunpack.c.l.b16 %v3613
  %v3653 = vunpack.c.l.b16 %v3614
  %v3654 = vunpack.c.l.b16 %v3615
  %v3655 = vunpack.c.l.b16 %v3616
  %v3656 = vunpack.c.l.b16 %v3617
  %v3657 = vunpack.c.l.b16 %v3618
  %v3658 = vunpack.c.l.b16 %v3619
  %v3659 = vunpack.c.l.b16 %v3620
  %v3660 = vunpack.c.l.b16 %v3621
  %v3661 = vunpack.c.l.b16 %v3622
  %v3662 = vpack.c.b16 %v3647, %v3646
  %v3663 = vpack.c.b16 %v3649, %v3648
  %v3664 = vpack.c.b16 %v3651, %v3650
  %v3665 = vpack.c.b16 %v3653, %v3652
  %v3666 = vpack.c.b16 %v3655, %v3654
  %v3667 = vpack.c.b16 %v3657, %v3656
  %v3668 = vpack.c.b16 %v3659, %v3658
  %v3669 = vpack.c.b16 %v3661, %v3660
  %3678 = vmatprep.subr.bf16.mxu0 0
  %3679 = vmatpush1.bf16.msra.mxu0 %v3669
  %3680 = vmatprep.subr.bf16.mxu0 0
  %3681 = vmatpush1.bf16.msra.mxu0 %v3668
  %3682 = vmatprep.subr.bf16.mxu0 0
  %3683 = vmatpush1.bf16.msra.mxu0 %v3667
  %3684 = vmatprep.subr.bf16.mxu0 0
  %3685 = vmatpush1.bf16.msra.mxu0 %v3666
  %3686 = vmatprep.subr.bf16.mxu0 0
  %3687 = vmatpush1.bf16.msra.mxu0 %v3665
  %3688 = vmatprep.subr.bf16.mxu0 0
  %3689 = vmatpush1.bf16.msra.mxu0 %v3664
  %3690 = vmatprep.subr.bf16.mxu0 0
  %3691 = vmatpush1.bf16.msra.mxu0 %v3663
  %3692 = vmatprep.subr.bf16.mxu0 0
  %3693 = vmatpush1.bf16.msra.mxu0 %v3662
  %3694 = vmatprep.subr.bf16.mxu0 0
  %3695 = vmatpush2.bf16.msra.mxu0 0
  %3696 = vmatprep.subr.bf16.mxu0 0
  %3697 = vmatpush2.bf16.msra.mxu0 0
  %3698 = vmatprep.subr.bf16.mxu0 0
  %3699 = vmatpush2.bf16.msra.mxu0 0
  %3700 = vmatprep.subr.bf16.mxu0 0
  %3701 = vmatpush2.bf16.msra.mxu0 0
  %3702 = vmatprep.subr.bf16.mxu0 0
  %3703 = vmatpush2.bf16.msra.mxu0 0
  %3704 = vmatprep.subr.bf16.mxu0 0
  %3705 = vmatpush2.bf16.msra.mxu0 0
  %3706 = vmatprep.subr.bf16.mxu0 0
  %3707 = vmatpush2.bf16.msra.mxu0 0
  %3708 = vmatprep.subr.bf16.mxu0 0
  %3709 = vmatpush2.bf16.msra.mxu0 0
  %3710 = vmatprep.mubr.bf16.mxu0 0
  %3711 = vmatmul.mubr.bf16.gmra.mxu0 %v3591
  %v3712 = vpop.f32.mrf.mxu0
  %v3713 = vadd.f32 %v3628, %v3712
  %v3714 = vpop.f32.mrf.mxu0
  %v3715 = vpop.f32.mrf.mxu0
  %v3716 = vadd.f32 %v3628, %v3715
  %v3717 = vpop.f32.mrf.mxu0
  %3718 = vmatprep.mubr.bf16.mxu0 0
  %3719 = vmatmul.mubr.bf16.gmra.mxu0 %v3592
  %v3720 = vpop.f32.mrf.mxu0
  %v3721 = vadd.f32 %v3628, %v3720
  %v3722 = vpop.f32.mrf.mxu0
  %v3723 = vpop.f32.mrf.mxu0
  %v3724 = vadd.f32 %v3628, %v3723
  %v3725 = vpop.f32.mrf.mxu0
  %3726 = vmatprep.mubr.bf16.mxu0 0
  %3727 = vmatmul.mubr.bf16.gmra.mxu0 %v3593
  %v3728 = vpop.f32.mrf.mxu0
  %v3729 = vadd.f32 %v3628, %v3728
  %v3730 = vpop.f32.mrf.mxu0
  %v3731 = vpop.f32.mrf.mxu0
  %v3732 = vadd.f32 %v3628, %v3731
  %v3733 = vpop.f32.mrf.mxu0
  %3734 = vmatprep.mubr.bf16.mxu0 0
  %3735 = vmatmul.mubr.bf16.gmra.mxu0 %v3594
  %v3736 = vpop.f32.mrf.mxu0
  %v3737 = vadd.f32 %v3628, %v3736
  %v3738 = vpop.f32.mrf.mxu0
  %v3739 = vpop.f32.mrf.mxu0
  %v3740 = vadd.f32 %v3628, %v3739
  %v3741 = vpop.f32.mrf.mxu0
  %3742 = vmatprep.mubr.bf16.mxu0 0
  %3743 = vmatmul.mubr.bf16.gmra.mxu0 %v3595
  %v3744 = vpop.f32.mrf.mxu0
  %v3745 = vadd.f32 %v3628, %v3744
  %v3746 = vpop.f32.mrf.mxu0
  %v3747 = vpop.f32.mrf.mxu0
  %v3748 = vadd.f32 %v3628, %v3747
  %v3749 = vpop.f32.mrf.mxu0
  %3750 = vmatprep.mubr.bf16.mxu0 0
  %3751 = vmatmul.mubr.bf16.gmra.mxu0 %v3596
  %v3752 = vpop.f32.mrf.mxu0
  %v3753 = vadd.f32 %v3628, %v3752
  %v3754 = vpop.f32.mrf.mxu0
  %v3755 = vpop.f32.mrf.mxu0
  %v3756 = vadd.f32 %v3628, %v3755
  %v3757 = vpop.f32.mrf.mxu0
  %3758 = vmatprep.mubr.bf16.mxu0 0
  %3759 = vmatmul.mubr.bf16.gmra.mxu0 %v3597
  %v3760 = vpop.f32.mrf.mxu0
  %v3761 = vadd.f32 %v3628, %v3760
  %v3762 = vpop.f32.mrf.mxu0
  %v3763 = vpop.f32.mrf.mxu0
  %v3764 = vadd.f32 %v3628, %v3763
  %v3765 = vpop.f32.mrf.mxu0
  %3766 = vmatprep.mubr.bf16.mxu0 0
  %3767 = vmatmul.mubr.bf16.gmra.mxu0 %v3598
  %v3768 = vpop.f32.mrf.mxu0
  %v3769 = vadd.f32 %v3628, %v3768
  %v3770 = vpop.f32.mrf.mxu0
  %v3771 = vpop.f32.mrf.mxu0
  %v3772 = vadd.f32 %v3628, %v3771
  %v3773 = vpop.f32.mrf.mxu0
  %3774 = vmatprep.mubr.bf16.mxu0 0
  %3775 = vmatmul.mubr.bf16.gmra.mxu0 %v3599
  %v3776 = vpop.f32.mrf.mxu0
  %v3777 = vadd.f32 %v3628, %v3776
  %v3778 = vpop.f32.mrf.mxu0
  %v3779 = vpop.f32.mrf.mxu0
  %v3780 = vadd.f32 %v3628, %v3779
  %v3781 = vpop.f32.mrf.mxu0
  %3782 = vmatprep.mubr.bf16.mxu0 0
  %3783 = vmatmul.mubr.bf16.gmra.mxu0 %v3600
  %v3784 = vpop.f32.mrf.mxu0
  %v3785 = vadd.f32 %v3628, %v3784
  %v3786 = vpop.f32.mrf.mxu0
  %v3787 = vpop.f32.mrf.mxu0
  %v3788 = vadd.f32 %v3628, %v3787
  %v3789 = vpop.f32.mrf.mxu0
  %3790 = vmatprep.mubr.bf16.mxu0 0
  %3791 = vmatmul.mubr.bf16.gmra.mxu0 %v3601
  %v3792 = vpop.f32.mrf.mxu0
  %v3793 = vadd.f32 %v3628, %v3792
  %v3794 = vpop.f32.mrf.mxu0
  %v3795 = vpop.f32.mrf.mxu0
  %v3796 = vadd.f32 %v3628, %v3795
  %v3797 = vpop.f32.mrf.mxu0
  %3798 = vmatprep.mubr.bf16.mxu0 0
  %3799 = vmatmul.mubr.bf16.gmra.mxu0 %v3602
  %v3800 = vpop.f32.mrf.mxu0
  %v3801 = vadd.f32 %v3628, %v3800
  %v3802 = vpop.f32.mrf.mxu0
  %v3803 = vpop.f32.mrf.mxu0
  %v3804 = vadd.f32 %v3628, %v3803
  %v3805 = vpop.f32.mrf.mxu0
  %3806 = vmatprep.mubr.bf16.mxu0 0
  %3807 = vmatmul.mubr.bf16.gmra.mxu0 %v3603
  %v3808 = vpop.f32.mrf.mxu0
  %v3809 = vadd.f32 %v3628, %v3808
  %v3810 = vpop.f32.mrf.mxu0
  %v3811 = vpop.f32.mrf.mxu0
  %v3812 = vadd.f32 %v3628, %v3811
  %v3813 = vpop.f32.mrf.mxu0
  %3814 = vmatprep.mubr.bf16.mxu0 0
  %3815 = vmatmul.mubr.bf16.gmra.mxu0 %v3604
  %v3816 = vpop.f32.mrf.mxu0
  %v3817 = vadd.f32 %v3628, %v3816
  %v3818 = vpop.f32.mrf.mxu0
  %v3819 = vpop.f32.mrf.mxu0
  %v3820 = vadd.f32 %v3628, %v3819
  %v3821 = vpop.f32.mrf.mxu0
  %3822 = vmatprep.mubr.bf16.mxu0 0
  %3823 = vmatmul.mubr.bf16.gmra.mxu0 %v3605
  %v3824 = vpop.f32.mrf.mxu0
  %v3825 = vadd.f32 %v3628, %v3824
  %v3826 = vpop.f32.mrf.mxu0
  %v3827 = vpop.f32.mrf.mxu0
  %v3828 = vadd.f32 %v3628, %v3827
  %v3829 = vpop.f32.mrf.mxu0
  %3830 = vmatprep.mubr.bf16.mxu0 0
  %3831 = vmatmul.mubr.bf16.gmra.mxu0 %v3606
  %v3832 = vpop.f32.mrf.mxu0
  %v3833 = vadd.f32 %v3628, %v3832
  %v3834 = vpop.f32.mrf.mxu0
  %v3835 = vpop.f32.mrf.mxu0
  %v3836 = vadd.f32 %v3628, %v3835
  %v3837 = vpop.f32.mrf.mxu0
  %3838 = vdwg.mxu0
  %v3839 = vadd.f32 %v3713, %v658
  %v3840 = vadd.f32 %v3716, %v659
  %v3841 = vadd.f32 %v3721, %v660
  %v3842 = vadd.f32 %v3724, %v661
  %v3843 = vadd.f32 %v3729, %v662
  %v3844 = vadd.f32 %v3732, %v663
  %v3845 = vadd.f32 %v3737, %v664
  %v3846 = vadd.f32 %v3740, %v665
  %v3847 = vadd.f32 %v3745, %v666
  %v3848 = vadd.f32 %v3748, %v667
  %v3849 = vadd.f32 %v3753, %v668
  %v3850 = vadd.f32 %v3756, %v669
  %v3851 = vadd.f32 %v3761, %v670
  %v3852 = vadd.f32 %v3764, %v671
  %v3853 = vadd.f32 %v3769, %v672
  %v3854 = vadd.f32 %v3772, %v673
  %v3855 = vadd.f32 %v3777, %v674
  %v3856 = vadd.f32 %v3780, %v675
  %v3857 = vadd.f32 %v3785, %v676
  %v3858 = vadd.f32 %v3788, %v677
  %v3859 = vadd.f32 %v3793, %v678
  %v3860 = vadd.f32 %v3796, %v679
  %v3861 = vadd.f32 %v3801, %v680
  %v3862 = vadd.f32 %v3804, %v681
  %v3863 = vadd.f32 %v3809, %v682
  %v3864 = vadd.f32 %v3812, %v683
  %v3865 = vadd.f32 %v3817, %v684
  %v3866 = vadd.f32 %v3820, %v685
  %v3867 = vadd.f32 %v3825, %v686
  %v3868 = vadd.f32 %v3828, %v687
  %v3869 = vadd.f32 %v3833, %v688
  %v3870 = vadd.f32 %v3836, %v689
  %v3871 = vld [vmem:[%s10] sm:$0x1]
  %v3872 = vld [vmem:[%s11] sm:$0x1]
  %3873 = vadd.xlane.f32.xlu0 %v3839
  %v3874 = vpop.xlane.xlu0 %3873
  %3875 = vadd.xlane.f32.xlu0 %v3840
  %v3876 = vpop.xlane.xlu0 %3875
  %3877 = vadd.xlane.f32.xlu0 %v3841
  %v3878 = vpop.xlane.xlu0 %3877
  %3879 = vadd.xlane.f32.xlu0 %v3842
  %v3880 = vpop.xlane.xlu0 %3879
  %3881 = vadd.xlane.f32.xlu0 %v3843
  %v3882 = vpop.xlane.xlu0 %3881
  %3883 = vadd.xlane.f32.xlu0 %v3844
  %v3884 = vpop.xlane.xlu0 %3883
  %3885 = vadd.xlane.f32.xlu0 %v3845
  %v3886 = vpop.xlane.xlu0 %3885
  %3887 = vadd.xlane.f32.xlu0 %v3846
  %v3888 = vpop.xlane.xlu0 %3887
  %3889 = vadd.xlane.f32.xlu0 %v3847
  %v3890 = vpop.xlane.xlu0 %3889
  %3891 = vadd.xlane.f32.xlu0 %v3848
  %v3892 = vpop.xlane.xlu0 %3891
  %3893 = vadd.xlane.f32.xlu0 %v3849
  %v3894 = vpop.xlane.xlu0 %3893
  %3895 = vadd.xlane.f32.xlu0 %v3850
  %v3896 = vpop.xlane.xlu0 %3895
  %3897 = vadd.xlane.f32.xlu0 %v3851
  %v3898 = vpop.xlane.xlu0 %3897
  %3899 = vadd.xlane.f32.xlu0 %v3852
  %v3900 = vpop.xlane.xlu0 %3899
  %3901 = vadd.xlane.f32.xlu0 %v3853
  %v3902 = vpop.xlane.xlu0 %3901
  %3903 = vadd.xlane.f32.xlu0 %v3854
  %v3904 = vpop.xlane.xlu0 %3903
  %3905 = vadd.xlane.f32.xlu0 %v3855
  %v3906 = vpop.xlane.xlu0 %3905
  %3907 = vadd.xlane.f32.xlu0 %v3856
  %v3908 = vpop.xlane.xlu0 %3907
  %3909 = vadd.xlane.f32.xlu0 %v3857
  %v3910 = vpop.xlane.xlu0 %3909
  %3911 = vadd.xlane.f32.xlu0 %v3858
  %v3912 = vpop.xlane.xlu0 %3911
  %3913 = vadd.xlane.f32.xlu0 %v3859
  %v3914 = vpop.xlane.xlu0 %3913
  %3915 = vadd.xlane.f32.xlu0 %v3860
  %v3916 = vpop.xlane.xlu0 %3915
  %3917 = vadd.xlane.f32.xlu0 %v3861
  %v3918 = vpop.xlane.xlu0 %3917
  %3919 = vadd.xlane.f32.xlu0 %v3862
  %v3920 = vpop.xlane.xlu0 %3919
  %3921 = vadd.xlane.f32.xlu0 %v3863
  %v3922 = vpop.xlane.xlu0 %3921
  %3923 = vadd.xlane.f32.xlu0 %v3864
  %v3924 = vpop.xlane.xlu0 %3923
  %3925 = vadd.xlane.f32.xlu0 %v3865
  %v3926 = vpop.xlane.xlu0 %3925
  %3927 = vadd.xlane.f32.xlu0 %v3866
  %v3928 = vpop.xlane.xlu0 %3927
  %3929 = vadd.xlane.f32.xlu0 %v3867
  %v3930 = vpop.xlane.xlu0 %3929
  %3931 = vadd.xlane.f32.xlu0 %v3868
  %v3932 = vpop.xlane.xlu0 %3931
  %3933 = vadd.xlane.f32.xlu0 %v3869
  %v3934 = vpop.xlane.xlu0 %3933
  %3935 = vadd.xlane.f32.xlu0 %v3870
  %v3936 = vpop.xlane.xlu0 %3935
  %v3937 = vmul.f32 %v3874, %v261
  %v3938 = vmul.f32 %v3876, %v261
  %v3939 = vmul.f32 %v3878, %v261
  %v3940 = vmul.f32 %v3880, %v261
  %v3941 = vmul.f32 %v3882, %v261
  %v3942 = vmul.f32 %v3884, %v261
  %v3943 = vmul.f32 %v3886, %v261
  %v3944 = vmul.f32 %v3888, %v261
  %v3945 = vmul.f32 %v3890, %v261
  %v3946 = vmul.f32 %v3892, %v261
  %v3947 = vmul.f32 %v3894, %v261
  %v3948 = vmul.f32 %v3896, %v261
  %v3949 = vmul.f32 %v3898, %v261
  %v3950 = vmul.f32 %v3900, %v261
  %v3951 = vmul.f32 %v3902, %v261
  %v3952 = vmul.f32 %v3904, %v261
  %v3953 = vmul.f32 %v3906, %v261
  %v3954 = vmul.f32 %v3908, %v261
  %v3955 = vmul.f32 %v3910, %v261
  %v3956 = vmul.f32 %v3912, %v261
  %v3957 = vmul.f32 %v3914, %v261
  %v3958 = vmul.f32 %v3916, %v261
  %v3959 = vmul.f32 %v3918, %v261
  %v3960 = vmul.f32 %v3920, %v261
  %v3961 = vmul.f32 %v3922, %v261
  %v3962 = vmul.f32 %v3924, %v261
  %v3963 = vmul.f32 %v3926, %v261
  %v3964 = vmul.f32 %v3928, %v261
  %v3965 = vmul.f32 %v3930, %v261
  %v3966 = vmul.f32 %v3932, %v261
  %v3967 = vmul.f32 %v3934, %v261
  %v3968 = vmul.f32 %v3936, %v261
  %v3969 = vmul.f32 %v3839, %v3839
  %v3970 = vmul.f32 %v3840, %v3840
  %v3971 = vmul.f32 %v3841, %v3841
  %v3972 = vmul.f32 %v3842, %v3842
  %v3973 = vmul.f32 %v3843, %v3843
  %v3974 = vmul.f32 %v3844, %v3844
  %v3975 = vmul.f32 %v3845, %v3845
  %v3976 = vmul.f32 %v3846, %v3846
  %v3977 = vmul.f32 %v3847, %v3847
  %v3978 = vmul.f32 %v3848, %v3848
  %v3979 = vmul.f32 %v3849, %v3849
  %v3980 = vmul.f32 %v3850, %v3850
  %v3981 = vmul.f32 %v3851, %v3851
  %v3982 = vmul.f32 %v3852, %v3852
  %v3983 = vmul.f32 %v3853, %v3853
  %v3984 = vmul.f32 %v3854, %v3854
  %v3985 = vmul.f32 %v3855, %v3855
  %v3986 = vmul.f32 %v3856, %v3856
  %v3987 = vmul.f32 %v3857, %v3857
  %v3988 = vmul.f32 %v3858, %v3858
  %v3989 = vmul.f32 %v3859, %v3859
  %v3990 = vmul.f32 %v3860, %v3860
  %v3991 = vmul.f32 %v3861, %v3861
  %v3992 = vmul.f32 %v3862, %v3862
  %v3993 = vmul.f32 %v3863, %v3863
  %v3994 = vmul.f32 %v3864, %v3864
  %v3995 = vmul.f32 %v3865, %v3865
  %v3996 = vmul.f32 %v3866, %v3866
  %v3997 = vmul.f32 %v3867, %v3867
  %v3998 = vmul.f32 %v3868, %v3868
  %v3999 = vmul.f32 %v3869, %v3869
  %v4000 = vmul.f32 %v3870, %v3870
  %4001 = vadd.xlane.f32.xlu0 %v3969
  %v4002 = vpop.xlane.xlu0 %4001
  %4003 = vadd.xlane.f32.xlu0 %v3970
  %v4004 = vpop.xlane.xlu0 %4003
  %4005 = vadd.xlane.f32.xlu0 %v3971
  %v4006 = vpop.xlane.xlu0 %4005
  %4007 = vadd.xlane.f32.xlu0 %v3972
  %v4008 = vpop.xlane.xlu0 %4007
  %4009 = vadd.xlane.f32.xlu0 %v3973
  %v4010 = vpop.xlane.xlu0 %4009
  %4011 = vadd.xlane.f32.xlu0 %v3974
  %v4012 = vpop.xlane.xlu0 %4011
  %4013 = vadd.xlane.f32.xlu0 %v3975
  %v4014 = vpop.xlane.xlu0 %4013
  %4015 = vadd.xlane.f32.xlu0 %v3976
  %v4016 = vpop.xlane.xlu0 %4015
  %4017 = vadd.xlane.f32.xlu0 %v3977
  %v4018 = vpop.xlane.xlu0 %4017
  %4019 = vadd.xlane.f32.xlu0 %v3978
  %v4020 = vpop.xlane.xlu0 %4019
  %4021 = vadd.xlane.f32.xlu0 %v3979
  %v4022 = vpop.xlane.xlu0 %4021
  %4023 = vadd.xlane.f32.xlu0 %v3980
  %v4024 = vpop.xlane.xlu0 %4023
  %4025 = vadd.xlane.f32.xlu0 %v3981
  %v4026 = vpop.xlane.xlu0 %4025
  %4027 = vadd.xlane.f32.xlu0 %v3982
  %v4028 = vpop.xlane.xlu0 %4027
  %4029 = vadd.xlane.f32.xlu0 %v3983
  %v4030 = vpop.xlane.xlu0 %4029
  %4031 = vadd.xlane.f32.xlu0 %v3984
  %v4032 = vpop.xlane.xlu0 %4031
  %4033 = vadd.xlane.f32.xlu0 %v3985
  %v4034 = vpop.xlane.xlu0 %4033
  %4035 = vadd.xlane.f32.xlu0 %v3986
  %v4036 = vpop.xlane.xlu0 %4035
  %4037 = vadd.xlane.f32.xlu0 %v3987
  %v4038 = vpop.xlane.xlu0 %4037
  %4039 = vadd.xlane.f32.xlu0 %v3988
  %v4040 = vpop.xlane.xlu0 %4039
  %4041 = vadd.xlane.f32.xlu0 %v3989
  %v4042 = vpop.xlane.xlu0 %4041
  %4043 = vadd.xlane.f32.xlu0 %v3990
  %v4044 = vpop.xlane.xlu0 %4043
  %4045 = vadd.xlane.f32.xlu0 %v3991
  %v4046 = vpop.xlane.xlu0 %4045
  %4047 = vadd.xlane.f32.xlu0 %v3992
  %v4048 = vpop.xlane.xlu0 %4047
  %4049 = vadd.xlane.f32.xlu0 %v3993
  %v4050 = vpop.xlane.xlu0 %4049
  %4051 = vadd.xlane.f32.xlu0 %v3994
  %v4052 = vpop.xlane.xlu0 %4051
  %4053 = vadd.xlane.f32.xlu0 %v3995
  %v4054 = vpop.xlane.xlu0 %4053
  %4055 = vadd.xlane.f32.xlu0 %v3996
  %v4056 = vpop.xlane.xlu0 %4055
  %4057 = vadd.xlane.f32.xlu0 %v3997
  %v4058 = vpop.xlane.xlu0 %4057
  %4059 = vadd.xlane.f32.xlu0 %v3998
  %v4060 = vpop.xlane.xlu0 %4059
  %4061 = vadd.xlane.f32.xlu0 %v3999
  %v4062 = vpop.xlane.xlu0 %4061
  %4063 = vadd.xlane.f32.xlu0 %v4000
  %v4064 = vpop.xlane.xlu0 %4063
  %v4065 = vmul.f32 %v4002, %v261
  %v4066 = vmul.f32 %v4004, %v261
  %v4067 = vmul.f32 %v4006, %v261
  %v4068 = vmul.f32 %v4008, %v261
  %v4069 = vmul.f32 %v4010, %v261
  %v4070 = vmul.f32 %v4012, %v261
  %v4071 = vmul.f32 %v4014, %v261
  %v4072 = vmul.f32 %v4016, %v261
  %v4073 = vmul.f32 %v4018, %v261
  %v4074 = vmul.f32 %v4020, %v261
  %v4075 = vmul.f32 %v4022, %v261
  %v4076 = vmul.f32 %v4024, %v261
  %v4077 = vmul.f32 %v4026, %v261
  %v4078 = vmul.f32 %v4028, %v261
  %v4079 = vmul.f32 %v4030, %v261
  %v4080 = vmul.f32 %v4032, %v261
  %v4081 = vmul.f32 %v4034, %v261
  %v4082 = vmul.f32 %v4036, %v261
  %v4083 = vmul.f32 %v4038, %v261
  %v4084 = vmul.f32 %v4040, %v261
  %v4085 = vmul.f32 %v4042, %v261
  %v4086 = vmul.f32 %v4044, %v261
  %v4087 = vmul.f32 %v4046, %v261
  %v4088 = vmul.f32 %v4048, %v261
  %v4089 = vmul.f32 %v4050, %v261
  %v4090 = vmul.f32 %v4052, %v261
  %v4091 = vmul.f32 %v4054, %v261
  %v4092 = vmul.f32 %v4056, %v261
  %v4093 = vmul.f32 %v4058, %v261
  %v4094 = vmul.f32 %v4060, %v261
  %v4095 = vmul.f32 %v4062, %v261
  %v4096 = vmul.f32 %v4064, %v261
  %v4097 = vmul.f32 %v3937, %v3937
  %v4098 = vmul.f32 %v3938, %v3938
  %v4099 = vmul.f32 %v3939, %v3939
  %v4100 = vmul.f32 %v3940, %v3940
  %v4101 = vmul.f32 %v3941, %v3941
  %v4102 = vmul.f32 %v3942, %v3942
  %v4103 = vmul.f32 %v3943, %v3943
  %v4104 = vmul.f32 %v3944, %v3944
  %v4105 = vmul.f32 %v3945, %v3945
  %v4106 = vmul.f32 %v3946, %v3946
  %v4107 = vmul.f32 %v3947, %v3947
  %v4108 = vmul.f32 %v3948, %v3948
  %v4109 = vmul.f32 %v3949, %v3949
  %v4110 = vmul.f32 %v3950, %v3950
  %v4111 = vmul.f32 %v3951, %v3951
  %v4112 = vmul.f32 %v3952, %v3952
  %v4113 = vmul.f32 %v3953, %v3953
  %v4114 = vmul.f32 %v3954, %v3954
  %v4115 = vmul.f32 %v3955, %v3955
  %v4116 = vmul.f32 %v3956, %v3956
  %v4117 = vmul.f32 %v3957, %v3957
  %v4118 = vmul.f32 %v3958, %v3958
  %v4119 = vmul.f32 %v3959, %v3959
  %v4120 = vmul.f32 %v3960, %v3960
  %v4121 = vmul.f32 %v3961, %v3961
  %v4122 = vmul.f32 %v3962, %v3962
  %v4123 = vmul.f32 %v3963, %v3963
  %v4124 = vmul.f32 %v3964, %v3964
  %v4125 = vmul.f32 %v3965, %v3965
  %v4126 = vmul.f32 %v3966, %v3966
  %v4127 = vmul.f32 %v3967, %v3967
  %v4128 = vmul.f32 %v3968, %v3968
  %v4129 = vsub.f32 %v4065, %v4097
  %v4130 = vsub.f32 %v4066, %v4098
  %v4131 = vsub.f32 %v4067, %v4099
  %v4132 = vsub.f32 %v4068, %v4100
  %v4133 = vsub.f32 %v4069, %v4101
  %v4134 = vsub.f32 %v4070, %v4102
  %v4135 = vsub.f32 %v4071, %v4103
  %v4136 = vsub.f32 %v4072, %v4104
  %v4137 = vsub.f32 %v4073, %v4105
  %v4138 = vsub.f32 %v4074, %v4106
  %v4139 = vsub.f32 %v4075, %v4107
  %v4140 = vsub.f32 %v4076, %v4108
  %v4141 = vsub.f32 %v4077, %v4109
  %v4142 = vsub.f32 %v4078, %v4110
  %v4143 = vsub.f32 %v4079, %v4111
  %v4144 = vsub.f32 %v4080, %v4112
  %v4145 = vsub.f32 %v4081, %v4113
  %v4146 = vsub.f32 %v4082, %v4114
  %v4147 = vsub.f32 %v4083, %v4115
  %v4148 = vsub.f32 %v4084, %v4116
  %v4149 = vsub.f32 %v4085, %v4117
  %v4150 = vsub.f32 %v4086, %v4118
  %v4151 = vsub.f32 %v4087, %v4119
  %v4152 = vsub.f32 %v4088, %v4120
  %v4153 = vsub.f32 %v4089, %v4121
  %v4154 = vsub.f32 %v4090, %v4122
  %v4155 = vsub.f32 %v4091, %v4123
  %v4156 = vsub.f32 %v4092, %v4124
  %v4157 = vsub.f32 %v4093, %v4125
  %v4158 = vsub.f32 %v4094, %v4126
  %v4159 = vsub.f32 %v4095, %v4127
  %v4160 = vsub.f32 %v4096, %v4128
  %v4161 = vsub.f32 %v3839, %v3937
  %v4162 = vsub.f32 %v3840, %v3938
  %v4163 = vsub.f32 %v3841, %v3939
  %v4164 = vsub.f32 %v3842, %v3940
  %v4165 = vsub.f32 %v3843, %v3941
  %v4166 = vsub.f32 %v3844, %v3942
  %v4167 = vsub.f32 %v3845, %v3943
  %v4168 = vsub.f32 %v3846, %v3944
  %v4169 = vsub.f32 %v3847, %v3945
  %v4170 = vsub.f32 %v3848, %v3946
  %v4171 = vsub.f32 %v3849, %v3947
  %v4172 = vsub.f32 %v3850, %v3948
  %v4173 = vsub.f32 %v3851, %v3949
  %v4174 = vsub.f32 %v3852, %v3950
  %v4175 = vsub.f32 %v3853, %v3951
  %v4176 = vsub.f32 %v3854, %v3952
  %v4177 = vsub.f32 %v3855, %v3953
  %v4178 = vsub.f32 %v3856, %v3954
  %v4179 = vsub.f32 %v3857, %v3955
  %v4180 = vsub.f32 %v3858, %v3956
  %v4181 = vsub.f32 %v3859, %v3957
  %v4182 = vsub.f32 %v3860, %v3958
  %v4183 = vsub.f32 %v3861, %v3959
  %v4184 = vsub.f32 %v3862, %v3960
  %v4185 = vsub.f32 %v3863, %v3961
  %v4186 = vsub.f32 %v3864, %v3962
  %v4187 = vsub.f32 %v3865, %v3963
  %v4188 = vsub.f32 %v3866, %v3964
  %v4189 = vsub.f32 %v3867, %v3965
  %v4190 = vsub.f32 %v3868, %v3966
  %v4191 = vsub.f32 %v3869, %v3967
  %v4192 = vsub.f32 %v3870, %v3968
  %v4193 = vadd.f32 %v4129, 1e-12
  %v4194 = vadd.f32 %v4130, 1e-12
  %v4195 = vadd.f32 %v4131, 1e-12
  %v4196 = vadd.f32 %v4132, 1e-12
  %v4197 = vadd.f32 %v4133, 1e-12
  %v4198 = vadd.f32 %v4134, 1e-12
  %v4199 = vadd.f32 %v4135, 1e-12
  %v4200 = vadd.f32 %v4136, 1e-12
  %v4201 = vadd.f32 %v4137, 1e-12
  %v4202 = vadd.f32 %v4138, 1e-12
  %v4203 = vadd.f32 %v4139, 1e-12
  %v4204 = vadd.f32 %v4140, 1e-12
  %v4205 = vadd.f32 %v4141, 1e-12
  %v4206 = vadd.f32 %v4142, 1e-12
  %v4207 = vadd.f32 %v4143, 1e-12
  %v4208 = vadd.f32 %v4144, 1e-12
  %v4209 = vadd.f32 %v4145, 1e-12
  %v4210 = vadd.f32 %v4146, 1e-12
  %v4211 = vadd.f32 %v4147, 1e-12
  %v4212 = vadd.f32 %v4148, 1e-12
  %v4213 = vadd.f32 %v4149, 1e-12
  %v4214 = vadd.f32 %v4150, 1e-12
  %v4215 = vadd.f32 %v4151, 1e-12
  %v4216 = vadd.f32 %v4152, 1e-12
  %v4217 = vadd.f32 %v4153, 1e-12
  %v4218 = vadd.f32 %v4154, 1e-12
  %v4219 = vadd.f32 %v4155, 1e-12
  %v4220 = vadd.f32 %v4156, 1e-12
  %v4221 = vadd.f32 %v4157, 1e-12
  %v4222 = vadd.f32 %v4158, 1e-12
  %v4223 = vadd.f32 %v4159, 1e-12
  %v4224 = vadd.f32 %v4160, 1e-12
  %v4225 = vrsqrt.pop %v4193
  %v4226 = vrsqrt.pop %v4194
  %v4227 = vrsqrt.pop %v4195
  %v4228 = vrsqrt.pop %v4196
  %v4229 = vrsqrt.pop %v4197
  %v4230 = vrsqrt.pop %v4198
  %v4231 = vrsqrt.pop %v4199
  %v4232 = vrsqrt.pop %v4200
  %v4233 = vrsqrt.pop %v4201
  %v4234 = vrsqrt.pop %v4202
  %v4235 = vrsqrt.pop %v4203
  %v4236 = vrsqrt.pop %v4204
  %v4237 = vrsqrt.pop %v4205
  %v4238 = vrsqrt.pop %v4206
  %v4239 = vrsqrt.pop %v4207
  %v4240 = vrsqrt.pop %v4208
  %v4241 = vrsqrt.pop %v4209
  %v4242 = vrsqrt.pop %v4210
  %v4243 = vrsqrt.pop %v4211
  %v4244 = vrsqrt.pop %v4212
  %v4245 = vrsqrt.pop %v4213
  %v4246 = vrsqrt.pop %v4214
  %v4247 = vrsqrt.pop %v4215
  %v4248 = vrsqrt.pop %v4216
  %v4249 = vrsqrt.pop %v4217
  %v4250 = vrsqrt.pop %v4218
  %v4251 = vrsqrt.pop %v4219
  %v4252 = vrsqrt.pop %v4220
  %v4253 = vrsqrt.pop %v4221
  %v4254 = vrsqrt.pop %v4222
  %v4255 = vrsqrt.pop %v4223
  %v4256 = vrsqrt.pop %v4224
  %v4257 = vmul.f32 %v4161, %v4225
  %v4258 = vmul.f32 %v4162, %v4226
  %v4259 = vmul.f32 %v4163, %v4227
  %v4260 = vmul.f32 %v4164, %v4228
  %v4261 = vmul.f32 %v4165, %v4229
  %v4262 = vmul.f32 %v4166, %v4230
  %v4263 = vmul.f32 %v4167, %v4231
  %v4264 = vmul.f32 %v4168, %v4232
  %v4265 = vmul.f32 %v4169, %v4233
  %v4266 = vmul.f32 %v4170, %v4234
  %v4267 = vmul.f32 %v4171, %v4235
  %v4268 = vmul.f32 %v4172, %v4236
  %v4269 = vmul.f32 %v4173, %v4237
  %v4270 = vmul.f32 %v4174, %v4238
  %v4271 = vmul.f32 %v4175, %v4239
  %v4272 = vmul.f32 %v4176, %v4240
  %v4273 = vmul.f32 %v4177, %v4241
  %v4274 = vmul.f32 %v4178, %v4242
  %v4275 = vmul.f32 %v4179, %v4243
  %v4276 = vmul.f32 %v4180, %v4244
  %v4277 = vmul.f32 %v4181, %v4245
  %v4278 = vmul.f32 %v4182, %v4246
  %v4279 = vmul.f32 %v4183, %v4247
  %v4280 = vmul.f32 %v4184, %v4248
  %v4281 = vmul.f32 %v4185, %v4249
  %v4282 = vmul.f32 %v4186, %v4250
  %v4283 = vmul.f32 %v4187, %v4251
  %v4284 = vmul.f32 %v4188, %v4252
  %v4285 = vmul.f32 %v4189, %v4253
  %v4286 = vmul.f32 %v4190, %v4254
  %v4287 = vmul.f32 %v4191, %v4255
  %v4288 = vmul.f32 %v4192, %v4256
  %v4290 = vlaneseq
  %v4291 = vshrl.u32 %v4290, 7
  %v4292 = vsub.s32 0, %v4291
  %v4293 = vrot.slane %v3871, %v4292
  %v4295 = vmul.f32 %v4257, %v4293
  %v4296 = vmul.f32 %v4258, %v4293
  %v4297 = vmul.f32 %v4259, %v4293
  %v4298 = vmul.f32 %v4260, %v4293
  %v4299 = vmul.f32 %v4261, %v4293
  %v4300 = vmul.f32 %v4262, %v4293
  %v4301 = vmul.f32 %v4263, %v4293
  %v4302 = vmul.f32 %v4264, %v4293
  %v4303 = vmul.f32 %v4265, %v4293
  %v4304 = vmul.f32 %v4266, %v4293
  %v4305 = vmul.f32 %v4267, %v4293
  %v4306 = vmul.f32 %v4268, %v4293
  %v4307 = vmul.f32 %v4269, %v4293
  %v4308 = vmul.f32 %v4270, %v4293
  %v4309 = vmul.f32 %v4271, %v4293
  %v4310 = vmul.f32 %v4272, %v4293
  %v4311 = vmul.f32 %v4273, %v4293
  %v4312 = vmul.f32 %v4274, %v4293
  %v4313 = vmul.f32 %v4275, %v4293
  %v4314 = vmul.f32 %v4276, %v4293
  %v4315 = vmul.f32 %v4277, %v4293
  %v4316 = vmul.f32 %v4278, %v4293
  %v4317 = vmul.f32 %v4279, %v4293
  %v4318 = vmul.f32 %v4280, %v4293
  %v4319 = vmul.f32 %v4281, %v4293
  %v4320 = vmul.f32 %v4282, %v4293
  %v4321 = vmul.f32 %v4283, %v4293
  %v4322 = vmul.f32 %v4284, %v4293
  %v4323 = vmul.f32 %v4285, %v4293
  %v4324 = vmul.f32 %v4286, %v4293
  %v4325 = vmul.f32 %v4287, %v4293
  %v4326 = vmul.f32 %v4288, %v4293
  %v4328 = vlaneseq
  %v4329 = vshrl.u32 %v4328, 7
  %v4330 = vsub.s32 0, %v4329
  %v4331 = vrot.slane %v3872, %v4330
  %v4333 = vadd.f32 %v4295, %v4331
  %v4334 = vadd.f32 %v4296, %v4331
  %v4335 = vadd.f32 %v4297, %v4331
  %v4336 = vadd.f32 %v4298, %v4331
  %v4337 = vadd.f32 %v4299, %v4331
  %v4338 = vadd.f32 %v4300, %v4331
  %v4339 = vadd.f32 %v4301, %v4331
  %v4340 = vadd.f32 %v4302, %v4331
  %v4341 = vadd.f32 %v4303, %v4331
  %v4342 = vadd.f32 %v4304, %v4331
  %v4343 = vadd.f32 %v4305, %v4331
  %v4344 = vadd.f32 %v4306, %v4331
  %v4345 = vadd.f32 %v4307, %v4331
  %v4346 = vadd.f32 %v4308, %v4331
  %v4347 = vadd.f32 %v4309, %v4331
  %v4348 = vadd.f32 %v4310, %v4331
  %v4349 = vadd.f32 %v4311, %v4331
  %v4350 = vadd.f32 %v4312, %v4331
  %v4351 = vadd.f32 %v4313, %v4331
  %v4352 = vadd.f32 %v4314, %v4331
  %v4353 = vadd.f32 %v4315, %v4331
  %v4354 = vadd.f32 %v4316, %v4331
  %v4355 = vadd.f32 %v4317, %v4331
  %v4356 = vadd.f32 %v4318, %v4331
  %v4357 = vadd.f32 %v4319, %v4331
  %v4358 = vadd.f32 %v4320, %v4331
  %v4359 = vadd.f32 %v4321, %v4331
  %v4360 = vadd.f32 %v4322, %v4331
  %v4361 = vadd.f32 %v4323, %v4331
  %v4362 = vadd.f32 %v4324, %v4331
  %v4363 = vadd.f32 %v4325, %v4331
  %v4364 = vadd.f32 %v4326, %v4331
  %v4365 = vpack.c.bf16 %v4334, %v4333
  %v4366 = vpack.c.bf16 %v4336, %v4335
  %v4367 = vpack.c.bf16 %v4338, %v4337
  %v4368 = vpack.c.bf16 %v4340, %v4339
  %v4369 = vpack.c.bf16 %v4342, %v4341
  %v4370 = vpack.c.bf16 %v4344, %v4343
  %v4371 = vpack.c.bf16 %v4346, %v4345
  %v4372 = vpack.c.bf16 %v4348, %v4347
  %v4373 = vpack.c.bf16 %v4350, %v4349
  %v4374 = vpack.c.bf16 %v4352, %v4351
  %v4375 = vpack.c.bf16 %v4354, %v4353
  %v4376 = vpack.c.bf16 %v4356, %v4355
  %v4377 = vpack.c.bf16 %v4358, %v4357
  %v4378 = vpack.c.bf16 %v4360, %v4359
  %v4379 = vpack.c.bf16 %v4362, %v4361
  %v4380 = vpack.c.bf16 %v4364, %v4363
  %v4381 = vld [vmem:[%s12] sm:$0xff]
  %v4382 = vld [vmem:[%s12 + $0x8] sm:$0xff]
  %v4383 = vld [vmem:[%s12 + $0x10] sm:$0xff]
  %v4384 = vld [vmem:[%s12 + $0x18] sm:$0xff]
  %v4385 = vld [vmem:[%s12 + $0x20] sm:$0xff]
  %v4386 = vld [vmem:[%s12 + $0x28] sm:$0xff]
  %v4387 = vld [vmem:[%s12 + $0x30] sm:$0xff]
  %v4388 = vld [vmem:[%s12 + $0x38] sm:$0xff]
  %v4389 = vld [vmem:[%s12 + $0x40] sm:$0xff]
  %v4390 = vld [vmem:[%s12 + $0x48] sm:$0xff]
  %v4391 = vld [vmem:[%s12 + $0x50] sm:$0xff]
  %v4392 = vld [vmem:[%s12 + $0x58] sm:$0xff]
  %v4393 = vld [vmem:[%s12 + $0x60] sm:$0xff]
  %v4394 = vld [vmem:[%s12 + $0x68] sm:$0xff]
  %v4395 = vld [vmem:[%s12 + $0x70] sm:$0xff]
  %v4396 = vld [vmem:[%s12 + $0x78] sm:$0xff]
  %v4397 = vld [vmem:[%s13] sm:$0x3]
  %v4399 = vlaneseq
  %v4400 = vshrl.u32 %v4399, 7
  %v4401 = vsub.s32 0, %v4400
  %v4402 = vrot.slane %v4397, %v4401
  %v4403 = vlaneseq
  %v4404 = vshrl.u32 %v4403, 7
  %v4405 = vsub.s32 1, %v4404
  %v4406 = vrot.slane %v4397, %v4405
  %v4425 = vunpack.c.l.b16 %v4381
  %v4426 = vunpack.c.h.b16 %v4381
  %v4427 = vunpack.c.l.b16 %v4382
  %v4428 = vunpack.c.h.b16 %v4382
  %v4429 = vunpack.c.l.b16 %v4383
  %v4430 = vunpack.c.h.b16 %v4383
  %v4431 = vunpack.c.l.b16 %v4384
  %v4432 = vunpack.c.h.b16 %v4384
  %v4433 = vunpack.c.l.b16 %v4385
  %v4434 = vunpack.c.h.b16 %v4385
  %v4435 = vunpack.c.l.b16 %v4386
  %v4436 = vunpack.c.h.b16 %v4386
  %v4437 = vunpack.c.l.b16 %v4387
  %v4438 = vunpack.c.h.b16 %v4387
  %v4439 = vunpack.c.l.b16 %v4388
  %v4440 = vunpack.c.h.b16 %v4388
  %v4441 = vunpack.c.l.b16 %v4389
  %v4442 = vunpack.c.h.b16 %v4389
  %v4443 = vunpack.c.l.b16 %v4390
  %v4444 = vunpack.c.h.b16 %v4390
  %v4445 = vunpack.c.l.b16 %v4391
  %v4446 = vunpack.c.h.b16 %v4391
  %v4447 = vunpack.c.l.b16 %v4392
  %v4448 = vunpack.c.h.b16 %v4392
  %v4449 = vunpack.c.l.b16 %v4393
  %v4450 = vunpack.c.h.b16 %v4393
  %v4451 = vunpack.c.l.b16 %v4394
  %v4452 = vunpack.c.h.b16 %v4394
  %v4453 = vunpack.c.l.b16 %v4395
  %v4454 = vunpack.c.h.b16 %v4395
  %v4455 = vunpack.c.l.b16 %v4396
  %v4456 = vunpack.c.h.b16 %v4396
  %v4457 = vpack.c.b16 %v4427, %v4425
  %v4458 = vpack.c.b16 %v4428, %v4426
  %v4459 = vpack.c.b16 %v4431, %v4429
  %v4460 = vpack.c.b16 %v4432, %v4430
  %v4461 = vpack.c.b16 %v4435, %v4433
  %v4462 = vpack.c.b16 %v4436, %v4434
  %v4463 = vpack.c.b16 %v4439, %v4437
  %v4464 = vpack.c.b16 %v4440, %v4438
  %v4465 = vpack.c.b16 %v4443, %v4441
  %v4466 = vpack.c.b16 %v4444, %v4442
  %v4467 = vpack.c.b16 %v4447, %v4445
  %v4468 = vpack.c.b16 %v4448, %v4446
  %v4469 = vpack.c.b16 %v4451, %v4449
  %v4470 = vpack.c.b16 %v4452, %v4450
  %v4471 = vpack.c.b16 %v4455, %v4453
  %v4472 = vpack.c.b16 %v4456, %v4454
  %4489 = vmatprep.subr.bf16.mxu0 %v4472
  %4490 = vmatpush1.bf16.msra.mxu0 %v4471
  %4491 = vmatprep.subr.bf16.mxu0 %v4470
  %4492 = vmatpush1.bf16.msra.mxu0 %v4469
  %4493 = vmatprep.subr.bf16.mxu0 %v4468
  %4494 = vmatpush1.bf16.msra.mxu0 %v4467
  %4495 = vmatprep.subr.bf16.mxu0 %v4466
  %4496 = vmatpush1.bf16.msra.mxu0 %v4465
  %4497 = vmatprep.subr.bf16.mxu0 %v4464
  %4498 = vmatpush1.bf16.msra.mxu0 %v4463
  %4499 = vmatprep.subr.bf16.mxu0 %v4462
  %4500 = vmatpush1.bf16.msra.mxu0 %v4461
  %4501 = vmatprep.subr.bf16.mxu0 %v4460
  %4502 = vmatpush1.bf16.msra.mxu0 %v4459
  %4503 = vmatprep.subr.bf16.mxu0 %v4458
  %4504 = vmatpush1.bf16.msra.mxu0 %v4457
  %4505 = vmatprep.subr.bf16.mxu0 0
  %4506 = vmatpush2.bf16.msra.mxu0 0
  %4507 = vmatprep.subr.bf16.mxu0 0
  %4508 = vmatpush2.bf16.msra.mxu0 0
  %4509 = vmatprep.subr.bf16.mxu0 0
  %4510 = vmatpush2.bf16.msra.mxu0 0
  %4511 = vmatprep.subr.bf16.mxu0 0
  %4512 = vmatpush2.bf16.msra.mxu0 0
  %4513 = vmatprep.subr.bf16.mxu0 0
  %4514 = vmatpush2.bf16.msra.mxu0 0
  %4515 = vmatprep.subr.bf16.mxu0 0
  %4516 = vmatpush2.bf16.msra.mxu0 0
  %4517 = vmatprep.subr.bf16.mxu0 0
  %4518 = vmatpush2.bf16.msra.mxu0 0
  %4519 = vmatprep.subr.bf16.mxu0 0
  %4520 = vmatpush2.bf16.msra.mxu0 0
  %4521 = vmatprep.mubr.bf16.mxu0 0
  %4522 = vmatmul.mubr.bf16.gmra.mxu0 %v4365
  %v4523 = vpop.f32.mrf.mxu0
  %v4524 = vadd.f32 %v4402, %v4523
  %v4525 = vpop.f32.mrf.mxu0
  %v4526 = vadd.f32 %v4406, %v4525
  %v4527 = vpop.f32.mrf.mxu0
  %v4528 = vadd.f32 %v4402, %v4527
  %v4529 = vpop.f32.mrf.mxu0
  %v4530 = vadd.f32 %v4406, %v4529
  %4531 = vmatprep.mubr.bf16.mxu0 0
  %4532 = vmatmul.mubr.bf16.gmra.mxu0 %v4366
  %v4533 = vpop.f32.mrf.mxu0
  %v4534 = vadd.f32 %v4402, %v4533
  %v4535 = vpop.f32.mrf.mxu0
  %v4536 = vadd.f32 %v4406, %v4535
  %v4537 = vpop.f32.mrf.mxu0
  %v4538 = vadd.f32 %v4402, %v4537
  %v4539 = vpop.f32.mrf.mxu0
  %v4540 = vadd.f32 %v4406, %v4539
  %4541 = vmatprep.mubr.bf16.mxu0 0
  %4542 = vmatmul.mubr.bf16.gmra.mxu0 %v4367
  %v4543 = vpop.f32.mrf.mxu0
  %v4544 = vadd.f32 %v4402, %v4543
  %v4545 = vpop.f32.mrf.mxu0
  %v4546 = vadd.f32 %v4406, %v4545
  %v4547 = vpop.f32.mrf.mxu0
  %v4548 = vadd.f32 %v4402, %v4547
  %v4549 = vpop.f32.mrf.mxu0
  %v4550 = vadd.f32 %v4406, %v4549
  %4551 = vmatprep.mubr.bf16.mxu0 0
  %4552 = vmatmul.mubr.bf16.gmra.mxu0 %v4368
  %v4553 = vpop.f32.mrf.mxu0
  %v4554 = vadd.f32 %v4402, %v4553
  %v4555 = vpop.f32.mrf.mxu0
  %v4556 = vadd.f32 %v4406, %v4555
  %v4557 = vpop.f32.mrf.mxu0
  %v4558 = vadd.f32 %v4402, %v4557
  %v4559 = vpop.f32.mrf.mxu0
  %v4560 = vadd.f32 %v4406, %v4559
  %4561 = vmatprep.mubr.bf16.mxu0 0
  %4562 = vmatmul.mubr.bf16.gmra.mxu0 %v4369
  %v4563 = vpop.f32.mrf.mxu0
  %v4564 = vadd.f32 %v4402, %v4563
  %v4565 = vpop.f32.mrf.mxu0
  %v4566 = vadd.f32 %v4406, %v4565
  %v4567 = vpop.f32.mrf.mxu0
  %v4568 = vadd.f32 %v4402, %v4567
  %v4569 = vpop.f32.mrf.mxu0
  %v4570 = vadd.f32 %v4406, %v4569
  %4571 = vmatprep.mubr.bf16.mxu0 0
  %4572 = vmatmul.mubr.bf16.gmra.mxu0 %v4370
  %v4573 = vpop.f32.mrf.mxu0
  %v4574 = vadd.f32 %v4402, %v4573
  %v4575 = vpop.f32.mrf.mxu0
  %v4576 = vadd.f32 %v4406, %v4575
  %v4577 = vpop.f32.mrf.mxu0
  %v4578 = vadd.f32 %v4402, %v4577
  %v4579 = vpop.f32.mrf.mxu0
  %v4580 = vadd.f32 %v4406, %v4579
  %4581 = vmatprep.mubr.bf16.mxu0 0
  %4582 = vmatmul.mubr.bf16.gmra.mxu0 %v4371
  %v4583 = vpop.f32.mrf.mxu0
  %v4584 = vadd.f32 %v4402, %v4583
  %v4585 = vpop.f32.mrf.mxu0
  %v4586 = vadd.f32 %v4406, %v4585
  %v4587 = vpop.f32.mrf.mxu0
  %v4588 = vadd.f32 %v4402, %v4587
  %v4589 = vpop.f32.mrf.mxu0
  %v4590 = vadd.f32 %v4406, %v4589
  %4591 = vmatprep.mubr.bf16.mxu0 0
  %4592 = vmatmul.mubr.bf16.gmra.mxu0 %v4372
  %v4593 = vpop.f32.mrf.mxu0
  %v4594 = vadd.f32 %v4402, %v4593
  %v4595 = vpop.f32.mrf.mxu0
  %v4596 = vadd.f32 %v4406, %v4595
  %v4597 = vpop.f32.mrf.mxu0
  %v4598 = vadd.f32 %v4402, %v4597
  %v4599 = vpop.f32.mrf.mxu0
  %v4600 = vadd.f32 %v4406, %v4599
  %4601 = vmatprep.mubr.bf16.mxu0 0
  %4602 = vmatmul.mubr.bf16.gmra.mxu0 %v4373
  %v4603 = vpop.f32.mrf.mxu0
  %v4604 = vadd.f32 %v4402, %v4603
  %v4605 = vpop.f32.mrf.mxu0
  %v4606 = vadd.f32 %v4406, %v4605
  %v4607 = vpop.f32.mrf.mxu0
  %v4608 = vadd.f32 %v4402, %v4607
  %v4609 = vpop.f32.mrf.mxu0
  %v4610 = vadd.f32 %v4406, %v4609
  %4611 = vmatprep.mubr.bf16.mxu0 0
  %4612 = vmatmul.mubr.bf16.gmra.mxu0 %v4374
  %v4613 = vpop.f32.mrf.mxu0
  %v4614 = vadd.f32 %v4402, %v4613
  %v4615 = vpop.f32.mrf.mxu0
  %v4616 = vadd.f32 %v4406, %v4615
  %v4617 = vpop.f32.mrf.mxu0
  %v4618 = vadd.f32 %v4402, %v4617
  %v4619 = vpop.f32.mrf.mxu0
  %v4620 = vadd.f32 %v4406, %v4619
  %4621 = vmatprep.mubr.bf16.mxu0 0
  %4622 = vmatmul.mubr.bf16.gmra.mxu0 %v4375
  %v4623 = vpop.f32.mrf.mxu0
  %v4624 = vadd.f32 %v4402, %v4623
  %v4625 = vpop.f32.mrf.mxu0
  %v4626 = vadd.f32 %v4406, %v4625
  %v4627 = vpop.f32.mrf.mxu0
  %v4628 = vadd.f32 %v4402, %v4627
  %v4629 = vpop.f32.mrf.mxu0
  %v4630 = vadd.f32 %v4406, %v4629
  %4631 = vmatprep.mubr.bf16.mxu0 0
  %4632 = vmatmul.mubr.bf16.gmra.mxu0 %v4376
  %v4633 = vpop.f32.mrf.mxu0
  %v4634 = vadd.f32 %v4402, %v4633
  %v4635 = vpop.f32.mrf.mxu0
  %v4636 = vadd.f32 %v4406, %v4635
  %v4637 = vpop.f32.mrf.mxu0
  %v4638 = vadd.f32 %v4402, %v4637
  %v4639 = vpop.f32.mrf.mxu0
  %v4640 = vadd.f32 %v4406, %v4639
  %4641 = vmatprep.mubr.bf16.mxu0 0
  %4642 = vmatmul.mubr.bf16.gmra.mxu0 %v4377
  %v4643 = vpop.f32.mrf.mxu0
  %v4644 = vadd.f32 %v4402, %v4643
  %v4645 = vpop.f32.mrf.mxu0
  %v4646 = vadd.f32 %v4406, %v4645
  %v4647 = vpop.f32.mrf.mxu0
  %v4648 = vadd.f32 %v4402, %v4647
  %v4649 = vpop.f32.mrf.mxu0
  %v4650 = vadd.f32 %v4406, %v4649
  %4651 = vmatprep.mubr.bf16.mxu0 0
  %4652 = vmatmul.mubr.bf16.gmra.mxu0 %v4378
  %v4653 = vpop.f32.mrf.mxu0
  %v4654 = vadd.f32 %v4402, %v4653
  %v4655 = vpop.f32.mrf.mxu0
  %v4656 = vadd.f32 %v4406, %v4655
  %v4657 = vpop.f32.mrf.mxu0
  %v4658 = vadd.f32 %v4402, %v4657
  %v4659 = vpop.f32.mrf.mxu0
  %v4660 = vadd.f32 %v4406, %v4659
  %4661 = vmatprep.mubr.bf16.mxu0 0
  %4662 = vmatmul.mubr.bf16.gmra.mxu0 %v4379
  %v4663 = vpop.f32.mrf.mxu0
  %v4664 = vadd.f32 %v4402, %v4663
  %v4665 = vpop.f32.mrf.mxu0
  %v4666 = vadd.f32 %v4406, %v4665
  %v4667 = vpop.f32.mrf.mxu0
  %v4668 = vadd.f32 %v4402, %v4667
  %v4669 = vpop.f32.mrf.mxu0
  %v4670 = vadd.f32 %v4406, %v4669
  %4671 = vmatprep.mubr.bf16.mxu0 0
  %4672 = vmatmul.mubr.bf16.gmra.mxu0 %v4380
  %v4673 = vpop.f32.mrf.mxu0
  %v4674 = vadd.f32 %v4402, %v4673
  %v4675 = vpop.f32.mrf.mxu0
  %v4676 = vadd.f32 %v4406, %v4675
  %v4677 = vpop.f32.mrf.mxu0
  %v4678 = vadd.f32 %v4402, %v4677
  %v4679 = vpop.f32.mrf.mxu0
  %v4680 = vadd.f32 %v4406, %v4679
  %4681 = vdwg.mxu0
  %v4682 = vmul.f32 %v4524, %v4524
  %v4683 = vmul.f32 %v4526, %v4526
  %v4684 = vmul.f32 %v4528, %v4528
  %v4685 = vmul.f32 %v4530, %v4530
  %v4686 = vmul.f32 %v4534, %v4534
  %v4687 = vmul.f32 %v4536, %v4536
  %v4688 = vmul.f32 %v4538, %v4538
  %v4689 = vmul.f32 %v4540, %v4540
  %v4690 = vmul.f32 %v4544, %v4544
  %v4691 = vmul.f32 %v4546, %v4546
  %v4692 = vmul.f32 %v4548, %v4548
  %v4693 = vmul.f32 %v4550, %v4550
  %v4694 = vmul.f32 %v4554, %v4554
  %v4695 = vmul.f32 %v4556, %v4556
  %v4696 = vmul.f32 %v4558, %v4558
  %v4697 = vmul.f32 %v4560, %v4560
  %v4698 = vmul.f32 %v4564, %v4564
  %v4699 = vmul.f32 %v4566, %v4566
  %v4700 = vmul.f32 %v4568, %v4568
  %v4701 = vmul.f32 %v4570, %v4570
  %v4702 = vmul.f32 %v4574, %v4574
  %v4703 = vmul.f32 %v4576, %v4576
  %v4704 = vmul.f32 %v4578, %v4578
  %v4705 = vmul.f32 %v4580, %v4580
  %v4706 = vmul.f32 %v4584, %v4584
  %v4707 = vmul.f32 %v4586, %v4586
  %v4708 = vmul.f32 %v4588, %v4588
  %v4709 = vmul.f32 %v4590, %v4590
  %v4710 = vmul.f32 %v4594, %v4594
  %v4711 = vmul.f32 %v4596, %v4596
  %v4712 = vmul.f32 %v4598, %v4598
  %v4713 = vmul.f32 %v4600, %v4600
  %v4714 = vmul.f32 %v4604, %v4604
  %v4715 = vmul.f32 %v4606, %v4606
  %v4716 = vmul.f32 %v4608, %v4608
  %v4717 = vmul.f32 %v4610, %v4610
  %v4718 = vmul.f32 %v4614, %v4614
  %v4719 = vmul.f32 %v4616, %v4616
  %v4720 = vmul.f32 %v4618, %v4618
  %v4721 = vmul.f32 %v4620, %v4620
  %v4722 = vmul.f32 %v4624, %v4624
  %v4723 = vmul.f32 %v4626, %v4626
  %v4724 = vmul.f32 %v4628, %v4628
  %v4725 = vmul.f32 %v4630, %v4630
  %v4726 = vmul.f32 %v4634, %v4634
  %v4727 = vmul.f32 %v4636, %v4636
  %v4728 = vmul.f32 %v4638, %v4638
  %v4729 = vmul.f32 %v4640, %v4640
  %v4730 = vmul.f32 %v4644, %v4644
  %v4731 = vmul.f32 %v4646, %v4646
  %v4732 = vmul.f32 %v4648, %v4648
  %v4733 = vmul.f32 %v4650, %v4650
  %v4734 = vmul.f32 %v4654, %v4654
  %v4735 = vmul.f32 %v4656, %v4656
  %v4736 = vmul.f32 %v4658, %v4658
  %v4737 = vmul.f32 %v4660, %v4660
  %v4738 = vmul.f32 %v4664, %v4664
  %v4739 = vmul.f32 %v4666, %v4666
  %v4740 = vmul.f32 %v4668, %v4668
  %v4741 = vmul.f32 %v4670, %v4670
  %v4742 = vmul.f32 %v4674, %v4674
  %v4743 = vmul.f32 %v4676, %v4676
  %v4744 = vmul.f32 %v4678, %v4678
  %v4745 = vmul.f32 %v4680, %v4680
  %v4746 = vmul.f32 %v4524, %v4682
  %v4747 = vmul.f32 %v4526, %v4683
  %v4748 = vmul.f32 %v4528, %v4684
  %v4749 = vmul.f32 %v4530, %v4685
  %v4750 = vmul.f32 %v4534, %v4686
  %v4751 = vmul.f32 %v4536, %v4687
  %v4752 = vmul.f32 %v4538, %v4688
  %v4753 = vmul.f32 %v4540, %v4689
  %v4754 = vmul.f32 %v4544, %v4690
  %v4755 = vmul.f32 %v4546, %v4691
  %v4756 = vmul.f32 %v4548, %v4692
  %v4757 = vmul.f32 %v4550, %v4693
  %v4758 = vmul.f32 %v4554, %v4694
  %v4759 = vmul.f32 %v4556, %v4695
  %v4760 = vmul.f32 %v4558, %v4696
  %v4761 = vmul.f32 %v4560, %v4697
  %v4762 = vmul.f32 %v4564, %v4698
  %v4763 = vmul.f32 %v4566, %v4699
  %v4764 = vmul.f32 %v4568, %v4700
  %v4765 = vmul.f32 %v4570, %v4701
  %v4766 = vmul.f32 %v4574, %v4702
  %v4767 = vmul.f32 %v4576, %v4703
  %v4768 = vmul.f32 %v4578, %v4704
  %v4769 = vmul.f32 %v4580, %v4705
  %v4770 = vmul.f32 %v4584, %v4706
  %v4771 = vmul.f32 %v4586, %v4707
  %v4772 = vmul.f32 %v4588, %v4708
  %v4773 = vmul.f32 %v4590, %v4709
  %v4774 = vmul.f32 %v4594, %v4710
  %v4775 = vmul.f32 %v4596, %v4711
  %v4776 = vmul.f32 %v4598, %v4712
  %v4777 = vmul.f32 %v4600, %v4713
  %v4778 = vmul.f32 %v4604, %v4714
  %v4779 = vmul.f32 %v4606, %v4715
  %v4780 = vmul.f32 %v4608, %v4716
  %v4781 = vmul.f32 %v4610, %v4717
  %v4782 = vmul.f32 %v4614, %v4718
  %v4783 = vmul.f32 %v4616, %v4719
  %v4784 = vmul.f32 %v4618, %v4720
  %v4785 = vmul.f32 %v4620, %v4721
  %v4786 = vmul.f32 %v4624, %v4722
  %v4787 = vmul.f32 %v4626, %v4723
  %v4788 = vmul.f32 %v4628, %v4724
  %v4789 = vmul.f32 %v4630, %v4725
  %v4790 = vmul.f32 %v4634, %v4726
  %v4791 = vmul.f32 %v4636, %v4727
  %v4792 = vmul.f32 %v4638, %v4728
  %v4793 = vmul.f32 %v4640, %v4729
  %v4794 = vmul.f32 %v4644, %v4730
  %v4795 = vmul.f32 %v4646, %v4731
  %v4796 = vmul.f32 %v4648, %v4732
  %v4797 = vmul.f32 %v4650, %v4733
  %v4798 = vmul.f32 %v4654, %v4734
  %v4799 = vmul.f32 %v4656, %v4735
  %v4800 = vmul.f32 %v4658, %v4736
  %v4801 = vmul.f32 %v4660, %v4737
  %v4802 = vmul.f32 %v4664, %v4738
  %v4803 = vmul.f32 %v4666, %v4739
  %v4804 = vmul.f32 %v4668, %v4740
  %v4805 = vmul.f32 %v4670, %v4741
  %v4806 = vmul.f32 %v4674, %v4742
  %v4807 = vmul.f32 %v4676, %v4743
  %v4808 = vmul.f32 %v4678, %v4744
  %v4809 = vmul.f32 %v4680, %v4745
  %v4810 = vmul.f32 %v4746, 0.044715
  %v4811 = vmul.f32 %v4747, 0.044715
  %v4812 = vmul.f32 %v4748, 0.044715
  %v4813 = vmul.f32 %v4749, 0.044715
  %v4814 = vmul.f32 %v4750, 0.044715
  %v4815 = vmul.f32 %v4751, 0.044715
  %v4816 = vmul.f32 %v4752, 0.044715
  %v4817 = vmul.f32 %v4753, 0.044715
  %v4818 = vmul.f32 %v4754, 0.044715
  %v4819 = vmul.f32 %v4755, 0.044715
  %v4820 = vmul.f32 %v4756, 0.044715
  %v4821 = vmul.f32 %v4757, 0.044715
  %v4822 = vmul.f32 %v4758, 0.044715
  %v4823 = vmul.f32 %v4759, 0.044715
  %v4824 = vmul.f32 %v4760, 0.044715
  %v4825 = vmul.f32 %v4761, 0.044715
  %v4826 = vmul.f32 %v4762, 0.044715
  %v4827 = vmul.f32 %v4763, 0.044715
  %v4828 = vmul.f32 %v4764, 0.044715
  %v4829 = vmul.f32 %v4765, 0.044715
  %v4830 = vmul.f32 %v4766, 0.044715
  %v4831 = vmul.f32 %v4767, 0.044715
  %v4832 = vmul.f32 %v4768, 0.044715
  %v4833 = vmul.f32 %v4769, 0.044715
  %v4834 = vmul.f32 %v4770, 0.044715
  %v4835 = vmul.f32 %v4771, 0.044715
  %v4836 = vmul.f32 %v4772, 0.044715
  %v4837 = vmul.f32 %v4773, 0.044715
  %v4838 = vmul.f32 %v4774, 0.044715
  %v4839 = vmul.f32 %v4775, 0.044715
  %v4840 = vmul.f32 %v4776, 0.044715
  %v4841 = vmul.f32 %v4777, 0.044715
  %v4842 = vmul.f32 %v4778, 0.044715
  %v4843 = vmul.f32 %v4779, 0.044715
  %v4844 = vmul.f32 %v4780, 0.044715
  %v4845 = vmul.f32 %v4781, 0.044715
  %v4846 = vmul.f32 %v4782, 0.044715
  %v4847 = vmul.f32 %v4783, 0.044715
  %v4848 = vmul.f32 %v4784, 0.044715
  %v4849 = vmul.f32 %v4785, 0.044715
  %v4850 = vmul.f32 %v4786, 0.044715
  %v4851 = vmul.f32 %v4787, 0.044715
  %v4852 = vmul.f32 %v4788, 0.044715
  %v4853 = vmul.f32 %v4789, 0.044715
  %v4854 = vmul.f32 %v4790, 0.044715
  %v4855 = vmul.f32 %v4791, 0.044715
  %v4856 = vmul.f32 %v4792, 0.044715
  %v4857 = vmul.f32 %v4793, 0.044715
  %v4858 = vmul.f32 %v4794, 0.044715
  %v4859 = vmul.f32 %v4795, 0.044715
  %v4860 = vmul.f32 %v4796, 0.044715
  %v4861 = vmul.f32 %v4797, 0.044715
  %v4862 = vmul.f32 %v4798, 0.044715
  %v4863 = vmul.f32 %v4799, 0.044715
  %v4864 = vmul.f32 %v4800, 0.044715
  %v4865 = vmul.f32 %v4801, 0.044715
  %v4866 = vmul.f32 %v4802, 0.044715
  %v4867 = vmul.f32 %v4803, 0.044715
  %v4868 = vmul.f32 %v4804, 0.044715
  %v4869 = vmul.f32 %v4805, 0.044715
  %v4870 = vmul.f32 %v4806, 0.044715
  %v4871 = vmul.f32 %v4807, 0.044715
  %v4872 = vmul.f32 %v4808, 0.044715
  %v4873 = vmul.f32 %v4809, 0.044715
  %v4874 = vadd.f32 %v4524, %v4810
  %v4875 = vadd.f32 %v4526, %v4811
  %v4876 = vadd.f32 %v4528, %v4812
  %v4877 = vadd.f32 %v4530, %v4813
  %v4878 = vadd.f32 %v4534, %v4814
  %v4879 = vadd.f32 %v4536, %v4815
  %v4880 = vadd.f32 %v4538, %v4816
  %v4881 = vadd.f32 %v4540, %v4817
  %v4882 = vadd.f32 %v4544, %v4818
  %v4883 = vadd.f32 %v4546, %v4819
  %v4884 = vadd.f32 %v4548, %v4820
  %v4885 = vadd.f32 %v4550, %v4821
  %v4886 = vadd.f32 %v4554, %v4822
  %v4887 = vadd.f32 %v4556, %v4823
  %v4888 = vadd.f32 %v4558, %v4824
  %v4889 = vadd.f32 %v4560, %v4825
  %v4890 = vadd.f32 %v4564, %v4826
  %v4891 = vadd.f32 %v4566, %v4827
  %v4892 = vadd.f32 %v4568, %v4828
  %v4893 = vadd.f32 %v4570, %v4829
  %v4894 = vadd.f32 %v4574, %v4830
  %v4895 = vadd.f32 %v4576, %v4831
  %v4896 = vadd.f32 %v4578, %v4832
  %v4897 = vadd.f32 %v4580, %v4833
  %v4898 = vadd.f32 %v4584, %v4834
  %v4899 = vadd.f32 %v4586, %v4835
  %v4900 = vadd.f32 %v4588, %v4836
  %v4901 = vadd.f32 %v4590, %v4837
  %v4902 = vadd.f32 %v4594, %v4838
  %v4903 = vadd.f32 %v4596, %v4839
  %v4904 = vadd.f32 %v4598, %v4840
  %v4905 = vadd.f32 %v4600, %v4841
  %v4906 = vadd.f32 %v4604, %v4842
  %v4907 = vadd.f32 %v4606, %v4843
  %v4908 = vadd.f32 %v4608, %v4844
  %v4909 = vadd.f32 %v4610, %v4845
  %v4910 = vadd.f32 %v4614, %v4846
  %v4911 = vadd.f32 %v4616, %v4847
  %v4912 = vadd.f32 %v4618, %v4848
  %v4913 = vadd.f32 %v4620, %v4849
  %v4914 = vadd.f32 %v4624, %v4850
  %v4915 = vadd.f32 %v4626, %v4851
  %v4916 = vadd.f32 %v4628, %v4852
  %v4917 = vadd.f32 %v4630, %v4853
  %v4918 = vadd.f32 %v4634, %v4854
  %v4919 = vadd.f32 %v4636, %v4855
  %v4920 = vadd.f32 %v4638, %v4856
  %v4921 = vadd.f32 %v4640, %v4857
  %v4922 = vadd.f32 %v4644, %v4858
  %v4923 = vadd.f32 %v4646, %v4859
  %v4924 = vadd.f32 %v4648, %v4860
  %v4925 = vadd.f32 %v4650, %v4861
  %v4926 = vadd.f32 %v4654, %v4862
  %v4927 = vadd.f32 %v4656, %v4863
  %v4928 = vadd.f32 %v4658, %v4864
  %v4929 = vadd.f32 %v4660, %v4865
  %v4930 = vadd.f32 %v4664, %v4866
  %v4931 = vadd.f32 %v4666, %v4867
  %v4932 = vadd.f32 %v4668, %v4868
  %v4933 = vadd.f32 %v4670, %v4869
  %v4934 = vadd.f32 %v4674, %v4870
  %v4935 = vadd.f32 %v4676, %v4871
  %v4936 = vadd.f32 %v4678, %v4872
  %v4937 = vadd.f32 %v4680, %v4873
  %v4938 = vmul.f32 %v4874, 0.7978846
  %v4939 = vmul.f32 %v4875, 0.7978846
  %v4940 = vmul.f32 %v4876, 0.7978846
  %v4941 = vmul.f32 %v4877, 0.7978846
  %v4942 = vmul.f32 %v4878, 0.7978846
  %v4943 = vmul.f32 %v4879, 0.7978846
  %v4944 = vmul.f32 %v4880, 0.7978846
  %v4945 = vmul.f32 %v4881, 0.7978846
  %v4946 = vmul.f32 %v4882, 0.7978846
  %v4947 = vmul.f32 %v4883, 0.7978846
  %v4948 = vmul.f32 %v4884, 0.7978846
  %v4949 = vmul.f32 %v4885, 0.7978846
  %v4950 = vmul.f32 %v4886, 0.7978846
  %v4951 = vmul.f32 %v4887, 0.7978846
  %v4952 = vmul.f32 %v4888, 0.7978846
  %v4953 = vmul.f32 %v4889, 0.7978846
  %v4954 = vmul.f32 %v4890, 0.7978846
  %v4955 = vmul.f32 %v4891, 0.7978846
  %v4956 = vmul.f32 %v4892, 0.7978846
  %v4957 = vmul.f32 %v4893, 0.7978846
  %v4958 = vmul.f32 %v4894, 0.7978846
  %v4959 = vmul.f32 %v4895, 0.7978846
  %v4960 = vmul.f32 %v4896, 0.7978846
  %v4961 = vmul.f32 %v4897, 0.7978846
  %v4962 = vmul.f32 %v4898, 0.7978846
  %v4963 = vmul.f32 %v4899, 0.7978846
  %v4964 = vmul.f32 %v4900, 0.7978846
  %v4965 = vmul.f32 %v4901, 0.7978846
  %v4966 = vmul.f32 %v4902, 0.7978846
  %v4967 = vmul.f32 %v4903, 0.7978846
  %v4968 = vmul.f32 %v4904, 0.7978846
  %v4969 = vmul.f32 %v4905, 0.7978846
  %v4970 = vmul.f32 %v4906, 0.7978846
  %v4971 = vmul.f32 %v4907, 0.7978846
  %v4972 = vmul.f32 %v4908, 0.7978846
  %v4973 = vmul.f32 %v4909, 0.7978846
  %v4974 = vmul.f32 %v4910, 0.7978846
  %v4975 = vmul.f32 %v4911, 0.7978846
  %v4976 = vmul.f32 %v4912, 0.7978846
  %v4977 = vmul.f32 %v4913, 0.7978846
  %v4978 = vmul.f32 %v4914, 0.7978846
  %v4979 = vmul.f32 %v4915, 0.7978846
  %v4980 = vmul.f32 %v4916, 0.7978846
  %v4981 = vmul.f32 %v4917, 0.7978846
  %v4982 = vmul.f32 %v4918, 0.7978846
  %v4983 = vmul.f32 %v4919, 0.7978846
  %v4984 = vmul.f32 %v4920, 0.7978846
  %v4985 = vmul.f32 %v4921, 0.7978846
  %v4986 = vmul.f32 %v4922, 0.7978846
  %v4987 = vmul.f32 %v4923, 0.7978846
  %v4988 = vmul.f32 %v4924, 0.7978846
  %v4989 = vmul.f32 %v4925, 0.7978846
  %v4990 = vmul.f32 %v4926, 0.7978846
  %v4991 = vmul.f32 %v4927, 0.7978846
  %v4992 = vmul.f32 %v4928, 0.7978846
  %v4993 = vmul.f32 %v4929, 0.7978846
  %v4994 = vmul.f32 %v4930, 0.7978846
  %v4995 = vmul.f32 %v4931, 0.7978846
  %v4996 = vmul.f32 %v4932, 0.7978846
  %v4997 = vmul.f32 %v4933, 0.7978846
  %v4998 = vmul.f32 %v4934, 0.7978846
  %v4999 = vmul.f32 %v4935, 0.7978846
  %v5000 = vmul.f32 %v4936, 0.7978846
  %v5001 = vmul.f32 %v4937, 0.7978846
  %v5002 = vtanh.pop %v4938
  %v5003 = vtanh.pop %v4939
  %v5004 = vtanh.pop %v4940
  %v5005 = vtanh.pop %v4941
  %v5006 = vtanh.pop %v4942
  %v5007 = vtanh.pop %v4943
  %v5008 = vtanh.pop %v4944
  %v5009 = vtanh.pop %v4945
  %v5010 = vtanh.pop %v4946
  %v5011 = vtanh.pop %v4947
  %v5012 = vtanh.pop %v4948
  %v5013 = vtanh.pop %v4949
  %v5014 = vtanh.pop %v4950
  %v5015 = vtanh.pop %v4951
  %v5016 = vtanh.pop %v4952
  %v5017 = vtanh.pop %v4953
  %v5018 = vtanh.pop %v4954
  %v5019 = vtanh.pop %v4955
  %v5020 = vtanh.pop %v4956
  %v5021 = vtanh.pop %v4957
  %v5022 = vtanh.pop %v4958
  %v5023 = vtanh.pop %v4959
  %v5024 = vtanh.pop %v4960
  %v5025 = vtanh.pop %v4961
  %v5026 = vtanh.pop %v4962
  %v5027 = vtanh.pop %v4963
  %v5028 = vtanh.pop %v4964
  %v5029 = vtanh.pop %v4965
  %v5030 = vtanh.pop %v4966
  %v5031 = vtanh.pop %v4967
  %v5032 = vtanh.pop %v4968
  %v5033 = vtanh.pop %v4969
  %v5034 = vtanh.pop %v4970
  %v5035 = vtanh.pop %v4971
  %v5036 = vtanh.pop %v4972
  %v5037 = vtanh.pop %v4973
  %v5038 = vtanh.pop %v4974
  %v5039 = vtanh.pop %v4975
  %v5040 = vtanh.pop %v4976
  %v5041 = vtanh.pop %v4977
  %v5042 = vtanh.pop %v4978
  %v5043 = vtanh.pop %v4979
  %v5044 = vtanh.pop %v4980
  %v5045 = vtanh.pop %v4981
  %v5046 = vtanh.pop %v4982
  %v5047 = vtanh.pop %v4983
  %v5048 = vtanh.pop %v4984
  %v5049 = vtanh.pop %v4985
  %v5050 = vtanh.pop %v4986
  %v5051 = vtanh.pop %v4987
  %v5052 = vtanh.pop %v4988
  %v5053 = vtanh.pop %v4989
  %v5054 = vtanh.pop %v4990
  %v5055 = vtanh.pop %v4991
  %v5056 = vtanh.pop %v4992
  %v5057 = vtanh.pop %v4993
  %v5058 = vtanh.pop %v4994
  %v5059 = vtanh.pop %v4995
  %v5060 = vtanh.pop %v4996
  %v5061 = vtanh.pop %v4997
  %v5062 = vtanh.pop %v4998
  %v5063 = vtanh.pop %v4999
  %v5064 = vtanh.pop %v5000
  %v5065 = vtanh.pop %v5001
  %v5066 = vadd.f32 %v5002, 1.0
  %v5067 = vadd.f32 %v5003, 1.0
  %v5068 = vadd.f32 %v5004, 1.0
  %v5069 = vadd.f32 %v5005, 1.0
  %v5070 = vadd.f32 %v5006, 1.0
  %v5071 = vadd.f32 %v5007, 1.0
  %v5072 = vadd.f32 %v5008, 1.0
  %v5073 = vadd.f32 %v5009, 1.0
  %v5074 = vadd.f32 %v5010, 1.0
  %v5075 = vadd.f32 %v5011, 1.0
  %v5076 = vadd.f32 %v5012, 1.0
  %v5077 = vadd.f32 %v5013, 1.0
  %v5078 = vadd.f32 %v5014, 1.0
  %v5079 = vadd.f32 %v5015, 1.0
  %v5080 = vadd.f32 %v5016, 1.0
  %v5081 = vadd.f32 %v5017, 1.0
  %v5082 = vadd.f32 %v5018, 1.0
  %v5083 = vadd.f32 %v5019, 1.0
  %v5084 = vadd.f32 %v5020, 1.0
  %v5085 = vadd.f32 %v5021, 1.0
  %v5086 = vadd.f32 %v5022, 1.0
  %v5087 = vadd.f32 %v5023, 1.0
  %v5088 = vadd.f32 %v5024, 1.0
  %v5089 = vadd.f32 %v5025, 1.0
  %v5090 = vadd.f32 %v5026, 1.0
  %v5091 = vadd.f32 %v5027, 1.0
  %v5092 = vadd.f32 %v5028, 1.0
  %v5093 = vadd.f32 %v5029, 1.0
  %v5094 = vadd.f32 %v5030, 1.0
  %v5095 = vadd.f32 %v5031, 1.0
  %v5096 = vadd.f32 %v5032, 1.0
  %v5097 = vadd.f32 %v5033, 1.0
  %v5098 = vadd.f32 %v5034, 1.0
  %v5099 = vadd.f32 %v5035, 1.0
  %v5100 = vadd.f32 %v5036, 1.0
  %v5101 = vadd.f32 %v5037, 1.0
  %v5102 = vadd.f32 %v5038, 1.0
  %v5103 = vadd.f32 %v5039, 1.0
  %v5104 = vadd.f32 %v5040, 1.0
  %v5105 = vadd.f32 %v5041, 1.0
  %v5106 = vadd.f32 %v5042, 1.0
  %v5107 = vadd.f32 %v5043, 1.0
  %v5108 = vadd.f32 %v5044, 1.0
  %v5109 = vadd.f32 %v5045, 1.0
  %v5110 = vadd.f32 %v5046, 1.0
  %v5111 = vadd.f32 %v5047, 1.0
  %v5112 = vadd.f32 %v5048, 1.0
  %v5113 = vadd.f32 %v5049, 1.0
  %v5114 = vadd.f32 %v5050, 1.0
  %v5115 = vadd.f32 %v5051, 1.0
  %v5116 = vadd.f32 %v5052, 1.0
  %v5117 = vadd.f32 %v5053, 1.0
  %v5118 = vadd.f32 %v5054, 1.0
  %v5119 = vadd.f32 %v5055, 1.0
  %v5120 = vadd.f32 %v5056, 1.0
  %v5121 = vadd.f32 %v5057, 1.0
  %v5122 = vadd.f32 %v5058, 1.0
  %v5123 = vadd.f32 %v5059, 1.0
  %v5124 = vadd.f32 %v5060, 1.0
  %v5125 = vadd.f32 %v5061, 1.0
  %v5126 = vadd.f32 %v5062, 1.0
  %v5127 = vadd.f32 %v5063, 1.0
  %v5128 = vadd.f32 %v5064, 1.0
  %v5129 = vadd.f32 %v5065, 1.0
  %v5130 = vmul.f32 %v5066, 0.5
  %v5131 = vmul.f32 %v5067, 0.5
  %v5132 = vmul.f32 %v5068, 0.5
  %v5133 = vmul.f32 %v5069, 0.5
  %v5134 = vmul.f32 %v5070, 0.5
  %v5135 = vmul.f32 %v5071, 0.5
  %v5136 = vmul.f32 %v5072, 0.5
  %v5137 = vmul.f32 %v5073, 0.5
  %v5138 = vmul.f32 %v5074, 0.5
  %v5139 = vmul.f32 %v5075, 0.5
  %v5140 = vmul.f32 %v5076, 0.5
  %v5141 = vmul.f32 %v5077, 0.5
  %v5142 = vmul.f32 %v5078, 0.5
  %v5143 = vmul.f32 %v5079, 0.5
  %v5144 = vmul.f32 %v5080, 0.5
  %v5145 = vmul.f32 %v5081, 0.5
  %v5146 = vmul.f32 %v5082, 0.5
  %v5147 = vmul.f32 %v5083, 0.5
  %v5148 = vmul.f32 %v5084, 0.5
  %v5149 = vmul.f32 %v5085, 0.5
  %v5150 = vmul.f32 %v5086, 0.5
  %v5151 = vmul.f32 %v5087, 0.5
  %v5152 = vmul.f32 %v5088, 0.5
  %v5153 = vmul.f32 %v5089, 0.5
  %v5154 = vmul.f32 %v5090, 0.5
  %v5155 = vmul.f32 %v5091, 0.5
  %v5156 = vmul.f32 %v5092, 0.5
  %v5157 = vmul.f32 %v5093, 0.5
  %v5158 = vmul.f32 %v5094, 0.5
  %v5159 = vmul.f32 %v5095, 0.5
  %v5160 = vmul.f32 %v5096, 0.5
  %v5161 = vmul.f32 %v5097, 0.5
  %v5162 = vmul.f32 %v5098, 0.5
  %v5163 = vmul.f32 %v5099, 0.5
  %v5164 = vmul.f32 %v5100, 0.5
  %v5165 = vmul.f32 %v5101, 0.5
  %v5166 = vmul.f32 %v5102, 0.5
  %v5167 = vmul.f32 %v5103, 0.5
  %v5168 = vmul.f32 %v5104, 0.5
  %v5169 = vmul.f32 %v5105, 0.5
  %v5170 = vmul.f32 %v5106, 0.5
  %v5171 = vmul.f32 %v5107, 0.5
  %v5172 = vmul.f32 %v5108, 0.5
  %v5173 = vmul.f32 %v5109, 0.5
  %v5174 = vmul.f32 %v5110, 0.5
  %v5175 = vmul.f32 %v5111, 0.5
  %v5176 = vmul.f32 %v5112, 0.5
  %v5177 = vmul.f32 %v5113, 0.5
  %v5178 = vmul.f32 %v5114, 0.5
  %v5179 = vmul.f32 %v5115, 0.5
  %v5180 = vmul.f32 %v5116, 0.5
  %v5181 = vmul.f32 %v5117, 0.5
  %v5182 = vmul.f32 %v5118, 0.5
  %v5183 = vmul.f32 %v5119, 0.5
  %v5184 = vmul.f32 %v5120, 0.5
  %v5185 = vmul.f32 %v5121, 0.5
  %v5186 = vmul.f32 %v5122, 0.5
  %v5187 = vmul.f32 %v5123, 0.5
  %v5188 = vmul.f32 %v5124, 0.5
  %v5189 = vmul.f32 %v5125, 0.5
  %v5190 = vmul.f32 %v5126, 0.5
  %v5191 = vmul.f32 %v5127, 0.5
  %v5192 = vmul.f32 %v5128, 0.5
  %v5193 = vmul.f32 %v5129, 0.5
  %v5194 = vmul.f32 %v4524, %v5130
  %v5195 = vmul.f32 %v4526, %v5131
  %v5196 = vmul.f32 %v4528, %v5132
  %v5197 = vmul.f32 %v4530, %v5133
  %v5198 = vmul.f32 %v4534, %v5134
  %v5199 = vmul.f32 %v4536, %v5135
  %v5200 = vmul.f32 %v4538, %v5136
  %v5201 = vmul.f32 %v4540, %v5137
  %v5202 = vmul.f32 %v4544, %v5138
  %v5203 = vmul.f32 %v4546, %v5139
  %v5204 = vmul.f32 %v4548, %v5140
  %v5205 = vmul.f32 %v4550, %v5141
  %v5206 = vmul.f32 %v4554, %v5142
  %v5207 = vmul.f32 %v4556, %v5143
  %v5208 = vmul.f32 %v4558, %v5144
  %v5209 = vmul.f32 %v4560, %v5145
  %v5210 = vmul.f32 %v4564, %v5146
  %v5211 = vmul.f32 %v4566, %v5147
  %v5212 = vmul.f32 %v4568, %v5148
  %v5213 = vmul.f32 %v4570, %v5149
  %v5214 = vmul.f32 %v4574, %v5150
  %v5215 = vmul.f32 %v4576, %v5151
  %v5216 = vmul.f32 %v4578, %v5152
  %v5217 = vmul.f32 %v4580, %v5153
  %v5218 = vmul.f32 %v4584, %v5154
  %v5219 = vmul.f32 %v4586, %v5155
  %v5220 = vmul.f32 %v4588, %v5156
  %v5221 = vmul.f32 %v4590, %v5157
  %v5222 = vmul.f32 %v4594, %v5158
  %v5223 = vmul.f32 %v4596, %v5159
  %v5224 = vmul.f32 %v4598, %v5160
  %v5225 = vmul.f32 %v4600, %v5161
  %v5226 = vmul.f32 %v4604, %v5162
  %v5227 = vmul.f32 %v4606, %v5163
  %v5228 = vmul.f32 %v4608, %v5164
  %v5229 = vmul.f32 %v4610, %v5165
  %v5230 = vmul.f32 %v4614, %v5166
  %v5231 = vmul.f32 %v4616, %v5167
  %v5232 = vmul.f32 %v4618, %v5168
  %v5233 = vmul.f32 %v4620, %v5169
  %v5234 = vmul.f32 %v4624, %v5170
  %v5235 = vmul.f32 %v4626, %v5171
  %v5236 = vmul.f32 %v4628, %v5172
  %v5237 = vmul.f32 %v4630, %v5173
  %v5238 = vmul.f32 %v4634, %v5174
  %v5239 = vmul.f32 %v4636, %v5175
  %v5240 = vmul.f32 %v4638, %v5176
  %v5241 = vmul.f32 %v4640, %v5177
  %v5242 = vmul.f32 %v4644, %v5178
  %v5243 = vmul.f32 %v4646, %v5179
  %v5244 = vmul.f32 %v4648, %v5180
  %v5245 = vmul.f32 %v4650, %v5181
  %v5246 = vmul.f32 %v4654, %v5182
  %v5247 = vmul.f32 %v4656, %v5183
  %v5248 = vmul.f32 %v4658, %v5184
  %v5249 = vmul.f32 %v4660, %v5185
  %v5250 = vmul.f32 %v4664, %v5186
  %v5251 = vmul.f32 %v4666, %v5187
  %v5252 = vmul.f32 %v4668, %v5188
  %v5253 = vmul.f32 %v4670, %v5189
  %v5254 = vmul.f32 %v4674, %v5190
  %v5255 = vmul.f32 %v4676, %v5191
  %v5256 = vmul.f32 %v4678, %v5192
  %v5257 = vmul.f32 %v4680, %v5193
  %v5258 = vpack.c.bf16 %v5196, %v5194
  %v5259 = vpack.c.bf16 %v5197, %v5195
  %v5260 = vpack.c.bf16 %v5200, %v5198
  %v5261 = vpack.c.bf16 %v5201, %v5199
  %v5262 = vpack.c.bf16 %v5204, %v5202
  %v5263 = vpack.c.bf16 %v5205, %v5203
  %v5264 = vpack.c.bf16 %v5208, %v5206
  %v5265 = vpack.c.bf16 %v5209, %v5207
  %v5266 = vpack.c.bf16 %v5212, %v5210
  %v5267 = vpack.c.bf16 %v5213, %v5211
  %v5268 = vpack.c.bf16 %v5216, %v5214
  %v5269 = vpack.c.bf16 %v5217, %v5215
  %v5270 = vpack.c.bf16 %v5220, %v5218
  %v5271 = vpack.c.bf16 %v5221, %v5219
  %v5272 = vpack.c.bf16 %v5224, %v5222
  %v5273 = vpack.c.bf16 %v5225, %v5223
  %v5274 = vpack.c.bf16 %v5228, %v5226
  %v5275 = vpack.c.bf16 %v5229, %v5227
  %v5276 = vpack.c.bf16 %v5232, %v5230
  %v5277 = vpack.c.bf16 %v5233, %v5231
  %v5278 = vpack.c.bf16 %v5236, %v5234
  %v5279 = vpack.c.bf16 %v5237, %v5235
  %v5280 = vpack.c.bf16 %v5240, %v5238
  %v5281 = vpack.c.bf16 %v5241, %v5239
  %v5282 = vpack.c.bf16 %v5244, %v5242
  %v5283 = vpack.c.bf16 %v5245, %v5243
  %v5284 = vpack.c.bf16 %v5248, %v5246
  %v5285 = vpack.c.bf16 %v5249, %v5247
  %v5286 = vpack.c.bf16 %v5252, %v5250
  %v5287 = vpack.c.bf16 %v5253, %v5251
  %v5288 = vpack.c.bf16 %v5256, %v5254
  %v5289 = vpack.c.bf16 %v5257, %v5255
  %v5290 = vld [vmem:[%s14] sm:$0xf]
  %v5291 = vld [vmem:[%s14 + $0x4] sm:$0xf]
  %v5292 = vld [vmem:[%s14 + $0x8] sm:$0xf]
  %v5293 = vld [vmem:[%s14 + $0xc] sm:$0xf]
  %v5294 = vld [vmem:[%s14 + $0x10] sm:$0xf]
  %v5295 = vld [vmem:[%s14 + $0x14] sm:$0xf]
  %v5296 = vld [vmem:[%s14 + $0x18] sm:$0xf]
  %v5297 = vld [vmem:[%s14 + $0x1c] sm:$0xf]
  %v5298 = vld [vmem:[%s14 + $0x20] sm:$0xf]
  %v5299 = vld [vmem:[%s14 + $0x24] sm:$0xf]
  %v5300 = vld [vmem:[%s14 + $0x28] sm:$0xf]
  %v5301 = vld [vmem:[%s14 + $0x2c] sm:$0xf]
  %v5302 = vld [vmem:[%s14 + $0x30] sm:$0xf]
  %v5303 = vld [vmem:[%s14 + $0x34] sm:$0xf]
  %v5304 = vld [vmem:[%s14 + $0x38] sm:$0xf]
  %v5305 = vld [vmem:[%s14 + $0x3c] sm:$0xf]
  %v5306 = vld [vmem:[%s14 + $0x40] sm:$0xf]
  %v5307 = vld [vmem:[%s14 + $0x44] sm:$0xf]
  %v5308 = vld [vmem:[%s14 + $0x48] sm:$0xf]
  %v5309 = vld [vmem:[%s14 + $0x4c] sm:$0xf]
  %v5310 = vld [vmem:[%s14 + $0x50] sm:$0xf]
  %v5311 = vld [vmem:[%s14 + $0x54] sm:$0xf]
  %v5312 = vld [vmem:[%s14 + $0x58] sm:$0xf]
  %v5313 = vld [vmem:[%s14 + $0x5c] sm:$0xf]
  %v5314 = vld [vmem:[%s14 + $0x60] sm:$0xf]
  %v5315 = vld [vmem:[%s14 + $0x64] sm:$0xf]
  %v5316 = vld [vmem:[%s14 + $0x68] sm:$0xf]
  %v5317 = vld [vmem:[%s14 + $0x6c] sm:$0xf]
  %v5318 = vld [vmem:[%s14 + $0x70] sm:$0xf]
  %v5319 = vld [vmem:[%s14 + $0x74] sm:$0xf]
  %v5320 = vld [vmem:[%s14 + $0x78] sm:$0xf]
  %v5321 = vld [vmem:[%s14 + $0x7c] sm:$0xf]
  %v5322 = vld [vmem:[%s15] sm:$0x1]
  %v5324 = vlaneseq
  %v5325 = vshrl.u32 %v5324, 7
  %v5326 = vsub.s32 0, %v5325
  %v5327 = vrot.slane %v5322, %v5326
  %v5361 = vunpack.c.l.b16 %v5290
  %v5362 = vunpack.c.l.b16 %v5291
  %v5363 = vunpack.c.l.b16 %v5292
  %v5364 = vunpack.c.l.b16 %v5293
  %v5365 = vunpack.c.l.b16 %v5294
  %v5366 = vunpack.c.l.b16 %v5295
  %v5367 = vunpack.c.l.b16 %v5296
  %v5368 = vunpack.c.l.b16 %v5297
  %v5369 = vunpack.c.l.b16 %v5298
  %v5370 = vunpack.c.l.b16 %v5299
  %v5371 = vunpack.c.l.b16 %v5300
  %v5372 = vunpack.c.l.b16 %v5301
  %v5373 = vunpack.c.l.b16 %v5302
  %v5374 = vunpack.c.l.b16 %v5303
  %v5375 = vunpack.c.l.b16 %v5304
  %v5376 = vunpack.c.l.b16 %v5305
  %v5377 = vunpack.c.l.b16 %v5306
  %v5378 = vunpack.c.l.b16 %v5307
  %v5379 = vunpack.c.l.b16 %v5308
  %v5380 = vunpack.c.l.b16 %v5309
  %v5381 = vunpack.c.l.b16 %v5310
  %v5382 = vunpack.c.l.b16 %v5311
  %v5383 = vunpack.c.l.b16 %v5312
  %v5384 = vunpack.c.l.b16 %v5313
  %v5385 = vunpack.c.l.b16 %v5314
  %v5386 = vunpack.c.l.b16 %v5315
  %v5387 = vunpack.c.l.b16 %v5316
  %v5388 = vunpack.c.l.b16 %v5317
  %v5389 = vunpack.c.l.b16 %v5318
  %v5390 = vunpack.c.l.b16 %v5319
  %v5391 = vunpack.c.l.b16 %v5320
  %v5392 = vunpack.c.l.b16 %v5321
  %v5393 = vpack.c.b16 %v5362, %v5361
  %v5394 = vpack.c.b16 %v5364, %v5363
  %v5395 = vpack.c.b16 %v5366, %v5365
  %v5396 = vpack.c.b16 %v5368, %v5367
  %v5397 = vpack.c.b16 %v5370, %v5369
  %v5398 = vpack.c.b16 %v5372, %v5371
  %v5399 = vpack.c.b16 %v5374, %v5373
  %v5400 = vpack.c.b16 %v5376, %v5375
  %v5401 = vpack.c.b16 %v5378, %v5377
  %v5402 = vpack.c.b16 %v5380, %v5379
  %v5403 = vpack.c.b16 %v5382, %v5381
  %v5404 = vpack.c.b16 %v5384, %v5383
  %v5405 = vpack.c.b16 %v5386, %v5385
  %v5406 = vpack.c.b16 %v5388, %v5387
  %v5407 = vpack.c.b16 %v5390, %v5389
  %v5408 = vpack.c.b16 %v5392, %v5391
  %5425 = vmatprep.subr.bf16.mxu0 0
  %5426 = vmatpush1.bf16.msra.mxu0 %v5400
  %5427 = vmatprep.subr.bf16.mxu0 0
  %5428 = vmatpush1.bf16.msra.mxu0 %v5399
  %5429 = vmatprep.subr.bf16.mxu0 0
  %5430 = vmatpush1.bf16.msra.mxu0 %v5398
  %5431 = vmatprep.subr.bf16.mxu0 0
  %5432 = vmatpush1.bf16.msra.mxu0 %v5397
  %5433 = vmatprep.subr.bf16.mxu0 0
  %5434 = vmatpush1.bf16.msra.mxu0 %v5396
  %5435 = vmatprep.subr.bf16.mxu0 0
  %5436 = vmatpush1.bf16.msra.mxu0 %v5395
  %5437 = vmatprep.subr.bf16.mxu0 0
  %5438 = vmatpush1.bf16.msra.mxu0 %v5394
  %5439 = vmatprep.subr.bf16.mxu0 0
  %5440 = vmatpush1.bf16.msra.mxu0 %v5393
  %5441 = vmatprep.subr.bf16.mxu0 0
  %5442 = vmatpush2.bf16.msra.mxu0 %v5408
  %5443 = vmatprep.subr.bf16.mxu0 0
  %5444 = vmatpush2.bf16.msra.mxu0 %v5407
  %5445 = vmatprep.subr.bf16.mxu0 0
  %5446 = vmatpush2.bf16.msra.mxu0 %v5406
  %5447 = vmatprep.subr.bf16.mxu0 0
  %5448 = vmatpush2.bf16.msra.mxu0 %v5405
  %5449 = vmatprep.subr.bf16.mxu0 0
  %5450 = vmatpush2.bf16.msra.mxu0 %v5404
  %5451 = vmatprep.subr.bf16.mxu0 0
  %5452 = vmatpush2.bf16.msra.mxu0 %v5403
  %5453 = vmatprep.subr.bf16.mxu0 0
  %5454 = vmatpush2.bf16.msra.mxu0 %v5402
  %5455 = vmatprep.subr.bf16.mxu0 0
  %5456 = vmatpush2.bf16.msra.mxu0 %v5401
  %5457 = vmatprep.mubr.bf16.mxu0 %v5259
  %5458 = vmatmul.mubr.bf16.gmra.mxu0 %v5258
  %v5459 = vpop.f32.mrf.mxu0
  %v5460 = vadd.f32 %v5327, %v5459
  %v5461 = vpop.f32.mrf.mxu0
  %v5462 = vpop.f32.mrf.mxu0
  %v5463 = vadd.f32 %v5327, %v5462
  %v5464 = vpop.f32.mrf.mxu0
  %5465 = vmatprep.mubr.bf16.mxu0 %v5261
  %5466 = vmatmul.mubr.bf16.gmra.mxu0 %v5260
  %v5467 = vpop.f32.mrf.mxu0
  %v5468 = vadd.f32 %v5327, %v5467
  %v5469 = vpop.f32.mrf.mxu0
  %v5470 = vpop.f32.mrf.mxu0
  %v5471 = vadd.f32 %v5327, %v5470
  %v5472 = vpop.f32.mrf.mxu0
  %5473 = vmatprep.mubr.bf16.mxu0 %v5263
  %5474 = vmatmul.mubr.bf16.gmra.mxu0 %v5262
  %v5475 = vpop.f32.mrf.mxu0
  %v5476 = vadd.f32 %v5327, %v5475
  %v5477 = vpop.f32.mrf.mxu0
  %v5478 = vpop.f32.mrf.mxu0
  %v5479 = vadd.f32 %v5327, %v5478
  %v5480 = vpop.f32.mrf.mxu0
  %5481 = vmatprep.mubr.bf16.mxu0 %v5265
  %5482 = vmatmul.mubr.bf16.gmra.mxu0 %v5264
  %v5483 = vpop.f32.mrf.mxu0
  %v5484 = vadd.f32 %v5327, %v5483
  %v5485 = vpop.f32.mrf.mxu0
  %v5486 = vpop.f32.mrf.mxu0
  %v5487 = vadd.f32 %v5327, %v5486
  %v5488 = vpop.f32.mrf.mxu0
  %5489 = vmatprep.mubr.bf16.mxu0 %v5267
  %5490 = vmatmul.mubr.bf16.gmra.mxu0 %v5266
  %v5491 = vpop.f32.mrf.mxu0
  %v5492 = vadd.f32 %v5327, %v5491
  %v5493 = vpop.f32.mrf.mxu0
  %v5494 = vpop.f32.mrf.mxu0
  %v5495 = vadd.f32 %v5327, %v5494
  %v5496 = vpop.f32.mrf.mxu0
  %5497 = vmatprep.mubr.bf16.mxu0 %v5269
  %5498 = vmatmul.mubr.bf16.gmra.mxu0 %v5268
  %v5499 = vpop.f32.mrf.mxu0
  %v5500 = vadd.f32 %v5327, %v5499
  %v5501 = vpop.f32.mrf.mxu0
  %v5502 = vpop.f32.mrf.mxu0
  %v5503 = vadd.f32 %v5327, %v5502
  %v5504 = vpop.f32.mrf.mxu0
  %5505 = vmatprep.mubr.bf16.mxu0 %v5271
  %5506 = vmatmul.mubr.bf16.gmra.mxu0 %v5270
  %v5507 = vpop.f32.mrf.mxu0
  %v5508 = vadd.f32 %v5327, %v5507
  %v5509 = vpop.f32.mrf.mxu0
  %v5510 = vpop.f32.mrf.mxu0
  %v5511 = vadd.f32 %v5327, %v5510
  %v5512 = vpop.f32.mrf.mxu0
  %5513 = vmatprep.mubr.bf16.mxu0 %v5273
  %5514 = vmatmul.mubr.bf16.gmra.mxu0 %v5272
  %v5515 = vpop.f32.mrf.mxu0
  %v5516 = vadd.f32 %v5327, %v5515
  %v5517 = vpop.f32.mrf.mxu0
  %v5518 = vpop.f32.mrf.mxu0
  %v5519 = vadd.f32 %v5327, %v5518
  %v5520 = vpop.f32.mrf.mxu0
  %5521 = vmatprep.mubr.bf16.mxu0 %v5275
  %5522 = vmatmul.mubr.bf16.gmra.mxu0 %v5274
  %v5523 = vpop.f32.mrf.mxu0
  %v5524 = vadd.f32 %v5327, %v5523
  %v5525 = vpop.f32.mrf.mxu0
  %v5526 = vpop.f32.mrf.mxu0
  %v5527 = vadd.f32 %v5327, %v5526
  %v5528 = vpop.f32.mrf.mxu0
  %5529 = vmatprep.mubr.bf16.mxu0 %v5277
  %5530 = vmatmul.mubr.bf16.gmra.mxu0 %v5276
  %v5531 = vpop.f32.mrf.mxu0
  %v5532 = vadd.f32 %v5327, %v5531
  %v5533 = vpop.f32.mrf.mxu0
  %v5534 = vpop.f32.mrf.mxu0
  %v5535 = vadd.f32 %v5327, %v5534
  %v5536 = vpop.f32.mrf.mxu0
  %5537 = vmatprep.mubr.bf16.mxu0 %v5279
  %5538 = vmatmul.mubr.bf16.gmra.mxu0 %v5278
  %v5539 = vpop.f32.mrf.mxu0
  %v5540 = vadd.f32 %v5327, %v5539
  %v5541 = vpop.f32.mrf.mxu0
  %v5542 = vpop.f32.mrf.mxu0
  %v5543 = vadd.f32 %v5327, %v5542
  %v5544 = vpop.f32.mrf.mxu0
  %5545 = vmatprep.mubr.bf16.mxu0 %v5281
  %5546 = vmatmul.mubr.bf16.gmra.mxu0 %v5280
  %v5547 = vpop.f32.mrf.mxu0
  %v5548 = vadd.f32 %v5327, %v5547
  %v5549 = vpop.f32.mrf.mxu0
  %v5550 = vpop.f32.mrf.mxu0
  %v5551 = vadd.f32 %v5327, %v5550
  %v5552 = vpop.f32.mrf.mxu0
  %5553 = vmatprep.mubr.bf16.mxu0 %v5283
  %5554 = vmatmul.mubr.bf16.gmra.mxu0 %v5282
  %v5555 = vpop.f32.mrf.mxu0
  %v5556 = vadd.f32 %v5327, %v5555
  %v5557 = vpop.f32.mrf.mxu0
  %v5558 = vpop.f32.mrf.mxu0
  %v5559 = vadd.f32 %v5327, %v5558
  %v5560 = vpop.f32.mrf.mxu0
  %5561 = vmatprep.mubr.bf16.mxu0 %v5285
  %5562 = vmatmul.mubr.bf16.gmra.mxu0 %v5284
  %v5563 = vpop.f32.mrf.mxu0
  %v5564 = vadd.f32 %v5327, %v5563
  %v5565 = vpop.f32.mrf.mxu0
  %v5566 = vpop.f32.mrf.mxu0
  %v5567 = vadd.f32 %v5327, %v5566
  %v5568 = vpop.f32.mrf.mxu0
  %5569 = vmatprep.mubr.bf16.mxu0 %v5287
  %5570 = vmatmul.mubr.bf16.gmra.mxu0 %v5286
  %v5571 = vpop.f32.mrf.mxu0
  %v5572 = vadd.f32 %v5327, %v5571
  %v5573 = vpop.f32.mrf.mxu0
  %v5574 = vpop.f32.mrf.mxu0
  %v5575 = vadd.f32 %v5327, %v5574
  %v5576 = vpop.f32.mrf.mxu0
  %5577 = vmatprep.mubr.bf16.mxu0 %v5289
  %5578 = vmatmul.mubr.bf16.gmra.mxu0 %v5288
  %v5579 = vpop.f32.mrf.mxu0
  %v5580 = vadd.f32 %v5327, %v5579
  %v5581 = vpop.f32.mrf.mxu0
  %v5582 = vpop.f32.mrf.mxu0
  %v5583 = vadd.f32 %v5327, %v5582
  %v5584 = vpop.f32.mrf.mxu0
  %5585 = vdwg.mxu0
  %v5586 = vadd.f32 %v5460, %v4333
  %v5587 = vadd.f32 %v5463, %v4334
  %v5588 = vadd.f32 %v5468, %v4335
  %v5589 = vadd.f32 %v5471, %v4336
  %v5590 = vadd.f32 %v5476, %v4337
  %v5591 = vadd.f32 %v5479, %v4338
  %v5592 = vadd.f32 %v5484, %v4339
  %v5593 = vadd.f32 %v5487, %v4340
  %v5594 = vadd.f32 %v5492, %v4341
  %v5595 = vadd.f32 %v5495, %v4342
  %v5596 = vadd.f32 %v5500, %v4343
  %v5597 = vadd.f32 %v5503, %v4344
  %v5598 = vadd.f32 %v5508, %v4345
  %v5599 = vadd.f32 %v5511, %v4346
  %v5600 = vadd.f32 %v5516, %v4347
  %v5601 = vadd.f32 %v5519, %v4348
  %v5602 = vadd.f32 %v5524, %v4349
  %v5603 = vadd.f32 %v5527, %v4350
  %v5604 = vadd.f32 %v5532, %v4351
  %v5605 = vadd.f32 %v5535, %v4352
  %v5606 = vadd.f32 %v5540, %v4353
  %v5607 = vadd.f32 %v5543, %v4354
  %v5608 = vadd.f32 %v5548, %v4355
  %v5609 = vadd.f32 %v5551, %v4356
  %v5610 = vadd.f32 %v5556, %v4357
  %v5611 = vadd.f32 %v5559, %v4358
  %v5612 = vadd.f32 %v5564, %v4359
  %v5613 = vadd.f32 %v5567, %v4360
  %v5614 = vadd.f32 %v5572, %v4361
  %v5615 = vadd.f32 %v5575, %v4362
  %v5616 = vadd.f32 %v5580, %v4363
  %v5617 = vadd.f32 %v5583, %v4364
  %v5618 = vld [vmem:[%s16] sm:$0x1]
  %v5619 = vld [vmem:[%s17] sm:$0x1]
  %5620 = vadd.xlane.f32.xlu0 %v5586
  %v5621 = vpop.xlane.xlu0 %5620
  %5622 = vadd.xlane.f32.xlu0 %v5587
  %v5623 = vpop.xlane.xlu0 %5622
  %5624 = vadd.xlane.f32.xlu0 %v5588
  %v5625 = vpop.xlane.xlu0 %5624
  %5626 = vadd.xlane.f32.xlu0 %v5589
  %v5627 = vpop.xlane.xlu0 %5626
  %5628 = vadd.xlane.f32.xlu0 %v5590
  %v5629 = vpop.xlane.xlu0 %5628
  %5630 = vadd.xlane.f32.xlu0 %v5591
  %v5631 = vpop.xlane.xlu0 %5630
  %5632 = vadd.xlane.f32.xlu0 %v5592
  %v5633 = vpop.xlane.xlu0 %5632
  %5634 = vadd.xlane.f32.xlu0 %v5593
  %v5635 = vpop.xlane.xlu0 %5634
  %5636 = vadd.xlane.f32.xlu0 %v5594
  %v5637 = vpop.xlane.xlu0 %5636
  %5638 = vadd.xlane.f32.xlu0 %v5595
  %v5639 = vpop.xlane.xlu0 %5638
  %5640 = vadd.xlane.f32.xlu0 %v5596
  %v5641 = vpop.xlane.xlu0 %5640
  %5642 = vadd.xlane.f32.xlu0 %v5597
  %v5643 = vpop.xlane.xlu0 %5642
  %5644 = vadd.xlane.f32.xlu0 %v5598
  %v5645 = vpop.xlane.xlu0 %5644
  %5646 = vadd.xlane.f32.xlu0 %v5599
  %v5647 = vpop.xlane.xlu0 %5646
  %5648 = vadd.xlane.f32.xlu0 %v5600
  %v5649 = vpop.xlane.xlu0 %5648
  %5650 = vadd.xlane.f32.xlu0 %v5601
  %v5651 = vpop.xlane.xlu0 %5650
  %5652 = vadd.xlane.f32.xlu0 %v5602
  %v5653 = vpop.xlane.xlu0 %5652
  %5654 = vadd.xlane.f32.xlu0 %v5603
  %v5655 = vpop.xlane.xlu0 %5654
  %5656 = vadd.xlane.f32.xlu0 %v5604
  %v5657 = vpop.xlane.xlu0 %5656
  %5658 = vadd.xlane.f32.xlu0 %v5605
  %v5659 = vpop.xlane.xlu0 %5658
  %5660 = vadd.xlane.f32.xlu0 %v5606
  %v5661 = vpop.xlane.xlu0 %5660
  %5662 = vadd.xlane.f32.xlu0 %v5607
  %v5663 = vpop.xlane.xlu0 %5662
  %5664 = vadd.xlane.f32.xlu0 %v5608
  %v5665 = vpop.xlane.xlu0 %5664
  %5666 = vadd.xlane.f32.xlu0 %v5609
  %v5667 = vpop.xlane.xlu0 %5666
  %5668 = vadd.xlane.f32.xlu0 %v5610
  %v5669 = vpop.xlane.xlu0 %5668
  %5670 = vadd.xlane.f32.xlu0 %v5611
  %v5671 = vpop.xlane.xlu0 %5670
  %5672 = vadd.xlane.f32.xlu0 %v5612
  %v5673 = vpop.xlane.xlu0 %5672
  %5674 = vadd.xlane.f32.xlu0 %v5613
  %v5675 = vpop.xlane.xlu0 %5674
  %5676 = vadd.xlane.f32.xlu0 %v5614
  %v5677 = vpop.xlane.xlu0 %5676
  %5678 = vadd.xlane.f32.xlu0 %v5615
  %v5679 = vpop.xlane.xlu0 %5678
  %5680 = vadd.xlane.f32.xlu0 %v5616
  %v5681 = vpop.xlane.xlu0 %5680
  %5682 = vadd.xlane.f32.xlu0 %v5617
  %v5683 = vpop.xlane.xlu0 %5682
  %v5684 = vmul.f32 %v5621, %v261
  %v5685 = vmul.f32 %v5623, %v261
  %v5686 = vmul.f32 %v5625, %v261
  %v5687 = vmul.f32 %v5627, %v261
  %v5688 = vmul.f32 %v5629, %v261
  %v5689 = vmul.f32 %v5631, %v261
  %v5690 = vmul.f32 %v5633, %v261
  %v5691 = vmul.f32 %v5635, %v261
  %v5692 = vmul.f32 %v5637, %v261
  %v5693 = vmul.f32 %v5639, %v261
  %v5694 = vmul.f32 %v5641, %v261
  %v5695 = vmul.f32 %v5643, %v261
  %v5696 = vmul.f32 %v5645, %v261
  %v5697 = vmul.f32 %v5647, %v261
  %v5698 = vmul.f32 %v5649, %v261
  %v5699 = vmul.f32 %v5651, %v261
  %v5700 = vmul.f32 %v5653, %v261
  %v5701 = vmul.f32 %v5655, %v261
  %v5702 = vmul.f32 %v5657, %v261
  %v5703 = vmul.f32 %v5659, %v261
  %v5704 = vmul.f32 %v5661, %v261
  %v5705 = vmul.f32 %v5663, %v261
  %v5706 = vmul.f32 %v5665, %v261
  %v5707 = vmul.f32 %v5667, %v261
  %v5708 = vmul.f32 %v5669, %v261
  %v5709 = vmul.f32 %v5671, %v261
  %v5710 = vmul.f32 %v5673, %v261
  %v5711 = vmul.f32 %v5675, %v261
  %v5712 = vmul.f32 %v5677, %v261
  %v5713 = vmul.f32 %v5679, %v261
  %v5714 = vmul.f32 %v5681, %v261
  %v5715 = vmul.f32 %v5683, %v261
  %v5716 = vmul.f32 %v5586, %v5586
  %v5717 = vmul.f32 %v5587, %v5587
  %v5718 = vmul.f32 %v5588, %v5588
  %v5719 = vmul.f32 %v5589, %v5589
  %v5720 = vmul.f32 %v5590, %v5590
  %v5721 = vmul.f32 %v5591, %v5591
  %v5722 = vmul.f32 %v5592, %v5592
  %v5723 = vmul.f32 %v5593, %v5593
  %v5724 = vmul.f32 %v5594, %v5594
  %v5725 = vmul.f32 %v5595, %v5595
  %v5726 = vmul.f32 %v5596, %v5596
  %v5727 = vmul.f32 %v5597, %v5597
  %v5728 = vmul.f32 %v5598, %v5598
  %v5729 = vmul.f32 %v5599, %v5599
  %v5730 = vmul.f32 %v5600, %v5600
  %v5731 = vmul.f32 %v5601, %v5601
  %v5732 = vmul.f32 %v5602, %v5602
  %v5733 = vmul.f32 %v5603, %v5603
  %v5734 = vmul.f32 %v5604, %v5604
  %v5735 = vmul.f32 %v5605, %v5605
  %v5736 = vmul.f32 %v5606, %v5606
  %v5737 = vmul.f32 %v5607, %v5607
  %v5738 = vmul.f32 %v5608, %v5608
  %v5739 = vmul.f32 %v5609, %v5609
  %v5740 = vmul.f32 %v5610, %v5610
  %v5741 = vmul.f32 %v5611, %v5611
  %v5742 = vmul.f32 %v5612, %v5612
  %v5743 = vmul.f32 %v5613, %v5613
  %v5744 = vmul.f32 %v5614, %v5614
  %v5745 = vmul.f32 %v5615, %v5615
  %v5746 = vmul.f32 %v5616, %v5616
  %v5747 = vmul.f32 %v5617, %v5617
  %5748 = vadd.xlane.f32.xlu0 %v5716
  %v5749 = vpop.xlane.xlu0 %5748
  %5750 = vadd.xlane.f32.xlu0 %v5717
  %v5751 = vpop.xlane.xlu0 %5750
  %5752 = vadd.xlane.f32.xlu0 %v5718
  %v5753 = vpop.xlane.xlu0 %5752
  %5754 = vadd.xlane.f32.xlu0 %v5719
  %v5755 = vpop.xlane.xlu0 %5754
  %5756 = vadd.xlane.f32.xlu0 %v5720
  %v5757 = vpop.xlane.xlu0 %5756
  %5758 = vadd.xlane.f32.xlu0 %v5721
  %v5759 = vpop.xlane.xlu0 %5758
  %5760 = vadd.xlane.f32.xlu0 %v5722
  %v5761 = vpop.xlane.xlu0 %5760
  %5762 = vadd.xlane.f32.xlu0 %v5723
  %v5763 = vpop.xlane.xlu0 %5762
  %5764 = vadd.xlane.f32.xlu0 %v5724
  %v5765 = vpop.xlane.xlu0 %5764
  %5766 = vadd.xlane.f32.xlu0 %v5725
  %v5767 = vpop.xlane.xlu0 %5766
  %5768 = vadd.xlane.f32.xlu0 %v5726
  %v5769 = vpop.xlane.xlu0 %5768
  %5770 = vadd.xlane.f32.xlu0 %v5727
  %v5771 = vpop.xlane.xlu0 %5770
  %5772 = vadd.xlane.f32.xlu0 %v5728
  %v5773 = vpop.xlane.xlu0 %5772
  %5774 = vadd.xlane.f32.xlu0 %v5729
  %v5775 = vpop.xlane.xlu0 %5774
  %5776 = vadd.xlane.f32.xlu0 %v5730
  %v5777 = vpop.xlane.xlu0 %5776
  %5778 = vadd.xlane.f32.xlu0 %v5731
  %v5779 = vpop.xlane.xlu0 %5778
  %5780 = vadd.xlane.f32.xlu0 %v5732
  %v5781 = vpop.xlane.xlu0 %5780
  %5782 = vadd.xlane.f32.xlu0 %v5733
  %v5783 = vpop.xlane.xlu0 %5782
  %5784 = vadd.xlane.f32.xlu0 %v5734
  %v5785 = vpop.xlane.xlu0 %5784
  %5786 = vadd.xlane.f32.xlu0 %v5735
  %v5787 = vpop.xlane.xlu0 %5786
  %5788 = vadd.xlane.f32.xlu0 %v5736
  %v5789 = vpop.xlane.xlu0 %5788
  %5790 = vadd.xlane.f32.xlu0 %v5737
  %v5791 = vpop.xlane.xlu0 %5790
  %5792 = vadd.xlane.f32.xlu0 %v5738
  %v5793 = vpop.xlane.xlu0 %5792
  %5794 = vadd.xlane.f32.xlu0 %v5739
  %v5795 = vpop.xlane.xlu0 %5794
  %5796 = vadd.xlane.f32.xlu0 %v5740
  %v5797 = vpop.xlane.xlu0 %5796
  %5798 = vadd.xlane.f32.xlu0 %v5741
  %v5799 = vpop.xlane.xlu0 %5798
  %5800 = vadd.xlane.f32.xlu0 %v5742
  %v5801 = vpop.xlane.xlu0 %5800
  %5802 = vadd.xlane.f32.xlu0 %v5743
  %v5803 = vpop.xlane.xlu0 %5802
  %5804 = vadd.xlane.f32.xlu0 %v5744
  %v5805 = vpop.xlane.xlu0 %5804
  %5806 = vadd.xlane.f32.xlu0 %v5745
  %v5807 = vpop.xlane.xlu0 %5806
  %5808 = vadd.xlane.f32.xlu0 %v5746
  %v5809 = vpop.xlane.xlu0 %5808
  %5810 = vadd.xlane.f32.xlu0 %v5747
  %v5811 = vpop.xlane.xlu0 %5810
  %v5812 = vmul.f32 %v5749, %v261
  %v5813 = vmul.f32 %v5751, %v261
  %v5814 = vmul.f32 %v5753, %v261
  %v5815 = vmul.f32 %v5755, %v261
  %v5816 = vmul.f32 %v5757, %v261
  %v5817 = vmul.f32 %v5759, %v261
  %v5818 = vmul.f32 %v5761, %v261
  %v5819 = vmul.f32 %v5763, %v261
  %v5820 = vmul.f32 %v5765, %v261
  %v5821 = vmul.f32 %v5767, %v261
  %v5822 = vmul.f32 %v5769, %v261
  %v5823 = vmul.f32 %v5771, %v261
  %v5824 = vmul.f32 %v5773, %v261
  %v5825 = vmul.f32 %v5775, %v261
  %v5826 = vmul.f32 %v5777, %v261
  %v5827 = vmul.f32 %v5779, %v261
  %v5828 = vmul.f32 %v5781, %v261
  %v5829 = vmul.f32 %v5783, %v261
  %v5830 = vmul.f32 %v5785, %v261
  %v5831 = vmul.f32 %v5787, %v261
  %v5832 = vmul.f32 %v5789, %v261
  %v5833 = vmul.f32 %v5791, %v261
  %v5834 = vmul.f32 %v5793, %v261
  %v5835 = vmul.f32 %v5795, %v261
  %v5836 = vmul.f32 %v5797, %v261
  %v5837 = vmul.f32 %v5799, %v261
  %v5838 = vmul.f32 %v5801, %v261
  %v5839 = vmul.f32 %v5803, %v261
  %v5840 = vmul.f32 %v5805, %v261
  %v5841 = vmul.f32 %v5807, %v261
  %v5842 = vmul.f32 %v5809, %v261
  %v5843 = vmul.f32 %v5811, %v261
  %v5844 = vmul.f32 %v5684, %v5684
  %v5845 = vmul.f32 %v5685, %v5685
  %v5846 = vmul.f32 %v5686, %v5686
  %v5847 = vmul.f32 %v5687, %v5687
  %v5848 = vmul.f32 %v5688, %v5688
  %v5849 = vmul.f32 %v5689, %v5689
  %v5850 = vmul.f32 %v5690, %v5690
  %v5851 = vmul.f32 %v5691, %v5691
  %v5852 = vmul.f32 %v5692, %v5692
  %v5853 = vmul.f32 %v5693, %v5693
  %v5854 = vmul.f32 %v5694, %v5694
  %v5855 = vmul.f32 %v5695, %v5695
  %v5856 = vmul.f32 %v5696, %v5696
  %v5857 = vmul.f32 %v5697, %v5697
  %v5858 = vmul.f32 %v5698, %v5698
  %v5859 = vmul.f32 %v5699, %v5699
  %v5860 = vmul.f32 %v5700, %v5700
  %v5861 = vmul.f32 %v5701, %v5701
  %v5862 = vmul.f32 %v5702, %v5702
  %v5863 = vmul.f32 %v5703, %v5703
  %v5864 = vmul.f32 %v5704, %v5704
  %v5865 = vmul.f32 %v5705, %v5705
  %v5866 = vmul.f32 %v5706, %v5706
  %v5867 = vmul.f32 %v5707, %v5707
  %v5868 = vmul.f32 %v5708, %v5708
  %v5869 = vmul.f32 %v5709, %v5709
  %v5870 = vmul.f32 %v5710, %v5710
  %v5871 = vmul.f32 %v5711, %v5711
  %v5872 = vmul.f32 %v5712, %v5712
  %v5873 = vmul.f32 %v5713, %v5713
  %v5874 = vmul.f32 %v5714, %v5714
  %v5875 = vmul.f32 %v5715, %v5715
  %v5876 = vsub.f32 %v5812, %v5844
  %v5877 = vsub.f32 %v5813, %v5845
  %v5878 = vsub.f32 %v5814, %v5846
  %v5879 = vsub.f32 %v5815, %v5847
  %v5880 = vsub.f32 %v5816, %v5848
  %v5881 = vsub.f32 %v5817, %v5849
  %v5882 = vsub.f32 %v5818, %v5850
  %v5883 = vsub.f32 %v5819, %v5851
  %v5884 = vsub.f32 %v5820, %v5852
  %v5885 = vsub.f32 %v5821, %v5853
  %v5886 = vsub.f32 %v5822, %v5854
  %v5887 = vsub.f32 %v5823, %v5855
  %v5888 = vsub.f32 %v5824, %v5856
  %v5889 = vsub.f32 %v5825, %v5857
  %v5890 = vsub.f32 %v5826, %v5858
  %v5891 = vsub.f32 %v5827, %v5859
  %v5892 = vsub.f32 %v5828, %v5860
  %v5893 = vsub.f32 %v5829, %v5861
  %v5894 = vsub.f32 %v5830, %v5862
  %v5895 = vsub.f32 %v5831, %v5863
  %v5896 = vsub.f32 %v5832, %v5864
  %v5897 = vsub.f32 %v5833, %v5865
  %v5898 = vsub.f32 %v5834, %v5866
  %v5899 = vsub.f32 %v5835, %v5867
  %v5900 = vsub.f32 %v5836, %v5868
  %v5901 = vsub.f32 %v5837, %v5869
  %v5902 = vsub.f32 %v5838, %v5870
  %v5903 = vsub.f32 %v5839, %v5871
  %v5904 = vsub.f32 %v5840, %v5872
  %v5905 = vsub.f32 %v5841, %v5873
  %v5906 = vsub.f32 %v5842, %v5874
  %v5907 = vsub.f32 %v5843, %v5875
  %v5908 = vsub.f32 %v5586, %v5684
  %v5909 = vsub.f32 %v5587, %v5685
  %v5910 = vsub.f32 %v5588, %v5686
  %v5911 = vsub.f32 %v5589, %v5687
  %v5912 = vsub.f32 %v5590, %v5688
  %v5913 = vsub.f32 %v5591, %v5689
  %v5914 = vsub.f32 %v5592, %v5690
  %v5915 = vsub.f32 %v5593, %v5691
  %v5916 = vsub.f32 %v5594, %v5692
  %v5917 = vsub.f32 %v5595, %v5693
  %v5918 = vsub.f32 %v5596, %v5694
  %v5919 = vsub.f32 %v5597, %v5695
  %v5920 = vsub.f32 %v5598, %v5696
  %v5921 = vsub.f32 %v5599, %v5697
  %v5922 = vsub.f32 %v5600, %v5698
  %v5923 = vsub.f32 %v5601, %v5699
  %v5924 = vsub.f32 %v5602, %v5700
  %v5925 = vsub.f32 %v5603, %v5701
  %v5926 = vsub.f32 %v5604, %v5702
  %v5927 = vsub.f32 %v5605, %v5703
  %v5928 = vsub.f32 %v5606, %v5704
  %v5929 = vsub.f32 %v5607, %v5705
  %v5930 = vsub.f32 %v5608, %v5706
  %v5931 = vsub.f32 %v5609, %v5707
  %v5932 = vsub.f32 %v5610, %v5708
  %v5933 = vsub.f32 %v5611, %v5709
  %v5934 = vsub.f32 %v5612, %v5710
  %v5935 = vsub.f32 %v5613, %v5711
  %v5936 = vsub.f32 %v5614, %v5712
  %v5937 = vsub.f32 %v5615, %v5713
  %v5938 = vsub.f32 %v5616, %v5714
  %v5939 = vsub.f32 %v5617, %v5715
  %v5940 = vadd.f32 %v5876, 1e-12
  %v5941 = vadd.f32 %v5877, 1e-12
  %v5942 = vadd.f32 %v5878, 1e-12
  %v5943 = vadd.f32 %v5879, 1e-12
  %v5944 = vadd.f32 %v5880, 1e-12
  %v5945 = vadd.f32 %v5881, 1e-12
  %v5946 = vadd.f32 %v5882, 1e-12
  %v5947 = vadd.f32 %v5883, 1e-12
  %v5948 = vadd.f32 %v5884, 1e-12
  %v5949 = vadd.f32 %v5885, 1e-12
  %v5950 = vadd.f32 %v5886, 1e-12
  %v5951 = vadd.f32 %v5887, 1e-12
  %v5952 = vadd.f32 %v5888, 1e-12
  %v5953 = vadd.f32 %v5889, 1e-12
  %v5954 = vadd.f32 %v5890, 1e-12
  %v5955 = vadd.f32 %v5891, 1e-12
  %v5956 = vadd.f32 %v5892, 1e-12
  %v5957 = vadd.f32 %v5893, 1e-12
  %v5958 = vadd.f32 %v5894, 1e-12
  %v5959 = vadd.f32 %v5895, 1e-12
  %v5960 = vadd.f32 %v5896, 1e-12
  %v5961 = vadd.f32 %v5897, 1e-12
  %v5962 = vadd.f32 %v5898, 1e-12
  %v5963 = vadd.f32 %v5899, 1e-12
  %v5964 = vadd.f32 %v5900, 1e-12
  %v5965 = vadd.f32 %v5901, 1e-12
  %v5966 = vadd.f32 %v5902, 1e-12
  %v5967 = vadd.f32 %v5903, 1e-12
  %v5968 = vadd.f32 %v5904, 1e-12
  %v5969 = vadd.f32 %v5905, 1e-12
  %v5970 = vadd.f32 %v5906, 1e-12
  %v5971 = vadd.f32 %v5907, 1e-12
  %v5972 = vrsqrt.pop %v5940
  %v5973 = vrsqrt.pop %v5941
  %v5974 = vrsqrt.pop %v5942
  %v5975 = vrsqrt.pop %v5943
  %v5976 = vrsqrt.pop %v5944
  %v5977 = vrsqrt.pop %v5945
  %v5978 = vrsqrt.pop %v5946
  %v5979 = vrsqrt.pop %v5947
  %v5980 = vrsqrt.pop %v5948
  %v5981 = vrsqrt.pop %v5949
  %v5982 = vrsqrt.pop %v5950
  %v5983 = vrsqrt.pop %v5951
  %v5984 = vrsqrt.pop %v5952
  %v5985 = vrsqrt.pop %v5953
  %v5986 = vrsqrt.pop %v5954
  %v5987 = vrsqrt.pop %v5955
  %v5988 = vrsqrt.pop %v5956
  %v5989 = vrsqrt.pop %v5957
  %v5990 = vrsqrt.pop %v5958
  %v5991 = vrsqrt.pop %v5959
  %v5992 = vrsqrt.pop %v5960
  %v5993 = vrsqrt.pop %v5961
  %v5994 = vrsqrt.pop %v5962
  %v5995 = vrsqrt.pop %v5963
  %v5996 = vrsqrt.pop %v5964
  %v5997 = vrsqrt.pop %v5965
  %v5998 = vrsqrt.pop %v5966
  %v5999 = vrsqrt.pop %v5967
  %v6000 = vrsqrt.pop %v5968
  %v6001 = vrsqrt.pop %v5969
  %v6002 = vrsqrt.pop %v5970
  %v6003 = vrsqrt.pop %v5971
  %v6004 = vmul.f32 %v5908, %v5972
  %v6005 = vmul.f32 %v5909, %v5973
  %v6006 = vmul.f32 %v5910, %v5974
  %v6007 = vmul.f32 %v5911, %v5975
  %v6008 = vmul.f32 %v5912, %v5976
  %v6009 = vmul.f32 %v5913, %v5977
  %v6010 = vmul.f32 %v5914, %v5978
  %v6011 = vmul.f32 %v5915, %v5979
  %v6012 = vmul.f32 %v5916, %v5980
  %v6013 = vmul.f32 %v5917, %v5981
  %v6014 = vmul.f32 %v5918, %v5982
  %v6015 = vmul.f32 %v5919, %v5983
  %v6016 = vmul.f32 %v5920, %v5984
  %v6017 = vmul.f32 %v5921, %v5985
  %v6018 = vmul.f32 %v5922, %v5986
  %v6019 = vmul.f32 %v5923, %v5987
  %v6020 = vmul.f32 %v5924, %v5988
  %v6021 = vmul.f32 %v5925, %v5989
  %v6022 = vmul.f32 %v5926, %v5990
  %v6023 = vmul.f32 %v5927, %v5991
  %v6024 = vmul.f32 %v5928, %v5992
  %v6025 = vmul.f32 %v5929, %v5993
  %v6026 = vmul.f32 %v5930, %v5994
  %v6027 = vmul.f32 %v5931, %v5995
  %v6028 = vmul.f32 %v5932, %v5996
  %v6029 = vmul.f32 %v5933, %v5997
  %v6030 = vmul.f32 %v5934, %v5998
  %v6031 = vmul.f32 %v5935, %v5999
  %v6032 = vmul.f32 %v5936, %v6000
  %v6033 = vmul.f32 %v5937, %v6001
  %v6034 = vmul.f32 %v5938, %v6002
  %v6035 = vmul.f32 %v5939, %v6003
  %v6037 = vlaneseq
  %v6038 = vshrl.u32 %v6037, 7
  %v6039 = vsub.s32 0, %v6038
  %v6040 = vrot.slane %v5618, %v6039
  %v6042 = vmul.f32 %v6004, %v6040
  %v6043 = vmul.f32 %v6005, %v6040
  %v6044 = vmul.f32 %v6006, %v6040
  %v6045 = vmul.f32 %v6007, %v6040
  %v6046 = vmul.f32 %v6008, %v6040
  %v6047 = vmul.f32 %v6009, %v6040
  %v6048 = vmul.f32 %v6010, %v6040
  %v6049 = vmul.f32 %v6011, %v6040
  %v6050 = vmul.f32 %v6012, %v6040
  %v6051 = vmul.f32 %v6013, %v6040
  %v6052 = vmul.f32 %v6014, %v6040
  %v6053 = vmul.f32 %v6015, %v6040
  %v6054 = vmul.f32 %v6016, %v6040
  %v6055 = vmul.f32 %v6017, %v6040
  %v6056 = vmul.f32 %v6018, %v6040
  %v6057 = vmul.f32 %v6019, %v6040
  %v6058 = vmul.f32 %v6020, %v6040
  %v6059 = vmul.f32 %v6021, %v6040
  %v6060 = vmul.f32 %v6022, %v6040
  %v6061 = vmul.f32 %v6023, %v6040
  %v6062 = vmul.f32 %v6024, %v6040
  %v6063 = vmul.f32 %v6025, %v6040
  %v6064 = vmul.f32 %v6026, %v6040
  %v6065 = vmul.f32 %v6027, %v6040
  %v6066 = vmul.f32 %v6028, %v6040
  %v6067 = vmul.f32 %v6029, %v6040
  %v6068 = vmul.f32 %v6030, %v6040
  %v6069 = vmul.f32 %v6031, %v6040
  %v6070 = vmul.f32 %v6032, %v6040
  %v6071 = vmul.f32 %v6033, %v6040
  %v6072 = vmul.f32 %v6034, %v6040
  %v6073 = vmul.f32 %v6035, %v6040
  %v6075 = vlaneseq
  %v6076 = vshrl.u32 %v6075, 7
  %v6077 = vsub.s32 0, %v6076
  %v6078 = vrot.slane %v5619, %v6077
  %v6080 = vadd.f32 %v6042, %v6078
  %v6081 = vadd.f32 %v6043, %v6078
  %v6082 = vadd.f32 %v6044, %v6078
  %v6083 = vadd.f32 %v6045, %v6078
  %v6084 = vadd.f32 %v6046, %v6078
  %v6085 = vadd.f32 %v6047, %v6078
  %v6086 = vadd.f32 %v6048, %v6078
  %v6087 = vadd.f32 %v6049, %v6078
  %v6088 = vadd.f32 %v6050, %v6078
  %v6089 = vadd.f32 %v6051, %v6078
  %v6090 = vadd.f32 %v6052, %v6078
  %v6091 = vadd.f32 %v6053, %v6078
  %v6092 = vadd.f32 %v6054, %v6078
  %v6093 = vadd.f32 %v6055, %v6078
  %v6094 = vadd.f32 %v6056, %v6078
  %v6095 = vadd.f32 %v6057, %v6078
  %v6096 = vadd.f32 %v6058, %v6078
  %v6097 = vadd.f32 %v6059, %v6078
  %v6098 = vadd.f32 %v6060, %v6078
  %v6099 = vadd.f32 %v6061, %v6078
  %v6100 = vadd.f32 %v6062, %v6078
  %v6101 = vadd.f32 %v6063, %v6078
  %v6102 = vadd.f32 %v6064, %v6078
  %v6103 = vadd.f32 %v6065, %v6078
  %v6104 = vadd.f32 %v6066, %v6078
  %v6105 = vadd.f32 %v6067, %v6078
  %v6106 = vadd.f32 %v6068, %v6078
  %v6107 = vadd.f32 %v6069, %v6078
  %v6108 = vadd.f32 %v6070, %v6078
  %v6109 = vadd.f32 %v6071, %v6078
  %v6110 = vadd.f32 %v6072, %v6078
  %v6111 = vadd.f32 %v6073, %v6078
  %v6112 = vpack.c.bf16 %v6081, %v6080
  %v6113 = vpack.c.bf16 %v6083, %v6082
  %v6114 = vpack.c.bf16 %v6085, %v6084
  %v6115 = vpack.c.bf16 %v6087, %v6086
  %v6116 = vpack.c.bf16 %v6089, %v6088
  %v6117 = vpack.c.bf16 %v6091, %v6090
  %v6118 = vpack.c.bf16 %v6093, %v6092
  %v6119 = vpack.c.bf16 %v6095, %v6094
  %v6120 = vpack.c.bf16 %v6097, %v6096
  %v6121 = vpack.c.bf16 %v6099, %v6098
  %v6122 = vpack.c.bf16 %v6101, %v6100
  %v6123 = vpack.c.bf16 %v6103, %v6102
  %v6124 = vpack.c.bf16 %v6105, %v6104
  %v6125 = vpack.c.bf16 %v6107, %v6106
  %v6126 = vpack.c.bf16 %v6109, %v6108
  %v6127 = vpack.c.bf16 %v6111, %v6110
  %s6128 = scalar_lea.vmem %s6, 192
  %v6129 = vld [vmem:[%s6128] sm:$0xff]
  %v6130 = vld [vmem:[%s6128 + $0x8] sm:$0xf]
  %v6131 = vld [vmem:[%s6128 + $0xc] sm:$0xff]
  %v6132 = vld [vmem:[%s6128 + $0x14] sm:$0xf]
  %v6133 = vld [vmem:[%s6128 + $0x18] sm:$0xff]
  %v6134 = vld [vmem:[%s6128 + $0x20] sm:$0xf]
  %v6135 = vld [vmem:[%s6128 + $0x24] sm:$0xff]
  %v6136 = vld [vmem:[%s6128 + $0x2c] sm:$0xf]
  %v6137 = vld [vmem:[%s6128 + $0x30] sm:$0xff]
  %v6138 = vld [vmem:[%s6128 + $0x38] sm:$0xf]
  %v6139 = vld [vmem:[%s6128 + $0x3c] sm:$0xff]
  %v6140 = vld [vmem:[%s6128 + $0x44] sm:$0xf]
  %v6141 = vld [vmem:[%s6128 + $0x48] sm:$0xff]
  %v6142 = vld [vmem:[%s6128 + $0x50] sm:$0xf]
  %v6143 = vld [vmem:[%s6128 + $0x54] sm:$0xff]
  %v6144 = vld [vmem:[%s6128 + $0x5c] sm:$0xf]
  %v6145 = vld [vmem:[%s6128 + $0x60] sm:$0xff]
  %v6146 = vld [vmem:[%s6128 + $0x68] sm:$0xf]
  %v6147 = vld [vmem:[%s6128 + $0x6c] sm:$0xff]
  %v6148 = vld [vmem:[%s6128 + $0x74] sm:$0xf]
  %v6149 = vld [vmem:[%s6128 + $0x78] sm:$0xff]
  %v6150 = vld [vmem:[%s6128 + $0x80] sm:$0xf]
  %v6151 = vld [vmem:[%s6128 + $0x84] sm:$0xff]
  %v6152 = vld [vmem:[%s6128 + $0x8c] sm:$0xf]
  %v6153 = vld [vmem:[%s6128 + $0x90] sm:$0xff]
  %v6154 = vld [vmem:[%s6128 + $0x98] sm:$0xf]
  %v6155 = vld [vmem:[%s6128 + $0x9c] sm:$0xff]
  %v6156 = vld [vmem:[%s6128 + $0xa4] sm:$0xf]
  %v6157 = vld [vmem:[%s6128 + $0xa8] sm:$0xff]
  %v6158 = vld [vmem:[%s6128 + $0xb0] sm:$0xf]
  %v6159 = vld [vmem:[%s6128 + $0xb4] sm:$0xff]
  %v6160 = vld [vmem:[%s6128 + $0xbc] sm:$0xf]
  %s6161 = scalar_lea.vmem %s7, 3
  %v6162 = vld [vmem:[%s6161] sm:$0x7]
  %v6164 = vlaneseq
  %v6165 = vshrl.u32 %v6164, 7
  %v6166 = vsub.s32 0, %v6165
  %v6167 = vrot.slane %v6162, %v6166
  %v6168 = vlaneseq
  %v6169 = vshrl.u32 %v6168, 7
  %v6170 = vsub.s32 1, %v6169
  %v6171 = vrot.slane %v6162, %v6170
  %v6172 = vlaneseq
  %v6173 = vshrl.u32 %v6172, 7
  %v6174 = vsub.s32 2, %v6173
  %v6175 = vrot.slane %v6162, %v6174
  %v6211 = vunpack.c.l.b16 %v6129
  %v6212 = vunpack.c.h.b16 %v6129
  %v6213 = vunpack.c.l.b16 %v6130
  %v6214 = vunpack.c.l.b16 %v6131
  %v6215 = vunpack.c.h.b16 %v6131
  %v6216 = vunpack.c.l.b16 %v6132
  %v6217 = vunpack.c.l.b16 %v6133
  %v6218 = vunpack.c.h.b16 %v6133
  %v6219 = vunpack.c.l.b16 %v6134
  %v6220 = vunpack.c.l.b16 %v6135
  %v6221 = vunpack.c.h.b16 %v6135
  %v6222 = vunpack.c.l.b16 %v6136
  %v6223 = vunpack.c.l.b16 %v6137
  %v6224 = vunpack.c.h.b16 %v6137
  %v6225 = vunpack.c.l.b16 %v6138
  %v6226 = vunpack.c.l.b16 %v6139
  %v6227 = vunpack.c.h.b16 %v6139
  %v6228 = vunpack.c.l.b16 %v6140
  %v6229 = vunpack.c.l.b16 %v6141
  %v6230 = vunpack.c.h.b16 %v6141
  %v6231 = vunpack.c.l.b16 %v6142
  %v6232 = vunpack.c.l.b16 %v6143
  %v6233 = vunpack.c.h.b16 %v6143
  %v6234 = vunpack.c.l.b16 %v6144
  %v6235 = vunpack.c.l.b16 %v6145
  %v6236 = vunpack.c.h.b16 %v6145
  %v6237 = vunpack.c.l.b16 %v6146
  %v6238 = vunpack.c.l.b16 %v6147
  %v6239 = vunpack.c.h.b16 %v6147
  %v6240 = vunpack.c.l.b16 %v6148
  %v6241 = vunpack.c.l.b16 %v6149
  %v6242 = vunpack.c.h.b16 %v6149
  %v6243 = vunpack.c.l.b16 %v6150
  %v6244 = vunpack.c.l.b16 %v6151
  %v6245 = vunpack.c.h.b16 %v6151
  %v6246 = vunpack.c.l.b16 %v6152
  %v6247 = vunpack.c.l.b16 %v6153
  %v6248 = vunpack.c.h.b16 %v6153
  %v6249 = vunpack.c.l.b16 %v6154
  %v6250 = vunpack.c.l.b16 %v6155
  %v6251 = vunpack.c.h.b16 %v6155
  %v6252 = vunpack.c.l.b16 %v6156
  %v6253 = vunpack.c.l.b16 %v6157
  %v6254 = vunpack.c.h.b16 %v6157
  %v6255 = vunpack.c.l.b16 %v6158
  %v6256 = vunpack.c.l.b16 %v6159
  %v6257 = vunpack.c.h.b16 %v6159
  %v6258 = vunpack.c.l.b16 %v6160
  %v6259 = vpack.c.b16 %v6214, %v6211
  %v6260 = vpack.c.b16 %v6215, %v6212
  %v6261 = vpack.c.b16 %v6216, %v6213
  %v6262 = vpack.c.b16 %v6220, %v6217
  %v6263 = vpack.c.b16 %v6221, %v6218
  %v6264 = vpack.c.b16 %v6222, %v6219
  %v6265 = vpack.c.b16 %v6226, %v6223
  %v6266 = vpack.c.b16 %v6227, %v6224
  %v6267 = vpack.c.b16 %v6228, %v6225
  %v6268 = vpack.c.b16 %v6232, %v6229
  %v6269 = vpack.c.b16 %v6233, %v6230
  %v6270 = vpack.c.b16 %v6234, %v6231
  %v6271 = vpack.c.b16 %v6238, %v6235
  %v6272 = vpack.c.b16 %v6239, %v6236
  %v6273 = vpack.c.b16 %v6240, %v6237
  %v6274 = vpack.c.b16 %v6244, %v6241
  %v6275 = vpack.c.b16 %v6245, %v6242
  %v6276 = vpack.c.b16 %v6246, %v6243
  %v6277 = vpack.c.b16 %v6250, %v6247
  %v6278 = vpack.c.b16 %v6251, %v6248
  %v6279 = vpack.c.b16 %v6252, %v6249
  %v6280 = vpack.c.b16 %v6256, %v6253
  %v6281 = vpack.c.b16 %v6257, %v6254
  %v6282 = vpack.c.b16 %v6258, %v6255
  %6307 = vmatprep.subr.bf16.mxu0 %v6281
  %6308 = vmatpush1.bf16.msra.mxu0 %v6280
  %6309 = vmatprep.subr.bf16.mxu0 %v6278
  %6310 = vmatpush1.bf16.msra.mxu0 %v6277
  %6311 = vmatprep.subr.bf16.mxu0 %v6275
  %6312 = vmatpush1.bf16.msra.mxu0 %v6274
  %6313 = vmatprep.subr.bf16.mxu0 %v6272
  %6314 = vmatpush1.bf16.msra.mxu0 %v6271
  %6315 = vmatprep.subr.bf16.mxu0 %v6269
  %6316 = vmatpush1.bf16.msra.mxu0 %v6268
  %6317 = vmatprep.subr.bf16.mxu0 %v6266
  %6318 = vmatpush1.bf16.msra.mxu0 %v6265
  %6319 = vmatprep.subr.bf16.mxu0 %v6263
  %6320 = vmatpush1.bf16.msra.mxu0 %v6262
  %6321 = vmatprep.subr.bf16.mxu0 %v6260
  %6322 = vmatpush1.bf16.msra.mxu0 %v6259
  %6323 = vmatprep.subr.bf16.mxu0 0
  %6324 = vmatpush2.bf16.msra.mxu0 0
  %6325 = vmatprep.subr.bf16.mxu0 0
  %6326 = vmatpush2.bf16.msra.mxu0 0
  %6327 = vmatprep.subr.bf16.mxu0 0
  %6328 = vmatpush2.bf16.msra.mxu0 0
  %6329 = vmatprep.subr.bf16.mxu0 0
  %6330 = vmatpush2.bf16.msra.mxu0 0
  %6331 = vmatprep.subr.bf16.mxu0 0
  %6332 = vmatpush2.bf16.msra.mxu0 0
  %6333 = vmatprep.subr.bf16.mxu0 0
  %6334 = vmatpush2.bf16.msra.mxu0 0
  %6335 = vmatprep.subr.bf16.mxu0 0
  %6336 = vmatpush2.bf16.msra.mxu0 0
  %6337 = vmatprep.subr.bf16.mxu0 0
  %6338 = vmatpush2.bf16.msra.mxu0 0
  %6339 = vmatprep.mubr.bf16.mxu0 0
  %6340 = vmatmul.mubr.bf16.gmra.mxu0 %v6112
  %v6341 = vpop.f32.mrf.mxu0
  %v6342 = vadd.f32 %v6167, %v6341
  %v6343 = vpop.f32.mrf.mxu0
  %v6344 = vadd.f32 %v6171, %v6343
  %v6345 = vpop.f32.mrf.mxu0
  %v6346 = vadd.f32 %v6167, %v6345
  %v6347 = vpop.f32.mrf.mxu0
  %v6348 = vadd.f32 %v6171, %v6347
  %6349 = vmatprep.mubr.bf16.mxu0 0
  %6350 = vmatmul.mubr.bf16.gmra.mxu0 %v6113
  %v6351 = vpop.f32.mrf.mxu0
  %v6352 = vadd.f32 %v6167, %v6351
  %v6353 = vpop.f32.mrf.mxu0
  %v6354 = vadd.f32 %v6171, %v6353
  %v6355 = vpop.f32.mrf.mxu0
  %v6356 = vadd.f32 %v6167, %v6355
  %v6357 = vpop.f32.mrf.mxu0
  %v6358 = vadd.f32 %v6171, %v6357
  %6359 = vmatprep.mubr.bf16.mxu0 0
  %6360 = vmatmul.mubr.bf16.gmra.mxu0 %v6114
  %v6361 = vpop.f32.mrf.mxu0
  %v6362 = vadd.f32 %v6167, %v6361
  %v6363 = vpop.f32.mrf.mxu0
  %v6364 = vadd.f32 %v6171, %v6363
  %v6365 = vpop.f32.mrf.mxu0
  %v6366 = vadd.f32 %v6167, %v6365
  %v6367 = vpop.f32.mrf.mxu0
  %v6368 = vadd.f32 %v6171, %v6367
  %6369 = vmatprep.mubr.bf16.mxu0 0
  %6370 = vmatmul.mubr.bf16.gmra.mxu0 %v6115
  %v6371 = vpop.f32.mrf.mxu0
  %v6372 = vadd.f32 %v6167, %v6371
  %v6373 = vpop.f32.mrf.mxu0
  %v6374 = vadd.f32 %v6171, %v6373
  %v6375 = vpop.f32.mrf.mxu0
  %v6376 = vadd.f32 %v6167, %v6375
  %v6377 = vpop.f32.mrf.mxu0
  %v6378 = vadd.f32 %v6171, %v6377
  %6379 = vmatprep.mubr.bf16.mxu0 0
  %6380 = vmatmul.mubr.bf16.gmra.mxu0 %v6116
  %v6381 = vpop.f32.mrf.mxu0
  %v6382 = vadd.f32 %v6167, %v6381
  %v6383 = vpop.f32.mrf.mxu0
  %v6384 = vadd.f32 %v6171, %v6383
  %v6385 = vpop.f32.mrf.mxu0
  %v6386 = vadd.f32 %v6167, %v6385
  %v6387 = vpop.f32.mrf.mxu0
  %v6388 = vadd.f32 %v6171, %v6387
  %6389 = vmatprep.mubr.bf16.mxu0 0
  %6390 = vmatmul.mubr.bf16.gmra.mxu0 %v6117
  %v6391 = vpop.f32.mrf.mxu0
  %v6392 = vadd.f32 %v6167, %v6391
  %v6393 = vpop.f32.mrf.mxu0
  %v6394 = vadd.f32 %v6171, %v6393
  %v6395 = vpop.f32.mrf.mxu0
  %v6396 = vadd.f32 %v6167, %v6395
  %v6397 = vpop.f32.mrf.mxu0
  %v6398 = vadd.f32 %v6171, %v6397
  %6399 = vmatprep.mubr.bf16.mxu0 0
  %6400 = vmatmul.mubr.bf16.gmra.mxu0 %v6118
  %v6401 = vpop.f32.mrf.mxu0
  %v6402 = vadd.f32 %v6167, %v6401
  %v6403 = vpop.f32.mrf.mxu0
  %v6404 = vadd.f32 %v6171, %v6403
  %v6405 = vpop.f32.mrf.mxu0
  %v6406 = vadd.f32 %v6167, %v6405
  %v6407 = vpop.f32.mrf.mxu0
  %v6408 = vadd.f32 %v6171, %v6407
  %6409 = vmatprep.mubr.bf16.mxu0 0
  %6410 = vmatmul.mubr.bf16.gmra.mxu0 %v6119
  %v6411 = vpop.f32.mrf.mxu0
  %v6412 = vadd.f32 %v6167, %v6411
  %v6413 = vpop.f32.mrf.mxu0
  %v6414 = vadd.f32 %v6171, %v6413
  %v6415 = vpop.f32.mrf.mxu0
  %v6416 = vadd.f32 %v6167, %v6415
  %v6417 = vpop.f32.mrf.mxu0
  %v6418 = vadd.f32 %v6171, %v6417
  %6419 = vmatprep.mubr.bf16.mxu0 0
  %6420 = vmatmul.mubr.bf16.gmra.mxu0 %v6120
  %v6421 = vpop.f32.mrf.mxu0
  %v6422 = vadd.f32 %v6167, %v6421
  %v6423 = vpop.f32.mrf.mxu0
  %v6424 = vadd.f32 %v6171, %v6423
  %v6425 = vpop.f32.mrf.mxu0
  %v6426 = vadd.f32 %v6167, %v6425
  %v6427 = vpop.f32.mrf.mxu0
  %v6428 = vadd.f32 %v6171, %v6427
  %6429 = vmatprep.mubr.bf16.mxu0 0
  %6430 = vmatmul.mubr.bf16.gmra.mxu0 %v6121
  %v6431 = vpop.f32.mrf.mxu0
  %v6432 = vadd.f32 %v6167, %v6431
  %v6433 = vpop.f32.mrf.mxu0
  %v6434 = vadd.f32 %v6171, %v6433
  %v6435 = vpop.f32.mrf.mxu0
  %v6436 = vadd.f32 %v6167, %v6435
  %v6437 = vpop.f32.mrf.mxu0
  %v6438 = vadd.f32 %v6171, %v6437
  %6439 = vmatprep.mubr.bf16.mxu0 0
  %6440 = vmatmul.mubr.bf16.gmra.mxu0 %v6122
  %v6441 = vpop.f32.mrf.mxu0
  %v6442 = vadd.f32 %v6167, %v6441
  %v6443 = vpop.f32.mrf.mxu0
  %v6444 = vadd.f32 %v6171, %v6443
  %v6445 = vpop.f32.mrf.mxu0
  %v6446 = vadd.f32 %v6167, %v6445
  %v6447 = vpop.f32.mrf.mxu0
  %v6448 = vadd.f32 %v6171, %v6447
  %6449 = vmatprep.mubr.bf16.mxu0 0
  %6450 = vmatmul.mubr.bf16.gmra.mxu0 %v6123
  %v6451 = vpop.f32.mrf.mxu0
  %v6452 = vadd.f32 %v6167, %v6451
  %v6453 = vpop.f32.mrf.mxu0
  %v6454 = vadd.f32 %v6171, %v6453
  %v6455 = vpop.f32.mrf.mxu0
  %v6456 = vadd.f32 %v6167, %v6455
  %v6457 = vpop.f32.mrf.mxu0
  %v6458 = vadd.f32 %v6171, %v6457
  %6459 = vmatprep.mubr.bf16.mxu0 0
  %6460 = vmatmul.mubr.bf16.gmra.mxu0 %v6124
  %v6461 = vpop.f32.mrf.mxu0
  %v6462 = vadd.f32 %v6167, %v6461
  %v6463 = vpop.f32.mrf.mxu0
  %v6464 = vadd.f32 %v6171, %v6463
  %v6465 = vpop.f32.mrf.mxu0
  %v6466 = vadd.f32 %v6167, %v6465
  %v6467 = vpop.f32.mrf.mxu0
  %v6468 = vadd.f32 %v6171, %v6467
  %6469 = vmatprep.mubr.bf16.mxu0 0
  %6470 = vmatmul.mubr.bf16.gmra.mxu0 %v6125
  %v6471 = vpop.f32.mrf.mxu0
  %v6472 = vadd.f32 %v6167, %v6471
  %v6473 = vpop.f32.mrf.mxu0
  %v6474 = vadd.f32 %v6171, %v6473
  %v6475 = vpop.f32.mrf.mxu0
  %v6476 = vadd.f32 %v6167, %v6475
  %v6477 = vpop.f32.mrf.mxu0
  %v6478 = vadd.f32 %v6171, %v6477
  %6479 = vmatprep.mubr.bf16.mxu0 0
  %6480 = vmatmul.mubr.bf16.gmra.mxu0 %v6126
  %v6481 = vpop.f32.mrf.mxu0
  %v6482 = vadd.f32 %v6167, %v6481
  %v6483 = vpop.f32.mrf.mxu0
  %v6484 = vadd.f32 %v6171, %v6483
  %v6485 = vpop.f32.mrf.mxu0
  %v6486 = vadd.f32 %v6167, %v6485
  %v6487 = vpop.f32.mrf.mxu0
  %v6488 = vadd.f32 %v6171, %v6487
  %6489 = vmatprep.mubr.bf16.mxu0 0
  %6490 = vmatmul.mubr.bf16.gmra.mxu0 %v6127
  %v6491 = vpop.f32.mrf.mxu0
  %v6492 = vadd.f32 %v6167, %v6491
  %v6493 = vpop.f32.mrf.mxu0
  %v6494 = vadd.f32 %v6171, %v6493
  %v6495 = vpop.f32.mrf.mxu0
  %v6496 = vadd.f32 %v6167, %v6495
  %v6497 = vpop.f32.mrf.mxu0
  %v6498 = vadd.f32 %v6171, %v6497
  %6499 = vdwg.mxu0
  %6500 = vmatprep.subr.bf16.mxu0 0
  %6501 = vmatpush1.bf16.msra.mxu0 %v6282
  %6502 = vmatprep.subr.bf16.mxu0 0
  %6503 = vmatpush1.bf16.msra.mxu0 %v6279
  %6504 = vmatprep.subr.bf16.mxu0 0
  %6505 = vmatpush1.bf16.msra.mxu0 %v6276
  %6506 = vmatprep.subr.bf16.mxu0 0
  %6507 = vmatpush1.bf16.msra.mxu0 %v6273
  %6508 = vmatprep.subr.bf16.mxu0 0
  %6509 = vmatpush1.bf16.msra.mxu0 %v6270
  %6510 = vmatprep.subr.bf16.mxu0 0
  %6511 = vmatpush1.bf16.msra.mxu0 %v6267
  %6512 = vmatprep.subr.bf16.mxu0 0
  %6513 = vmatpush1.bf16.msra.mxu0 %v6264
  %6514 = vmatprep.subr.bf16.mxu0 0
  %6515 = vmatpush1.bf16.msra.mxu0 %v6261
  %6516 = vmatprep.subr.bf16.mxu0 0
  %6517 = vmatpush2.bf16.msra.mxu0 0
  %6518 = vmatprep.subr.bf16.mxu0 0
  %6519 = vmatpush2.bf16.msra.mxu0 0
  %6520 = vmatprep.subr.bf16.mxu0 0
  %6521 = vmatpush2.bf16.msra.mxu0 0
  %6522 = vmatprep.subr.bf16.mxu0 0
  %6523 = vmatpush2.bf16.msra.mxu0 0
  %6524 = vmatprep.subr.bf16.mxu0 0
  %6525 = vmatpush2.bf16.msra.mxu0 0
  %6526 = vmatprep.subr.bf16.mxu0 0
  %6527 = vmatpush2.bf16.msra.mxu0 0
  %6528 = vmatprep.subr.bf16.mxu0 0
  %6529 = vmatpush2.bf16.msra.mxu0 0
  %6530 = vmatprep.subr.bf16.mxu0 0
  %6531 = vmatpush2.bf16.msra.mxu0 0
  %6532 = vmatprep.mubr.bf16.mxu0 0
  %6533 = vmatmul.mubr.bf16.gmra.mxu0 %v6112
  %v6534 = vpop.f32.mrf.mxu0
  %v6535 = vadd.f32 %v6175, %v6534
  %v6536 = vpop.f32.mrf.mxu0
  %v6537 = vpop.f32.mrf.mxu0
  %v6538 = vadd.f32 %v6175, %v6537
  %v6539 = vpop.f32.mrf.mxu0
  %6540 = vmatprep.mubr.bf16.mxu0 0
  %6541 = vmatmul.mubr.bf16.gmra.mxu0 %v6113
  %v6542 = vpop.f32.mrf.mxu0
  %v6543 = vadd.f32 %v6175, %v6542
  %v6544 = vpop.f32.mrf.mxu0
  %v6545 = vpop.f32.mrf.mxu0
  %v6546 = vadd.f32 %v6175, %v6545
  %v6547 = vpop.f32.mrf.mxu0
  %6548 = vmatprep.mubr.bf16.mxu0 0
  %6549 = vmatmul.mubr.bf16.gmra.mxu0 %v6114
  %v6550 = vpop.f32.mrf.mxu0
  %v6551 = vadd.f32 %v6175, %v6550
  %v6552 = vpop.f32.mrf.mxu0
  %v6553 = vpop.f32.mrf.mxu0
  %v6554 = vadd.f32 %v6175, %v6553
  %v6555 = vpop.f32.mrf.mxu0
  %6556 = vmatprep.mubr.bf16.mxu0 0
  %6557 = vmatmul.mubr.bf16.gmra.mxu0 %v6115
  %v6558 = vpop.f32.mrf.mxu0
  %v6559 = vadd.f32 %v6175, %v6558
  %v6560 = vpop.f32.mrf.mxu0
  %v6561 = vpop.f32.mrf.mxu0
  %v6562 = vadd.f32 %v6175, %v6561
  %v6563 = vpop.f32.mrf.mxu0
  %6564 = vmatprep.mubr.bf16.mxu0 0
  %6565 = vmatmul.mubr.bf16.gmra.mxu0 %v6116
  %v6566 = vpop.f32.mrf.mxu0
  %v6567 = vadd.f32 %v6175, %v6566
  %v6568 = vpop.f32.mrf.mxu0
  %v6569 = vpop.f32.mrf.mxu0
  %v6570 = vadd.f32 %v6175, %v6569
  %v6571 = vpop.f32.mrf.mxu0
  %6572 = vmatprep.mubr.bf16.mxu0 0
  %6573 = vmatmul.mubr.bf16.gmra.mxu0 %v6117
  %v6574 = vpop.f32.mrf.mxu0
  %v6575 = vadd.f32 %v6175, %v6574
  %v6576 = vpop.f32.mrf.mxu0
  %v6577 = vpop.f32.mrf.mxu0
  %v6578 = vadd.f32 %v6175, %v6577
  %v6579 = vpop.f32.mrf.mxu0
  %6580 = vmatprep.mubr.bf16.mxu0 0
  %6581 = vmatmul.mubr.bf16.gmra.mxu0 %v6118
  %v6582 = vpop.f32.mrf.mxu0
  %v6583 = vadd.f32 %v6175, %v6582
  %v6584 = vpop.f32.mrf.mxu0
  %v6585 = vpop.f32.mrf.mxu0
  %v6586 = vadd.f32 %v6175, %v6585
  %v6587 = vpop.f32.mrf.mxu0
  %6588 = vmatprep.mubr.bf16.mxu0 0
  %6589 = vmatmul.mubr.bf16.gmra.mxu0 %v6119
  %v6590 = vpop.f32.mrf.mxu0
  %v6591 = vadd.f32 %v6175, %v6590
  %v6592 = vpop.f32.mrf.mxu0
  %v6593 = vpop.f32.mrf.mxu0
  %v6594 = vadd.f32 %v6175, %v6593
  %v6595 = vpop.f32.mrf.mxu0
  %6596 = vmatprep.mubr.bf16.mxu0 0
  %6597 = vmatmul.mubr.bf16.gmra.mxu0 %v6120
  %v6598 = vpop.f32.mrf.mxu0
  %v6599 = vadd.f32 %v6175, %v6598
  %v6600 = vpop.f32.mrf.mxu0
  %v6601 = vpop.f32.mrf.mxu0
  %v6602 = vadd.f32 %v6175, %v6601
  %v6603 = vpop.f32.mrf.mxu0
  %6604 = vmatprep.mubr.bf16.mxu0 0
  %6605 = vmatmul.mubr.bf16.gmra.mxu0 %v6121
  %v6606 = vpop.f32.mrf.mxu0
  %v6607 = vadd.f32 %v6175, %v6606
  %v6608 = vpop.f32.mrf.mxu0
  %v6609 = vpop.f32.mrf.mxu0
  %v6610 = vadd.f32 %v6175, %v6609
  %v6611 = vpop.f32.mrf.mxu0
  %6612 = vmatprep.mubr.bf16.mxu0 0
  %6613 = vmatmul.mubr.bf16.gmra.mxu0 %v6122
  %v6614 = vpop.f32.mrf.mxu0
  %v6615 = vadd.f32 %v6175, %v6614
  %v6616 = vpop.f32.mrf.mxu0
  %v6617 = vpop.f32.mrf.mxu0
  %v6618 = vadd.f32 %v6175, %v6617
  %v6619 = vpop.f32.mrf.mxu0
  %6620 = vmatprep.mubr.bf16.mxu0 0
  %6621 = vmatmul.mubr.bf16.gmra.mxu0 %v6123
  %v6622 = vpop.f32.mrf.mxu0
  %v6623 = vadd.f32 %v6175, %v6622
  %v6624 = vpop.f32.mrf.mxu0
  %v6625 = vpop.f32.mrf.mxu0
  %v6626 = vadd.f32 %v6175, %v6625
  %v6627 = vpop.f32.mrf.mxu0
  %6628 = vmatprep.mubr.bf16.mxu0 0
  %6629 = vmatmul.mubr.bf16.gmra.mxu0 %v6124
  %v6630 = vpop.f32.mrf.mxu0
  %v6631 = vadd.f32 %v6175, %v6630
  %v6632 = vpop.f32.mrf.mxu0
  %v6633 = vpop.f32.mrf.mxu0
  %v6634 = vadd.f32 %v6175, %v6633
  %v6635 = vpop.f32.mrf.mxu0
  %6636 = vmatprep.mubr.bf16.mxu0 0
  %6637 = vmatmul.mubr.bf16.gmra.mxu0 %v6125
  %v6638 = vpop.f32.mrf.mxu0
  %v6639 = vadd.f32 %v6175, %v6638
  %v6640 = vpop.f32.mrf.mxu0
  %v6641 = vpop.f32.mrf.mxu0
  %v6642 = vadd.f32 %v6175, %v6641
  %v6643 = vpop.f32.mrf.mxu0
  %6644 = vmatprep.mubr.bf16.mxu0 0
  %6645 = vmatmul.mubr.bf16.gmra.mxu0 %v6126
  %v6646 = vpop.f32.mrf.mxu0
  %v6647 = vadd.f32 %v6175, %v6646
  %v6648 = vpop.f32.mrf.mxu0
  %v6649 = vpop.f32.mrf.mxu0
  %v6650 = vadd.f32 %v6175, %v6649
  %v6651 = vpop.f32.mrf.mxu0
  %6652 = vmatprep.mubr.bf16.mxu0 0
  %6653 = vmatmul.mubr.bf16.gmra.mxu0 %v6127
  %v6654 = vpop.f32.mrf.mxu0
  %v6655 = vadd.f32 %v6175, %v6654
  %v6656 = vpop.f32.mrf.mxu0
  %v6657 = vpop.f32.mrf.mxu0
  %v6658 = vadd.f32 %v6175, %v6657
  %v6659 = vpop.f32.mrf.mxu0
  %6660 = vdwg.mxu0
  %v6661 = vpack.c.bf16 %v6346, %v6342
  %v6662 = vpack.c.bf16 %v6356, %v6352
  %v6663 = vpack.c.bf16 %v6366, %v6362
  %v6664 = vpack.c.bf16 %v6376, %v6372
  %v6665 = vpack.c.bf16 %v6386, %v6382
  %v6666 = vpack.c.bf16 %v6396, %v6392
  %v6667 = vpack.c.bf16 %v6406, %v6402
  %v6668 = vpack.c.bf16 %v6416, %v6412
  %v6669 = vpack.c.bf16 %v6348, %v6344
  %v6670 = vpack.c.bf16 %v6358, %v6354
  %v6671 = vpack.c.bf16 %v6368, %v6364
  %v6672 = vpack.c.bf16 %v6378, %v6374
  %v6673 = vpack.c.bf16 %v6388, %v6384
  %v6674 = vpack.c.bf16 %v6398, %v6394
  %v6675 = vpack.c.bf16 %v6408, %v6404
  %v6676 = vpack.c.bf16 %v6418, %v6414
  %v6677 = vpack.c.bf16 %v6538, %v6535
  %v6678 = vpack.c.bf16 %v6546, %v6543
  %v6679 = vpack.c.bf16 %v6554, %v6551
  %v6680 = vpack.c.bf16 %v6562, %v6559
  %v6681 = vpack.c.bf16 %v6570, %v6567
  %v6682 = vpack.c.bf16 %v6578, %v6575
  %v6683 = vpack.c.bf16 %v6586, %v6583
  %v6684 = vpack.c.bf16 %v6594, %v6591
  %v6686 = vsel %vm1261, %v6661, 0
  %v6689 = vsel %vm1261, %v6662, 0
  %v6692 = vsel %vm1261, %v6663, 0
  %v6695 = vsel %vm1261, %v6664, 0
  %v6698 = vsel %vm1261, %v6665, 0
  %v6701 = vsel %vm1261, %v6666, 0
  %v6704 = vsel %vm1261, %v6667, 0
  %v6707 = vsel %vm1261, %v6668, 0
  %v6710 = vsel %vm1261, %v6669, 0
  %v6713 = vsel %vm1261, %v6670, 0
  %v6716 = vsel %vm1261, %v6671, 0
  %v6719 = vsel %vm1261, %v6672, 0
  %v6722 = vsel %vm1261, %v6673, 0
  %v6725 = vsel %vm1261, %v6674, 0
  %v6728 = vsel %vm1261, %v6675, 0
  %v6731 = vsel %vm1261, %v6676, 0
  %6733 = vmatprep.subr.bf16.mxu0 0
  %6734 = vmatpush1.bf16.xpose.msra.mxu0 %v6731
  %6735 = vmatprep.subr.bf16.mxu0 0
  %6736 = vmatpush1.bf16.xpose.msra.mxu0 %v6728
  %6737 = vmatprep.subr.bf16.mxu0 0
  %6738 = vmatpush1.bf16.xpose.msra.mxu0 %v6725
  %6739 = vmatprep.subr.bf16.mxu0 0
  %6740 = vmatpush1.bf16.xpose.msra.mxu0 %v6722
  %6741 = vmatprep.subr.bf16.mxu0 0
  %6742 = vmatpush1.bf16.xpose.msra.mxu0 %v6719
  %6743 = vmatprep.subr.bf16.mxu0 0
  %6744 = vmatpush1.bf16.xpose.msra.mxu0 %v6716
  %6745 = vmatprep.subr.bf16.mxu0 0
  %6746 = vmatpush1.bf16.xpose.msra.mxu0 %v6713
  %6747 = vmatprep.subr.bf16.mxu0 0
  %6748 = vmatpush1.bf16.xpose.msra.mxu0 %v6710
  %6749 = vmatprep.subr.bf16.mxu0 0
  %6750 = vmatpush2.bf16.xpose.msra.mxu0 0
  %6751 = vmatprep.subr.bf16.mxu0 0
  %6752 = vmatpush2.bf16.xpose.msra.mxu0 0
  %6753 = vmatprep.subr.bf16.mxu0 0
  %6754 = vmatpush2.bf16.xpose.msra.mxu0 0
  %6755 = vmatprep.subr.bf16.mxu0 0
  %6756 = vmatpush2.bf16.xpose.msra.mxu0 0
  %6757 = vmatprep.subr.bf16.mxu0 0
  %6758 = vmatpush2.bf16.xpose.msra.mxu0 0
  %6759 = vmatprep.subr.bf16.mxu0 0
  %6760 = vmatpush2.bf16.xpose.msra.mxu0 0
  %6761 = vmatprep.subr.bf16.mxu0 0
  %6762 = vmatpush2.bf16.xpose.msra.mxu0 0
  %6763 = vmatprep.subr.bf16.mxu0 0
  %6764 = vmatpush2.bf16.xpose.msra.mxu0 0
  %6765 = vmatprep.mubr.bf16.mxu0 0
  %6766 = vmatmul.mubr.bf16.gmra.mxu0 %v6686
  %v6767 = vpop.f32.mrf.mxu0
  %v6768 = vadd.f32 0.0, %v6767
  %v6769 = vpop.f32.mrf.mxu0
  %v6770 = vpop.f32.mrf.mxu0
  %v6771 = vadd.f32 0.0, %v6770
  %v6772 = vpop.f32.mrf.mxu0
  %6773 = vmatprep.mubr.bf16.mxu0 0
  %6774 = vmatmul.mubr.bf16.gmra.mxu0 %v6689
  %v6775 = vpop.f32.mrf.mxu0
  %v6776 = vadd.f32 0.0, %v6775
  %v6777 = vpop.f32.mrf.mxu0
  %v6778 = vpop.f32.mrf.mxu0
  %v6779 = vadd.f32 0.0, %v6778
  %v6780 = vpop.f32.mrf.mxu0
  %6781 = vmatprep.mubr.bf16.mxu0 0
  %6782 = vmatmul.mubr.bf16.gmra.mxu0 %v6692
  %v6783 = vpop.f32.mrf.mxu0
  %v6784 = vadd.f32 0.0, %v6783
  %v6785 = vpop.f32.mrf.mxu0
  %v6786 = vpop.f32.mrf.mxu0
  %v6787 = vadd.f32 0.0, %v6786
  %v6788 = vpop.f32.mrf.mxu0
  %6789 = vmatprep.mubr.bf16.mxu0 0
  %6790 = vmatmul.mubr.bf16.gmra.mxu0 %v6695
  %v6791 = vpop.f32.mrf.mxu0
  %v6792 = vadd.f32 0.0, %v6791
  %v6793 = vpop.f32.mrf.mxu0
  %v6794 = vpop.f32.mrf.mxu0
  %v6795 = vadd.f32 0.0, %v6794
  %v6796 = vpop.f32.mrf.mxu0
  %6797 = vmatprep.mubr.bf16.mxu0 0
  %6798 = vmatmul.mubr.bf16.gmra.mxu0 %v6698
  %v6799 = vpop.f32.mrf.mxu0
  %v6800 = vadd.f32 0.0, %v6799
  %v6801 = vpop.f32.mrf.mxu0
  %v6802 = vpop.f32.mrf.mxu0
  %v6803 = vadd.f32 0.0, %v6802
  %v6804 = vpop.f32.mrf.mxu0
  %6805 = vmatprep.mubr.bf16.mxu0 0
  %6806 = vmatmul.mubr.bf16.gmra.mxu0 %v6701
  %v6807 = vpop.f32.mrf.mxu0
  %v6808 = vadd.f32 0.0, %v6807
  %v6809 = vpop.f32.mrf.mxu0
  %v6810 = vpop.f32.mrf.mxu0
  %v6811 = vadd.f32 0.0, %v6810
  %v6812 = vpop.f32.mrf.mxu0
  %6813 = vmatprep.mubr.bf16.mxu0 0
  %6814 = vmatmul.mubr.bf16.gmra.mxu0 %v6704
  %v6815 = vpop.f32.mrf.mxu0
  %v6816 = vadd.f32 0.0, %v6815
  %v6817 = vpop.f32.mrf.mxu0
  %v6818 = vpop.f32.mrf.mxu0
  %v6819 = vadd.f32 0.0, %v6818
  %v6820 = vpop.f32.mrf.mxu0
  %6821 = vmatprep.mubr.bf16.mxu0 0
  %6822 = vmatmul.mubr.bf16.gmra.mxu0 %v6707
  %v6823 = vpop.f32.mrf.mxu0
  %v6824 = vadd.f32 0.0, %v6823
  %v6825 = vpop.f32.mrf.mxu0
  %v6826 = vpop.f32.mrf.mxu0
  %v6827 = vadd.f32 0.0, %v6826
  %v6828 = vpop.f32.mrf.mxu0
  %6829 = vdwg.mxu0
  %v6830 = vmul.f32 %v6768, 0.125
  %v6831 = vmul.f32 %v6771, 0.125
  %v6832 = vmul.f32 %v6776, 0.125
  %v6833 = vmul.f32 %v6779, 0.125
  %v6834 = vmul.f32 %v6784, 0.125
  %v6835 = vmul.f32 %v6787, 0.125
  %v6836 = vmul.f32 %v6792, 0.125
  %v6837 = vmul.f32 %v6795, 0.125
  %v6838 = vmul.f32 %v6800, 0.125
  %v6839 = vmul.f32 %v6803, 0.125
  %v6840 = vmul.f32 %v6808, 0.125
  %v6841 = vmul.f32 %v6811, 0.125
  %v6842 = vmul.f32 %v6816, 0.125
  %v6843 = vmul.f32 %v6819, 0.125
  %v6844 = vmul.f32 %v6824, 0.125
  %v6845 = vmul.f32 %v6827, 0.125
  %v6846 = vadd.f32 %v6830, %v1426
  %v6847 = vadd.f32 %v6831, %v1426
  %v6848 = vadd.f32 %v6832, %v1426
  %v6849 = vadd.f32 %v6833, %v1426
  %v6850 = vadd.f32 %v6834, %v1426
  %v6851 = vadd.f32 %v6835, %v1426
  %v6852 = vadd.f32 %v6836, %v1426
  %v6853 = vadd.f32 %v6837, %v1426
  %v6854 = vadd.f32 %v6838, %v1426
  %v6855 = vadd.f32 %v6839, %v1426
  %v6856 = vadd.f32 %v6840, %v1426
  %v6857 = vadd.f32 %v6841, %v1426
  %v6858 = vadd.f32 %v6842, %v1426
  %v6859 = vadd.f32 %v6843, %v1426
  %v6860 = vadd.f32 %v6844, %v1426
  %v6861 = vadd.f32 %v6845, %v1426
  %6862 = vmax.xlane.f32.xlu0 %v6846
  %v6863 = vpop.xlane.xlu0 %6862
  %6864 = vmax.xlane.f32.xlu0 %v6847
  %v6865 = vpop.xlane.xlu0 %6864
  %6866 = vmax.xlane.f32.xlu0 %v6848
  %v6867 = vpop.xlane.xlu0 %6866
  %6868 = vmax.xlane.f32.xlu0 %v6849
  %v6869 = vpop.xlane.xlu0 %6868
  %6870 = vmax.xlane.f32.xlu0 %v6850
  %v6871 = vpop.xlane.xlu0 %6870
  %6872 = vmax.xlane.f32.xlu0 %v6851
  %v6873 = vpop.xlane.xlu0 %6872
  %6874 = vmax.xlane.f32.xlu0 %v6852
  %v6875 = vpop.xlane.xlu0 %6874
  %6876 = vmax.xlane.f32.xlu0 %v6853
  %v6877 = vpop.xlane.xlu0 %6876
  %6878 = vmax.xlane.f32.xlu0 %v6854
  %v6879 = vpop.xlane.xlu0 %6878
  %6880 = vmax.xlane.f32.xlu0 %v6855
  %v6881 = vpop.xlane.xlu0 %6880
  %6882 = vmax.xlane.f32.xlu0 %v6856
  %v6883 = vpop.xlane.xlu0 %6882
  %6884 = vmax.xlane.f32.xlu0 %v6857
  %v6885 = vpop.xlane.xlu0 %6884
  %6886 = vmax.xlane.f32.xlu0 %v6858
  %v6887 = vpop.xlane.xlu0 %6886
  %6888 = vmax.xlane.f32.xlu0 %v6859
  %v6889 = vpop.xlane.xlu0 %6888
  %6890 = vmax.xlane.f32.xlu0 %v6860
  %v6891 = vpop.xlane.xlu0 %6890
  %6892 = vmax.xlane.f32.xlu0 %v6861
  %v6893 = vpop.xlane.xlu0 %6892
  %v6894 = vsub.f32 %v6846, %v6863
  %v6895 = vsub.f32 %v6847, %v6865
  %v6896 = vsub.f32 %v6848, %v6867
  %v6897 = vsub.f32 %v6849, %v6869
  %v6898 = vsub.f32 %v6850, %v6871
  %v6899 = vsub.f32 %v6851, %v6873
  %v6900 = vsub.f32 %v6852, %v6875
  %v6901 = vsub.f32 %v6853, %v6877
  %v6902 = vsub.f32 %v6854, %v6879
  %v6903 = vsub.f32 %v6855, %v6881
  %v6904 = vsub.f32 %v6856, %v6883
  %v6905 = vsub.f32 %v6857, %v6885
  %v6906 = vsub.f32 %v6858, %v6887
  %v6907 = vsub.f32 %v6859, %v6889
  %v6908 = vsub.f32 %v6860, %v6891
  %v6909 = vsub.f32 %v6861, %v6893
  %v6910 = vmul.f32 %v6894, 1.442695
  %v6911 = vpow.pop %v6910
  %v6912 = vmul.f32 %v6895, 1.442695
  %v6913 = vpow.pop %v6912
  %v6914 = vmul.f32 %v6896, 1.442695
  %v6915 = vpow.pop %v6914
  %v6916 = vmul.f32 %v6897, 1.442695
  %v6917 = vpow.pop %v6916
  %v6918 = vmul.f32 %v6898, 1.442695
  %v6919 = vpow.pop %v6918
  %v6920 = vmul.f32 %v6899, 1.442695
  %v6921 = vpow.pop %v6920
  %v6922 = vmul.f32 %v6900, 1.442695
  %v6923 = vpow.pop %v6922
  %v6924 = vmul.f32 %v6901, 1.442695
  %v6925 = vpow.pop %v6924
  %v6926 = vmul.f32 %v6902, 1.442695
  %v6927 = vpow.pop %v6926
  %v6928 = vmul.f32 %v6903, 1.442695
  %v6929 = vpow.pop %v6928
  %v6930 = vmul.f32 %v6904, 1.442695
  %v6931 = vpow.pop %v6930
  %v6932 = vmul.f32 %v6905, 1.442695
  %v6933 = vpow.pop %v6932
  %v6934 = vmul.f32 %v6906, 1.442695
  %v6935 = vpow.pop %v6934
  %v6936 = vmul.f32 %v6907, 1.442695
  %v6937 = vpow.pop %v6936
  %v6938 = vmul.f32 %v6908, 1.442695
  %v6939 = vpow.pop %v6938
  %v6940 = vmul.f32 %v6909, 1.442695
  %v6941 = vpow.pop %v6940
  %v6943 = vsel %vm1261, %v6677, 1065369472
  %v6946 = vsel %vm1261, %v6678, 1065369472
  %v6949 = vsel %vm1261, %v6679, 1065369472
  %v6952 = vsel %vm1261, %v6680, 1065369472
  %v6955 = vsel %vm1261, %v6681, 1065369472
  %v6958 = vsel %vm1261, %v6682, 1065369472
  %v6961 = vsel %vm1261, %v6683, 1065369472
  %v6964 = vsel %vm1261, %v6684, 1065369472
  %v6966 = vpack.c.bf16 %v6913, %v6911
  %v6967 = vpack.c.bf16 %v6917, %v6915
  %v6968 = vpack.c.bf16 %v6921, %v6919
  %v6969 = vpack.c.bf16 %v6925, %v6923
  %v6970 = vpack.c.bf16 %v6929, %v6927
  %v6971 = vpack.c.bf16 %v6933, %v6931
  %v6972 = vpack.c.bf16 %v6937, %v6935
  %v6973 = vpack.c.bf16 %v6941, %v6939
  %6974 = vmatprep.subr.bf16.mxu0 0
  %6975 = vmatpush1.bf16.msra.mxu0 %v6964
  %6976 = vmatprep.subr.bf16.mxu0 0
  %6977 = vmatpush1.bf16.msra.mxu0 %v6961
  %6978 = vmatprep.subr.bf16.mxu0 0
  %6979 = vmatpush1.bf16.msra.mxu0 %v6958
  %6980 = vmatprep.subr.bf16.mxu0 0
  %6981 = vmatpush1.bf16.msra.mxu0 %v6955
  %6982 = vmatprep.subr.bf16.mxu0 0
  %6983 = vmatpush1.bf16.msra.mxu0 %v6952
  %6984 = vmatprep.subr.bf16.mxu0 0
  %6985 = vmatpush1.bf16.msra.mxu0 %v6949
  %6986 = vmatprep.subr.bf16.mxu0 0
  %6987 = vmatpush1.bf16.msra.mxu0 %v6946
  %6988 = vmatprep.subr.bf16.mxu0 0
  %6989 = vmatpush1.bf16.msra.mxu0 %v6943
  %6990 = vmatprep.subr.bf16.mxu0 0
  %6991 = vmatpush2.bf16.msra.mxu0 0
  %6992 = vmatprep.subr.bf16.mxu0 0
  %6993 = vmatpush2.bf16.msra.mxu0 0
  %6994 = vmatprep.subr.bf16.mxu0 0
  %6995 = vmatpush2.bf16.msra.mxu0 0
  %6996 = vmatprep.subr.bf16.mxu0 0
  %6997 = vmatpush2.bf16.msra.mxu0 0
  %6998 = vmatprep.subr.bf16.mxu0 0
  %6999 = vmatpush2.bf16.msra.mxu0 0
  %7000 = vmatprep.subr.bf16.mxu0 0
  %7001 = vmatpush2.bf16.msra.mxu0 0
  %7002 = vmatprep.subr.bf16.mxu0 0
  %7003 = vmatpush2.bf16.msra.mxu0 0
  %7004 = vmatprep.subr.bf16.mxu0 0
  %7005 = vmatpush2.bf16.msra.mxu0 0
  %7006 = vmatprep.mubr.bf16.mxu0 0
  %7007 = vmatmul.mubr.bf16.gmra.mxu0 %v6966
  %v7008 = vpop.f32.mrf.mxu0
  %v7009 = vadd.f32 0.0, %v7008
  %v7010 = vpop.f32.mrf.mxu0
  %v7011 = vpop.f32.mrf.mxu0
  %v7012 = vadd.f32 0.0, %v7011
  %v7013 = vpop.f32.mrf.mxu0
  %7014 = vmatprep.mubr.bf16.mxu0 0
  %7015 = vmatmul.mubr.bf16.gmra.mxu0 %v6967
  %v7016 = vpop.f32.mrf.mxu0
  %v7017 = vadd.f32 0.0, %v7016
  %v7018 = vpop.f32.mrf.mxu0
  %v7019 = vpop.f32.mrf.mxu0
  %v7020 = vadd.f32 0.0, %v7019
  %v7021 = vpop.f32.mrf.mxu0
  %7022 = vmatprep.mubr.bf16.mxu0 0
  %7023 = vmatmul.mubr.bf16.gmra.mxu0 %v6968
  %v7024 = vpop.f32.mrf.mxu0
  %v7025 = vadd.f32 0.0, %v7024
  %v7026 = vpop.f32.mrf.mxu0
  %v7027 = vpop.f32.mrf.mxu0
  %v7028 = vadd.f32 0.0, %v7027
  %v7029 = vpop.f32.mrf.mxu0
  %7030 = vmatprep.mubr.bf16.mxu0 0
  %7031 = vmatmul.mubr.bf16.gmra.mxu0 %v6969
  %v7032 = vpop.f32.mrf.mxu0
  %v7033 = vadd.f32 0.0, %v7032
  %v7034 = vpop.f32.mrf.mxu0
  %v7035 = vpop.f32.mrf.mxu0
  %v7036 = vadd.f32 0.0, %v7035
  %v7037 = vpop.f32.mrf.mxu0
  %7038 = vmatprep.mubr.bf16.mxu0 0
  %7039 = vmatmul.mubr.bf16.gmra.mxu0 %v6970
  %v7040 = vpop.f32.mrf.mxu0
  %v7041 = vadd.f32 0.0, %v7040
  %v7042 = vpop.f32.mrf.mxu0
  %v7043 = vpop.f32.mrf.mxu0
  %v7044 = vadd.f32 0.0, %v7043
  %v7045 = vpop.f32.mrf.mxu0
  %7046 = vmatprep.mubr.bf16.mxu0 0
  %7047 = vmatmul.mubr.bf16.gmra.mxu0 %v6971
  %v7048 = vpop.f32.mrf.mxu0
  %v7049 = vadd.f32 0.0, %v7048
  %v7050 = vpop.f32.mrf.mxu0
  %v7051 = vpop.f32.mrf.mxu0
  %v7052 = vadd.f32 0.0, %v7051
  %v7053 = vpop.f32.mrf.mxu0
  %7054 = vmatprep.mubr.bf16.mxu0 0
  %7055 = vmatmul.mubr.bf16.gmra.mxu0 %v6972
  %v7056 = vpop.f32.mrf.mxu0
  %v7057 = vadd.f32 0.0, %v7056
  %v7058 = vpop.f32.mrf.mxu0
  %v7059 = vpop.f32.mrf.mxu0
  %v7060 = vadd.f32 0.0, %v7059
  %v7061 = vpop.f32.mrf.mxu0
  %7062 = vmatprep.mubr.bf16.mxu0 0
  %7063 = vmatmul.mubr.bf16.gmra.mxu0 %v6973
  %v7064 = vpop.f32.mrf.mxu0
  %v7065 = vadd.f32 0.0, %v7064
  %v7066 = vpop.f32.mrf.mxu0
  %v7067 = vpop.f32.mrf.mxu0
  %v7068 = vadd.f32 0.0, %v7067
  %v7069 = vpop.f32.mrf.mxu0
  %7070 = vdwg.mxu0
  %v7071 = vrcp.pop %v7009
  %v7072 = vrcp.pop %v7012
  %v7073 = vrcp.pop %v7017
  %v7074 = vrcp.pop %v7020
  %v7075 = vrcp.pop %v7025
  %v7076 = vrcp.pop %v7028
  %v7077 = vrcp.pop %v7033
  %v7078 = vrcp.pop %v7036
  %v7079 = vrcp.pop %v7041
  %v7080 = vrcp.pop %v7044
  %v7081 = vrcp.pop %v7049
  %v7082 = vrcp.pop %v7052
  %v7083 = vrcp.pop %v7057
  %v7084 = vrcp.pop %v7060
  %v7085 = vrcp.pop %v7065
  %v7086 = vrcp.pop %v7068
  %7088 = vset.pattern.permute.xlu0 64
  %7089 = vperm.xlu0 %7088, %v7071
  %v7090 = vpop.permute.xlu0 %7089
  %7093 = vset.pattern.permute.xlu0 64
  %7094 = vperm.xlu0 %7093, %v7072
  %v7095 = vpop.permute.xlu0 %7094
  %7098 = vset.pattern.permute.xlu0 64
  %7099 = vperm.xlu0 %7098, %v7073
  %v7100 = vpop.permute.xlu0 %7099
  %7103 = vset.pattern.permute.xlu0 64
  %7104 = vperm.xlu0 %7103, %v7074
  %v7105 = vpop.permute.xlu0 %7104
  %7108 = vset.pattern.permute.xlu0 64
  %7109 = vperm.xlu0 %7108, %v7075
  %v7110 = vpop.permute.xlu0 %7109
  %7113 = vset.pattern.permute.xlu0 64
  %7114 = vperm.xlu0 %7113, %v7076
  %v7115 = vpop.permute.xlu0 %7114
  %7118 = vset.pattern.permute.xlu0 64
  %7119 = vperm.xlu0 %7118, %v7077
  %v7120 = vpop.permute.xlu0 %7119
  %7123 = vset.pattern.permute.xlu0 64
  %7124 = vperm.xlu0 %7123, %v7078
  %v7125 = vpop.permute.xlu0 %7124
  %7128 = vset.pattern.permute.xlu0 64
  %7129 = vperm.xlu0 %7128, %v7079
  %v7130 = vpop.permute.xlu0 %7129
  %7133 = vset.pattern.permute.xlu0 64
  %7134 = vperm.xlu0 %7133, %v7080
  %v7135 = vpop.permute.xlu0 %7134
  %7138 = vset.pattern.permute.xlu0 64
  %7139 = vperm.xlu0 %7138, %v7081
  %v7140 = vpop.permute.xlu0 %7139
  %7143 = vset.pattern.permute.xlu0 64
  %7144 = vperm.xlu0 %7143, %v7082
  %v7145 = vpop.permute.xlu0 %7144
  %7148 = vset.pattern.permute.xlu0 64
  %7149 = vperm.xlu0 %7148, %v7083
  %v7150 = vpop.permute.xlu0 %7149
  %7153 = vset.pattern.permute.xlu0 64
  %7154 = vperm.xlu0 %7153, %v7084
  %v7155 = vpop.permute.xlu0 %7154
  %7158 = vset.pattern.permute.xlu0 64
  %7159 = vperm.xlu0 %7158, %v7085
  %v7160 = vpop.permute.xlu0 %7159
  %7163 = vset.pattern.permute.xlu0 64
  %7164 = vperm.xlu0 %7163, %v7086
  %v7165 = vpop.permute.xlu0 %7164
  %v7167 = vmul.f32 %v7009, %v7090
  %v7168 = vmul.f32 %v7012, %v7095
  %v7169 = vmul.f32 %v7017, %v7100
  %v7170 = vmul.f32 %v7020, %v7105
  %v7171 = vmul.f32 %v7025, %v7110
  %v7172 = vmul.f32 %v7028, %v7115
  %v7173 = vmul.f32 %v7033, %v7120
  %v7174 = vmul.f32 %v7036, %v7125
  %v7175 = vmul.f32 %v7041, %v7130
  %v7176 = vmul.f32 %v7044, %v7135
  %v7177 = vmul.f32 %v7049, %v7140
  %v7178 = vmul.f32 %v7052, %v7145
  %v7179 = vmul.f32 %v7057, %v7150
  %v7180 = vmul.f32 %v7060, %v7155
  %v7181 = vmul.f32 %v7065, %v7160
  %v7182 = vmul.f32 %v7068, %v7165
  %7191 = vrot.lane.b32.xlu0 %v6661, 64
  %v7192 = vpop.permute.xlu0 %7191
  %7193 = vrot.lane.b32.xlu0 %v6662, 64
  %v7194 = vpop.permute.xlu0 %7193
  %7195 = vrot.lane.b32.xlu0 %v6663, 64
  %v7196 = vpop.permute.xlu0 %7195
  %7197 = vrot.lane.b32.xlu0 %v6664, 64
  %v7198 = vpop.permute.xlu0 %7197
  %7199 = vrot.lane.b32.xlu0 %v6665, 64
  %v7200 = vpop.permute.xlu0 %7199
  %7201 = vrot.lane.b32.xlu0 %v6666, 64
  %v7202 = vpop.permute.xlu0 %7201
  %7203 = vrot.lane.b32.xlu0 %v6667, 64
  %v7204 = vpop.permute.xlu0 %7203
  %7205 = vrot.lane.b32.xlu0 %v6668, 64
  %v7206 = vpop.permute.xlu0 %7205
  %7215 = vrot.lane.b32.xlu0 %v6669, 64
  %v7216 = vpop.permute.xlu0 %7215
  %7217 = vrot.lane.b32.xlu0 %v6670, 64
  %v7218 = vpop.permute.xlu0 %7217
  %7219 = vrot.lane.b32.xlu0 %v6671, 64
  %v7220 = vpop.permute.xlu0 %7219
  %7221 = vrot.lane.b32.xlu0 %v6672, 64
  %v7222 = vpop.permute.xlu0 %7221
  %7223 = vrot.lane.b32.xlu0 %v6673, 64
  %v7224 = vpop.permute.xlu0 %7223
  %7225 = vrot.lane.b32.xlu0 %v6674, 64
  %v7226 = vpop.permute.xlu0 %7225
  %7227 = vrot.lane.b32.xlu0 %v6675, 64
  %v7228 = vpop.permute.xlu0 %7227
  %7229 = vrot.lane.b32.xlu0 %v6676, 64
  %v7230 = vpop.permute.xlu0 %7229
  %v7232 = vsel %vm1261, %v7192, 0
  %v7235 = vsel %vm1261, %v7194, 0
  %v7238 = vsel %vm1261, %v7196, 0
  %v7241 = vsel %vm1261, %v7198, 0
  %v7244 = vsel %vm1261, %v7200, 0
  %v7247 = vsel %vm1261, %v7202, 0
  %v7250 = vsel %vm1261, %v7204, 0
  %v7253 = vsel %vm1261, %v7206, 0
  %v7256 = vsel %vm1261, %v7216, 0
  %v7259 = vsel %vm1261, %v7218, 0
  %v7262 = vsel %vm1261, %v7220, 0
  %v7265 = vsel %vm1261, %v7222, 0
  %v7268 = vsel %vm1261, %v7224, 0
  %v7271 = vsel %vm1261, %v7226, 0
  %v7274 = vsel %vm1261, %v7228, 0
  %v7277 = vsel %vm1261, %v7230, 0
  %7279 = vmatprep.subr.bf16.mxu0 0
  %7280 = vmatpush1.bf16.xpose.msra.mxu0 %v7277
  %7281 = vmatprep.subr.bf16.mxu0 0
  %7282 = vmatpush1.bf16.xpose.msra.mxu0 %v7274
  %7283 = vmatprep.subr.bf16.mxu0 0
  %7284 = vmatpush1.bf16.xpose.msra.mxu0 %v7271
  %7285 = vmatprep.subr.bf16.mxu0 0
  %7286 = vmatpush1.bf16.xpose.msra.mxu0 %v7268
  %7287 = vmatprep.subr.bf16.mxu0 0
  %7288 = vmatpush1.bf16.xpose.msra.mxu0 %v7265
  %7289 = vmatprep.subr.bf16.mxu0 0
  %7290 = vmatpush1.bf16.xpose.msra.mxu0 %v7262
  %7291 = vmatprep.subr.bf16.mxu0 0
  %7292 = vmatpush1.bf16.xpose.msra.mxu0 %v7259
  %7293 = vmatprep.subr.bf16.mxu0 0
  %7294 = vmatpush1.bf16.xpose.msra.mxu0 %v7256
  %7295 = vmatprep.subr.bf16.mxu0 0
  %7296 = vmatpush2.bf16.xpose.msra.mxu0 0
  %7297 = vmatprep.subr.bf16.mxu0 0
  %7298 = vmatpush2.bf16.xpose.msra.mxu0 0
  %7299 = vmatprep.subr.bf16.mxu0 0
  %7300 = vmatpush2.bf16.xpose.msra.mxu0 0
  %7301 = vmatprep.subr.bf16.mxu0 0
  %7302 = vmatpush2.bf16.xpose.msra.mxu0 0
  %7303 = vmatprep.subr.bf16.mxu0 0
  %7304 = vmatpush2.bf16.xpose.msra.mxu0 0
  %7305 = vmatprep.subr.bf16.mxu0 0
  %7306 = vmatpush2.bf16.xpose.msra.mxu0 0
  %7307 = vmatprep.subr.bf16.mxu0 0
  %7308 = vmatpush2.bf16.xpose.msra.mxu0 0
  %7309 = vmatprep.subr.bf16.mxu0 0
  %7310 = vmatpush2.bf16.xpose.msra.mxu0 0
  %7311 = vmatprep.mubr.bf16.mxu0 0
  %7312 = vmatmul.mubr.bf16.gmra.mxu0 %v7232
  %v7313 = vpop.f32.mrf.mxu0
  %v7314 = vadd.f32 0.0, %v7313
  %v7315 = vpop.f32.mrf.mxu0
  %v7316 = vpop.f32.mrf.mxu0
  %v7317 = vadd.f32 0.0, %v7316
  %v7318 = vpop.f32.mrf.mxu0
  %7319 = vmatprep.mubr.bf16.mxu0 0
  %7320 = vmatmul.mubr.bf16.gmra.mxu0 %v7235
  %v7321 = vpop.f32.mrf.mxu0
  %v7322 = vadd.f32 0.0, %v7321
  %v7323 = vpop.f32.mrf.mxu0
  %v7324 = vpop.f32.mrf.mxu0
  %v7325 = vadd.f32 0.0, %v7324
  %v7326 = vpop.f32.mrf.mxu0
  %7327 = vmatprep.mubr.bf16.mxu0 0
  %7328 = vmatmul.mubr.bf16.gmra.mxu0 %v7238
  %v7329 = vpop.f32.mrf.mxu0
  %v7330 = vadd.f32 0.0, %v7329
  %v7331 = vpop.f32.mrf.mxu0
  %v7332 = vpop.f32.mrf.mxu0
  %v7333 = vadd.f32 0.0, %v7332
  %v7334 = vpop.f32.mrf.mxu0
  %7335 = vmatprep.mubr.bf16.mxu0 0
  %7336 = vmatmul.mubr.bf16.gmra.mxu0 %v7241
  %v7337 = vpop.f32.mrf.mxu0
  %v7338 = vadd.f32 0.0, %v7337
  %v7339 = vpop.f32.mrf.mxu0
  %v7340 = vpop.f32.mrf.mxu0
  %v7341 = vadd.f32 0.0, %v7340
  %v7342 = vpop.f32.mrf.mxu0
  %7343 = vmatprep.mubr.bf16.mxu0 0
  %7344 = vmatmul.mubr.bf16.gmra.mxu0 %v7244
  %v7345 = vpop.f32.mrf.mxu0
  %v7346 = vadd.f32 0.0, %v7345
  %v7347 = vpop.f32.mrf.mxu0
  %v7348 = vpop.f32.mrf.mxu0
  %v7349 = vadd.f32 0.0, %v7348
  %v7350 = vpop.f32.mrf.mxu0
  %7351 = vmatprep.mubr.bf16.mxu0 0
  %7352 = vmatmul.mubr.bf16.gmra.mxu0 %v7247
  %v7353 = vpop.f32.mrf.mxu0
  %v7354 = vadd.f32 0.0, %v7353
  %v7355 = vpop.f32.mrf.mxu0
  %v7356 = vpop.f32.mrf.mxu0
  %v7357 = vadd.f32 0.0, %v7356
  %v7358 = vpop.f32.mrf.mxu0
  %7359 = vmatprep.mubr.bf16.mxu0 0
  %7360 = vmatmul.mubr.bf16.gmra.mxu0 %v7250
  %v7361 = vpop.f32.mrf.mxu0
  %v7362 = vadd.f32 0.0, %v7361
  %v7363 = vpop.f32.mrf.mxu0
  %v7364 = vpop.f32.mrf.mxu0
  %v7365 = vadd.f32 0.0, %v7364
  %v7366 = vpop.f32.mrf.mxu0
  %7367 = vmatprep.mubr.bf16.mxu0 0
  %7368 = vmatmul.mubr.bf16.gmra.mxu0 %v7253
  %v7369 = vpop.f32.mrf.mxu0
  %v7370 = vadd.f32 0.0, %v7369
  %v7371 = vpop.f32.mrf.mxu0
  %v7372 = vpop.f32.mrf.mxu0
  %v7373 = vadd.f32 0.0, %v7372
  %v7374 = vpop.f32.mrf.mxu0
  %7375 = vdwg.mxu0
  %v7376 = vmul.f32 %v7314, 0.125
  %v7377 = vmul.f32 %v7317, 0.125
  %v7378 = vmul.f32 %v7322, 0.125
  %v7379 = vmul.f32 %v7325, 0.125
  %v7380 = vmul.f32 %v7330, 0.125
  %v7381 = vmul.f32 %v7333, 0.125
  %v7382 = vmul.f32 %v7338, 0.125
  %v7383 = vmul.f32 %v7341, 0.125
  %v7384 = vmul.f32 %v7346, 0.125
  %v7385 = vmul.f32 %v7349, 0.125
  %v7386 = vmul.f32 %v7354, 0.125
  %v7387 = vmul.f32 %v7357, 0.125
  %v7388 = vmul.f32 %v7362, 0.125
  %v7389 = vmul.f32 %v7365, 0.125
  %v7390 = vmul.f32 %v7370, 0.125
  %v7391 = vmul.f32 %v7373, 0.125
  %v7392 = vadd.f32 %v7376, %v1426
  %v7393 = vadd.f32 %v7377, %v1426
  %v7394 = vadd.f32 %v7378, %v1426
  %v7395 = vadd.f32 %v7379, %v1426
  %v7396 = vadd.f32 %v7380, %v1426
  %v7397 = vadd.f32 %v7381, %v1426
  %v7398 = vadd.f32 %v7382, %v1426
  %v7399 = vadd.f32 %v7383, %v1426
  %v7400 = vadd.f32 %v7384, %v1426
  %v7401 = vadd.f32 %v7385, %v1426
  %v7402 = vadd.f32 %v7386, %v1426
  %v7403 = vadd.f32 %v7387, %v1426
  %v7404 = vadd.f32 %v7388, %v1426
  %v7405 = vadd.f32 %v7389, %v1426
  %v7406 = vadd.f32 %v7390, %v1426
  %v7407 = vadd.f32 %v7391, %v1426
  %7408 = vmax.xlane.f32.xlu0 %v7392
  %v7409 = vpop.xlane.xlu0 %7408
  %7410 = vmax.xlane.f32.xlu0 %v7393
  %v7411 = vpop.xlane.xlu0 %7410
  %7412 = vmax.xlane.f32.xlu0 %v7394
  %v7413 = vpop.xlane.xlu0 %7412
  %7414 = vmax.xlane.f32.xlu0 %v7395
  %v7415 = vpop.xlane.xlu0 %7414
  %7416 = vmax.xlane.f32.xlu0 %v7396
  %v7417 = vpop.xlane.xlu0 %7416
  %7418 = vmax.xlane.f32.xlu0 %v7397
  %v7419 = vpop.xlane.xlu0 %7418
  %7420 = vmax.xlane.f32.xlu0 %v7398
  %v7421 = vpop.xlane.xlu0 %7420
  %7422 = vmax.xlane.f32.xlu0 %v7399
  %v7423 = vpop.xlane.xlu0 %7422
  %7424 = vmax.xlane.f32.xlu0 %v7400
  %v7425 = vpop.xlane.xlu0 %7424
  %7426 = vmax.xlane.f32.xlu0 %v7401
  %v7427 = vpop.xlane.xlu0 %7426
  %7428 = vmax.xlane.f32.xlu0 %v7402
  %v7429 = vpop.xlane.xlu0 %7428
  %7430 = vmax.xlane.f32.xlu0 %v7403
  %v7431 = vpop.xlane.xlu0 %7430
  %7432 = vmax.xlane.f32.xlu0 %v7404
  %v7433 = vpop.xlane.xlu0 %7432
  %7434 = vmax.xlane.f32.xlu0 %v7405
  %v7435 = vpop.xlane.xlu0 %7434
  %7436 = vmax.xlane.f32.xlu0 %v7406
  %v7437 = vpop.xlane.xlu0 %7436
  %7438 = vmax.xlane.f32.xlu0 %v7407
  %v7439 = vpop.xlane.xlu0 %7438
  %v7440 = vsub.f32 %v7392, %v7409
  %v7441 = vsub.f32 %v7393, %v7411
  %v7442 = vsub.f32 %v7394, %v7413
  %v7443 = vsub.f32 %v7395, %v7415
  %v7444 = vsub.f32 %v7396, %v7417
  %v7445 = vsub.f32 %v7397, %v7419
  %v7446 = vsub.f32 %v7398, %v7421
  %v7447 = vsub.f32 %v7399, %v7423
  %v7448 = vsub.f32 %v7400, %v7425
  %v7449 = vsub.f32 %v7401, %v7427
  %v7450 = vsub.f32 %v7402, %v7429
  %v7451 = vsub.f32 %v7403, %v7431
  %v7452 = vsub.f32 %v7404, %v7433
  %v7453 = vsub.f32 %v7405, %v7435
  %v7454 = vsub.f32 %v7406, %v7437
  %v7455 = vsub.f32 %v7407, %v7439
  %v7456 = vmul.f32 %v7440, 1.442695
  %v7457 = vpow.pop %v7456
  %v7458 = vmul.f32 %v7441, 1.442695
  %v7459 = vpow.pop %v7458
  %v7460 = vmul.f32 %v7442, 1.442695
  %v7461 = vpow.pop %v7460
  %v7462 = vmul.f32 %v7443, 1.442695
  %v7463 = vpow.pop %v7462
  %v7464 = vmul.f32 %v7444, 1.442695
  %v7465 = vpow.pop %v7464
  %v7466 = vmul.f32 %v7445, 1.442695
  %v7467 = vpow.pop %v7466
  %v7468 = vmul.f32 %v7446, 1.442695
  %v7469 = vpow.pop %v7468
  %v7470 = vmul.f32 %v7447, 1.442695
  %v7471 = vpow.pop %v7470
  %v7472 = vmul.f32 %v7448, 1.442695
  %v7473 = vpow.pop %v7472
  %v7474 = vmul.f32 %v7449, 1.442695
  %v7475 = vpow.pop %v7474
  %v7476 = vmul.f32 %v7450, 1.442695
  %v7477 = vpow.pop %v7476
  %v7478 = vmul.f32 %v7451, 1.442695
  %v7479 = vpow.pop %v7478
  %v7480 = vmul.f32 %v7452, 1.442695
  %v7481 = vpow.pop %v7480
  %v7482 = vmul.f32 %v7453, 1.442695
  %v7483 = vpow.pop %v7482
  %v7484 = vmul.f32 %v7454, 1.442695
  %v7485 = vpow.pop %v7484
  %v7486 = vmul.f32 %v7455, 1.442695
  %v7487 = vpow.pop %v7486
  %7496 = vrot.lane.b32.xlu0 %v6677, 64
  %v7497 = vpop.permute.xlu0 %7496
  %7498 = vrot.lane.b32.xlu0 %v6678, 64
  %v7499 = vpop.permute.xlu0 %7498
  %7500 = vrot.lane.b32.xlu0 %v6679, 64
  %v7501 = vpop.permute.xlu0 %7500
  %7502 = vrot.lane.b32.xlu0 %v6680, 64
  %v7503 = vpop.permute.xlu0 %7502
  %7504 = vrot.lane.b32.xlu0 %v6681, 64
  %v7505 = vpop.permute.xlu0 %7504
  %7506 = vrot.lane.b32.xlu0 %v6682, 64
  %v7507 = vpop.permute.xlu0 %7506
  %7508 = vrot.lane.b32.xlu0 %v6683, 64
  %v7509 = vpop.permute.xlu0 %7508
  %7510 = vrot.lane.b32.xlu0 %v6684, 64
  %v7511 = vpop.permute.xlu0 %7510
  %v7513 = vsel %vm1261, %v7497, 1065369472
  %v7516 = vsel %vm1261, %v7499, 1065369472
  %v7519 = vsel %vm1261, %v7501, 1065369472
  %v7522 = vsel %vm1261, %v7503, 1065369472
  %v7525 = vsel %vm1261, %v7505, 1065369472
  %v7528 = vsel %vm1261, %v7507, 1065369472
  %v7531 = vsel %vm1261, %v7509, 1065369472
  %v7534 = vsel %vm1261, %v7511, 1065369472
  %v7536 = vpack.c.bf16 %v7459, %v7457
  %v7537 = vpack.c.bf16 %v7463, %v7461
  %v7538 = vpack.c.bf16 %v7467, %v7465
  %v7539 = vpack.c.bf16 %v7471, %v7469
  %v7540 = vpack.c.bf16 %v7475, %v7473
  %v7541 = vpack.c.bf16 %v7479, %v7477
  %v7542 = vpack.c.bf16 %v7483, %v7481
  %v7543 = vpack.c.bf16 %v7487, %v7485
  %7544 = vmatprep.subr.bf16.mxu0 0
  %7545 = vmatpush1.bf16.msra.mxu0 %v7534
  %7546 = vmatprep.subr.bf16.mxu0 0
  %7547 = vmatpush1.bf16.msra.mxu0 %v7531
  %7548 = vmatprep.subr.bf16.mxu0 0
  %7549 = vmatpush1.bf16.msra.mxu0 %v7528
  %7550 = vmatprep.subr.bf16.mxu0 0
  %7551 = vmatpush1.bf16.msra.mxu0 %v7525
  %7552 = vmatprep.subr.bf16.mxu0 0
  %7553 = vmatpush1.bf16.msra.mxu0 %v7522
  %7554 = vmatprep.subr.bf16.mxu0 0
  %7555 = vmatpush1.bf16.msra.mxu0 %v7519
  %7556 = vmatprep.subr.bf16.mxu0 0
  %7557 = vmatpush1.bf16.msra.mxu0 %v7516
  %7558 = vmatprep.subr.bf16.mxu0 0
  %7559 = vmatpush1.bf16.msra.mxu0 %v7513
  %7560 = vmatprep.subr.bf16.mxu0 0
  %7561 = vmatpush2.bf16.msra.mxu0 0
  %7562 = vmatprep.subr.bf16.mxu0 0
  %7563 = vmatpush2.bf16.msra.mxu0 0
  %7564 = vmatprep.subr.bf16.mxu0 0
  %7565 = vmatpush2.bf16.msra.mxu0 0
  %7566 = vmatprep.subr.bf16.mxu0 0
  %7567 = vmatpush2.bf16.msra.mxu0 0
  %7568 = vmatprep.subr.bf16.mxu0 0
  %7569 = vmatpush2.bf16.msra.mxu0 0
  %7570 = vmatprep.subr.bf16.mxu0 0
  %7571 = vmatpush2.bf16.msra.mxu0 0
  %7572 = vmatprep.subr.bf16.mxu0 0
  %7573 = vmatpush2.bf16.msra.mxu0 0
  %7574 = vmatprep.subr.bf16.mxu0 0
  %7575 = vmatpush2.bf16.msra.mxu0 0
  %7576 = vmatprep.mubr.bf16.mxu0 0
  %7577 = vmatmul.mubr.bf16.gmra.mxu0 %v7536
  %v7578 = vpop.f32.mrf.mxu0
  %v7579 = vadd.f32 0.0, %v7578
  %v7580 = vpop.f32.mrf.mxu0
  %v7581 = vpop.f32.mrf.mxu0
  %v7582 = vadd.f32 0.0, %v7581
  %v7583 = vpop.f32.mrf.mxu0
  %7584 = vmatprep.mubr.bf16.mxu0 0
  %7585 = vmatmul.mubr.bf16.gmra.mxu0 %v7537
  %v7586 = vpop.f32.mrf.mxu0
  %v7587 = vadd.f32 0.0, %v7586
  %v7588 = vpop.f32.mrf.mxu0
  %v7589 = vpop.f32.mrf.mxu0
  %v7590 = vadd.f32 0.0, %v7589
  %v7591 = vpop.f32.mrf.mxu0
  %7592 = vmatprep.mubr.bf16.mxu0 0
  %7593 = vmatmul.mubr.bf16.gmra.mxu0 %v7538
  %v7594 = vpop.f32.mrf.mxu0
  %v7595 = vadd.f32 0.0, %v7594
  %v7596 = vpop.f32.mrf.mxu0
  %v7597 = vpop.f32.mrf.mxu0
  %v7598 = vadd.f32 0.0, %v7597
  %v7599 = vpop.f32.mrf.mxu0
  %7600 = vmatprep.mubr.bf16.mxu0 0
  %7601 = vmatmul.mubr.bf16.gmra.mxu0 %v7539
  %v7602 = vpop.f32.mrf.mxu0
  %v7603 = vadd.f32 0.0, %v7602
  %v7604 = vpop.f32.mrf.mxu0
  %v7605 = vpop.f32.mrf.mxu0
  %v7606 = vadd.f32 0.0, %v7605
  %v7607 = vpop.f32.mrf.mxu0
  %7608 = vmatprep.mubr.bf16.mxu0 0
  %7609 = vmatmul.mubr.bf16.gmra.mxu0 %v7540
  %v7610 = vpop.f32.mrf.mxu0
  %v7611 = vadd.f32 0.0, %v7610
  %v7612 = vpop.f32.mrf.mxu0
  %v7613 = vpop.f32.mrf.mxu0
  %v7614 = vadd.f32 0.0, %v7613
  %v7615 = vpop.f32.mrf.mxu0
  %7616 = vmatprep.mubr.bf16.mxu0 0
  %7617 = vmatmul.mubr.bf16.gmra.mxu0 %v7541
  %v7618 = vpop.f32.mrf.mxu0
  %v7619 = vadd.f32 0.0, %v7618
  %v7620 = vpop.f32.mrf.mxu0
  %v7621 = vpop.f32.mrf.mxu0
  %v7622 = vadd.f32 0.0, %v7621
  %v7623 = vpop.f32.mrf.mxu0
  %7624 = vmatprep.mubr.bf16.mxu0 0
  %7625 = vmatmul.mubr.bf16.gmra.mxu0 %v7542
  %v7626 = vpop.f32.mrf.mxu0
  %v7627 = vadd.f32 0.0, %v7626
  %v7628 = vpop.f32.mrf.mxu0
  %v7629 = vpop.f32.mrf.mxu0
  %v7630 = vadd.f32 0.0, %v7629
  %v7631 = vpop.f32.mrf.mxu0
  %7632 = vmatprep.mubr.bf16.mxu0 0
  %7633 = vmatmul.mubr.bf16.gmra.mxu0 %v7543
  %v7634 = vpop.f32.mrf.mxu0
  %v7635 = vadd.f32 0.0, %v7634
  %v7636 = vpop.f32.mrf.mxu0
  %v7637 = vpop.f32.mrf.mxu0
  %v7638 = vadd.f32 0.0, %v7637
  %v7639 = vpop.f32.mrf.mxu0
  %7640 = vdwg.mxu0
  %v7641 = vrcp.pop %v7579
  %v7642 = vrcp.pop %v7582
  %v7643 = vrcp.pop %v7587
  %v7644 = vrcp.pop %v7590
  %v7645 = vrcp.pop %v7595
  %v7646 = vrcp.pop %v7598
  %v7647 = vrcp.pop %v7603
  %v7648 = vrcp.pop %v7606
  %v7649 = vrcp.pop %v7611
  %v7650 = vrcp.pop %v7614
  %v7651 = vrcp.pop %v7619
  %v7652 = vrcp.pop %v7622
  %v7653 = vrcp.pop %v7627
  %v7654 = vrcp.pop %v7630
  %v7655 = vrcp.pop %v7635
  %v7656 = vrcp.pop %v7638
  %7658 = vset.pattern.permute.xlu0 64
  %7659 = vperm.xlu0 %7658, %v7641
  %v7660 = vpop.permute.xlu0 %7659
  %7663 = vset.pattern.permute.xlu0 64
  %7664 = vperm.xlu0 %7663, %v7642
  %v7665 = vpop.permute.xlu0 %7664
  %7668 = vset.pattern.permute.xlu0 64
  %7669 = vperm.xlu0 %7668, %v7643
  %v7670 = vpop.permute.xlu0 %7669
  %7673 = vset.pattern.permute.xlu0 64
  %7674 = vperm.xlu0 %7673, %v7644
  %v7675 = vpop.permute.xlu0 %7674
  %7678 = vset.pattern.permute.xlu0 64
  %7679 = vperm.xlu0 %7678, %v7645
  %v7680 = vpop.permute.xlu0 %7679
  %7683 = vset.pattern.permute.xlu0 64
  %7684 = vperm.xlu0 %7683, %v7646
  %v7685 = vpop.permute.xlu0 %7684
  %7688 = vset.pattern.permute.xlu0 64
  %7689 = vperm.xlu0 %7688, %v7647
  %v7690 = vpop.permute.xlu0 %7689
  %7693 = vset.pattern.permute.xlu0 64
  %7694 = vperm.xlu0 %7693, %v7648
  %v7695 = vpop.permute.xlu0 %7694
  %7698 = vset.pattern.permute.xlu0 64
  %7699 = vperm.xlu0 %7698, %v7649
  %v7700 = vpop.permute.xlu0 %7699
  %7703 = vset.pattern.permute.xlu0 64
  %7704 = vperm.xlu0 %7703, %v7650
  %v7705 = vpop.permute.xlu0 %7704
  %7708 = vset.pattern.permute.xlu0 64
  %7709 = vperm.xlu0 %7708, %v7651
  %v7710 = vpop.permute.xlu0 %7709
  %7713 = vset.pattern.permute.xlu0 64
  %7714 = vperm.xlu0 %7713, %v7652
  %v7715 = vpop.permute.xlu0 %7714
  %7718 = vset.pattern.permute.xlu0 64
  %7719 = vperm.xlu0 %7718, %v7653
  %v7720 = vpop.permute.xlu0 %7719
  %7723 = vset.pattern.permute.xlu0 64
  %7724 = vperm.xlu0 %7723, %v7654
  %v7725 = vpop.permute.xlu0 %7724
  %7728 = vset.pattern.permute.xlu0 64
  %7729 = vperm.xlu0 %7728, %v7655
  %v7730 = vpop.permute.xlu0 %7729
  %7733 = vset.pattern.permute.xlu0 64
  %7734 = vperm.xlu0 %7733, %v7656
  %v7735 = vpop.permute.xlu0 %7734
  %v7737 = vmul.f32 %v7579, %v7660
  %v7738 = vmul.f32 %v7582, %v7665
  %v7739 = vmul.f32 %v7587, %v7670
  %v7740 = vmul.f32 %v7590, %v7675
  %v7741 = vmul.f32 %v7595, %v7680
  %v7742 = vmul.f32 %v7598, %v7685
  %v7743 = vmul.f32 %v7603, %v7690
  %v7744 = vmul.f32 %v7606, %v7695
  %v7745 = vmul.f32 %v7611, %v7700
  %v7746 = vmul.f32 %v7614, %v7705
  %v7747 = vmul.f32 %v7619, %v7710
  %v7748 = vmul.f32 %v7622, %v7715
  %v7749 = vmul.f32 %v7627, %v7720
  %v7750 = vmul.f32 %v7630, %v7725
  %v7751 = vmul.f32 %v7635, %v7730
  %v7752 = vmul.f32 %v7638, %v7735
  %7769 = vrot.lane.b32.xlu0 %v7737, 64
  %v7770 = vpop.permute.xlu0 %7769
  %7771 = vrot.lane.b32.xlu0 %v7738, 64
  %v7772 = vpop.permute.xlu0 %7771
  %7773 = vrot.lane.b32.xlu0 %v7739, 64
  %v7774 = vpop.permute.xlu0 %7773
  %7775 = vrot.lane.b32.xlu0 %v7740, 64
  %v7776 = vpop.permute.xlu0 %7775
  %7777 = vrot.lane.b32.xlu0 %v7741, 64
  %v7778 = vpop.permute.xlu0 %7777
  %7779 = vrot.lane.b32.xlu0 %v7742, 64
  %v7780 = vpop.permute.xlu0 %7779
  %7781 = vrot.lane.b32.xlu0 %v7743, 64
  %v7782 = vpop.permute.xlu0 %7781
  %7783 = vrot.lane.b32.xlu0 %v7744, 64
  %v7784 = vpop.permute.xlu0 %7783
  %7785 = vrot.lane.b32.xlu0 %v7745, 64
  %v7786 = vpop.permute.xlu0 %7785
  %7787 = vrot.lane.b32.xlu0 %v7746, 64
  %v7788 = vpop.permute.xlu0 %7787
  %7789 = vrot.lane.b32.xlu0 %v7747, 64
  %v7790 = vpop.permute.xlu0 %7789
  %7791 = vrot.lane.b32.xlu0 %v7748, 64
  %v7792 = vpop.permute.xlu0 %7791
  %7793 = vrot.lane.b32.xlu0 %v7749, 64
  %v7794 = vpop.permute.xlu0 %7793
  %7795 = vrot.lane.b32.xlu0 %v7750, 64
  %v7796 = vpop.permute.xlu0 %7795
  %7797 = vrot.lane.b32.xlu0 %v7751, 64
  %v7798 = vpop.permute.xlu0 %7797
  %7799 = vrot.lane.b32.xlu0 %v7752, 64
  %v7800 = vpop.permute.xlu0 %7799
  %v7817 = vsel %vm1261, %v7167, %v7770
  %v7818 = vsel %vm1261, %v7168, %v7772
  %v7819 = vsel %vm1261, %v7169, %v7774
  %v7820 = vsel %vm1261, %v7170, %v7776
  %v7821 = vsel %vm1261, %v7171, %v7778
  %v7822 = vsel %vm1261, %v7172, %v7780
  %v7823 = vsel %vm1261, %v7173, %v7782
  %v7824 = vsel %vm1261, %v7174, %v7784
  %v7825 = vsel %vm1261, %v7175, %v7786
  %v7826 = vsel %vm1261, %v7176, %v7788
  %v7827 = vsel %vm1261, %v7177, %v7790
  %v7828 = vsel %vm1261, %v7178, %v7792
  %v7829 = vsel %vm1261, %v7179, %v7794
  %v7830 = vsel %vm1261, %v7180, %v7796
  %v7831 = vsel %vm1261, %v7181, %v7798
  %v7832 = vsel %vm1261, %v7182, %v7800
  %v7833 = vpack.c.bf16 %v6426, %v6422
  %v7834 = vpack.c.bf16 %v6436, %v6432
  %v7835 = vpack.c.bf16 %v6446, %v6442
  %v7836 = vpack.c.bf16 %v6456, %v6452
  %v7837 = vpack.c.bf16 %v6466, %v6462
  %v7838 = vpack.c.bf16 %v6476, %v6472
  %v7839 = vpack.c.bf16 %v6486, %v6482
  %v7840 = vpack.c.bf16 %v6496, %v6492
  %v7841 = vpack.c.bf16 %v6428, %v6424
  %v7842 = vpack.c.bf16 %v6438, %v6434
  %v7843 = vpack.c.bf16 %v6448, %v6444
  %v7844 = vpack.c.bf16 %v6458, %v6454
  %v7845 = vpack.c.bf16 %v6468, %v6464
  %v7846 = vpack.c.bf16 %v6478, %v6474
  %v7847 = vpack.c.bf16 %v6488, %v6484
  %v7848 = vpack.c.bf16 %v6498, %v6494
  %v7849 = vpack.c.bf16 %v6602, %v6599
  %v7850 = vpack.c.bf16 %v6610, %v6607
  %v7851 = vpack.c.bf16 %v6618, %v6615
  %v7852 = vpack.c.bf16 %v6626, %v6623
  %v7853 = vpack.c.bf16 %v6634, %v6631
  %v7854 = vpack.c.bf16 %v6642, %v6639
  %v7855 = vpack.c.bf16 %v6650, %v6647
  %v7856 = vpack.c.bf16 %v6658, %v6655
  %v7858 = vsel %vm1261, %v7833, 0
  %v7861 = vsel %vm1261, %v7834, 0
  %v7864 = vsel %vm1261, %v7835, 0
  %v7867 = vsel %vm1261, %v7836, 0
  %v7870 = vsel %vm1261, %v7837, 0
  %v7873 = vsel %vm1261, %v7838, 0
  %v7876 = vsel %vm1261, %v7839, 0
  %v7879 = vsel %vm1261, %v7840, 0
  %v7882 = vsel %vm1261, %v7841, 0
  %v7885 = vsel %vm1261, %v7842, 0
  %v7888 = vsel %vm1261, %v7843, 0
  %v7891 = vsel %vm1261, %v7844, 0
  %v7894 = vsel %vm1261, %v7845, 0
  %v7897 = vsel %vm1261, %v7846, 0
  %v7900 = vsel %vm1261, %v7847, 0
  %v7903 = vsel %vm1261, %v7848, 0
  %7905 = vmatprep.subr.bf16.mxu0 0
  %7906 = vmatpush1.bf16.xpose.msra.mxu0 %v7903
  %7907 = vmatprep.subr.bf16.mxu0 0
  %7908 = vmatpush1.bf16.xpose.msra.mxu0 %v7900
  %7909 = vmatprep.subr.bf16.mxu0 0
  %7910 = vmatpush1.bf16.xpose.msra.mxu0 %v7897
  %7911 = vmatprep.subr.bf16.mxu0 0
  %7912 = vmatpush1.bf16.xpose.msra.mxu0 %v7894
  %7913 = vmatprep.subr.bf16.mxu0 0
  %7914 = vmatpush1.bf16.xpose.msra.mxu0 %v7891
  %7915 = vmatprep.subr.bf16.mxu0 0
  %7916 = vmatpush1.bf16.xpose.msra.mxu0 %v7888
  %7917 = vmatprep.subr.bf16.mxu0 0
  %7918 = vmatpush1.bf16.xpose.msra.mxu0 %v7885
  %7919 = vmatprep.subr.bf16.mxu0 0
  %7920 = vmatpush1.bf16.xpose.msra.mxu0 %v7882
  %7921 = vmatprep.subr.bf16.mxu0 0
  %7922 = vmatpush2.bf16.xpose.msra.mxu0 0
  %7923 = vmatprep.subr.bf16.mxu0 0
  %7924 = vmatpush2.bf16.xpose.msra.mxu0 0
  %7925 = vmatprep.subr.bf16.mxu0 0
  %7926 = vmatpush2.bf16.xpose.msra.mxu0 0
  %7927 = vmatprep.subr.bf16.mxu0 0
  %7928 = vmatpush2.bf16.xpose.msra.mxu0 0
  %7929 = vmatprep.subr.bf16.mxu0 0
  %7930 = vmatpush2.bf16.xpose.msra.mxu0 0
  %7931 = vmatprep.subr.bf16.mxu0 0
  %7932 = vmatpush2.bf16.xpose.msra.mxu0 0
  %7933 = vmatprep.subr.bf16.mxu0 0
  %7934 = vmatpush2.bf16.xpose.msra.mxu0 0
  %7935 = vmatprep.subr.bf16.mxu0 0
  %7936 = vmatpush2.bf16.xpose.msra.mxu0 0
  %7937 = vmatprep.mubr.bf16.mxu0 0
  %7938 = vmatmul.mubr.bf16.gmra.mxu0 %v7858
  %v7939 = vpop.f32.mrf.mxu0
  %v7940 = vadd.f32 0.0, %v7939
  %v7941 = vpop.f32.mrf.mxu0
  %v7942 = vpop.f32.mrf.mxu0
  %v7943 = vadd.f32 0.0, %v7942
  %v7944 = vpop.f32.mrf.mxu0
  %7945 = vmatprep.mubr.bf16.mxu0 0
  %7946 = vmatmul.mubr.bf16.gmra.mxu0 %v7861
  %v7947 = vpop.f32.mrf.mxu0
  %v7948 = vadd.f32 0.0, %v7947
  %v7949 = vpop.f32.mrf.mxu0
  %v7950 = vpop.f32.mrf.mxu0
  %v7951 = vadd.f32 0.0, %v7950
  %v7952 = vpop.f32.mrf.mxu0
  %7953 = vmatprep.mubr.bf16.mxu0 0
  %7954 = vmatmul.mubr.bf16.gmra.mxu0 %v7864
  %v7955 = vpop.f32.mrf.mxu0
  %v7956 = vadd.f32 0.0, %v7955
  %v7957 = vpop.f32.mrf.mxu0
  %v7958 = vpop.f32.mrf.mxu0
  %v7959 = vadd.f32 0.0, %v7958
  %v7960 = vpop.f32.mrf.mxu0
  %7961 = vmatprep.mubr.bf16.mxu0 0
  %7962 = vmatmul.mubr.bf16.gmra.mxu0 %v7867
  %v7963 = vpop.f32.mrf.mxu0
  %v7964 = vadd.f32 0.0, %v7963
  %v7965 = vpop.f32.mrf.mxu0
  %v7966 = vpop.f32.mrf.mxu0
  %v7967 = vadd.f32 0.0, %v7966
  %v7968 = vpop.f32.mrf.mxu0
  %7969 = vmatprep.mubr.bf16.mxu0 0
  %7970 = vmatmul.mubr.bf16.gmra.mxu0 %v7870
  %v7971 = vpop.f32.mrf.mxu0
  %v7972 = vadd.f32 0.0, %v7971
  %v7973 = vpop.f32.mrf.mxu0
  %v7974 = vpop.f32.mrf.mxu0
  %v7975 = vadd.f32 0.0, %v7974
  %v7976 = vpop.f32.mrf.mxu0
  %7977 = vmatprep.mubr.bf16.mxu0 0
  %7978 = vmatmul.mubr.bf16.gmra.mxu0 %v7873
  %v7979 = vpop.f32.mrf.mxu0
  %v7980 = vadd.f32 0.0, %v7979
  %v7981 = vpop.f32.mrf.mxu0
  %v7982 = vpop.f32.mrf.mxu0
  %v7983 = vadd.f32 0.0, %v7982
  %v7984 = vpop.f32.mrf.mxu0
  %7985 = vmatprep.mubr.bf16.mxu0 0
  %7986 = vmatmul.mubr.bf16.gmra.mxu0 %v7876
  %v7987 = vpop.f32.mrf.mxu0
  %v7988 = vadd.f32 0.0, %v7987
  %v7989 = vpop.f32.mrf.mxu0
  %v7990 = vpop.f32.mrf.mxu0
  %v7991 = vadd.f32 0.0, %v7990
  %v7992 = vpop.f32.mrf.mxu0
  %7993 = vmatprep.mubr.bf16.mxu0 0
  %7994 = vmatmul.mubr.bf16.gmra.mxu0 %v7879
  %v7995 = vpop.f32.mrf.mxu0
  %v7996 = vadd.f32 0.0, %v7995
  %v7997 = vpop.f32.mrf.mxu0
  %v7998 = vpop.f32.mrf.mxu0
  %v7999 = vadd.f32 0.0, %v7998
  %v8000 = vpop.f32.mrf.mxu0
  %8001 = vdwg.mxu0
  %v8002 = vmul.f32 %v7940, 0.125
  %v8003 = vmul.f32 %v7943, 0.125
  %v8004 = vmul.f32 %v7948, 0.125
  %v8005 = vmul.f32 %v7951, 0.125
  %v8006 = vmul.f32 %v7956, 0.125
  %v8007 = vmul.f32 %v7959, 0.125
  %v8008 = vmul.f32 %v7964, 0.125
  %v8009 = vmul.f32 %v7967, 0.125
  %v8010 = vmul.f32 %v7972, 0.125
  %v8011 = vmul.f32 %v7975, 0.125
  %v8012 = vmul.f32 %v7980, 0.125
  %v8013 = vmul.f32 %v7983, 0.125
  %v8014 = vmul.f32 %v7988, 0.125
  %v8015 = vmul.f32 %v7991, 0.125
  %v8016 = vmul.f32 %v7996, 0.125
  %v8017 = vmul.f32 %v7999, 0.125
  %v8018 = vadd.f32 %v8002, %v2603
  %v8019 = vadd.f32 %v8003, %v2603
  %v8020 = vadd.f32 %v8004, %v2603
  %v8021 = vadd.f32 %v8005, %v2603
  %v8022 = vadd.f32 %v8006, %v2603
  %v8023 = vadd.f32 %v8007, %v2603
  %v8024 = vadd.f32 %v8008, %v2603
  %v8025 = vadd.f32 %v8009, %v2603
  %v8026 = vadd.f32 %v8010, %v2603
  %v8027 = vadd.f32 %v8011, %v2603
  %v8028 = vadd.f32 %v8012, %v2603
  %v8029 = vadd.f32 %v8013, %v2603
  %v8030 = vadd.f32 %v8014, %v2603
  %v8031 = vadd.f32 %v8015, %v2603
  %v8032 = vadd.f32 %v8016, %v2603
  %v8033 = vadd.f32 %v8017, %v2603
  %8034 = vmax.xlane.f32.xlu0 %v8018
  %v8035 = vpop.xlane.xlu0 %8034
  %8036 = vmax.xlane.f32.xlu0 %v8019
  %v8037 = vpop.xlane.xlu0 %8036
  %8038 = vmax.xlane.f32.xlu0 %v8020
  %v8039 = vpop.xlane.xlu0 %8038
  %8040 = vmax.xlane.f32.xlu0 %v8021
  %v8041 = vpop.xlane.xlu0 %8040
  %8042 = vmax.xlane.f32.xlu0 %v8022
  %v8043 = vpop.xlane.xlu0 %8042
  %8044 = vmax.xlane.f32.xlu0 %v8023
  %v8045 = vpop.xlane.xlu0 %8044
  %8046 = vmax.xlane.f32.xlu0 %v8024
  %v8047 = vpop.xlane.xlu0 %8046
  %8048 = vmax.xlane.f32.xlu0 %v8025
  %v8049 = vpop.xlane.xlu0 %8048
  %8050 = vmax.xlane.f32.xlu0 %v8026
  %v8051 = vpop.xlane.xlu0 %8050
  %8052 = vmax.xlane.f32.xlu0 %v8027
  %v8053 = vpop.xlane.xlu0 %8052
  %8054 = vmax.xlane.f32.xlu0 %v8028
  %v8055 = vpop.xlane.xlu0 %8054
  %8056 = vmax.xlane.f32.xlu0 %v8029
  %v8057 = vpop.xlane.xlu0 %8056
  %8058 = vmax.xlane.f32.xlu0 %v8030
  %v8059 = vpop.xlane.xlu0 %8058
  %8060 = vmax.xlane.f32.xlu0 %v8031
  %v8061 = vpop.xlane.xlu0 %8060
  %8062 = vmax.xlane.f32.xlu0 %v8032
  %v8063 = vpop.xlane.xlu0 %8062
  %8064 = vmax.xlane.f32.xlu0 %v8033
  %v8065 = vpop.xlane.xlu0 %8064
  %v8066 = vsub.f32 %v8018, %v8035
  %v8067 = vsub.f32 %v8019, %v8037
  %v8068 = vsub.f32 %v8020, %v8039
  %v8069 = vsub.f32 %v8021, %v8041
  %v8070 = vsub.f32 %v8022, %v8043
  %v8071 = vsub.f32 %v8023, %v8045
  %v8072 = vsub.f32 %v8024, %v8047
  %v8073 = vsub.f32 %v8025, %v8049
  %v8074 = vsub.f32 %v8026, %v8051
  %v8075 = vsub.f32 %v8027, %v8053
  %v8076 = vsub.f32 %v8028, %v8055
  %v8077 = vsub.f32 %v8029, %v8057
  %v8078 = vsub.f32 %v8030, %v8059
  %v8079 = vsub.f32 %v8031, %v8061
  %v8080 = vsub.f32 %v8032, %v8063
  %v8081 = vsub.f32 %v8033, %v8065
  %v8082 = vmul.f32 %v8066, 1.442695
  %v8083 = vpow.pop %v8082
  %v8084 = vmul.f32 %v8067, 1.442695
  %v8085 = vpow.pop %v8084
  %v8086 = vmul.f32 %v8068, 1.442695
  %v8087 = vpow.pop %v8086
  %v8088 = vmul.f32 %v8069, 1.442695
  %v8089 = vpow.pop %v8088
  %v8090 = vmul.f32 %v8070, 1.442695
  %v8091 = vpow.pop %v8090
  %v8092 = vmul.f32 %v8071, 1.442695
  %v8093 = vpow.pop %v8092
  %v8094 = vmul.f32 %v8072, 1.442695
  %v8095 = vpow.pop %v8094
  %v8096 = vmul.f32 %v8073, 1.442695
  %v8097 = vpow.pop %v8096
  %v8098 = vmul.f32 %v8074, 1.442695
  %v8099 = vpow.pop %v8098
  %v8100 = vmul.f32 %v8075, 1.442695
  %v8101 = vpow.pop %v8100
  %v8102 = vmul.f32 %v8076, 1.442695
  %v8103 = vpow.pop %v8102
  %v8104 = vmul.f32 %v8077, 1.442695
  %v8105 = vpow.pop %v8104
  %v8106 = vmul.f32 %v8078, 1.442695
  %v8107 = vpow.pop %v8106
  %v8108 = vmul.f32 %v8079, 1.442695
  %v8109 = vpow.pop %v8108
  %v8110 = vmul.f32 %v8080, 1.442695
  %v8111 = vpow.pop %v8110
  %v8112 = vmul.f32 %v8081, 1.442695
  %v8113 = vpow.pop %v8112
  %v8115 = vsel %vm1261, %v7849, 1065369472
  %v8118 = vsel %vm1261, %v7850, 1065369472
  %v8121 = vsel %vm1261, %v7851, 1065369472
  %v8124 = vsel %vm1261, %v7852, 1065369472
  %v8127 = vsel %vm1261, %v7853, 1065369472
  %v8130 = vsel %vm1261, %v7854, 1065369472
  %v8133 = vsel %vm1261, %v7855, 1065369472
  %v8136 = vsel %vm1261, %v7856, 1065369472
  %v8138 = vpack.c.bf16 %v8085, %v8083
  %v8139 = vpack.c.bf16 %v8089, %v8087
  %v8140 = vpack.c.bf16 %v8093, %v8091
  %v8141 = vpack.c.bf16 %v8097, %v8095
  %v8142 = vpack.c.bf16 %v8101, %v8099
  %v8143 = vpack.c.bf16 %v8105, %v8103
  %v8144 = vpack.c.bf16 %v8109, %v8107
  %v8145 = vpack.c.bf16 %v8113, %v8111
  %8146 = vmatprep.subr.bf16.mxu0 0
  %8147 = vmatpush1.bf16.msra.mxu0 %v8136
  %8148 = vmatprep.subr.bf16.mxu0 0
  %8149 = vmatpush1.bf16.msra.mxu0 %v8133
  %8150 = vmatprep.subr.bf16.mxu0 0
  %8151 = vmatpush1.bf16.msra.mxu0 %v8130
  %8152 = vmatprep.subr.bf16.mxu0 0
  %8153 = vmatpush1.bf16.msra.mxu0 %v8127
  %8154 = vmatprep.subr.bf16.mxu0 0
  %8155 = vmatpush1.bf16.msra.mxu0 %v8124
  %8156 = vmatprep.subr.bf16.mxu0 0
  %8157 = vmatpush1.bf16.msra.mxu0 %v8121
  %8158 = vmatprep.subr.bf16.mxu0 0
  %8159 = vmatpush1.bf16.msra.mxu0 %v8118
  %8160 = vmatprep.subr.bf16.mxu0 0
  %8161 = vmatpush1.bf16.msra.mxu0 %v8115
  %8162 = vmatprep.subr.bf16.mxu0 0
  %8163 = vmatpush2.bf16.msra.mxu0 0
  %8164 = vmatprep.subr.bf16.mxu0 0
  %8165 = vmatpush2.bf16.msra.mxu0 0
  %8166 = vmatprep.subr.bf16.mxu0 0
  %8167 = vmatpush2.bf16.msra.mxu0 0
  %8168 = vmatprep.subr.bf16.mxu0 0
  %8169 = vmatpush2.bf16.msra.mxu0 0
  %8170 = vmatprep.subr.bf16.mxu0 0
  %8171 = vmatpush2.bf16.msra.mxu0 0
  %8172 = vmatprep.subr.bf16.mxu0 0
  %8173 = vmatpush2.bf16.msra.mxu0 0
  %8174 = vmatprep.subr.bf16.mxu0 0
  %8175 = vmatpush2.bf16.msra.mxu0 0
  %8176 = vmatprep.subr.bf16.mxu0 0
  %8177 = vmatpush2.bf16.msra.mxu0 0
  %8178 = vmatprep.mubr.bf16.mxu0 0
  %8179 = vmatmul.mubr.bf16.gmra.mxu0 %v8138
  %v8180 = vpop.f32.mrf.mxu0
  %v8181 = vadd.f32 0.0, %v8180
  %v8182 = vpop.f32.mrf.mxu0
  %v8183 = vpop.f32.mrf.mxu0
  %v8184 = vadd.f32 0.0, %v8183
  %v8185 = vpop.f32.mrf.mxu0
  %8186 = vmatprep.mubr.bf16.mxu0 0
  %8187 = vmatmul.mubr.bf16.gmra.mxu0 %v8139
  %v8188 = vpop.f32.mrf.mxu0
  %v8189 = vadd.f32 0.0, %v8188
  %v8190 = vpop.f32.mrf.mxu0
  %v8191 = vpop.f32.mrf.mxu0
  %v8192 = vadd.f32 0.0, %v8191
  %v8193 = vpop.f32.mrf.mxu0
  %8194 = vmatprep.mubr.bf16.mxu0 0
  %8195 = vmatmul.mubr.bf16.gmra.mxu0 %v8140
  %v8196 = vpop.f32.mrf.mxu0
  %v8197 = vadd.f32 0.0, %v8196
  %v8198 = vpop.f32.mrf.mxu0
  %v8199 = vpop.f32.mrf.mxu0
  %v8200 = vadd.f32 0.0, %v8199
  %v8201 = vpop.f32.mrf.mxu0
  %8202 = vmatprep.mubr.bf16.mxu0 0
  %8203 = vmatmul.mubr.bf16.gmra.mxu0 %v8141
  %v8204 = vpop.f32.mrf.mxu0
  %v8205 = vadd.f32 0.0, %v8204
  %v8206 = vpop.f32.mrf.mxu0
  %v8207 = vpop.f32.mrf.mxu0
  %v8208 = vadd.f32 0.0, %v8207
  %v8209 = vpop.f32.mrf.mxu0
  %8210 = vmatprep.mubr.bf16.mxu0 0
  %8211 = vmatmul.mubr.bf16.gmra.mxu0 %v8142
  %v8212 = vpop.f32.mrf.mxu0
  %v8213 = vadd.f32 0.0, %v8212
  %v8214 = vpop.f32.mrf.mxu0
  %v8215 = vpop.f32.mrf.mxu0
  %v8216 = vadd.f32 0.0, %v8215
  %v8217 = vpop.f32.mrf.mxu0
  %8218 = vmatprep.mubr.bf16.mxu0 0
  %8219 = vmatmul.mubr.bf16.gmra.mxu0 %v8143
  %v8220 = vpop.f32.mrf.mxu0
  %v8221 = vadd.f32 0.0, %v8220
  %v8222 = vpop.f32.mrf.mxu0
  %v8223 = vpop.f32.mrf.mxu0
  %v8224 = vadd.f32 0.0, %v8223
  %v8225 = vpop.f32.mrf.mxu0
  %8226 = vmatprep.mubr.bf16.mxu0 0
  %8227 = vmatmul.mubr.bf16.gmra.mxu0 %v8144
  %v8228 = vpop.f32.mrf.mxu0
  %v8229 = vadd.f32 0.0, %v8228
  %v8230 = vpop.f32.mrf.mxu0
  %v8231 = vpop.f32.mrf.mxu0
  %v8232 = vadd.f32 0.0, %v8231
  %v8233 = vpop.f32.mrf.mxu0
  %8234 = vmatprep.mubr.bf16.mxu0 0
  %8235 = vmatmul.mubr.bf16.gmra.mxu0 %v8145
  %v8236 = vpop.f32.mrf.mxu0
  %v8237 = vadd.f32 0.0, %v8236
  %v8238 = vpop.f32.mrf.mxu0
  %v8239 = vpop.f32.mrf.mxu0
  %v8240 = vadd.f32 0.0, %v8239
  %v8241 = vpop.f32.mrf.mxu0
  %8242 = vdwg.mxu0
  %v8243 = vrcp.pop %v8181
  %v8244 = vrcp.pop %v8184
  %v8245 = vrcp.pop %v8189
  %v8246 = vrcp.pop %v8192
  %v8247 = vrcp.pop %v8197
  %v8248 = vrcp.pop %v8200
  %v8249 = vrcp.pop %v8205
  %v8250 = vrcp.pop %v8208
  %v8251 = vrcp.pop %v8213
  %v8252 = vrcp.pop %v8216
  %v8253 = vrcp.pop %v8221
  %v8254 = vrcp.pop %v8224
  %v8255 = vrcp.pop %v8229
  %v8256 = vrcp.pop %v8232
  %v8257 = vrcp.pop %v8237
  %v8258 = vrcp.pop %v8240
  %8260 = vset.pattern.permute.xlu0 64
  %8261 = vperm.xlu0 %8260, %v8243
  %v8262 = vpop.permute.xlu0 %8261
  %8265 = vset.pattern.permute.xlu0 64
  %8266 = vperm.xlu0 %8265, %v8244
  %v8267 = vpop.permute.xlu0 %8266
  %8270 = vset.pattern.permute.xlu0 64
  %8271 = vperm.xlu0 %8270, %v8245
  %v8272 = vpop.permute.xlu0 %8271
  %8275 = vset.pattern.permute.xlu0 64
  %8276 = vperm.xlu0 %8275, %v8246
  %v8277 = vpop.permute.xlu0 %8276
  %8280 = vset.pattern.permute.xlu0 64
  %8281 = vperm.xlu0 %8280, %v8247
  %v8282 = vpop.permute.xlu0 %8281
  %8285 = vset.pattern.permute.xlu0 64
  %8286 = vperm.xlu0 %8285, %v8248
  %v8287 = vpop.permute.xlu0 %8286
  %8290 = vset.pattern.permute.xlu0 64
  %8291 = vperm.xlu0 %8290, %v8249
  %v8292 = vpop.permute.xlu0 %8291
  %8295 = vset.pattern.permute.xlu0 64
  %8296 = vperm.xlu0 %8295, %v8250
  %v8297 = vpop.permute.xlu0 %8296
  %8300 = vset.pattern.permute.xlu0 64
  %8301 = vperm.xlu0 %8300, %v8251
  %v8302 = vpop.permute.xlu0 %8301
  %8305 = vset.pattern.permute.xlu0 64
  %8306 = vperm.xlu0 %8305, %v8252
  %v8307 = vpop.permute.xlu0 %8306
  %8310 = vset.pattern.permute.xlu0 64
  %8311 = vperm.xlu0 %8310, %v8253
  %v8312 = vpop.permute.xlu0 %8311
  %8315 = vset.pattern.permute.xlu0 64
  %8316 = vperm.xlu0 %8315, %v8254
  %v8317 = vpop.permute.xlu0 %8316
  %8320 = vset.pattern.permute.xlu0 64
  %8321 = vperm.xlu0 %8320, %v8255
  %v8322 = vpop.permute.xlu0 %8321
  %8325 = vset.pattern.permute.xlu0 64
  %8326 = vperm.xlu0 %8325, %v8256
  %v8327 = vpop.permute.xlu0 %8326
  %8330 = vset.pattern.permute.xlu0 64
  %8331 = vperm.xlu0 %8330, %v8257
  %v8332 = vpop.permute.xlu0 %8331
  %8335 = vset.pattern.permute.xlu0 64
  %8336 = vperm.xlu0 %8335, %v8258
  %v8337 = vpop.permute.xlu0 %8336
  %v8339 = vmul.f32 %v8181, %v8262
  %v8340 = vmul.f32 %v8184, %v8267
  %v8341 = vmul.f32 %v8189, %v8272
  %v8342 = vmul.f32 %v8192, %v8277
  %v8343 = vmul.f32 %v8197, %v8282
  %v8344 = vmul.f32 %v8200, %v8287
  %v8345 = vmul.f32 %v8205, %v8292
  %v8346 = vmul.f32 %v8208, %v8297
  %v8347 = vmul.f32 %v8213, %v8302
  %v8348 = vmul.f32 %v8216, %v8307
  %v8349 = vmul.f32 %v8221, %v8312
  %v8350 = vmul.f32 %v8224, %v8317
  %v8351 = vmul.f32 %v8229, %v8322
  %v8352 = vmul.f32 %v8232, %v8327
  %v8353 = vmul.f32 %v8237, %v8332
  %v8354 = vmul.f32 %v8240, %v8337
  %8363 = vrot.lane.b32.xlu0 %v7833, 64
  %v8364 = vpop.permute.xlu0 %8363
  %8365 = vrot.lane.b32.xlu0 %v7834, 64
  %v8366 = vpop.permute.xlu0 %8365
  %8367 = vrot.lane.b32.xlu0 %v7835, 64
  %v8368 = vpop.permute.xlu0 %8367
  %8369 = vrot.lane.b32.xlu0 %v7836, 64
  %v8370 = vpop.permute.xlu0 %8369
  %8371 = vrot.lane.b32.xlu0 %v7837, 64
  %v8372 = vpop.permute.xlu0 %8371
  %8373 = vrot.lane.b32.xlu0 %v7838, 64
  %v8374 = vpop.permute.xlu0 %8373
  %8375 = vrot.lane.b32.xlu0 %v7839, 64
  %v8376 = vpop.permute.xlu0 %8375
  %8377 = vrot.lane.b32.xlu0 %v7840, 64
  %v8378 = vpop.permute.xlu0 %8377
  %8387 = vrot.lane.b32.xlu0 %v7841, 64
  %v8388 = vpop.permute.xlu0 %8387
  %8389 = vrot.lane.b32.xlu0 %v7842, 64
  %v8390 = vpop.permute.xlu0 %8389
  %8391 = vrot.lane.b32.xlu0 %v7843, 64
  %v8392 = vpop.permute.xlu0 %8391
  %8393 = vrot.lane.b32.xlu0 %v7844, 64
  %v8394 = vpop.permute.xlu0 %8393
  %8395 = vrot.lane.b32.xlu0 %v7845, 64
  %v8396 = vpop.permute.xlu0 %8395
  %8397 = vrot.lane.b32.xlu0 %v7846, 64
  %v8398 = vpop.permute.xlu0 %8397
  %8399 = vrot.lane.b32.xlu0 %v7847, 64
  %v8400 = vpop.permute.xlu0 %8399
  %8401 = vrot.lane.b32.xlu0 %v7848, 64
  %v8402 = vpop.permute.xlu0 %8401
  %v8404 = vsel %vm1261, %v8364, 0
  %v8407 = vsel %vm1261, %v8366, 0
  %v8410 = vsel %vm1261, %v8368, 0
  %v8413 = vsel %vm1261, %v8370, 0
  %v8416 = vsel %vm1261, %v8372, 0
  %v8419 = vsel %vm1261, %v8374, 0
  %v8422 = vsel %vm1261, %v8376, 0
  %v8425 = vsel %vm1261, %v8378, 0
  %v8428 = vsel %vm1261, %v8388, 0
  %v8431 = vsel %vm1261, %v8390, 0
  %v8434 = vsel %vm1261, %v8392, 0
  %v8437 = vsel %vm1261, %v8394, 0
  %v8440 = vsel %vm1261, %v8396, 0
  %v8443 = vsel %vm1261, %v8398, 0
  %v8446 = vsel %vm1261, %v8400, 0
  %v8449 = vsel %vm1261, %v8402, 0
  %8451 = vmatprep.subr.bf16.mxu0 0
  %8452 = vmatpush1.bf16.xpose.msra.mxu0 %v8449
  %8453 = vmatprep.subr.bf16.mxu0 0
  %8454 = vmatpush1.bf16.xpose.msra.mxu0 %v8446
  %8455 = vmatprep.subr.bf16.mxu0 0
  %8456 = vmatpush1.bf16.xpose.msra.mxu0 %v8443
  %8457 = vmatprep.subr.bf16.mxu0 0
  %8458 = vmatpush1.bf16.xpose.msra.mxu0 %v8440
  %8459 = vmatprep.subr.bf16.mxu0 0
  %8460 = vmatpush1.bf16.xpose.msra.mxu0 %v8437
  %8461 = vmatprep.subr.bf16.mxu0 0
  %8462 = vmatpush1.bf16.xpose.msra.mxu0 %v8434
  %8463 = vmatprep.subr.bf16.mxu0 0
  %8464 = vmatpush1.bf16.xpose.msra.mxu0 %v8431
  %8465 = vmatprep.subr.bf16.mxu0 0
  %8466 = vmatpush1.bf16.xpose.msra.mxu0 %v8428
  %8467 = vmatprep.subr.bf16.mxu0 0
  %8468 = vmatpush2.bf16.xpose.msra.mxu0 0
  %8469 = vmatprep.subr.bf16.mxu0 0
  %8470 = vmatpush2.bf16.xpose.msra.mxu0 0
  %8471 = vmatprep.subr.bf16.mxu0 0
  %8472 = vmatpush2.bf16.xpose.msra.mxu0 0
  %8473 = vmatprep.subr.bf16.mxu0 0
  %8474 = vmatpush2.bf16.xpose.msra.mxu0 0
  %8475 = vmatprep.subr.bf16.mxu0 0
  %8476 = vmatpush2.bf16.xpose.msra.mxu0 0
  %8477 = vmatprep.subr.bf16.mxu0 0
  %8478 = vmatpush2.bf16.xpose.msra.mxu0 0
  %8479 = vmatprep.subr.bf16.mxu0 0
  %8480 = vmatpush2.bf16.xpose.msra.mxu0 0
  %8481 = vmatprep.subr.bf16.mxu0 0
  %8482 = vmatpush2.bf16.xpose.msra.mxu0 0
  %8483 = vmatprep.mubr.bf16.mxu0 0
  %8484 = vmatmul.mubr.bf16.gmra.mxu0 %v8404
  %v8485 = vpop.f32.mrf.mxu0
  %v8486 = vadd.f32 0.0, %v8485
  %v8487 = vpop.f32.mrf.mxu0
  %v8488 = vpop.f32.mrf.mxu0
  %v8489 = vadd.f32 0.0, %v8488
  %v8490 = vpop.f32.mrf.mxu0
  %8491 = vmatprep.mubr.bf16.mxu0 0
  %8492 = vmatmul.mubr.bf16.gmra.mxu0 %v8407
  %v8493 = vpop.f32.mrf.mxu0
  %v8494 = vadd.f32 0.0, %v8493
  %v8495 = vpop.f32.mrf.mxu0
  %v8496 = vpop.f32.mrf.mxu0
  %v8497 = vadd.f32 0.0, %v8496
  %v8498 = vpop.f32.mrf.mxu0
  %8499 = vmatprep.mubr.bf16.mxu0 0
  %8500 = vmatmul.mubr.bf16.gmra.mxu0 %v8410
  %v8501 = vpop.f32.mrf.mxu0
  %v8502 = vadd.f32 0.0, %v8501
  %v8503 = vpop.f32.mrf.mxu0
  %v8504 = vpop.f32.mrf.mxu0
  %v8505 = vadd.f32 0.0, %v8504
  %v8506 = vpop.f32.mrf.mxu0
  %8507 = vmatprep.mubr.bf16.mxu0 0
  %8508 = vmatmul.mubr.bf16.gmra.mxu0 %v8413
  %v8509 = vpop.f32.mrf.mxu0
  %v8510 = vadd.f32 0.0, %v8509
  %v8511 = vpop.f32.mrf.mxu0
  %v8512 = vpop.f32.mrf.mxu0
  %v8513 = vadd.f32 0.0, %v8512
  %v8514 = vpop.f32.mrf.mxu0
  %8515 = vmatprep.mubr.bf16.mxu0 0
  %8516 = vmatmul.mubr.bf16.gmra.mxu0 %v8416
  %v8517 = vpop.f32.mrf.mxu0
  %v8518 = vadd.f32 0.0, %v8517
  %v8519 = vpop.f32.mrf.mxu0
  %v8520 = vpop.f32.mrf.mxu0
  %v8521 = vadd.f32 0.0, %v8520
  %v8522 = vpop.f32.mrf.mxu0
  %8523 = vmatprep.mubr.bf16.mxu0 0
  %8524 = vmatmul.mubr.bf16.gmra.mxu0 %v8419
  %v8525 = vpop.f32.mrf.mxu0
  %v8526 = vadd.f32 0.0, %v8525
  %v8527 = vpop.f32.mrf.mxu0
  %v8528 = vpop.f32.mrf.mxu0
  %v8529 = vadd.f32 0.0, %v8528
  %v8530 = vpop.f32.mrf.mxu0
  %8531 = vmatprep.mubr.bf16.mxu0 0
  %8532 = vmatmul.mubr.bf16.gmra.mxu0 %v8422
  %v8533 = vpop.f32.mrf.mxu0
  %v8534 = vadd.f32 0.0, %v8533
  %v8535 = vpop.f32.mrf.mxu0
  %v8536 = vpop.f32.mrf.mxu0
  %v8537 = vadd.f32 0.0, %v8536
  %v8538 = vpop.f32.mrf.mxu0
  %8539 = vmatprep.mubr.bf16.mxu0 0
  %8540 = vmatmul.mubr.bf16.gmra.mxu0 %v8425
  %v8541 = vpop.f32.mrf.mxu0
  %v8542 = vadd.f32 0.0, %v8541
  %v8543 = vpop.f32.mrf.mxu0
  %v8544 = vpop.f32.mrf.mxu0
  %v8545 = vadd.f32 0.0, %v8544
  %v8546 = vpop.f32.mrf.mxu0
  %8547 = vdwg.mxu0
  %v8548 = vmul.f32 %v8486, 0.125
  %v8549 = vmul.f32 %v8489, 0.125
  %v8550 = vmul.f32 %v8494, 0.125
  %v8551 = vmul.f32 %v8497, 0.125
  %v8552 = vmul.f32 %v8502, 0.125
  %v8553 = vmul.f32 %v8505, 0.125
  %v8554 = vmul.f32 %v8510, 0.125
  %v8555 = vmul.f32 %v8513, 0.125
  %v8556 = vmul.f32 %v8518, 0.125
  %v8557 = vmul.f32 %v8521, 0.125
  %v8558 = vmul.f32 %v8526, 0.125
  %v8559 = vmul.f32 %v8529, 0.125
  %v8560 = vmul.f32 %v8534, 0.125
  %v8561 = vmul.f32 %v8537, 0.125
  %v8562 = vmul.f32 %v8542, 0.125
  %v8563 = vmul.f32 %v8545, 0.125
  %v8564 = vadd.f32 %v8548, %v2603
  %v8565 = vadd.f32 %v8549, %v2603
  %v8566 = vadd.f32 %v8550, %v2603
  %v8567 = vadd.f32 %v8551, %v2603
  %v8568 = vadd.f32 %v8552, %v2603
  %v8569 = vadd.f32 %v8553, %v2603
  %v8570 = vadd.f32 %v8554, %v2603
  %v8571 = vadd.f32 %v8555, %v2603
  %v8572 = vadd.f32 %v8556, %v2603
  %v8573 = vadd.f32 %v8557, %v2603
  %v8574 = vadd.f32 %v8558, %v2603
  %v8575 = vadd.f32 %v8559, %v2603
  %v8576 = vadd.f32 %v8560, %v2603
  %v8577 = vadd.f32 %v8561, %v2603
  %v8578 = vadd.f32 %v8562, %v2603
  %v8579 = vadd.f32 %v8563, %v2603
  %8580 = vmax.xlane.f32.xlu0 %v8564
  %v8581 = vpop.xlane.xlu0 %8580
  %8582 = vmax.xlane.f32.xlu0 %v8565
  %v8583 = vpop.xlane.xlu0 %8582
  %8584 = vmax.xlane.f32.xlu0 %v8566
  %v8585 = vpop.xlane.xlu0 %8584
  %8586 = vmax.xlane.f32.xlu0 %v8567
  %v8587 = vpop.xlane.xlu0 %8586
  %8588 = vmax.xlane.f32.xlu0 %v8568
  %v8589 = vpop.xlane.xlu0 %8588
  %8590 = vmax.xlane.f32.xlu0 %v8569
  %v8591 = vpop.xlane.xlu0 %8590
  %8592 = vmax.xlane.f32.xlu0 %v8570
  %v8593 = vpop.xlane.xlu0 %8592
  %8594 = vmax.xlane.f32.xlu0 %v8571
  %v8595 = vpop.xlane.xlu0 %8594
  %8596 = vmax.xlane.f32.xlu0 %v8572
  %v8597 = vpop.xlane.xlu0 %8596
  %8598 = vmax.xlane.f32.xlu0 %v8573
  %v8599 = vpop.xlane.xlu0 %8598
  %8600 = vmax.xlane.f32.xlu0 %v8574
  %v8601 = vpop.xlane.xlu0 %8600
  %8602 = vmax.xlane.f32.xlu0 %v8575
  %v8603 = vpop.xlane.xlu0 %8602
  %8604 = vmax.xlane.f32.xlu0 %v8576
  %v8605 = vpop.xlane.xlu0 %8604
  %8606 = vmax.xlane.f32.xlu0 %v8577
  %v8607 = vpop.xlane.xlu0 %8606
  %8608 = vmax.xlane.f32.xlu0 %v8578
  %v8609 = vpop.xlane.xlu0 %8608
  %8610 = vmax.xlane.f32.xlu0 %v8579
  %v8611 = vpop.xlane.xlu0 %8610
  %v8612 = vsub.f32 %v8564, %v8581
  %v8613 = vsub.f32 %v8565, %v8583
  %v8614 = vsub.f32 %v8566, %v8585
  %v8615 = vsub.f32 %v8567, %v8587
  %v8616 = vsub.f32 %v8568, %v8589
  %v8617 = vsub.f32 %v8569, %v8591
  %v8618 = vsub.f32 %v8570, %v8593
  %v8619 = vsub.f32 %v8571, %v8595
  %v8620 = vsub.f32 %v8572, %v8597
  %v8621 = vsub.f32 %v8573, %v8599
  %v8622 = vsub.f32 %v8574, %v8601
  %v8623 = vsub.f32 %v8575, %v8603
  %v8624 = vsub.f32 %v8576, %v8605
  %v8625 = vsub.f32 %v8577, %v8607
  %v8626 = vsub.f32 %v8578, %v8609
  %v8627 = vsub.f32 %v8579, %v8611
  %v8628 = vmul.f32 %v8612, 1.442695
  %v8629 = vpow.pop %v8628
  %v8630 = vmul.f32 %v8613, 1.442695
  %v8631 = vpow.pop %v8630
  %v8632 = vmul.f32 %v8614, 1.442695
  %v8633 = vpow.pop %v8632
  %v8634 = vmul.f32 %v8615, 1.442695
  %v8635 = vpow.pop %v8634
  %v8636 = vmul.f32 %v8616, 1.442695
  %v8637 = vpow.pop %v8636
  %v8638 = vmul.f32 %v8617, 1.442695
  %v8639 = vpow.pop %v8638
  %v8640 = vmul.f32 %v8618, 1.442695
  %v8641 = vpow.pop %v8640
  %v8642 = vmul.f32 %v8619, 1.442695
  %v8643 = vpow.pop %v8642
  %v8644 = vmul.f32 %v8620, 1.442695
  %v8645 = vpow.pop %v8644
  %v8646 = vmul.f32 %v8621, 1.442695
  %v8647 = vpow.pop %v8646
  %v8648 = vmul.f32 %v8622, 1.442695
  %v8649 = vpow.pop %v8648
  %v8650 = vmul.f32 %v8623, 1.442695
  %v8651 = vpow.pop %v8650
  %v8652 = vmul.f32 %v8624, 1.442695
  %v8653 = vpow.pop %v8652
  %v8654 = vmul.f32 %v8625, 1.442695
  %v8655 = vpow.pop %v8654
  %v8656 = vmul.f32 %v8626, 1.442695
  %v8657 = vpow.pop %v8656
  %v8658 = vmul.f32 %v8627, 1.442695
  %v8659 = vpow.pop %v8658
  %8668 = vrot.lane.b32.xlu0 %v7849, 64
  %v8669 = vpop.permute.xlu0 %8668
  %8670 = vrot.lane.b32.xlu0 %v7850, 64
  %v8671 = vpop.permute.xlu0 %8670
  %8672 = vrot.lane.b32.xlu0 %v7851, 64
  %v8673 = vpop.permute.xlu0 %8672
  %8674 = vrot.lane.b32.xlu0 %v7852, 64
  %v8675 = vpop.permute.xlu0 %8674
  %8676 = vrot.lane.b32.xlu0 %v7853, 64
  %v8677 = vpop.permute.xlu0 %8676
  %8678 = vrot.lane.b32.xlu0 %v7854, 64
  %v8679 = vpop.permute.xlu0 %8678
  %8680 = vrot.lane.b32.xlu0 %v7855, 64
  %v8681 = vpop.permute.xlu0 %8680
  %8682 = vrot.lane.b32.xlu0 %v7856, 64
  %v8683 = vpop.permute.xlu0 %8682
  %v8685 = vsel %vm1261, %v8669, 1065369472
  %v8688 = vsel %vm1261, %v8671, 1065369472
  %v8691 = vsel %vm1261, %v8673, 1065369472
  %v8694 = vsel %vm1261, %v8675, 1065369472
  %v8697 = vsel %vm1261, %v8677, 1065369472
  %v8700 = vsel %vm1261, %v8679, 1065369472
  %v8703 = vsel %vm1261, %v8681, 1065369472
  %v8706 = vsel %vm1261, %v8683, 1065369472
  %v8708 = vpack.c.bf16 %v8631, %v8629
  %v8709 = vpack.c.bf16 %v8635, %v8633
  %v8710 = vpack.c.bf16 %v8639, %v8637
  %v8711 = vpack.c.bf16 %v8643, %v8641
  %v8712 = vpack.c.bf16 %v8647, %v8645
  %v8713 = vpack.c.bf16 %v8651, %v8649
  %v8714 = vpack.c.bf16 %v8655, %v8653
  %v8715 = vpack.c.bf16 %v8659, %v8657
  %8716 = vmatprep.subr.bf16.mxu0 0
  %8717 = vmatpush1.bf16.msra.mxu0 %v8706
  %8718 = vmatprep.subr.bf16.mxu0 0
  %8719 = vmatpush1.bf16.msra.mxu0 %v8703
  %8720 = vmatprep.subr.bf16.mxu0 0
  %8721 = vmatpush1.bf16.msra.mxu0 %v8700
  %8722 = vmatprep.subr.bf16.mxu0 0
  %8723 = vmatpush1.bf16.msra.mxu0 %v8697
  %8724 = vmatprep.subr.bf16.mxu0 0
  %8725 = vmatpush1.bf16.msra.mxu0 %v8694
  %8726 = vmatprep.subr.bf16.mxu0 0
  %8727 = vmatpush1.bf16.msra.mxu0 %v8691
  %8728 = vmatprep.subr.bf16.mxu0 0
  %8729 = vmatpush1.bf16.msra.mxu0 %v8688
  %8730 = vmatprep.subr.bf16.mxu0 0
  %8731 = vmatpush1.bf16.msra.mxu0 %v8685
  %8732 = vmatprep.subr.bf16.mxu0 0
  %8733 = vmatpush2.bf16.msra.mxu0 0
  %8734 = vmatprep.subr.bf16.mxu0 0
  %8735 = vmatpush2.bf16.msra.mxu0 0
  %8736 = vmatprep.subr.bf16.mxu0 0
  %8737 = vmatpush2.bf16.msra.mxu0 0
  %8738 = vmatprep.subr.bf16.mxu0 0
  %8739 = vmatpush2.bf16.msra.mxu0 0
  %8740 = vmatprep.subr.bf16.mxu0 0
  %8741 = vmatpush2.bf16.msra.mxu0 0
  %8742 = vmatprep.subr.bf16.mxu0 0
  %8743 = vmatpush2.bf16.msra.mxu0 0
  %8744 = vmatprep.subr.bf16.mxu0 0
  %8745 = vmatpush2.bf16.msra.mxu0 0
  %8746 = vmatprep.subr.bf16.mxu0 0
  %8747 = vmatpush2.bf16.msra.mxu0 0
  %8748 = vmatprep.mubr.bf16.mxu0 0
  %8749 = vmatmul.mubr.bf16.gmra.mxu0 %v8708
  %v8750 = vpop.f32.mrf.mxu0
  %v8751 = vadd.f32 0.0, %v8750
  %v8752 = vpop.f32.mrf.mxu0
  %v8753 = vpop.f32.mrf.mxu0
  %v8754 = vadd.f32 0.0, %v8753
  %v8755 = vpop.f32.mrf.mxu0
  %8756 = vmatprep.mubr.bf16.mxu0 0
  %8757 = vmatmul.mubr.bf16.gmra.mxu0 %v8709
  %v8758 = vpop.f32.mrf.mxu0
  %v8759 = vadd.f32 0.0, %v8758
  %v8760 = vpop.f32.mrf.mxu0
  %v8761 = vpop.f32.mrf.mxu0
  %v8762 = vadd.f32 0.0, %v8761
  %v8763 = vpop.f32.mrf.mxu0
  %8764 = vmatprep.mubr.bf16.mxu0 0
  %8765 = vmatmul.mubr.bf16.gmra.mxu0 %v8710
  %v8766 = vpop.f32.mrf.mxu0
  %v8767 = vadd.f32 0.0, %v8766
  %v8768 = vpop.f32.mrf.mxu0
  %v8769 = vpop.f32.mrf.mxu0
  %v8770 = vadd.f32 0.0, %v8769
  %v8771 = vpop.f32.mrf.mxu0
  %8772 = vmatprep.mubr.bf16.mxu0 0
  %8773 = vmatmul.mubr.bf16.gmra.mxu0 %v8711
  %v8774 = vpop.f32.mrf.mxu0
  %v8775 = vadd.f32 0.0, %v8774
  %v8776 = vpop.f32.mrf.mxu0
  %v8777 = vpop.f32.mrf.mxu0
  %v8778 = vadd.f32 0.0, %v8777
  %v8779 = vpop.f32.mrf.mxu0
  %8780 = vmatprep.mubr.bf16.mxu0 0
  %8781 = vmatmul.mubr.bf16.gmra.mxu0 %v8712
  %v8782 = vpop.f32.mrf.mxu0
  %v8783 = vadd.f32 0.0, %v8782
  %v8784 = vpop.f32.mrf.mxu0
  %v8785 = vpop.f32.mrf.mxu0
  %v8786 = vadd.f32 0.0, %v8785
  %v8787 = vpop.f32.mrf.mxu0
  %8788 = vmatprep.mubr.bf16.mxu0 0
  %8789 = vmatmul.mubr.bf16.gmra.mxu0 %v8713
  %v8790 = vpop.f32.mrf.mxu0
  %v8791 = vadd.f32 0.0, %v8790
  %v8792 = vpop.f32.mrf.mxu0
  %v8793 = vpop.f32.mrf.mxu0
  %v8794 = vadd.f32 0.0, %v8793
  %v8795 = vpop.f32.mrf.mxu0
  %8796 = vmatprep.mubr.bf16.mxu0 0
  %8797 = vmatmul.mubr.bf16.gmra.mxu0 %v8714
  %v8798 = vpop.f32.mrf.mxu0
  %v8799 = vadd.f32 0.0, %v8798
  %v8800 = vpop.f32.mrf.mxu0
  %v8801 = vpop.f32.mrf.mxu0
  %v8802 = vadd.f32 0.0, %v8801
  %v8803 = vpop.f32.mrf.mxu0
  %8804 = vmatprep.mubr.bf16.mxu0 0
  %8805 = vmatmul.mubr.bf16.gmra.mxu0 %v8715
  %v8806 = vpop.f32.mrf.mxu0
  %v8807 = vadd.f32 0.0, %v8806
  %v8808 = vpop.f32.mrf.mxu0
  %v8809 = vpop.f32.mrf.mxu0
  %v8810 = vadd.f32 0.0, %v8809
  %v8811 = vpop.f32.mrf.mxu0
  %8812 = vdwg.mxu0
  %v8813 = vrcp.pop %v8751
  %v8814 = vrcp.pop %v8754
  %v8815 = vrcp.pop %v8759
  %v8816 = vrcp.pop %v8762
  %v8817 = vrcp.pop %v8767
  %v8818 = vrcp.pop %v8770
  %v8819 = vrcp.pop %v8775
  %v8820 = vrcp.pop %v8778
  %v8821 = vrcp.pop %v8783
  %v8822 = vrcp.pop %v8786
  %v8823 = vrcp.pop %v8791
  %v8824 = vrcp.pop %v8794
  %v8825 = vrcp.pop %v8799
  %v8826 = vrcp.pop %v8802
  %v8827 = vrcp.pop %v8807
  %v8828 = vrcp.pop %v8810
  %8830 = vset.pattern.permute.xlu0 64
  %8831 = vperm.xlu0 %8830, %v8813
  %v8832 = vpop.permute.xlu0 %8831
  %8835 = vset.pattern.permute.xlu0 64
  %8836 = vperm.xlu0 %8835, %v8814
  %v8837 = vpop.permute.xlu0 %8836
  %8840 = vset.pattern.permute.xlu0 64
  %8841 = vperm.xlu0 %8840, %v8815
  %v8842 = vpop.permute.xlu0 %8841
  %8845 = vset.pattern.permute.xlu0 64
  %8846 = vperm.xlu0 %8845, %v8816
  %v8847 = vpop.permute.xlu0 %8846
  %8850 = vset.pattern.permute.xlu0 64
  %8851 = vperm.xlu0 %8850, %v8817
  %v8852 = vpop.permute.xlu0 %8851
  %8855 = vset.pattern.permute.xlu0 64
  %8856 = vperm.xlu0 %8855, %v8818
  %v8857 = vpop.permute.xlu0 %8856
  %8860 = vset.pattern.permute.xlu0 64
  %8861 = vperm.xlu0 %8860, %v8819
  %v8862 = vpop.permute.xlu0 %8861
  %8865 = vset.pattern.permute.xlu0 64
  %8866 = vperm.xlu0 %8865, %v8820
  %v8867 = vpop.permute.xlu0 %8866
  %8870 = vset.pattern.permute.xlu0 64
  %8871 = vperm.xlu0 %8870, %v8821
  %v8872 = vpop.permute.xlu0 %8871
  %8875 = vset.pattern.permute.xlu0 64
  %8876 = vperm.xlu0 %8875, %v8822
  %v8877 = vpop.permute.xlu0 %8876
  %8880 = vset.pattern.permute.xlu0 64
  %8881 = vperm.xlu0 %8880, %v8823
  %v8882 = vpop.permute.xlu0 %8881
  %8885 = vset.pattern.permute.xlu0 64
  %8886 = vperm.xlu0 %8885, %v8824
  %v8887 = vpop.permute.xlu0 %8886
  %8890 = vset.pattern.permute.xlu0 64
  %8891 = vperm.xlu0 %8890, %v8825
  %v8892 = vpop.permute.xlu0 %8891
  %8895 = vset.pattern.permute.xlu0 64
  %8896 = vperm.xlu0 %8895, %v8826
  %v8897 = vpop.permute.xlu0 %8896
  %8900 = vset.pattern.permute.xlu0 64
  %8901 = vperm.xlu0 %8900, %v8827
  %v8902 = vpop.permute.xlu0 %8901
  %8905 = vset.pattern.permute.xlu0 64
  %8906 = vperm.xlu0 %8905, %v8828
  %v8907 = vpop.permute.xlu0 %8906
  %v8909 = vmul.f32 %v8751, %v8832
  %v8910 = vmul.f32 %v8754, %v8837
  %v8911 = vmul.f32 %v8759, %v8842
  %v8912 = vmul.f32 %v8762, %v8847
  %v8913 = vmul.f32 %v8767, %v8852
  %v8914 = vmul.f32 %v8770, %v8857
  %v8915 = vmul.f32 %v8775, %v8862
  %v8916 = vmul.f32 %v8778, %v8867
  %v8917 = vmul.f32 %v8783, %v8872
  %v8918 = vmul.f32 %v8786, %v8877
  %v8919 = vmul.f32 %v8791, %v8882
  %v8920 = vmul.f32 %v8794, %v8887
  %v8921 = vmul.f32 %v8799, %v8892
  %v8922 = vmul.f32 %v8802, %v8897
  %v8923 = vmul.f32 %v8807, %v8902
  %v8924 = vmul.f32 %v8810, %v8907
  %8941 = vrot.lane.b32.xlu0 %v8909, 64
  %v8942 = vpop.permute.xlu0 %8941
  %8943 = vrot.lane.b32.xlu0 %v8910, 64
  %v8944 = vpop.permute.xlu0 %8943
  %8945 = vrot.lane.b32.xlu0 %v8911, 64
  %v8946 = vpop.permute.xlu0 %8945
  %8947 = vrot.lane.b32.xlu0 %v8912, 64
  %v8948 = vpop.permute.xlu0 %8947
  %8949 = vrot.lane.b32.xlu0 %v8913, 64
  %v8950 = vpop.permute.xlu0 %8949
  %8951 = vrot.lane.b32.xlu0 %v8914, 64
  %v8952 = vpop.permute.xlu0 %8951
  %8953 = vrot.lane.b32.xlu0 %v8915, 64
  %v8954 = vpop.permute.xlu0 %8953
  %8955 = vrot.lane.b32.xlu0 %v8916, 64
  %v8956 = vpop.permute.xlu0 %8955
  %8957 = vrot.lane.b32.xlu0 %v8917, 64
  %v8958 = vpop.permute.xlu0 %8957
  %8959 = vrot.lane.b32.xlu0 %v8918, 64
  %v8960 = vpop.permute.xlu0 %8959
  %8961 = vrot.lane.b32.xlu0 %v8919, 64
  %v8962 = vpop.permute.xlu0 %8961
  %8963 = vrot.lane.b32.xlu0 %v8920, 64
  %v8964 = vpop.permute.xlu0 %8963
  %8965 = vrot.lane.b32.xlu0 %v8921, 64
  %v8966 = vpop.permute.xlu0 %8965
  %8967 = vrot.lane.b32.xlu0 %v8922, 64
  %v8968 = vpop.permute.xlu0 %8967
  %8969 = vrot.lane.b32.xlu0 %v8923, 64
  %v8970 = vpop.permute.xlu0 %8969
  %8971 = vrot.lane.b32.xlu0 %v8924, 64
  %v8972 = vpop.permute.xlu0 %8971
  %v8989 = vsel %vm1261, %v8339, %v8942
  %v8990 = vsel %vm1261, %v8340, %v8944
  %v8991 = vsel %vm1261, %v8341, %v8946
  %v8992 = vsel %vm1261, %v8342, %v8948
  %v8993 = vsel %vm1261, %v8343, %v8950
  %v8994 = vsel %vm1261, %v8344, %v8952
  %v8995 = vsel %vm1261, %v8345, %v8954
  %v8996 = vsel %vm1261, %v8346, %v8956
  %v8997 = vsel %vm1261, %v8347, %v8958
  %v8998 = vsel %vm1261, %v8348, %v8960
  %v8999 = vsel %vm1261, %v8349, %v8962
  %v9000 = vsel %vm1261, %v8350, %v8964
  %v9001 = vsel %vm1261, %v8351, %v8966
  %v9002 = vsel %vm1261, %v8352, %v8968
  %v9003 = vsel %vm1261, %v8353, %v8970
  %v9004 = vsel %vm1261, %v8354, %v8972
  %v9005 = vpack.c.bf16 %v7818, %v7817
  %v9006 = vpack.c.bf16 %v7820, %v7819
  %v9007 = vpack.c.bf16 %v7822, %v7821
  %v9008 = vpack.c.bf16 %v7824, %v7823
  %v9009 = vpack.c.bf16 %v7826, %v7825
  %v9010 = vpack.c.bf16 %v7828, %v7827
  %v9011 = vpack.c.bf16 %v7830, %v7829
  %v9012 = vpack.c.bf16 %v7832, %v7831
  %v9013 = vpack.c.bf16 %v8990, %v8989
  %v9014 = vpack.c.bf16 %v8992, %v8991
  %v9015 = vpack.c.bf16 %v8994, %v8993
  %v9016 = vpack.c.bf16 %v8996, %v8995
  %v9017 = vpack.c.bf16 %v8998, %v8997
  %v9018 = vpack.c.bf16 %v9000, %v8999
  %v9019 = vpack.c.bf16 %v9002, %v9001
  %v9020 = vpack.c.bf16 %v9004, %v9003
  %s9021 = scalar_lea.vmem %s8, 64
  %v9022 = vld [vmem:[%s9021] sm:$0xf]
  %v9023 = vld [vmem:[%s9021 + $0x4] sm:$0xf]
  %v9024 = vld [vmem:[%s9021 + $0x8] sm:$0xf]
  %v9025 = vld [vmem:[%s9021 + $0xc] sm:$0xf]
  %v9026 = vld [vmem:[%s9021 + $0x10] sm:$0xf]
  %v9027 = vld [vmem:[%s9021 + $0x14] sm:$0xf]
  %v9028 = vld [vmem:[%s9021 + $0x18] sm:$0xf]
  %v9029 = vld [vmem:[%s9021 + $0x1c] sm:$0xf]
  %v9030 = vld [vmem:[%s9021 + $0x20] sm:$0xf]
  %v9031 = vld [vmem:[%s9021 + $0x24] sm:$0xf]
  %v9032 = vld [vmem:[%s9021 + $0x28] sm:$0xf]
  %v9033 = vld [vmem:[%s9021 + $0x2c] sm:$0xf]
  %v9034 = vld [vmem:[%s9021 + $0x30] sm:$0xf]
  %v9035 = vld [vmem:[%s9021 + $0x34] sm:$0xf]
  %v9036 = vld [vmem:[%s9021 + $0x38] sm:$0xf]
  %v9037 = vld [vmem:[%s9021 + $0x3c] sm:$0xf]
  %s9038 = scalar_lea.vmem %s9, 1
  %v9039 = vld [vmem:[%s9038] sm:$0x1]
  %v9041 = vlaneseq
  %v9042 = vshrl.u32 %v9041, 7
  %v9043 = vsub.s32 0, %v9042
  %v9044 = vrot.slane %v9039, %v9043
  %v9062 = vunpack.c.l.b16 %v9022
  %v9063 = vunpack.c.l.b16 %v9023
  %v9064 = vunpack.c.l.b16 %v9024
  %v9065 = vunpack.c.l.b16 %v9025
  %v9066 = vunpack.c.l.b16 %v9026
  %v9067 = vunpack.c.l.b16 %v9027
  %v9068 = vunpack.c.l.b16 %v9028
  %v9069 = vunpack.c.l.b16 %v9029
  %v9070 = vunpack.c.l.b16 %v9030
  %v9071 = vunpack.c.l.b16 %v9031
  %v9072 = vunpack.c.l.b16 %v9032
  %v9073 = vunpack.c.l.b16 %v9033
  %v9074 = vunpack.c.l.b16 %v9034
  %v9075 = vunpack.c.l.b16 %v9035
  %v9076 = vunpack.c.l.b16 %v9036
  %v9077 = vunpack.c.l.b16 %v9037
  %v9078 = vpack.c.b16 %v9063, %v9062
  %v9079 = vpack.c.b16 %v9065, %v9064
  %v9080 = vpack.c.b16 %v9067, %v9066
  %v9081 = vpack.c.b16 %v9069, %v9068
  %v9082 = vpack.c.b16 %v9071, %v9070
  %v9083 = vpack.c.b16 %v9073, %v9072
  %v9084 = vpack.c.b16 %v9075, %v9074
  %v9085 = vpack.c.b16 %v9077, %v9076
  %9094 = vmatprep.subr.bf16.mxu0 0
  %9095 = vmatpush1.bf16.msra.mxu0 %v9085
  %9096 = vmatprep.subr.bf16.mxu0 0
  %9097 = vmatpush1.bf16.msra.mxu0 %v9084
  %9098 = vmatprep.subr.bf16.mxu0 0
  %9099 = vmatpush1.bf16.msra.mxu0 %v9083
  %9100 = vmatprep.subr.bf16.mxu0 0
  %9101 = vmatpush1.bf16.msra.mxu0 %v9082
  %9102 = vmatprep.subr.bf16.mxu0 0
  %9103 = vmatpush1.bf16.msra.mxu0 %v9081
  %9104 = vmatprep.subr.bf16.mxu0 0
  %9105 = vmatpush1.bf16.msra.mxu0 %v9080
  %9106 = vmatprep.subr.bf16.mxu0 0
  %9107 = vmatpush1.bf16.msra.mxu0 %v9079
  %9108 = vmatprep.subr.bf16.mxu0 0
  %9109 = vmatpush1.bf16.msra.mxu0 %v9078
  %9110 = vmatprep.subr.bf16.mxu0 0
  %9111 = vmatpush2.bf16.msra.mxu0 0
  %9112 = vmatprep.subr.bf16.mxu0 0
  %9113 = vmatpush2.bf16.msra.mxu0 0
  %9114 = vmatprep.subr.bf16.mxu0 0
  %9115 = vmatpush2.bf16.msra.mxu0 0
  %9116 = vmatprep.subr.bf16.mxu0 0
  %9117 = vmatpush2.bf16.msra.mxu0 0
  %9118 = vmatprep.subr.bf16.mxu0 0
  %9119 = vmatpush2.bf16.msra.mxu0 0
  %9120 = vmatprep.subr.bf16.mxu0 0
  %9121 = vmatpush2.bf16.msra.mxu0 0
  %9122 = vmatprep.subr.bf16.mxu0 0
  %9123 = vmatpush2.bf16.msra.mxu0 0
  %9124 = vmatprep.subr.bf16.mxu0 0
  %9125 = vmatpush2.bf16.msra.mxu0 0
  %9126 = vmatprep.mubr.bf16.mxu0 0
  %9127 = vmatmul.mubr.bf16.gmra.mxu0 %v9005
  %v9128 = vpop.f32.mrf.mxu0
  %v9129 = vadd.f32 %v9044, %v9128
  %v9130 = vpop.f32.mrf.mxu0
  %v9131 = vpop.f32.mrf.mxu0
  %v9132 = vadd.f32 %v9044, %v9131
  %v9133 = vpop.f32.mrf.mxu0
  %9134 = vmatprep.mubr.bf16.mxu0 0
  %9135 = vmatmul.mubr.bf16.gmra.mxu0 %v9006
  %v9136 = vpop.f32.mrf.mxu0
  %v9137 = vadd.f32 %v9044, %v9136
  %v9138 = vpop.f32.mrf.mxu0
  %v9139 = vpop.f32.mrf.mxu0
  %v9140 = vadd.f32 %v9044, %v9139
  %v9141 = vpop.f32.mrf.mxu0
  %9142 = vmatprep.mubr.bf16.mxu0 0
  %9143 = vmatmul.mubr.bf16.gmra.mxu0 %v9007
  %v9144 = vpop.f32.mrf.mxu0
  %v9145 = vadd.f32 %v9044, %v9144
  %v9146 = vpop.f32.mrf.mxu0
  %v9147 = vpop.f32.mrf.mxu0
  %v9148 = vadd.f32 %v9044, %v9147
  %v9149 = vpop.f32.mrf.mxu0
  %9150 = vmatprep.mubr.bf16.mxu0 0
  %9151 = vmatmul.mubr.bf16.gmra.mxu0 %v9008
  %v9152 = vpop.f32.mrf.mxu0
  %v9153 = vadd.f32 %v9044, %v9152
  %v9154 = vpop.f32.mrf.mxu0
  %v9155 = vpop.f32.mrf.mxu0
  %v9156 = vadd.f32 %v9044, %v9155
  %v9157 = vpop.f32.mrf.mxu0
  %9158 = vmatprep.mubr.bf16.mxu0 0
  %9159 = vmatmul.mubr.bf16.gmra.mxu0 %v9009
  %v9160 = vpop.f32.mrf.mxu0
  %v9161 = vadd.f32 %v9044, %v9160
  %v9162 = vpop.f32.mrf.mxu0
  %v9163 = vpop.f32.mrf.mxu0
  %v9164 = vadd.f32 %v9044, %v9163
  %v9165 = vpop.f32.mrf.mxu0
  %9166 = vmatprep.mubr.bf16.mxu0 0
  %9167 = vmatmul.mubr.bf16.gmra.mxu0 %v9010
  %v9168 = vpop.f32.mrf.mxu0
  %v9169 = vadd.f32 %v9044, %v9168
  %v9170 = vpop.f32.mrf.mxu0
  %v9171 = vpop.f32.mrf.mxu0
  %v9172 = vadd.f32 %v9044, %v9171
  %v9173 = vpop.f32.mrf.mxu0
  %9174 = vmatprep.mubr.bf16.mxu0 0
  %9175 = vmatmul.mubr.bf16.gmra.mxu0 %v9011
  %v9176 = vpop.f32.mrf.mxu0
  %v9177 = vadd.f32 %v9044, %v9176
  %v9178 = vpop.f32.mrf.mxu0
  %v9179 = vpop.f32.mrf.mxu0
  %v9180 = vadd.f32 %v9044, %v9179
  %v9181 = vpop.f32.mrf.mxu0
  %9182 = vmatprep.mubr.bf16.mxu0 0
  %9183 = vmatmul.mubr.bf16.gmra.mxu0 %v9012
  %v9184 = vpop.f32.mrf.mxu0
  %v9185 = vadd.f32 %v9044, %v9184
  %v9186 = vpop.f32.mrf.mxu0
  %v9187 = vpop.f32.mrf.mxu0
  %v9188 = vadd.f32 %v9044, %v9187
  %v9189 = vpop.f32.mrf.mxu0
  %9190 = vmatprep.mubr.bf16.mxu0 0
  %9191 = vmatmul.mubr.bf16.gmra.mxu0 %v9013
  %v9192 = vpop.f32.mrf.mxu0
  %v9193 = vadd.f32 %v9044, %v9192
  %v9194 = vpop.f32.mrf.mxu0
  %v9195 = vpop.f32.mrf.mxu0
  %v9196 = vadd.f32 %v9044, %v9195
  %v9197 = vpop.f32.mrf.mxu0
  %9198 = vmatprep.mubr.bf16.mxu0 0
  %9199 = vmatmul.mubr.bf16.gmra.mxu0 %v9014
  %v9200 = vpop.f32.mrf.mxu0
  %v9201 = vadd.f32 %v9044, %v9200
  %v9202 = vpop.f32.mrf.mxu0
  %v9203 = vpop.f32.mrf.mxu0
  %v9204 = vadd.f32 %v9044, %v9203
  %v9205 = vpop.f32.mrf.mxu0
  %9206 = vmatprep.mubr.bf16.mxu0 0
  %9207 = vmatmul.mubr.bf16.gmra.mxu0 %v9015
  %v9208 = vpop.f32.mrf.mxu0
  %v9209 = vadd.f32 %v9044, %v9208
  %v9210 = vpop.f32.mrf.mxu0
  %v9211 = vpop.f32.mrf.mxu0
  %v9212 = vadd.f32 %v9044, %v9211
  %v9213 = vpop.f32.mrf.mxu0
  %9214 = vmatprep.mubr.bf16.mxu0 0
  %9215 = vmatmul.mubr.bf16.gmra.mxu0 %v9016
  %v9216 = vpop.f32.mrf.mxu0
  %v9217 = vadd.f32 %v9044, %v9216
  %v9218 = vpop.f32.mrf.mxu0
  %v9219 = vpop.f32.mrf.mxu0
  %v9220 = vadd.f32 %v9044, %v9219
  %v9221 = vpop.f32.mrf.mxu0
  %9222 = vmatprep.mubr.bf16.mxu0 0
  %9223 = vmatmul.mubr.bf16.gmra.mxu0 %v9017
  %v9224 = vpop.f32.mrf.mxu0
  %v9225 = vadd.f32 %v9044, %v9224
  %v9226 = vpop.f32.mrf.mxu0
  %v9227 = vpop.f32.mrf.mxu0
  %v9228 = vadd.f32 %v9044, %v9227
  %v9229 = vpop.f32.mrf.mxu0
  %9230 = vmatprep.mubr.bf16.mxu0 0
  %9231 = vmatmul.mubr.bf16.gmra.mxu0 %v9018
  %v9232 = vpop.f32.mrf.mxu0
  %v9233 = vadd.f32 %v9044, %v9232
  %v9234 = vpop.f32.mrf.mxu0
  %v9235 = vpop.f32.mrf.mxu0
  %v9236 = vadd.f32 %v9044, %v9235
  %v9237 = vpop.f32.mrf.mxu0
  %9238 = vmatprep.mubr.bf16.mxu0 0
  %9239 = vmatmul.mubr.bf16.gmra.mxu0 %v9019
  %v9240 = vpop.f32.mrf.mxu0
  %v9241 = vadd.f32 %v9044, %v9240
  %v9242 = vpop.f32.mrf.mxu0
  %v9243 = vpop.f32.mrf.mxu0
  %v9244 = vadd.f32 %v9044, %v9243
  %v9245 = vpop.f32.mrf.mxu0
  %9246 = vmatprep.mubr.bf16.mxu0 0
  %9247 = vmatmul.mubr.bf16.gmra.mxu0 %v9020
  %v9248 = vpop.f32.mrf.mxu0
  %v9249 = vadd.f32 %v9044, %v9248
  %v9250 = vpop.f32.mrf.mxu0
  %v9251 = vpop.f32.mrf.mxu0
  %v9252 = vadd.f32 %v9044, %v9251
  %v9253 = vpop.f32.mrf.mxu0
  %9254 = vdwg.mxu0
  %v9255 = vadd.f32 %v9129, %v6080
  %v9256 = vadd.f32 %v9132, %v6081
  %v9257 = vadd.f32 %v9137, %v6082
  %v9258 = vadd.f32 %v9140, %v6083
  %v9259 = vadd.f32 %v9145, %v6084
  %v9260 = vadd.f32 %v9148, %v6085
  %v9261 = vadd.f32 %v9153, %v6086
  %v9262 = vadd.f32 %v9156, %v6087
  %v9263 = vadd.f32 %v9161, %v6088
  %v9264 = vadd.f32 %v9164, %v6089
  %v9265 = vadd.f32 %v9169, %v6090
  %v9266 = vadd.f32 %v9172, %v6091
  %v9267 = vadd.f32 %v9177, %v6092
  %v9268 = vadd.f32 %v9180, %v6093
  %v9269 = vadd.f32 %v9185, %v6094
  %v9270 = vadd.f32 %v9188, %v6095
  %v9271 = vadd.f32 %v9193, %v6096
  %v9272 = vadd.f32 %v9196, %v6097
  %v9273 = vadd.f32 %v9201, %v6098
  %v9274 = vadd.f32 %v9204, %v6099
  %v9275 = vadd.f32 %v9209, %v6100
  %v9276 = vadd.f32 %v9212, %v6101
  %v9277 = vadd.f32 %v9217, %v6102
  %v9278 = vadd.f32 %v9220, %v6103
  %v9279 = vadd.f32 %v9225, %v6104
  %v9280 = vadd.f32 %v9228, %v6105
  %v9281 = vadd.f32 %v9233, %v6106
  %v9282 = vadd.f32 %v9236, %v6107
  %v9283 = vadd.f32 %v9241, %v6108
  %v9284 = vadd.f32 %v9244, %v6109
  %v9285 = vadd.f32 %v9249, %v6110
  %v9286 = vadd.f32 %v9252, %v6111
  %s9287 = scalar_lea.vmem %s10, 1
  %v9288 = vld [vmem:[%s9287] sm:$0x1]
  %s9289 = scalar_lea.vmem %s11, 1
  %v9290 = vld [vmem:[%s9289] sm:$0x1]
  %9291 = vadd.xlane.f32.xlu0 %v9255
  %v9292 = vpop.xlane.xlu0 %9291
  %9293 = vadd.xlane.f32.xlu0 %v9256
  %v9294 = vpop.xlane.xlu0 %9293
  %9295 = vadd.xlane.f32.xlu0 %v9257
  %v9296 = vpop.xlane.xlu0 %9295
  %9297 = vadd.xlane.f32.xlu0 %v9258
  %v9298 = vpop.xlane.xlu0 %9297
  %9299 = vadd.xlane.f32.xlu0 %v9259
  %v9300 = vpop.xlane.xlu0 %9299
  %9301 = vadd.xlane.f32.xlu0 %v9260
  %v9302 = vpop.xlane.xlu0 %9301
  %9303 = vadd.xlane.f32.xlu0 %v9261
  %v9304 = vpop.xlane.xlu0 %9303
  %9305 = vadd.xlane.f32.xlu0 %v9262
  %v9306 = vpop.xlane.xlu0 %9305
  %9307 = vadd.xlane.f32.xlu0 %v9263
  %v9308 = vpop.xlane.xlu0 %9307
  %9309 = vadd.xlane.f32.xlu0 %v9264
  %v9310 = vpop.xlane.xlu0 %9309
  %9311 = vadd.xlane.f32.xlu0 %v9265
  %v9312 = vpop.xlane.xlu0 %9311
  %9313 = vadd.xlane.f32.xlu0 %v9266
  %v9314 = vpop.xlane.xlu0 %9313
  %9315 = vadd.xlane.f32.xlu0 %v9267
  %v9316 = vpop.xlane.xlu0 %9315
  %9317 = vadd.xlane.f32.xlu0 %v9268
  %v9318 = vpop.xlane.xlu0 %9317
  %9319 = vadd.xlane.f32.xlu0 %v9269
  %v9320 = vpop.xlane.xlu0 %9319
  %9321 = vadd.xlane.f32.xlu0 %v9270
  %v9322 = vpop.xlane.xlu0 %9321
  %9323 = vadd.xlane.f32.xlu0 %v9271
  %v9324 = vpop.xlane.xlu0 %9323
  %9325 = vadd.xlane.f32.xlu0 %v9272
  %v9326 = vpop.xlane.xlu0 %9325
  %9327 = vadd.xlane.f32.xlu0 %v9273
  %v9328 = vpop.xlane.xlu0 %9327
  %9329 = vadd.xlane.f32.xlu0 %v9274
  %v9330 = vpop.xlane.xlu0 %9329
  %9331 = vadd.xlane.f32.xlu0 %v9275
  %v9332 = vpop.xlane.xlu0 %9331
  %9333 = vadd.xlane.f32.xlu0 %v9276
  %v9334 = vpop.xlane.xlu0 %9333
  %9335 = vadd.xlane.f32.xlu0 %v9277
  %v9336 = vpop.xlane.xlu0 %9335
  %9337 = vadd.xlane.f32.xlu0 %v9278
  %v9338 = vpop.xlane.xlu0 %9337
  %9339 = vadd.xlane.f32.xlu0 %v9279
  %v9340 = vpop.xlane.xlu0 %9339
  %9341 = vadd.xlane.f32.xlu0 %v9280
  %v9342 = vpop.xlane.xlu0 %9341
  %9343 = vadd.xlane.f32.xlu0 %v9281
  %v9344 = vpop.xlane.xlu0 %9343
  %9345 = vadd.xlane.f32.xlu0 %v9282
  %v9346 = vpop.xlane.xlu0 %9345
  %9347 = vadd.xlane.f32.xlu0 %v9283
  %v9348 = vpop.xlane.xlu0 %9347
  %9349 = vadd.xlane.f32.xlu0 %v9284
  %v9350 = vpop.xlane.xlu0 %9349
  %9351 = vadd.xlane.f32.xlu0 %v9285
  %v9352 = vpop.xlane.xlu0 %9351
  %9353 = vadd.xlane.f32.xlu0 %v9286
  %v9354 = vpop.xlane.xlu0 %9353
  %v9355 = vmul.f32 %v9292, %v261
  %v9356 = vmul.f32 %v9294, %v261
  %v9357 = vmul.f32 %v9296, %v261
  %v9358 = vmul.f32 %v9298, %v261
  %v9359 = vmul.f32 %v9300, %v261
  %v9360 = vmul.f32 %v9302, %v261
  %v9361 = vmul.f32 %v9304, %v261
  %v9362 = vmul.f32 %v9306, %v261
  %v9363 = vmul.f32 %v9308, %v261
  %v9364 = vmul.f32 %v9310, %v261
  %v9365 = vmul.f32 %v9312, %v261
  %v9366 = vmul.f32 %v9314, %v261
  %v9367 = vmul.f32 %v9316, %v261
  %v9368 = vmul.f32 %v9318, %v261
  %v9369 = vmul.f32 %v9320, %v261
  %v9370 = vmul.f32 %v9322, %v261
  %v9371 = vmul.f32 %v9324, %v261
  %v9372 = vmul.f32 %v9326, %v261
  %v9373 = vmul.f32 %v9328, %v261
  %v9374 = vmul.f32 %v9330, %v261
  %v9375 = vmul.f32 %v9332, %v261
  %v9376 = vmul.f32 %v9334, %v261
  %v9377 = vmul.f32 %v9336, %v261
  %v9378 = vmul.f32 %v9338, %v261
  %v9379 = vmul.f32 %v9340, %v261
  %v9380 = vmul.f32 %v9342, %v261
  %v9381 = vmul.f32 %v9344, %v261
  %v9382 = vmul.f32 %v9346, %v261
  %v9383 = vmul.f32 %v9348, %v261
  %v9384 = vmul.f32 %v9350, %v261
  %v9385 = vmul.f32 %v9352, %v261
  %v9386 = vmul.f32 %v9354, %v261
  %v9387 = vmul.f32 %v9255, %v9255
  %v9388 = vmul.f32 %v9256, %v9256
  %v9389 = vmul.f32 %v9257, %v9257
  %v9390 = vmul.f32 %v9258, %v9258
  %v9391 = vmul.f32 %v9259, %v9259
  %v9392 = vmul.f32 %v9260, %v9260
  %v9393 = vmul.f32 %v9261, %v9261
  %v9394 = vmul.f32 %v9262, %v9262
  %v9395 = vmul.f32 %v9263, %v9263
  %v9396 = vmul.f32 %v9264, %v9264
  %v9397 = vmul.f32 %v9265, %v9265
  %v9398 = vmul.f32 %v9266, %v9266
  %v9399 = vmul.f32 %v9267, %v9267
  %v9400 = vmul.f32 %v9268, %v9268
  %v9401 = vmul.f32 %v9269, %v9269
  %v9402 = vmul.f32 %v9270, %v9270
  %v9403 = vmul.f32 %v9271, %v9271
  %v9404 = vmul.f32 %v9272, %v9272
  %v9405 = vmul.f32 %v9273, %v9273
  %v9406 = vmul.f32 %v9274, %v9274
  %v9407 = vmul.f32 %v9275, %v9275
  %v9408 = vmul.f32 %v9276, %v9276
  %v9409 = vmul.f32 %v9277, %v9277
  %v9410 = vmul.f32 %v9278, %v9278
  %v9411 = vmul.f32 %v9279, %v9279
  %v9412 = vmul.f32 %v9280, %v9280
  %v9413 = vmul.f32 %v9281, %v9281
  %v9414 = vmul.f32 %v9282, %v9282
  %v9415 = vmul.f32 %v9283, %v9283
  %v9416 = vmul.f32 %v9284, %v9284
  %v9417 = vmul.f32 %v9285, %v9285
  %v9418 = vmul.f32 %v9286, %v9286
  %9419 = vadd.xlane.f32.xlu0 %v9387
  %v9420 = vpop.xlane.xlu0 %9419
  %9421 = vadd.xlane.f32.xlu0 %v9388
  %v9422 = vpop.xlane.xlu0 %9421
  %9423 = vadd.xlane.f32.xlu0 %v9389
  %v9424 = vpop.xlane.xlu0 %9423
  %9425 = vadd.xlane.f32.xlu0 %v9390
  %v9426 = vpop.xlane.xlu0 %9425
  %9427 = vadd.xlane.f32.xlu0 %v9391
  %v9428 = vpop.xlane.xlu0 %9427
  %9429 = vadd.xlane.f32.xlu0 %v9392
  %v9430 = vpop.xlane.xlu0 %9429
  %9431 = vadd.xlane.f32.xlu0 %v9393
  %v9432 = vpop.xlane.xlu0 %9431
  %9433 = vadd.xlane.f32.xlu0 %v9394
  %v9434 = vpop.xlane.xlu0 %9433
  %9435 = vadd.xlane.f32.xlu0 %v9395
  %v9436 = vpop.xlane.xlu0 %9435
  %9437 = vadd.xlane.f32.xlu0 %v9396
  %v9438 = vpop.xlane.xlu0 %9437
  %9439 = vadd.xlane.f32.xlu0 %v9397
  %v9440 = vpop.xlane.xlu0 %9439
  %9441 = vadd.xlane.f32.xlu0 %v9398
  %v9442 = vpop.xlane.xlu0 %9441
  %9443 = vadd.xlane.f32.xlu0 %v9399
  %v9444 = vpop.xlane.xlu0 %9443
  %9445 = vadd.xlane.f32.xlu0 %v9400
  %v9446 = vpop.xlane.xlu0 %9445
  %9447 = vadd.xlane.f32.xlu0 %v9401
  %v9448 = vpop.xlane.xlu0 %9447
  %9449 = vadd.xlane.f32.xlu0 %v9402
  %v9450 = vpop.xlane.xlu0 %9449
  %9451 = vadd.xlane.f32.xlu0 %v9403
  %v9452 = vpop.xlane.xlu0 %9451
  %9453 = vadd.xlane.f32.xlu0 %v9404
  %v9454 = vpop.xlane.xlu0 %9453
  %9455 = vadd.xlane.f32.xlu0 %v9405
  %v9456 = vpop.xlane.xlu0 %9455
  %9457 = vadd.xlane.f32.xlu0 %v9406
  %v9458 = vpop.xlane.xlu0 %9457
  %9459 = vadd.xlane.f32.xlu0 %v9407
  %v9460 = vpop.xlane.xlu0 %9459
  %9461 = vadd.xlane.f32.xlu0 %v9408
  %v9462 = vpop.xlane.xlu0 %9461
  %9463 = vadd.xlane.f32.xlu0 %v9409
  %v9464 = vpop.xlane.xlu0 %9463
  %9465 = vadd.xlane.f32.xlu0 %v9410
  %v9466 = vpop.xlane.xlu0 %9465
  %9467 = vadd.xlane.f32.xlu0 %v9411
  %v9468 = vpop.xlane.xlu0 %9467
  %9469 = vadd.xlane.f32.xlu0 %v9412
  %v9470 = vpop.xlane.xlu0 %9469
  %9471 = vadd.xlane.f32.xlu0 %v9413
  %v9472 = vpop.xlane.xlu0 %9471
  %9473 = vadd.xlane.f32.xlu0 %v9414
  %v9474 = vpop.xlane.xlu0 %9473
  %9475 = vadd.xlane.f32.xlu0 %v9415
  %v9476 = vpop.xlane.xlu0 %9475
  %9477 = vadd.xlane.f32.xlu0 %v9416
  %v9478 = vpop.xlane.xlu0 %9477
  %9479 = vadd.xlane.f32.xlu0 %v9417
  %v9480 = vpop.xlane.xlu0 %9479
  %9481 = vadd.xlane.f32.xlu0 %v9418
  %v9482 = vpop.xlane.xlu0 %9481
  %v9483 = vmul.f32 %v9420, %v261
  %v9484 = vmul.f32 %v9422, %v261
  %v9485 = vmul.f32 %v9424, %v261
  %v9486 = vmul.f32 %v9426, %v261
  %v9487 = vmul.f32 %v9428, %v261
  %v9488 = vmul.f32 %v9430, %v261
  %v9489 = vmul.f32 %v9432, %v261
  %v9490 = vmul.f32 %v9434, %v261
  %v9491 = vmul.f32 %v9436, %v261
  %v9492 = vmul.f32 %v9438, %v261
  %v9493 = vmul.f32 %v9440, %v261
  %v9494 = vmul.f32 %v9442, %v261
  %v9495 = vmul.f32 %v9444, %v261
  %v9496 = vmul.f32 %v9446, %v261
  %v9497 = vmul.f32 %v9448, %v261
  %v9498 = vmul.f32 %v9450, %v261
  %v9499 = vmul.f32 %v9452, %v261
  %v9500 = vmul.f32 %v9454, %v261
  %v9501 = vmul.f32 %v9456, %v261
  %v9502 = vmul.f32 %v9458, %v261
  %v9503 = vmul.f32 %v9460, %v261
  %v9504 = vmul.f32 %v9462, %v261
  %v9505 = vmul.f32 %v9464, %v261
  %v9506 = vmul.f32 %v9466, %v261
  %v9507 = vmul.f32 %v9468, %v261
  %v9508 = vmul.f32 %v9470, %v261
  %v9509 = vmul.f32 %v9472, %v261
  %v9510 = vmul.f32 %v9474, %v261
  %v9511 = vmul.f32 %v9476, %v261
  %v9512 = vmul.f32 %v9478, %v261
  %v9513 = vmul.f32 %v9480, %v261
  %v9514 = vmul.f32 %v9482, %v261
  %v9515 = vmul.f32 %v9355, %v9355
  %v9516 = vmul.f32 %v9356, %v9356
  %v9517 = vmul.f32 %v9357, %v9357
  %v9518 = vmul.f32 %v9358, %v9358
  %v9519 = vmul.f32 %v9359, %v9359
  %v9520 = vmul.f32 %v9360, %v9360
  %v9521 = vmul.f32 %v9361, %v9361
  %v9522 = vmul.f32 %v9362, %v9362
  %v9523 = vmul.f32 %v9363, %v9363
  %v9524 = vmul.f32 %v9364, %v9364
  %v9525 = vmul.f32 %v9365, %v9365
  %v9526 = vmul.f32 %v9366, %v9366
  %v9527 = vmul.f32 %v9367, %v9367
  %v9528 = vmul.f32 %v9368, %v9368
  %v9529 = vmul.f32 %v9369, %v9369
  %v9530 = vmul.f32 %v9370, %v9370
  %v9531 = vmul.f32 %v9371, %v9371
  %v9532 = vmul.f32 %v9372, %v9372
  %v9533 = vmul.f32 %v9373, %v9373
  %v9534 = vmul.f32 %v9374, %v9374
  %v9535 = vmul.f32 %v9375, %v9375
  %v9536 = vmul.f32 %v9376, %v9376
  %v9537 = vmul.f32 %v9377, %v9377
  %v9538 = vmul.f32 %v9378, %v9378
  %v9539 = vmul.f32 %v9379, %v9379
  %v9540 = vmul.f32 %v9380, %v9380
  %v9541 = vmul.f32 %v9381, %v9381
  %v9542 = vmul.f32 %v9382, %v9382
  %v9543 = vmul.f32 %v9383, %v9383
  %v9544 = vmul.f32 %v9384, %v9384
  %v9545 = vmul.f32 %v9385, %v9385
  %v9546 = vmul.f32 %v9386, %v9386
  %v9547 = vsub.f32 %v9483, %v9515
  %v9548 = vsub.f32 %v9484, %v9516
  %v9549 = vsub.f32 %v9485, %v9517
  %v9550 = vsub.f32 %v9486, %v9518
  %v9551 = vsub.f32 %v9487, %v9519
  %v9552 = vsub.f32 %v9488, %v9520
  %v9553 = vsub.f32 %v9489, %v9521
  %v9554 = vsub.f32 %v9490, %v9522
  %v9555 = vsub.f32 %v9491, %v9523
  %v9556 = vsub.f32 %v9492, %v9524
  %v9557 = vsub.f32 %v9493, %v9525
  %v9558 = vsub.f32 %v9494, %v9526
  %v9559 = vsub.f32 %v9495, %v9527
  %v9560 = vsub.f32 %v9496, %v9528
  %v9561 = vsub.f32 %v9497, %v9529
  %v9562 = vsub.f32 %v9498, %v9530
  %v9563 = vsub.f32 %v9499, %v9531
  %v9564 = vsub.f32 %v9500, %v9532
  %v9565 = vsub.f32 %v9501, %v9533
  %v9566 = vsub.f32 %v9502, %v9534
  %v9567 = vsub.f32 %v9503, %v9535
  %v9568 = vsub.f32 %v9504, %v9536
  %v9569 = vsub.f32 %v9505, %v9537
  %v9570 = vsub.f32 %v9506, %v9538
  %v9571 = vsub.f32 %v9507, %v9539
  %v9572 = vsub.f32 %v9508, %v9540
  %v9573 = vsub.f32 %v9509, %v9541
  %v9574 = vsub.f32 %v9510, %v9542
  %v9575 = vsub.f32 %v9511, %v9543
  %v9576 = vsub.f32 %v9512, %v9544
  %v9577 = vsub.f32 %v9513, %v9545
  %v9578 = vsub.f32 %v9514, %v9546
  %v9579 = vsub.f32 %v9255, %v9355
  %v9580 = vsub.f32 %v9256, %v9356
  %v9581 = vsub.f32 %v9257, %v9357
  %v9582 = vsub.f32 %v9258, %v9358
  %v9583 = vsub.f32 %v9259, %v9359
  %v9584 = vsub.f32 %v9260, %v9360
  %v9585 = vsub.f32 %v9261, %v9361
  %v9586 = vsub.f32 %v9262, %v9362
  %v9587 = vsub.f32 %v9263, %v9363
  %v9588 = vsub.f32 %v9264, %v9364
  %v9589 = vsub.f32 %v9265, %v9365
  %v9590 = vsub.f32 %v9266, %v9366
  %v9591 = vsub.f32 %v9267, %v9367
  %v9592 = vsub.f32 %v9268, %v9368
  %v9593 = vsub.f32 %v9269, %v9369
  %v9594 = vsub.f32 %v9270, %v9370
  %v9595 = vsub.f32 %v9271, %v9371
  %v9596 = vsub.f32 %v9272, %v9372
  %v9597 = vsub.f32 %v9273, %v9373
  %v9598 = vsub.f32 %v9274, %v9374
  %v9599 = vsub.f32 %v9275, %v9375
  %v9600 = vsub.f32 %v9276, %v9376
  %v9601 = vsub.f32 %v9277, %v9377
  %v9602 = vsub.f32 %v9278, %v9378
  %v9603 = vsub.f32 %v9279, %v9379
  %v9604 = vsub.f32 %v9280, %v9380
  %v9605 = vsub.f32 %v9281, %v9381
  %v9606 = vsub.f32 %v9282, %v9382
  %v9607 = vsub.f32 %v9283, %v9383
  %v9608 = vsub.f32 %v9284, %v9384
  %v9609 = vsub.f32 %v9285, %v9385
  %v9610 = vsub.f32 %v9286, %v9386
  %v9611 = vadd.f32 %v9547, 1e-12
  %v9612 = vadd.f32 %v9548, 1e-12
  %v9613 = vadd.f32 %v9549, 1e-12
  %v9614 = vadd.f32 %v9550, 1e-12
  %v9615 = vadd.f32 %v9551, 1e-12
  %v9616 = vadd.f32 %v9552, 1e-12
  %v9617 = vadd.f32 %v9553, 1e-12
  %v9618 = vadd.f32 %v9554, 1e-12
  %v9619 = vadd.f32 %v9555, 1e-12
  %v9620 = vadd.f32 %v9556, 1e-12
  %v9621 = vadd.f32 %v9557, 1e-12
  %v9622 = vadd.f32 %v9558, 1e-12
  %v9623 = vadd.f32 %v9559, 1e-12
  %v9624 = vadd.f32 %v9560, 1e-12
  %v9625 = vadd.f32 %v9561, 1e-12
  %v9626 = vadd.f32 %v9562, 1e-12
  %v9627 = vadd.f32 %v9563, 1e-12
  %v9628 = vadd.f32 %v9564, 1e-12
  %v9629 = vadd.f32 %v9565, 1e-12
  %v9630 = vadd.f32 %v9566, 1e-12
  %v9631 = vadd.f32 %v9567, 1e-12
  %v9632 = vadd.f32 %v9568, 1e-12
  %v9633 = vadd.f32 %v9569, 1e-12
  %v9634 = vadd.f32 %v9570, 1e-12
  %v9635 = vadd.f32 %v9571, 1e-12
  %v9636 = vadd.f32 %v9572, 1e-12
  %v9637 = vadd.f32 %v9573, 1e-12
  %v9638 = vadd.f32 %v9574, 1e-12
  %v9639 = vadd.f32 %v9575, 1e-12
  %v9640 = vadd.f32 %v9576, 1e-12
  %v9641 = vadd.f32 %v9577, 1e-12
  %v9642 = vadd.f32 %v9578, 1e-12
  %v9643 = vrsqrt.pop %v9611
  %v9644 = vrsqrt.pop %v9612
  %v9645 = vrsqrt.pop %v9613
  %v9646 = vrsqrt.pop %v9614
  %v9647 = vrsqrt.pop %v9615
  %v9648 = vrsqrt.pop %v9616
  %v9649 = vrsqrt.pop %v9617
  %v9650 = vrsqrt.pop %v9618
  %v9651 = vrsqrt.pop %v9619
  %v9652 = vrsqrt.pop %v9620
  %v9653 = vrsqrt.pop %v9621
  %v9654 = vrsqrt.pop %v9622
  %v9655 = vrsqrt.pop %v9623
  %v9656 = vrsqrt.pop %v9624
  %v9657 = vrsqrt.pop %v9625
  %v9658 = vrsqrt.pop %v9626
  %v9659 = vrsqrt.pop %v9627
  %v9660 = vrsqrt.pop %v9628
  %v9661 = vrsqrt.pop %v9629
  %v9662 = vrsqrt.pop %v9630
  %v9663 = vrsqrt.pop %v9631
  %v9664 = vrsqrt.pop %v9632
  %v9665 = vrsqrt.pop %v9633
  %v9666 = vrsqrt.pop %v9634
  %v9667 = vrsqrt.pop %v9635
  %v9668 = vrsqrt.pop %v9636
  %v9669 = vrsqrt.pop %v9637
  %v9670 = vrsqrt.pop %v9638
  %v9671 = vrsqrt.pop %v9639
  %v9672 = vrsqrt.pop %v9640
  %v9673 = vrsqrt.pop %v9641
  %v9674 = vrsqrt.pop %v9642
  %v9675 = vmul.f32 %v9579, %v9643
  %v9676 = vmul.f32 %v9580, %v9644
  %v9677 = vmul.f32 %v9581, %v9645
  %v9678 = vmul.f32 %v9582, %v9646
  %v9679 = vmul.f32 %v9583, %v9647
  %v9680 = vmul.f32 %v9584, %v9648
  %v9681 = vmul.f32 %v9585, %v9649
  %v9682 = vmul.f32 %v9586, %v9650
  %v9683 = vmul.f32 %v9587, %v9651
  %v9684 = vmul.f32 %v9588, %v9652
  %v9685 = vmul.f32 %v9589, %v9653
  %v9686 = vmul.f32 %v9590, %v9654
  %v9687 = vmul.f32 %v9591, %v9655
  %v9688 = vmul.f32 %v9592, %v9656
  %v9689 = vmul.f32 %v9593, %v9657
  %v9690 = vmul.f32 %v9594, %v9658
  %v9691 = vmul.f32 %v9595, %v9659
  %v9692 = vmul.f32 %v9596, %v9660
  %v9693 = vmul.f32 %v9597, %v9661
  %v9694 = vmul.f32 %v9598, %v9662
  %v9695 = vmul.f32 %v9599, %v9663
  %v9696 = vmul.f32 %v9600, %v9664
  %v9697 = vmul.f32 %v9601, %v9665
  %v9698 = vmul.f32 %v9602, %v9666
  %v9699 = vmul.f32 %v9603, %v9667
  %v9700 = vmul.f32 %v9604, %v9668
  %v9701 = vmul.f32 %v9605, %v9669
  %v9702 = vmul.f32 %v9606, %v9670
  %v9703 = vmul.f32 %v9607, %v9671
  %v9704 = vmul.f32 %v9608, %v9672
  %v9705 = vmul.f32 %v9609, %v9673
  %v9706 = vmul.f32 %v9610, %v9674
  %v9708 = vlaneseq
  %v9709 = vshrl.u32 %v9708, 7
  %v9710 = vsub.s32 0, %v9709
  %v9711 = vrot.slane %v9288, %v9710
  %v9713 = vmul.f32 %v9675, %v9711
  %v9714 = vmul.f32 %v9676, %v9711
  %v9715 = vmul.f32 %v9677, %v9711
  %v9716 = vmul.f32 %v9678, %v9711
  %v9717 = vmul.f32 %v9679, %v9711
  %v9718 = vmul.f32 %v9680, %v9711
  %v9719 = vmul.f32 %v9681, %v9711
  %v9720 = vmul.f32 %v9682, %v9711
  %v9721 = vmul.f32 %v9683, %v9711
  %v9722 = vmul.f32 %v9684, %v9711
  %v9723 = vmul.f32 %v9685, %v9711
  %v9724 = vmul.f32 %v9686, %v9711
  %v9725 = vmul.f32 %v9687, %v9711
  %v9726 = vmul.f32 %v9688, %v9711
  %v9727 = vmul.f32 %v9689, %v9711
  %v9728 = vmul.f32 %v9690, %v9711
  %v9729 = vmul.f32 %v9691, %v9711
  %v9730 = vmul.f32 %v9692, %v9711
  %v9731 = vmul.f32 %v9693, %v9711
  %v9732 = vmul.f32 %v9694, %v9711
  %v9733 = vmul.f32 %v9695, %v9711
  %v9734 = vmul.f32 %v9696, %v9711
  %v9735 = vmul.f32 %v9697, %v9711
  %v9736 = vmul.f32 %v9698, %v9711
  %v9737 = vmul.f32 %v9699, %v9711
  %v9738 = vmul.f32 %v9700, %v9711
  %v9739 = vmul.f32 %v9701, %v9711
  %v9740 = vmul.f32 %v9702, %v9711
  %v9741 = vmul.f32 %v9703, %v9711
  %v9742 = vmul.f32 %v9704, %v9711
  %v9743 = vmul.f32 %v9705, %v9711
  %v9744 = vmul.f32 %v9706, %v9711
  %v9746 = vlaneseq
  %v9747 = vshrl.u32 %v9746, 7
  %v9748 = vsub.s32 0, %v9747
  %v9749 = vrot.slane %v9290, %v9748
  %v9751 = vadd.f32 %v9713, %v9749
  %v9752 = vadd.f32 %v9714, %v9749
  %v9753 = vadd.f32 %v9715, %v9749
  %v9754 = vadd.f32 %v9716, %v9749
  %v9755 = vadd.f32 %v9717, %v9749
  %v9756 = vadd.f32 %v9718, %v9749
  %v9757 = vadd.f32 %v9719, %v9749
  %v9758 = vadd.f32 %v9720, %v9749
  %v9759 = vadd.f32 %v9721, %v9749
  %v9760 = vadd.f32 %v9722, %v9749
  %v9761 = vadd.f32 %v9723, %v9749
  %v9762 = vadd.f32 %v9724, %v9749
  %v9763 = vadd.f32 %v9725, %v9749
  %v9764 = vadd.f32 %v9726, %v9749
  %v9765 = vadd.f32 %v9727, %v9749
  %v9766 = vadd.f32 %v9728, %v9749
  %v9767 = vadd.f32 %v9729, %v9749
  %v9768 = vadd.f32 %v9730, %v9749
  %v9769 = vadd.f32 %v9731, %v9749
  %v9770 = vadd.f32 %v9732, %v9749
  %v9771 = vadd.f32 %v9733, %v9749
  %v9772 = vadd.f32 %v9734, %v9749
  %v9773 = vadd.f32 %v9735, %v9749
  %v9774 = vadd.f32 %v9736, %v9749
  %v9775 = vadd.f32 %v9737, %v9749
  %v9776 = vadd.f32 %v9738, %v9749
  %v9777 = vadd.f32 %v9739, %v9749
  %v9778 = vadd.f32 %v9740, %v9749
  %v9779 = vadd.f32 %v9741, %v9749
  %v9780 = vadd.f32 %v9742, %v9749
  %v9781 = vadd.f32 %v9743, %v9749
  %v9782 = vadd.f32 %v9744, %v9749
  %v9783 = vpack.c.bf16 %v9752, %v9751
  %v9784 = vpack.c.bf16 %v9754, %v9753
  %v9785 = vpack.c.bf16 %v9756, %v9755
  %v9786 = vpack.c.bf16 %v9758, %v9757
  %v9787 = vpack.c.bf16 %v9760, %v9759
  %v9788 = vpack.c.bf16 %v9762, %v9761
  %v9789 = vpack.c.bf16 %v9764, %v9763
  %v9790 = vpack.c.bf16 %v9766, %v9765
  %v9791 = vpack.c.bf16 %v9768, %v9767
  %v9792 = vpack.c.bf16 %v9770, %v9769
  %v9793 = vpack.c.bf16 %v9772, %v9771
  %v9794 = vpack.c.bf16 %v9774, %v9773
  %v9795 = vpack.c.bf16 %v9776, %v9775
  %v9796 = vpack.c.bf16 %v9778, %v9777
  %v9797 = vpack.c.bf16 %v9780, %v9779
  %v9798 = vpack.c.bf16 %v9782, %v9781
  %s9799 = scalar_lea.vmem %s12, 128
  %v9800 = vld [vmem:[%s9799] sm:$0xff]
  %v9801 = vld [vmem:[%s9799 + $0x8] sm:$0xff]
  %v9802 = vld [vmem:[%s9799 + $0x10] sm:$0xff]
  %v9803 = vld [vmem:[%s9799 + $0x18] sm:$0xff]
  %v9804 = vld [vmem:[%s9799 + $0x20] sm:$0xff]
  %v9805 = vld [vmem:[%s9799 + $0x28] sm:$0xff]
  %v9806 = vld [vmem:[%s9799 + $0x30] sm:$0xff]
  %v9807 = vld [vmem:[%s9799 + $0x38] sm:$0xff]
  %v9808 = vld [vmem:[%s9799 + $0x40] sm:$0xff]
  %v9809 = vld [vmem:[%s9799 + $0x48] sm:$0xff]
  %v9810 = vld [vmem:[%s9799 + $0x50] sm:$0xff]
  %v9811 = vld [vmem:[%s9799 + $0x58] sm:$0xff]
  %v9812 = vld [vmem:[%s9799 + $0x60] sm:$0xff]
  %v9813 = vld [vmem:[%s9799 + $0x68] sm:$0xff]
  %v9814 = vld [vmem:[%s9799 + $0x70] sm:$0xff]
  %v9815 = vld [vmem:[%s9799 + $0x78] sm:$0xff]
  %s9816 = scalar_lea.vmem %s13, 2
  %v9817 = vld [vmem:[%s9816] sm:$0x3]
  %v9819 = vlaneseq
  %v9820 = vshrl.u32 %v9819, 7
  %v9821 = vsub.s32 0, %v9820
  %v9822 = vrot.slane %v9817, %v9821
  %v9823 = vlaneseq
  %v9824 = vshrl.u32 %v9823, 7
  %v9825 = vsub.s32 1, %v9824
  %v9826 = vrot.slane %v9817, %v9825
  %v9845 = vunpack.c.l.b16 %v9800
  %v9846 = vunpack.c.h.b16 %v9800
  %v9847 = vunpack.c.l.b16 %v9801
  %v9848 = vunpack.c.h.b16 %v9801
  %v9849 = vunpack.c.l.b16 %v9802
  %v9850 = vunpack.c.h.b16 %v9802
  %v9851 = vunpack.c.l.b16 %v9803
  %v9852 = vunpack.c.h.b16 %v9803
  %v9853 = vunpack.c.l.b16 %v9804
  %v9854 = vunpack.c.h.b16 %v9804
  %v9855 = vunpack.c.l.b16 %v9805
  %v9856 = vunpack.c.h.b16 %v9805
  %v9857 = vunpack.c.l.b16 %v9806
  %v9858 = vunpack.c.h.b16 %v9806
  %v9859 = vunpack.c.l.b16 %v9807
  %v9860 = vunpack.c.h.b16 %v9807
  %v9861 = vunpack.c.l.b16 %v9808
  %v9862 = vunpack.c.h.b16 %v9808
  %v9863 = vunpack.c.l.b16 %v9809
  %v9864 = vunpack.c.h.b16 %v9809
  %v9865 = vunpack.c.l.b16 %v9810
  %v9866 = vunpack.c.h.b16 %v9810
  %v9867 = vunpack.c.l.b16 %v9811
  %v9868 = vunpack.c.h.b16 %v9811
  %v9869 = vunpack.c.l.b16 %v9812
  %v9870 = vunpack.c.h.b16 %v9812
  %v9871 = vunpack.c.l.b16 %v9813
  %v9872 = vunpack.c.h.b16 %v9813
  %v9873 = vunpack.c.l.b16 %v9814
  %v9874 = vunpack.c.h.b16 %v9814
  %v9875 = vunpack.c.l.b16 %v9815
  %v9876 = vunpack.c.h.b16 %v9815
  %v9877 = vpack.c.b16 %v9847, %v9845
  %v9878 = vpack.c.b16 %v9848, %v9846
  %v9879 = vpack.c.b16 %v9851, %v9849
  %v9880 = vpack.c.b16 %v9852, %v9850
  %v9881 = vpack.c.b16 %v9855, %v9853
  %v9882 = vpack.c.b16 %v9856, %v9854
  %v9883 = vpack.c.b16 %v9859, %v9857
  %v9884 = vpack.c.b16 %v9860, %v9858
  %v9885 = vpack.c.b16 %v9863, %v9861
  %v9886 = vpack.c.b16 %v9864, %v9862
  %v9887 = vpack.c.b16 %v9867, %v9865
  %v9888 = vpack.c.b16 %v9868, %v9866
  %v9889 = vpack.c.b16 %v9871, %v9869
  %v9890 = vpack.c.b16 %v9872, %v9870
  %v9891 = vpack.c.b16 %v9875, %v9873
  %v9892 = vpack.c.b16 %v9876, %v9874
  %9909 = vmatprep.subr.bf16.mxu0 %v9892
  %9910 = vmatpush1.bf16.msra.mxu0 %v9891
  %9911 = vmatprep.subr.bf16.mxu0 %v9890
  %9912 = vmatpush1.bf16.msra.mxu0 %v9889
  %9913 = vmatprep.subr.bf16.mxu0 %v9888
  %9914 = vmatpush1.bf16.msra.mxu0 %v9887
  %9915 = vmatprep.subr.bf16.mxu0 %v9886
  %9916 = vmatpush1.bf16.msra.mxu0 %v9885
  %9917 = vmatprep.subr.bf16.mxu0 %v9884
  %9918 = vmatpush1.bf16.msra.mxu0 %v9883
  %9919 = vmatprep.subr.bf16.mxu0 %v9882
  %9920 = vmatpush1.bf16.msra.mxu0 %v9881
  %9921 = vmatprep.subr.bf16.mxu0 %v9880
  %9922 = vmatpush1.bf16.msra.mxu0 %v9879
  %9923 = vmatprep.subr.bf16.mxu0 %v9878
  %9924 = vmatpush1.bf16.msra.mxu0 %v9877
  %9925 = vmatprep.subr.bf16.mxu0 0
  %9926 = vmatpush2.bf16.msra.mxu0 0
  %9927 = vmatprep.subr.bf16.mxu0 0
  %9928 = vmatpush2.bf16.msra.mxu0 0
  %9929 = vmatprep.subr.bf16.mxu0 0
  %9930 = vmatpush2.bf16.msra.mxu0 0
  %9931 = vmatprep.subr.bf16.mxu0 0
  %9932 = vmatpush2.bf16.msra.mxu0 0
  %9933 = vmatprep.subr.bf16.mxu0 0
  %9934 = vmatpush2.bf16.msra.mxu0 0
  %9935 = vmatprep.subr.bf16.mxu0 0
  %9936 = vmatpush2.bf16.msra.mxu0 0
  %9937 = vmatprep.subr.bf16.mxu0 0
  %9938 = vmatpush2.bf16.msra.mxu0 0
  %9939 = vmatprep.subr.bf16.mxu0 0
  %9940 = vmatpush2.bf16.msra.mxu0 0
  %9941 = vmatprep.mubr.bf16.mxu0 0
  %9942 = vmatmul.mubr.bf16.gmra.mxu0 %v9783
  %v9943 = vpop.f32.mrf.mxu0
  %v9944 = vadd.f32 %v9822, %v9943
  %v9945 = vpop.f32.mrf.mxu0
  %v9946 = vadd.f32 %v9826, %v9945
  %v9947 = vpop.f32.mrf.mxu0
  %v9948 = vadd.f32 %v9822, %v9947
  %v9949 = vpop.f32.mrf.mxu0
  %v9950 = vadd.f32 %v9826, %v9949
  %9951 = vmatprep.mubr.bf16.mxu0 0
  %9952 = vmatmul.mubr.bf16.gmra.mxu0 %v9784
  %v9953 = vpop.f32.mrf.mxu0
  %v9954 = vadd.f32 %v9822, %v9953
  %v9955 = vpop.f32.mrf.mxu0
  %v9956 = vadd.f32 %v9826, %v9955
  %v9957 = vpop.f32.mrf.mxu0
  %v9958 = vadd.f32 %v9822, %v9957
  %v9959 = vpop.f32.mrf.mxu0
  %v9960 = vadd.f32 %v9826, %v9959
  %9961 = vmatprep.mubr.bf16.mxu0 0
  %9962 = vmatmul.mubr.bf16.gmra.mxu0 %v9785
  %v9963 = vpop.f32.mrf.mxu0
  %v9964 = vadd.f32 %v9822, %v9963
  %v9965 = vpop.f32.mrf.mxu0
  %v9966 = vadd.f32 %v9826, %v9965
  %v9967 = vpop.f32.mrf.mxu0
  %v9968 = vadd.f32 %v9822, %v9967
  %v9969 = vpop.f32.mrf.mxu0
  %v9970 = vadd.f32 %v9826, %v9969
  %9971 = vmatprep.mubr.bf16.mxu0 0
  %9972 = vmatmul.mubr.bf16.gmra.mxu0 %v9786
  %v9973 = vpop.f32.mrf.mxu0
  %v9974 = vadd.f32 %v9822, %v9973
  %v9975 = vpop.f32.mrf.mxu0
  %v9976 = vadd.f32 %v9826, %v9975
  %v9977 = vpop.f32.mrf.mxu0
  %v9978 = vadd.f32 %v9822, %v9977
  %v9979 = vpop.f32.mrf.mxu0
  %v9980 = vadd.f32 %v9826, %v9979
  %9981 = vmatprep.mubr.bf16.mxu0 0
  %9982 = vmatmul.mubr.bf16.gmra.mxu0 %v9787
  %v9983 = vpop.f32.mrf.mxu0
  %v9984 = vadd.f32 %v9822, %v9983
  %v9985 = vpop.f32.mrf.mxu0
  %v9986 = vadd.f32 %v9826, %v9985
  %v9987 = vpop.f32.mrf.mxu0
  %v9988 = vadd.f32 %v9822, %v9987
  %v9989 = vpop.f32.mrf.mxu0
  %v9990 = vadd.f32 %v9826, %v9989
  %9991 = vmatprep.mubr.bf16.mxu0 0
  %9992 = vmatmul.mubr.bf16.gmra.mxu0 %v9788
  %v9993 = vpop.f32.mrf.mxu0
  %v9994 = vadd.f32 %v9822, %v9993
  %v9995 = vpop.f32.mrf.mxu0
  %v9996 = vadd.f32 %v9826, %v9995
  %v9997 = vpop.f32.mrf.mxu0
  %v9998 = vadd.f32 %v9822, %v9997
  %v9999 = vpop.f32.mrf.mxu0
  %v10000 = vadd.f32 %v9826, %v9999
  %10001 = vmatprep.mubr.bf16.mxu0 0
  %10002 = vmatmul.mubr.bf16.gmra.mxu0 %v9789
  %v10003 = vpop.f32.mrf.mxu0
  %v10004 = vadd.f32 %v9822, %v10003
  %v10005 = vpop.f32.mrf.mxu0
  %v10006 = vadd.f32 %v9826, %v10005
  %v10007 = vpop.f32.mrf.mxu0
  %v10008 = vadd.f32 %v9822, %v10007
  %v10009 = vpop.f32.mrf.mxu0
  %v10010 = vadd.f32 %v9826, %v10009
  %10011 = vmatprep.mubr.bf16.mxu0 0
  %10012 = vmatmul.mubr.bf16.gmra.mxu0 %v9790
  %v10013 = vpop.f32.mrf.mxu0
  %v10014 = vadd.f32 %v9822, %v10013
  %v10015 = vpop.f32.mrf.mxu0
  %v10016 = vadd.f32 %v9826, %v10015
  %v10017 = vpop.f32.mrf.mxu0
  %v10018 = vadd.f32 %v9822, %v10017
  %v10019 = vpop.f32.mrf.mxu0
  %v10020 = vadd.f32 %v9826, %v10019
  %10021 = vmatprep.mubr.bf16.mxu0 0
  %10022 = vmatmul.mubr.bf16.gmra.mxu0 %v9791
  %v10023 = vpop.f32.mrf.mxu0
  %v10024 = vadd.f32 %v9822, %v10023
  %v10025 = vpop.f32.mrf.mxu0
  %v10026 = vadd.f32 %v9826, %v10025
  %v10027 = vpop.f32.mrf.mxu0
  %v10028 = vadd.f32 %v9822, %v10027
  %v10029 = vpop.f32.mrf.mxu0
  %v10030 = vadd.f32 %v9826, %v10029
  %10031 = vmatprep.mubr.bf16.mxu0 0
  %10032 = vmatmul.mubr.bf16.gmra.mxu0 %v9792
  %v10033 = vpop.f32.mrf.mxu0
  %v10034 = vadd.f32 %v9822, %v10033
  %v10035 = vpop.f32.mrf.mxu0
  %v10036 = vadd.f32 %v9826, %v10035
  %v10037 = vpop.f32.mrf.mxu0
  %v10038 = vadd.f32 %v9822, %v10037
  %v10039 = vpop.f32.mrf.mxu0
  %v10040 = vadd.f32 %v9826, %v10039
  %10041 = vmatprep.mubr.bf16.mxu0 0
  %10042 = vmatmul.mubr.bf16.gmra.mxu0 %v9793
  %v10043 = vpop.f32.mrf.mxu0
  %v10044 = vadd.f32 %v9822, %v10043
  %v10045 = vpop.f32.mrf.mxu0
  %v10046 = vadd.f32 %v9826, %v10045
  %v10047 = vpop.f32.mrf.mxu0
  %v10048 = vadd.f32 %v9822, %v10047
  %v10049 = vpop.f32.mrf.mxu0
  %v10050 = vadd.f32 %v9826, %v10049
  %10051 = vmatprep.mubr.bf16.mxu0 0
  %10052 = vmatmul.mubr.bf16.gmra.mxu0 %v9794
  %v10053 = vpop.f32.mrf.mxu0
  %v10054 = vadd.f32 %v9822, %v10053
  %v10055 = vpop.f32.mrf.mxu0
  %v10056 = vadd.f32 %v9826, %v10055
  %v10057 = vpop.f32.mrf.mxu0
  %v10058 = vadd.f32 %v9822, %v10057
  %v10059 = vpop.f32.mrf.mxu0
  %v10060 = vadd.f32 %v9826, %v10059
  %10061 = vmatprep.mubr.bf16.mxu0 0
  %10062 = vmatmul.mubr.bf16.gmra.mxu0 %v9795
  %v10063 = vpop.f32.mrf.mxu0
  %v10064 = vadd.f32 %v9822, %v10063
  %v10065 = vpop.f32.mrf.mxu0
  %v10066 = vadd.f32 %v9826, %v10065
  %v10067 = vpop.f32.mrf.mxu0
  %v10068 = vadd.f32 %v9822, %v10067
  %v10069 = vpop.f32.mrf.mxu0
  %v10070 = vadd.f32 %v9826, %v10069
  %10071 = vmatprep.mubr.bf16.mxu0 0
  %10072 = vmatmul.mubr.bf16.gmra.mxu0 %v9796
  %v10073 = vpop.f32.mrf.mxu0
  %v10074 = vadd.f32 %v9822, %v10073
  %v10075 = vpop.f32.mrf.mxu0
  %v10076 = vadd.f32 %v9826, %v10075
  %v10077 = vpop.f32.mrf.mxu0
  %v10078 = vadd.f32 %v9822, %v10077
  %v10079 = vpop.f32.mrf.mxu0
  %v10080 = vadd.f32 %v9826, %v10079
  %10081 = vmatprep.mubr.bf16.mxu0 0
  %10082 = vmatmul.mubr.bf16.gmra.mxu0 %v9797
  %v10083 = vpop.f32.mrf.mxu0
  %v10084 = vadd.f32 %v9822, %v10083
  %v10085 = vpop.f32.mrf.mxu0
  %v10086 = vadd.f32 %v9826, %v10085
  %v10087 = vpop.f32.mrf.mxu0
  %v10088 = vadd.f32 %v9822, %v10087
  %v10089 = vpop.f32.mrf.mxu0
  %v10090 = vadd.f32 %v9826, %v10089
  %10091 = vmatprep.mubr.bf16.mxu0 0
  %10092 = vmatmul.mubr.bf16.gmra.mxu0 %v9798
  %v10093 = vpop.f32.mrf.mxu0
  %v10094 = vadd.f32 %v9822, %v10093
  %v10095 = vpop.f32.mrf.mxu0
  %v10096 = vadd.f32 %v9826, %v10095
  %v10097 = vpop.f32.mrf.mxu0
  %v10098 = vadd.f32 %v9822, %v10097
  %v10099 = vpop.f32.mrf.mxu0
  %v10100 = vadd.f32 %v9826, %v10099
  %10101 = vdwg.mxu0
  %v10102 = vmul.f32 %v9944, %v9944
  %v10103 = vmul.f32 %v9946, %v9946
  %v10104 = vmul.f32 %v9948, %v9948
  %v10105 = vmul.f32 %v9950, %v9950
  %v10106 = vmul.f32 %v9954, %v9954
  %v10107 = vmul.f32 %v9956, %v9956
  %v10108 = vmul.f32 %v9958, %v9958
  %v10109 = vmul.f32 %v9960, %v9960
  %v10110 = vmul.f32 %v9964, %v9964
  %v10111 = vmul.f32 %v9966, %v9966
  %v10112 = vmul.f32 %v9968, %v9968
  %v10113 = vmul.f32 %v9970, %v9970
  %v10114 = vmul.f32 %v9974, %v9974
  %v10115 = vmul.f32 %v9976, %v9976
  %v10116 = vmul.f32 %v9978, %v9978
  %v10117 = vmul.f32 %v9980, %v9980
  %v10118 = vmul.f32 %v9984, %v9984
  %v10119 = vmul.f32 %v9986, %v9986
  %v10120 = vmul.f32 %v9988, %v9988
  %v10121 = vmul.f32 %v9990, %v9990
  %v10122 = vmul.f32 %v9994, %v9994
  %v10123 = vmul.f32 %v9996, %v9996
  %v10124 = vmul.f32 %v9998, %v9998
  %v10125 = vmul.f32 %v10000, %v10000
  %v10126 = vmul.f32 %v10004, %v10004
  %v10127 = vmul.f32 %v10006, %v10006
  %v10128 = vmul.f32 %v10008, %v10008
  %v10129 = vmul.f32 %v10010, %v10010
  %v10130 = vmul.f32 %v10014, %v10014
  %v10131 = vmul.f32 %v10016, %v10016
  %v10132 = vmul.f32 %v10018, %v10018
  %v10133 = vmul.f32 %v10020, %v10020
  %v10134 = vmul.f32 %v10024, %v10024
  %v10135 = vmul.f32 %v10026, %v10026
  %v10136 = vmul.f32 %v10028, %v10028
  %v10137 = vmul.f32 %v10030, %v10030
  %v10138 = vmul.f32 %v10034, %v10034
  %v10139 = vmul.f32 %v10036, %v10036
  %v10140 = vmul.f32 %v10038, %v10038
  %v10141 = vmul.f32 %v10040, %v10040
  %v10142 = vmul.f32 %v10044, %v10044
  %v10143 = vmul.f32 %v10046, %v10046
  %v10144 = vmul.f32 %v10048, %v10048
  %v10145 = vmul.f32 %v10050, %v10050
  %v10146 = vmul.f32 %v10054, %v10054
  %v10147 = vmul.f32 %v10056, %v10056
  %v10148 = vmul.f32 %v10058, %v10058
  %v10149 = vmul.f32 %v10060, %v10060
  %v10150 = vmul.f32 %v10064, %v10064
  %v10151 = vmul.f32 %v10066, %v10066
  %v10152 = vmul.f32 %v10068, %v10068
  %v10153 = vmul.f32 %v10070, %v10070
  %v10154 = vmul.f32 %v10074, %v10074
  %v10155 = vmul.f32 %v10076, %v10076
  %v10156 = vmul.f32 %v10078, %v10078
  %v10157 = vmul.f32 %v10080, %v10080
  %v10158 = vmul.f32 %v10084, %v10084
  %v10159 = vmul.f32 %v10086, %v10086
  %v10160 = vmul.f32 %v10088, %v10088
  %v10161 = vmul.f32 %v10090, %v10090
  %v10162 = vmul.f32 %v10094, %v10094
  %v10163 = vmul.f32 %v10096, %v10096
  %v10164 = vmul.f32 %v10098, %v10098
  %v10165 = vmul.f32 %v10100, %v10100
  %v10166 = vmul.f32 %v9944, %v10102
  %v10167 = vmul.f32 %v9946, %v10103
  %v10168 = vmul.f32 %v9948, %v10104
  %v10169 = vmul.f32 %v9950, %v10105
  %v10170 = vmul.f32 %v9954, %v10106
  %v10171 = vmul.f32 %v9956, %v10107
  %v10172 = vmul.f32 %v9958, %v10108
  %v10173 = vmul.f32 %v9960, %v10109
  %v10174 = vmul.f32 %v9964, %v10110
  %v10175 = vmul.f32 %v9966, %v10111
  %v10176 = vmul.f32 %v9968, %v10112
  %v10177 = vmul.f32 %v9970, %v10113
  %v10178 = vmul.f32 %v9974, %v10114
  %v10179 = vmul.f32 %v9976, %v10115
  %v10180 = vmul.f32 %v9978, %v10116
  %v10181 = vmul.f32 %v9980, %v10117
  %v10182 = vmul.f32 %v9984, %v10118
  %v10183 = vmul.f32 %v9986, %v10119
  %v10184 = vmul.f32 %v9988, %v10120
  %v10185 = vmul.f32 %v9990, %v10121
  %v10186 = vmul.f32 %v9994, %v10122
  %v10187 = vmul.f32 %v9996, %v10123
  %v10188 = vmul.f32 %v9998, %v10124
  %v10189 = vmul.f32 %v10000, %v10125
  %v10190 = vmul.f32 %v10004, %v10126
  %v10191 = vmul.f32 %v10006, %v10127
  %v10192 = vmul.f32 %v10008, %v10128
  %v10193 = vmul.f32 %v10010, %v10129
  %v10194 = vmul.f32 %v10014, %v10130
  %v10195 = vmul.f32 %v10016, %v10131
  %v10196 = vmul.f32 %v10018, %v10132
  %v10197 = vmul.f32 %v10020, %v10133
  %v10198 = vmul.f32 %v10024, %v10134
  %v10199 = vmul.f32 %v10026, %v10135
  %v10200 = vmul.f32 %v10028, %v10136
  %v10201 = vmul.f32 %v10030, %v10137
  %v10202 = vmul.f32 %v10034, %v10138
  %v10203 = vmul.f32 %v10036, %v10139
  %v10204 = vmul.f32 %v10038, %v10140
  %v10205 = vmul.f32 %v10040, %v10141
  %v10206 = vmul.f32 %v10044, %v10142
  %v10207 = vmul.f32 %v10046, %v10143
  %v10208 = vmul.f32 %v10048, %v10144
  %v10209 = vmul.f32 %v10050, %v10145
  %v10210 = vmul.f32 %v10054, %v10146
  %v10211 = vmul.f32 %v10056, %v10147
  %v10212 = vmul.f32 %v10058, %v10148
  %v10213 = vmul.f32 %v10060, %v10149
  %v10214 = vmul.f32 %v10064, %v10150
  %v10215 = vmul.f32 %v10066, %v10151
  %v10216 = vmul.f32 %v10068, %v10152
  %v10217 = vmul.f32 %v10070, %v10153
  %v10218 = vmul.f32 %v10074, %v10154
  %v10219 = vmul.f32 %v10076, %v10155
  %v10220 = vmul.f32 %v10078, %v10156
  %v10221 = vmul.f32 %v10080, %v10157
  %v10222 = vmul.f32 %v10084, %v10158
  %v10223 = vmul.f32 %v10086, %v10159
  %v10224 = vmul.f32 %v10088, %v10160
  %v10225 = vmul.f32 %v10090, %v10161
  %v10226 = vmul.f32 %v10094, %v10162
  %v10227 = vmul.f32 %v10096, %v10163
  %v10228 = vmul.f32 %v10098, %v10164
  %v10229 = vmul.f32 %v10100, %v10165
  %v10230 = vmul.f32 %v10166, 0.044715
  %v10231 = vmul.f32 %v10167, 0.044715
  %v10232 = vmul.f32 %v10168, 0.044715
  %v10233 = vmul.f32 %v10169, 0.044715
  %v10234 = vmul.f32 %v10170, 0.044715
  %v10235 = vmul.f32 %v10171, 0.044715
  %v10236 = vmul.f32 %v10172, 0.044715
  %v10237 = vmul.f32 %v10173, 0.044715
  %v10238 = vmul.f32 %v10174, 0.044715
  %v10239 = vmul.f32 %v10175, 0.044715
  %v10240 = vmul.f32 %v10176, 0.044715
  %v10241 = vmul.f32 %v10177, 0.044715
  %v10242 = vmul.f32 %v10178, 0.044715
  %v10243 = vmul.f32 %v10179, 0.044715
  %v10244 = vmul.f32 %v10180, 0.044715
  %v10245 = vmul.f32 %v10181, 0.044715
  %v10246 = vmul.f32 %v10182, 0.044715
  %v10247 = vmul.f32 %v10183, 0.044715
  %v10248 = vmul.f32 %v10184, 0.044715
  %v10249 = vmul.f32 %v10185, 0.044715
  %v10250 = vmul.f32 %v10186, 0.044715
  %v10251 = vmul.f32 %v10187, 0.044715
  %v10252 = vmul.f32 %v10188, 0.044715
  %v10253 = vmul.f32 %v10189, 0.044715
  %v10254 = vmul.f32 %v10190, 0.044715
  %v10255 = vmul.f32 %v10191, 0.044715
  %v10256 = vmul.f32 %v10192, 0.044715
  %v10257 = vmul.f32 %v10193, 0.044715
  %v10258 = vmul.f32 %v10194, 0.044715
  %v10259 = vmul.f32 %v10195, 0.044715
  %v10260 = vmul.f32 %v10196, 0.044715
  %v10261 = vmul.f32 %v10197, 0.044715
  %v10262 = vmul.f32 %v10198, 0.044715
  %v10263 = vmul.f32 %v10199, 0.044715
  %v10264 = vmul.f32 %v10200, 0.044715
  %v10265 = vmul.f32 %v10201, 0.044715
  %v10266 = vmul.f32 %v10202, 0.044715
  %v10267 = vmul.f32 %v10203, 0.044715
  %v10268 = vmul.f32 %v10204, 0.044715
  %v10269 = vmul.f32 %v10205, 0.044715
  %v10270 = vmul.f32 %v10206, 0.044715
  %v10271 = vmul.f32 %v10207, 0.044715
  %v10272 = vmul.f32 %v10208, 0.044715
  %v10273 = vmul.f32 %v10209, 0.044715
  %v10274 = vmul.f32 %v10210, 0.044715
  %v10275 = vmul.f32 %v10211, 0.044715
  %v10276 = vmul.f32 %v10212, 0.044715
  %v10277 = vmul.f32 %v10213, 0.044715
  %v10278 = vmul.f32 %v10214, 0.044715
  %v10279 = vmul.f32 %v10215, 0.044715
  %v10280 = vmul.f32 %v10216, 0.044715
  %v10281 = vmul.f32 %v10217, 0.044715
  %v10282 = vmul.f32 %v10218, 0.044715
  %v10283 = vmul.f32 %v10219, 0.044715
  %v10284 = vmul.f32 %v10220, 0.044715
  %v10285 = vmul.f32 %v10221, 0.044715
  %v10286 = vmul.f32 %v10222, 0.044715
  %v10287 = vmul.f32 %v10223, 0.044715
  %v10288 = vmul.f32 %v10224, 0.044715
  %v10289 = vmul.f32 %v10225, 0.044715
  %v10290 = vmul.f32 %v10226, 0.044715
  %v10291 = vmul.f32 %v10227, 0.044715
  %v10292 = vmul.f32 %v10228, 0.044715
  %v10293 = vmul.f32 %v10229, 0.044715
  %v10294 = vadd.f32 %v9944, %v10230
  %v10295 = vadd.f32 %v9946, %v10231
  %v10296 = vadd.f32 %v9948, %v10232
  %v10297 = vadd.f32 %v9950, %v10233
  %v10298 = vadd.f32 %v9954, %v10234
  %v10299 = vadd.f32 %v9956, %v10235
  %v10300 = vadd.f32 %v9958, %v10236
  %v10301 = vadd.f32 %v9960, %v10237
  %v10302 = vadd.f32 %v9964, %v10238
  %v10303 = vadd.f32 %v9966, %v10239
  %v10304 = vadd.f32 %v9968, %v10240
  %v10305 = vadd.f32 %v9970, %v10241
  %v10306 = vadd.f32 %v9974, %v10242
  %v10307 = vadd.f32 %v9976, %v10243
  %v10308 = vadd.f32 %v9978, %v10244
  %v10309 = vadd.f32 %v9980, %v10245
  %v10310 = vadd.f32 %v9984, %v10246
  %v10311 = vadd.f32 %v9986, %v10247
  %v10312 = vadd.f32 %v9988, %v10248
  %v10313 = vadd.f32 %v9990, %v10249
  %v10314 = vadd.f32 %v9994, %v10250
  %v10315 = vadd.f32 %v9996, %v10251
  %v10316 = vadd.f32 %v9998, %v10252
  %v10317 = vadd.f32 %v10000, %v10253
  %v10318 = vadd.f32 %v10004, %v10254
  %v10319 = vadd.f32 %v10006, %v10255
  %v10320 = vadd.f32 %v10008, %v10256
  %v10321 = vadd.f32 %v10010, %v10257
  %v10322 = vadd.f32 %v10014, %v10258
  %v10323 = vadd.f32 %v10016, %v10259
  %v10324 = vadd.f32 %v10018, %v10260
  %v10325 = vadd.f32 %v10020, %v10261
  %v10326 = vadd.f32 %v10024, %v10262
  %v10327 = vadd.f32 %v10026, %v10263
  %v10328 = vadd.f32 %v10028, %v10264
  %v10329 = vadd.f32 %v10030, %v10265
  %v10330 = vadd.f32 %v10034, %v10266
  %v10331 = vadd.f32 %v10036, %v10267
  %v10332 = vadd.f32 %v10038, %v10268
  %v10333 = vadd.f32 %v10040, %v10269
  %v10334 = vadd.f32 %v10044, %v10270
  %v10335 = vadd.f32 %v10046, %v10271
  %v10336 = vadd.f32 %v10048, %v10272
  %v10337 = vadd.f32 %v10050, %v10273
  %v10338 = vadd.f32 %v10054, %v10274
  %v10339 = vadd.f32 %v10056, %v10275
  %v10340 = vadd.f32 %v10058, %v10276
  %v10341 = vadd.f32 %v10060, %v10277
  %v10342 = vadd.f32 %v10064, %v10278
  %v10343 = vadd.f32 %v10066, %v10279
  %v10344 = vadd.f32 %v10068, %v10280
  %v10345 = vadd.f32 %v10070, %v10281
  %v10346 = vadd.f32 %v10074, %v10282
  %v10347 = vadd.f32 %v10076, %v10283
  %v10348 = vadd.f32 %v10078, %v10284
  %v10349 = vadd.f32 %v10080, %v10285
  %v10350 = vadd.f32 %v10084, %v10286
  %v10351 = vadd.f32 %v10086, %v10287
  %v10352 = vadd.f32 %v10088, %v10288
  %v10353 = vadd.f32 %v10090, %v10289
  %v10354 = vadd.f32 %v10094, %v10290
  %v10355 = vadd.f32 %v10096, %v10291
  %v10356 = vadd.f32 %v10098, %v10292
  %v10357 = vadd.f32 %v10100, %v10293
  %v10358 = vmul.f32 %v10294, 0.7978846
  %v10359 = vmul.f32 %v10295, 0.7978846
  %v10360 = vmul.f32 %v10296, 0.7978846
  %v10361 = vmul.f32 %v10297, 0.7978846
  %v10362 = vmul.f32 %v10298, 0.7978846
  %v10363 = vmul.f32 %v10299, 0.7978846
  %v10364 = vmul.f32 %v10300, 0.7978846
  %v10365 = vmul.f32 %v10301, 0.7978846
  %v10366 = vmul.f32 %v10302, 0.7978846
  %v10367 = vmul.f32 %v10303, 0.7978846
  %v10368 = vmul.f32 %v10304, 0.7978846
  %v10369 = vmul.f32 %v10305, 0.7978846
  %v10370 = vmul.f32 %v10306, 0.7978846
  %v10371 = vmul.f32 %v10307, 0.7978846
  %v10372 = vmul.f32 %v10308, 0.7978846
  %v10373 = vmul.f32 %v10309, 0.7978846
  %v10374 = vmul.f32 %v10310, 0.7978846
  %v10375 = vmul.f32 %v10311, 0.7978846
  %v10376 = vmul.f32 %v10312, 0.7978846
  %v10377 = vmul.f32 %v10313, 0.7978846
  %v10378 = vmul.f32 %v10314, 0.7978846
  %v10379 = vmul.f32 %v10315, 0.7978846
  %v10380 = vmul.f32 %v10316, 0.7978846
  %v10381 = vmul.f32 %v10317, 0.7978846
  %v10382 = vmul.f32 %v10318, 0.7978846
  %v10383 = vmul.f32 %v10319, 0.7978846
  %v10384 = vmul.f32 %v10320, 0.7978846
  %v10385 = vmul.f32 %v10321, 0.7978846
  %v10386 = vmul.f32 %v10322, 0.7978846
  %v10387 = vmul.f32 %v10323, 0.7978846
  %v10388 = vmul.f32 %v10324, 0.7978846
  %v10389 = vmul.f32 %v10325, 0.7978846
  %v10390 = vmul.f32 %v10326, 0.7978846
  %v10391 = vmul.f32 %v10327, 0.7978846
  %v10392 = vmul.f32 %v10328, 0.7978846
  %v10393 = vmul.f32 %v10329, 0.7978846
  %v10394 = vmul.f32 %v10330, 0.7978846
  %v10395 = vmul.f32 %v10331, 0.7978846
  %v10396 = vmul.f32 %v10332, 0.7978846
  %v10397 = vmul.f32 %v10333, 0.7978846
  %v10398 = vmul.f32 %v10334, 0.7978846
  %v10399 = vmul.f32 %v10335, 0.7978846
  %v10400 = vmul.f32 %v10336, 0.7978846
  %v10401 = vmul.f32 %v10337, 0.7978846
  %v10402 = vmul.f32 %v10338, 0.7978846
  %v10403 = vmul.f32 %v10339, 0.7978846
  %v10404 = vmul.f32 %v10340, 0.7978846
  %v10405 = vmul.f32 %v10341, 0.7978846
  %v10406 = vmul.f32 %v10342, 0.7978846
  %v10407 = vmul.f32 %v10343, 0.7978846
  %v10408 = vmul.f32 %v10344, 0.7978846
  %v10409 = vmul.f32 %v10345, 0.7978846
  %v10410 = vmul.f32 %v10346, 0.7978846
  %v10411 = vmul.f32 %v10347, 0.7978846
  %v10412 = vmul.f32 %v10348, 0.7978846
  %v10413 = vmul.f32 %v10349, 0.7978846
  %v10414 = vmul.f32 %v10350, 0.7978846
  %v10415 = vmul.f32 %v10351, 0.7978846
  %v10416 = vmul.f32 %v10352, 0.7978846
  %v10417 = vmul.f32 %v10353, 0.7978846
  %v10418 = vmul.f32 %v10354, 0.7978846
  %v10419 = vmul.f32 %v10355, 0.7978846
  %v10420 = vmul.f32 %v10356, 0.7978846
  %v10421 = vmul.f32 %v10357, 0.7978846
  %v10422 = vtanh.pop %v10358
  %v10423 = vtanh.pop %v10359
  %v10424 = vtanh.pop %v10360
  %v10425 = vtanh.pop %v10361
  %v10426 = vtanh.pop %v10362
  %v10427 = vtanh.pop %v10363
  %v10428 = vtanh.pop %v10364
  %v10429 = vtanh.pop %v10365
  %v10430 = vtanh.pop %v10366
  %v10431 = vtanh.pop %v10367
  %v10432 = vtanh.pop %v10368
  %v10433 = vtanh.pop %v10369
  %v10434 = vtanh.pop %v10370
  %v10435 = vtanh.pop %v10371
  %v10436 = vtanh.pop %v10372
  %v10437 = vtanh.pop %v10373
  %v10438 = vtanh.pop %v10374
  %v10439 = vtanh.pop %v10375
  %v10440 = vtanh.pop %v10376
  %v10441 = vtanh.pop %v10377
  %v10442 = vtanh.pop %v10378
  %v10443 = vtanh.pop %v10379
  %v10444 = vtanh.pop %v10380
  %v10445 = vtanh.pop %v10381
  %v10446 = vtanh.pop %v10382
  %v10447 = vtanh.pop %v10383
  %v10448 = vtanh.pop %v10384
  %v10449 = vtanh.pop %v10385
  %v10450 = vtanh.pop %v10386
  %v10451 = vtanh.pop %v10387
  %v10452 = vtanh.pop %v10388
  %v10453 = vtanh.pop %v10389
  %v10454 = vtanh.pop %v10390
  %v10455 = vtanh.pop %v10391
  %v10456 = vtanh.pop %v10392
  %v10457 = vtanh.pop %v10393
  %v10458 = vtanh.pop %v10394
  %v10459 = vtanh.pop %v10395
  %v10460 = vtanh.pop %v10396
  %v10461 = vtanh.pop %v10397
  %v10462 = vtanh.pop %v10398
  %v10463 = vtanh.pop %v10399
  %v10464 = vtanh.pop %v10400
  %v10465 = vtanh.pop %v10401
  %v10466 = vtanh.pop %v10402
  %v10467 = vtanh.pop %v10403
  %v10468 = vtanh.pop %v10404
  %v10469 = vtanh.pop %v10405
  %v10470 = vtanh.pop %v10406
  %v10471 = vtanh.pop %v10407
  %v10472 = vtanh.pop %v10408
  %v10473 = vtanh.pop %v10409
  %v10474 = vtanh.pop %v10410
  %v10475 = vtanh.pop %v10411
  %v10476 = vtanh.pop %v10412
  %v10477 = vtanh.pop %v10413
  %v10478 = vtanh.pop %v10414
  %v10479 = vtanh.pop %v10415
  %v10480 = vtanh.pop %v10416
  %v10481 = vtanh.pop %v10417
  %v10482 = vtanh.pop %v10418
  %v10483 = vtanh.pop %v10419
  %v10484 = vtanh.pop %v10420
  %v10485 = vtanh.pop %v10421
  %v10486 = vadd.f32 %v10422, 1.0
  %v10487 = vadd.f32 %v10423, 1.0
  %v10488 = vadd.f32 %v10424, 1.0
  %v10489 = vadd.f32 %v10425, 1.0
  %v10490 = vadd.f32 %v10426, 1.0
  %v10491 = vadd.f32 %v10427, 1.0
  %v10492 = vadd.f32 %v10428, 1.0
  %v10493 = vadd.f32 %v10429, 1.0
  %v10494 = vadd.f32 %v10430, 1.0
  %v10495 = vadd.f32 %v10431, 1.0
  %v10496 = vadd.f32 %v10432, 1.0
  %v10497 = vadd.f32 %v10433, 1.0
  %v10498 = vadd.f32 %v10434, 1.0
  %v10499 = vadd.f32 %v10435, 1.0
  %v10500 = vadd.f32 %v10436, 1.0
  %v10501 = vadd.f32 %v10437, 1.0
  %v10502 = vadd.f32 %v10438, 1.0
  %v10503 = vadd.f32 %v10439, 1.0
  %v10504 = vadd.f32 %v10440, 1.0
  %v10505 = vadd.f32 %v10441, 1.0
  %v10506 = vadd.f32 %v10442, 1.0
  %v10507 = vadd.f32 %v10443, 1.0
  %v10508 = vadd.f32 %v10444, 1.0
  %v10509 = vadd.f32 %v10445, 1.0
  %v10510 = vadd.f32 %v10446, 1.0
  %v10511 = vadd.f32 %v10447, 1.0
  %v10512 = vadd.f32 %v10448, 1.0
  %v10513 = vadd.f32 %v10449, 1.0
  %v10514 = vadd.f32 %v10450, 1.0
  %v10515 = vadd.f32 %v10451, 1.0
  %v10516 = vadd.f32 %v10452, 1.0
  %v10517 = vadd.f32 %v10453, 1.0
  %v10518 = vadd.f32 %v10454, 1.0
  %v10519 = vadd.f32 %v10455, 1.0
  %v10520 = vadd.f32 %v10456, 1.0
  %v10521 = vadd.f32 %v10457, 1.0
  %v10522 = vadd.f32 %v10458, 1.0
  %v10523 = vadd.f32 %v10459, 1.0
  %v10524 = vadd.f32 %v10460, 1.0
  %v10525 = vadd.f32 %v10461, 1.0
  %v10526 = vadd.f32 %v10462, 1.0
  %v10527 = vadd.f32 %v10463, 1.0
  %v10528 = vadd.f32 %v10464, 1.0
  %v10529 = vadd.f32 %v10465, 1.0
  %v10530 = vadd.f32 %v10466, 1.0
  %v10531 = vadd.f32 %v10467, 1.0
  %v10532 = vadd.f32 %v10468, 1.0
  %v10533 = vadd.f32 %v10469, 1.0
  %v10534 = vadd.f32 %v10470, 1.0
  %v10535 = vadd.f32 %v10471, 1.0
  %v10536 = vadd.f32 %v10472, 1.0
  %v10537 = vadd.f32 %v10473, 1.0
  %v10538 = vadd.f32 %v10474, 1.0
  %v10539 = vadd.f32 %v10475, 1.0
  %v10540 = vadd.f32 %v10476, 1.0
  %v10541 = vadd.f32 %v10477, 1.0
  %v10542 = vadd.f32 %v10478, 1.0
  %v10543 = vadd.f32 %v10479, 1.0
  %v10544 = vadd.f32 %v10480, 1.0
  %v10545 = vadd.f32 %v10481, 1.0
  %v10546 = vadd.f32 %v10482, 1.0
  %v10547 = vadd.f32 %v10483, 1.0
  %v10548 = vadd.f32 %v10484, 1.0
  %v10549 = vadd.f32 %v10485, 1.0
  %v10550 = vmul.f32 %v10486, 0.5
  %v10551 = vmul.f32 %v10487, 0.5
  %v10552 = vmul.f32 %v10488, 0.5
  %v10553 = vmul.f32 %v10489, 0.5
  %v10554 = vmul.f32 %v10490, 0.5
  %v10555 = vmul.f32 %v10491, 0.5
  %v10556 = vmul.f32 %v10492, 0.5
  %v10557 = vmul.f32 %v10493, 0.5
  %v10558 = vmul.f32 %v10494, 0.5
  %v10559 = vmul.f32 %v10495, 0.5
  %v10560 = vmul.f32 %v10496, 0.5
  %v10561 = vmul.f32 %v10497, 0.5
  %v10562 = vmul.f32 %v10498, 0.5
  %v10563 = vmul.f32 %v10499, 0.5
  %v10564 = vmul.f32 %v10500, 0.5
  %v10565 = vmul.f32 %v10501, 0.5
  %v10566 = vmul.f32 %v10502, 0.5
  %v10567 = vmul.f32 %v10503, 0.5
  %v10568 = vmul.f32 %v10504, 0.5
  %v10569 = vmul.f32 %v10505, 0.5
  %v10570 = vmul.f32 %v10506, 0.5
  %v10571 = vmul.f32 %v10507, 0.5
  %v10572 = vmul.f32 %v10508, 0.5
  %v10573 = vmul.f32 %v10509, 0.5
  %v10574 = vmul.f32 %v10510, 0.5
  %v10575 = vmul.f32 %v10511, 0.5
  %v10576 = vmul.f32 %v10512, 0.5
  %v10577 = vmul.f32 %v10513, 0.5
  %v10578 = vmul.f32 %v10514, 0.5
  %v10579 = vmul.f32 %v10515, 0.5
  %v10580 = vmul.f32 %v10516, 0.5
  %v10581 = vmul.f32 %v10517, 0.5
  %v10582 = vmul.f32 %v10518, 0.5
  %v10583 = vmul.f32 %v10519, 0.5
  %v10584 = vmul.f32 %v10520, 0.5
  %v10585 = vmul.f32 %v10521, 0.5
  %v10586 = vmul.f32 %v10522, 0.5
  %v10587 = vmul.f32 %v10523, 0.5
  %v10588 = vmul.f32 %v10524, 0.5
  %v10589 = vmul.f32 %v10525, 0.5
  %v10590 = vmul.f32 %v10526, 0.5
  %v10591 = vmul.f32 %v10527, 0.5
  %v10592 = vmul.f32 %v10528, 0.5
  %v10593 = vmul.f32 %v10529, 0.5
  %v10594 = vmul.f32 %v10530, 0.5
  %v10595 = vmul.f32 %v10531, 0.5
  %v10596 = vmul.f32 %v10532, 0.5
  %v10597 = vmul.f32 %v10533, 0.5
  %v10598 = vmul.f32 %v10534, 0.5
  %v10599 = vmul.f32 %v10535, 0.5
  %v10600 = vmul.f32 %v10536, 0.5
  %v10601 = vmul.f32 %v10537, 0.5
  %v10602 = vmul.f32 %v10538, 0.5
  %v10603 = vmul.f32 %v10539, 0.5
  %v10604 = vmul.f32 %v10540, 0.5
  %v10605 = vmul.f32 %v10541, 0.5
  %v10606 = vmul.f32 %v10542, 0.5
  %v10607 = vmul.f32 %v10543, 0.5
  %v10608 = vmul.f32 %v10544, 0.5
  %v10609 = vmul.f32 %v10545, 0.5
  %v10610 = vmul.f32 %v10546, 0.5
  %v10611 = vmul.f32 %v10547, 0.5
  %v10612 = vmul.f32 %v10548, 0.5
  %v10613 = vmul.f32 %v10549, 0.5
  %v10614 = vmul.f32 %v9944, %v10550
  %v10615 = vmul.f32 %v9946, %v10551
  %v10616 = vmul.f32 %v9948, %v10552
  %v10617 = vmul.f32 %v9950, %v10553
  %v10618 = vmul.f32 %v9954, %v10554
  %v10619 = vmul.f32 %v9956, %v10555
  %v10620 = vmul.f32 %v9958, %v10556
  %v10621 = vmul.f32 %v9960, %v10557
  %v10622 = vmul.f32 %v9964, %v10558
  %v10623 = vmul.f32 %v9966, %v10559
  %v10624 = vmul.f32 %v9968, %v10560
  %v10625 = vmul.f32 %v9970, %v10561
  %v10626 = vmul.f32 %v9974, %v10562
  %v10627 = vmul.f32 %v9976, %v10563
  %v10628 = vmul.f32 %v9978, %v10564
  %v10629 = vmul.f32 %v9980, %v10565
  %v10630 = vmul.f32 %v9984, %v10566
  %v10631 = vmul.f32 %v9986, %v10567
  %v10632 = vmul.f32 %v9988, %v10568
  %v10633 = vmul.f32 %v9990, %v10569
  %v10634 = vmul.f32 %v9994, %v10570
  %v10635 = vmul.f32 %v9996, %v10571
  %v10636 = vmul.f32 %v9998, %v10572
  %v10637 = vmul.f32 %v10000, %v10573
  %v10638 = vmul.f32 %v10004, %v10574
  %v10639 = vmul.f32 %v10006, %v10575
  %v10640 = vmul.f32 %v10008, %v10576
  %v10641 = vmul.f32 %v10010, %v10577
  %v10642 = vmul.f32 %v10014, %v10578
  %v10643 = vmul.f32 %v10016, %v10579
  %v10644 = vmul.f32 %v10018, %v10580
  %v10645 = vmul.f32 %v10020, %v10581
  %v10646 = vmul.f32 %v10024, %v10582
  %v10647 = vmul.f32 %v10026, %v10583
  %v10648 = vmul.f32 %v10028, %v10584
  %v10649 = vmul.f32 %v10030, %v10585
  %v10650 = vmul.f32 %v10034, %v10586
  %v10651 = vmul.f32 %v10036, %v10587
  %v10652 = vmul.f32 %v10038, %v10588
  %v10653 = vmul.f32 %v10040, %v10589
  %v10654 = vmul.f32 %v10044, %v10590
  %v10655 = vmul.f32 %v10046, %v10591
  %v10656 = vmul.f32 %v10048, %v10592
  %v10657 = vmul.f32 %v10050, %v10593
  %v10658 = vmul.f32 %v10054, %v10594
  %v10659 = vmul.f32 %v10056, %v10595
  %v10660 = vmul.f32 %v10058, %v10596
  %v10661 = vmul.f32 %v10060, %v10597
  %v10662 = vmul.f32 %v10064, %v10598
  %v10663 = vmul.f32 %v10066, %v10599
  %v10664 = vmul.f32 %v10068, %v10600
  %v10665 = vmul.f32 %v10070, %v10601
  %v10666 = vmul.f32 %v10074, %v10602
  %v10667 = vmul.f32 %v10076, %v10603
  %v10668 = vmul.f32 %v10078, %v10604
  %v10669 = vmul.f32 %v10080, %v10605
  %v10670 = vmul.f32 %v10084, %v10606
  %v10671 = vmul.f32 %v10086, %v10607
  %v10672 = vmul.f32 %v10088, %v10608
  %v10673 = vmul.f32 %v10090, %v10609
  %v10674 = vmul.f32 %v10094, %v10610
  %v10675 = vmul.f32 %v10096, %v10611
  %v10676 = vmul.f32 %v10098, %v10612
  %v10677 = vmul.f32 %v10100, %v10613
  %v10678 = vpack.c.bf16 %v10616, %v10614
  %v10679 = vpack.c.bf16 %v10617, %v10615
  %v10680 = vpack.c.bf16 %v10620, %v10618
  %v10681 = vpack.c.bf16 %v10621, %v10619
  %v10682 = vpack.c.bf16 %v10624, %v10622
  %v10683 = vpack.c.bf16 %v10625, %v10623
  %v10684 = vpack.c.bf16 %v10628, %v10626
  %v10685 = vpack.c.bf16 %v10629, %v10627
  %v10686 = vpack.c.bf16 %v10632, %v10630
  %v10687 = vpack.c.bf16 %v10633, %v10631
  %v10688 = vpack.c.bf16 %v10636, %v10634
  %v10689 = vpack.c.bf16 %v10637, %v10635
  %v10690 = vpack.c.bf16 %v10640, %v10638
  %v10691 = vpack.c.bf16 %v10641, %v10639
  %v10692 = vpack.c.bf16 %v10644, %v10642
  %v10693 = vpack.c.bf16 %v10645, %v10643
  %v10694 = vpack.c.bf16 %v10648, %v10646
  %v10695 = vpack.c.bf16 %v10649, %v10647
  %v10696 = vpack.c.bf16 %v10652, %v10650
  %v10697 = vpack.c.bf16 %v10653, %v10651
  %v10698 = vpack.c.bf16 %v10656, %v10654
  %v10699 = vpack.c.bf16 %v10657, %v10655
  %v10700 = vpack.c.bf16 %v10660, %v10658
  %v10701 = vpack.c.bf16 %v10661, %v10659
  %v10702 = vpack.c.bf16 %v10664, %v10662
  %v10703 = vpack.c.bf16 %v10665, %v10663
  %v10704 = vpack.c.bf16 %v10668, %v10666
  %v10705 = vpack.c.bf16 %v10669, %v10667
  %v10706 = vpack.c.bf16 %v10672, %v10670
  %v10707 = vpack.c.bf16 %v10673, %v10671
  %v10708 = vpack.c.bf16 %v10676, %v10674
  %v10709 = vpack.c.bf16 %v10677, %v10675
  %s10710 = scalar_lea.vmem %s14, 128
  %v10711 = vld [vmem:[%s10710] sm:$0xf]
  %v10712 = vld [vmem:[%s10710 + $0x4] sm:$0xf]
  %v10713 = vld [vmem:[%s10710 + $0x8] sm:$0xf]
  %v10714 = vld [vmem:[%s10710 + $0xc] sm:$0xf]
  %v10715 = vld [vmem:[%s10710 + $0x10] sm:$0xf]
  %v10716 = vld [vmem:[%s10710 + $0x14] sm:$0xf]
  %v10717 = vld [vmem:[%s10710 + $0x18] sm:$0xf]
  %v10718 = vld [vmem:[%s10710 + $0x1c] sm:$0xf]
  %v10719 = vld [vmem:[%s10710 + $0x20] sm:$0xf]
  %v10720 = vld [vmem:[%s10710 + $0x24] sm:$0xf]
  %v10721 = vld [vmem:[%s10710 + $0x28] sm:$0xf]
  %v10722 = vld [vmem:[%s10710 + $0x2c] sm:$0xf]
  %v10723 = vld [vmem:[%s10710 + $0x30] sm:$0xf]
  %v10724 = vld [vmem:[%s10710 + $0x34] sm:$0xf]
  %v10725 = vld [vmem:[%s10710 + $0x38] sm:$0xf]
  %v10726 = vld [vmem:[%s10710 + $0x3c] sm:$0xf]
  %v10727 = vld [vmem:[%s10710 + $0x40] sm:$0xf]
  %v10728 = vld [vmem:[%s10710 + $0x44] sm:$0xf]
  %v10729 = vld [vmem:[%s10710 + $0x48] sm:$0xf]
  %v10730 = vld [vmem:[%s10710 + $0x4c] sm:$0xf]
  %v10731 = vld [vmem:[%s10710 + $0x50] sm:$0xf]
  %v10732 = vld [vmem:[%s10710 + $0x54] sm:$0xf]
  %v10733 = vld [vmem:[%s10710 + $0x58] sm:$0xf]
  %v10734 = vld [vmem:[%s10710 + $0x5c] sm:$0xf]
  %v10735 = vld [vmem:[%s10710 + $0x60] sm:$0xf]
  %v10736 = vld [vmem:[%s10710 + $0x64] sm:$0xf]
  %v10737 = vld [vmem:[%s10710 + $0x68] sm:$0xf]
  %v10738 = vld [vmem:[%s10710 + $0x6c] sm:$0xf]
  %v10739 = vld [vmem:[%s10710 + $0x70] sm:$0xf]
  %v10740 = vld [vmem:[%s10710 + $0x74] sm:$0xf]
  %v10741 = vld [vmem:[%s10710 + $0x78] sm:$0xf]
  %v10742 = vld [vmem:[%s10710 + $0x7c] sm:$0xf]
  %s10743 = scalar_lea.vmem %s15, 1
  %v10744 = vld [vmem:[%s10743] sm:$0x1]
  %v10746 = vlaneseq
  %v10747 = vshrl.u32 %v10746, 7
  %v10748 = vsub.s32 0, %v10747
  %v10749 = vrot.slane %v10744, %v10748
  %v10783 = vunpack.c.l.b16 %v10711
  %v10784 = vunpack.c.l.b16 %v10712
  %v10785 = vunpack.c.l.b16 %v10713
  %v10786 = vunpack.c.l.b16 %v10714
  %v10787 = vunpack.c.l.b16 %v10715
  %v10788 = vunpack.c.l.b16 %v10716
  %v10789 = vunpack.c.l.b16 %v10717
  %v10790 = vunpack.c.l.b16 %v10718
  %v10791 = vunpack.c.l.b16 %v10719
  %v10792 = vunpack.c.l.b16 %v10720
  %v10793 = vunpack.c.l.b16 %v10721
  %v10794 = vunpack.c.l.b16 %v10722
  %v10795 = vunpack.c.l.b16 %v10723
  %v10796 = vunpack.c.l.b16 %v10724
  %v10797 = vunpack.c.l.b16 %v10725
  %v10798 = vunpack.c.l.b16 %v10726
  %v10799 = vunpack.c.l.b16 %v10727
  %v10800 = vunpack.c.l.b16 %v10728
  %v10801 = vunpack.c.l.b16 %v10729
  %v10802 = vunpack.c.l.b16 %v10730
  %v10803 = vunpack.c.l.b16 %v10731
  %v10804 = vunpack.c.l.b16 %v10732
  %v10805 = vunpack.c.l.b16 %v10733
  %v10806 = vunpack.c.l.b16 %v10734
  %v10807 = vunpack.c.l.b16 %v10735
  %v10808 = vunpack.c.l.b16 %v10736
  %v10809 = vunpack.c.l.b16 %v10737
  %v10810 = vunpack.c.l.b16 %v10738
  %v10811 = vunpack.c.l.b16 %v10739
  %v10812 = vunpack.c.l.b16 %v10740
  %v10813 = vunpack.c.l.b16 %v10741
  %v10814 = vunpack.c.l.b16 %v10742
  %v10815 = vpack.c.b16 %v10784, %v10783
  %v10816 = vpack.c.b16 %v10786, %v10785
  %v10817 = vpack.c.b16 %v10788, %v10787
  %v10818 = vpack.c.b16 %v10790, %v10789
  %v10819 = vpack.c.b16 %v10792, %v10791
  %v10820 = vpack.c.b16 %v10794, %v10793
  %v10821 = vpack.c.b16 %v10796, %v10795
  %v10822 = vpack.c.b16 %v10798, %v10797
  %v10823 = vpack.c.b16 %v10800, %v10799
  %v10824 = vpack.c.b16 %v10802, %v10801
  %v10825 = vpack.c.b16 %v10804, %v10803
  %v10826 = vpack.c.b16 %v10806, %v10805
  %v10827 = vpack.c.b16 %v10808, %v10807
  %v10828 = vpack.c.b16 %v10810, %v10809
  %v10829 = vpack.c.b16 %v10812, %v10811
  %v10830 = vpack.c.b16 %v10814, %v10813
  %10847 = vmatprep.subr.bf16.mxu0 0
  %10848 = vmatpush1.bf16.msra.mxu0 %v10822
  %10849 = vmatprep.subr.bf16.mxu0 0
  %10850 = vmatpush1.bf16.msra.mxu0 %v10821
  %10851 = vmatprep.subr.bf16.mxu0 0
  %10852 = vmatpush1.bf16.msra.mxu0 %v10820
  %10853 = vmatprep.subr.bf16.mxu0 0
  %10854 = vmatpush1.bf16.msra.mxu0 %v10819
  %10855 = vmatprep.subr.bf16.mxu0 0
  %10856 = vmatpush1.bf16.msra.mxu0 %v10818
  %10857 = vmatprep.subr.bf16.mxu0 0
  %10858 = vmatpush1.bf16.msra.mxu0 %v10817
  %10859 = vmatprep.subr.bf16.mxu0 0
  %10860 = vmatpush1.bf16.msra.mxu0 %v10816
  %10861 = vmatprep.subr.bf16.mxu0 0
  %10862 = vmatpush1.bf16.msra.mxu0 %v10815
  %10863 = vmatprep.subr.bf16.mxu0 0
  %10864 = vmatpush2.bf16.msra.mxu0 %v10830
  %10865 = vmatprep.subr.bf16.mxu0 0
  %10866 = vmatpush2.bf16.msra.mxu0 %v10829
  %10867 = vmatprep.subr.bf16.mxu0 0
  %10868 = vmatpush2.bf16.msra.mxu0 %v10828
  %10869 = vmatprep.subr.bf16.mxu0 0
  %10870 = vmatpush2.bf16.msra.mxu0 %v10827
  %10871 = vmatprep.subr.bf16.mxu0 0
  %10872 = vmatpush2.bf16.msra.mxu0 %v10826
  %10873 = vmatprep.subr.bf16.mxu0 0
  %10874 = vmatpush2.bf16.msra.mxu0 %v10825
  %10875 = vmatprep.subr.bf16.mxu0 0
  %10876 = vmatpush2.bf16.msra.mxu0 %v10824
  %10877 = vmatprep.subr.bf16.mxu0 0
  %10878 = vmatpush2.bf16.msra.mxu0 %v10823
  %10879 = vmatprep.mubr.bf16.mxu0 %v10679
  %10880 = vmatmul.mubr.bf16.gmra.mxu0 %v10678
  %v10881 = vpop.f32.mrf.mxu0
  %v10882 = vadd.f32 %v10749, %v10881
  %v10883 = vpop.f32.mrf.mxu0
  %v10884 = vpop.f32.mrf.mxu0
  %v10885 = vadd.f32 %v10749, %v10884
  %v10886 = vpop.f32.mrf.mxu0
  %10887 = vmatprep.mubr.bf16.mxu0 %v10681
  %10888 = vmatmul.mubr.bf16.gmra.mxu0 %v10680
  %v10889 = vpop.f32.mrf.mxu0
  %v10890 = vadd.f32 %v10749, %v10889
  %v10891 = vpop.f32.mrf.mxu0
  %v10892 = vpop.f32.mrf.mxu0
  %v10893 = vadd.f32 %v10749, %v10892
  %v10894 = vpop.f32.mrf.mxu0
  %10895 = vmatprep.mubr.bf16.mxu0 %v10683
  %10896 = vmatmul.mubr.bf16.gmra.mxu0 %v10682
  %v10897 = vpop.f32.mrf.mxu0
  %v10898 = vadd.f32 %v10749, %v10897
  %v10899 = vpop.f32.mrf.mxu0
  %v10900 = vpop.f32.mrf.mxu0
  %v10901 = vadd.f32 %v10749, %v10900
  %v10902 = vpop.f32.mrf.mxu0
  %10903 = vmatprep.mubr.bf16.mxu0 %v10685
  %10904 = vmatmul.mubr.bf16.gmra.mxu0 %v10684
  %v10905 = vpop.f32.mrf.mxu0
  %v10906 = vadd.f32 %v10749, %v10905
  %v10907 = vpop.f32.mrf.mxu0
  %v10908 = vpop.f32.mrf.mxu0
  %v10909 = vadd.f32 %v10749, %v10908
  %v10910 = vpop.f32.mrf.mxu0
  %10911 = vmatprep.mubr.bf16.mxu0 %v10687
  %10912 = vmatmul.mubr.bf16.gmra.mxu0 %v10686
  %v10913 = vpop.f32.mrf.mxu0
  %v10914 = vadd.f32 %v10749, %v10913
  %v10915 = vpop.f32.mrf.mxu0
  %v10916 = vpop.f32.mrf.mxu0
  %v10917 = vadd.f32 %v10749, %v10916
  %v10918 = vpop.f32.mrf.mxu0
  %10919 = vmatprep.mubr.bf16.mxu0 %v10689
  %10920 = vmatmul.mubr.bf16.gmra.mxu0 %v10688
  %v10921 = vpop.f32.mrf.mxu0
  %v10922 = vadd.f32 %v10749, %v10921
  %v10923 = vpop.f32.mrf.mxu0
  %v10924 = vpop.f32.mrf.mxu0
  %v10925 = vadd.f32 %v10749, %v10924
  %v10926 = vpop.f32.mrf.mxu0
  %10927 = vmatprep.mubr.bf16.mxu0 %v10691
  %10928 = vmatmul.mubr.bf16.gmra.mxu0 %v10690
  %v10929 = vpop.f32.mrf.mxu0
  %v10930 = vadd.f32 %v10749, %v10929
  %v10931 = vpop.f32.mrf.mxu0
  %v10932 = vpop.f32.mrf.mxu0
  %v10933 = vadd.f32 %v10749, %v10932
  %v10934 = vpop.f32.mrf.mxu0
  %10935 = vmatprep.mubr.bf16.mxu0 %v10693
  %10936 = vmatmul.mubr.bf16.gmra.mxu0 %v10692
  %v10937 = vpop.f32.mrf.mxu0
  %v10938 = vadd.f32 %v10749, %v10937
  %v10939 = vpop.f32.mrf.mxu0
  %v10940 = vpop.f32.mrf.mxu0
  %v10941 = vadd.f32 %v10749, %v10940
  %v10942 = vpop.f32.mrf.mxu0
  %10943 = vmatprep.mubr.bf16.mxu0 %v10695
  %10944 = vmatmul.mubr.bf16.gmra.mxu0 %v10694
  %v10945 = vpop.f32.mrf.mxu0
  %v10946 = vadd.f32 %v10749, %v10945
  %v10947 = vpop.f32.mrf.mxu0
  %v10948 = vpop.f32.mrf.mxu0
  %v10949 = vadd.f32 %v10749, %v10948
  %v10950 = vpop.f32.mrf.mxu0
  %10951 = vmatprep.mubr.bf16.mxu0 %v10697
  %10952 = vmatmul.mubr.bf16.gmra.mxu0 %v10696
  %v10953 = vpop.f32.mrf.mxu0
  %v10954 = vadd.f32 %v10749, %v10953
  %v10955 = vpop.f32.mrf.mxu0
  %v10956 = vpop.f32.mrf.mxu0
  %v10957 = vadd.f32 %v10749, %v10956
  %v10958 = vpop.f32.mrf.mxu0
  %10959 = vmatprep.mubr.bf16.mxu0 %v10699
  %10960 = vmatmul.mubr.bf16.gmra.mxu0 %v10698
  %v10961 = vpop.f32.mrf.mxu0
  %v10962 = vadd.f32 %v10749, %v10961
  %v10963 = vpop.f32.mrf.mxu0
  %v10964 = vpop.f32.mrf.mxu0
  %v10965 = vadd.f32 %v10749, %v10964
  %v10966 = vpop.f32.mrf.mxu0
  %10967 = vmatprep.mubr.bf16.mxu0 %v10701
  %10968 = vmatmul.mubr.bf16.gmra.mxu0 %v10700
  %v10969 = vpop.f32.mrf.mxu0
  %v10970 = vadd.f32 %v10749, %v10969
  %v10971 = vpop.f32.mrf.mxu0
  %v10972 = vpop.f32.mrf.mxu0
  %v10973 = vadd.f32 %v10749, %v10972
  %v10974 = vpop.f32.mrf.mxu0
  %10975 = vmatprep.mubr.bf16.mxu0 %v10703
  %10976 = vmatmul.mubr.bf16.gmra.mxu0 %v10702
  %v10977 = vpop.f32.mrf.mxu0
  %v10978 = vadd.f32 %v10749, %v10977
  %v10979 = vpop.f32.mrf.mxu0
  %v10980 = vpop.f32.mrf.mxu0
  %v10981 = vadd.f32 %v10749, %v10980
  %v10982 = vpop.f32.mrf.mxu0
  %10983 = vmatprep.mubr.bf16.mxu0 %v10705
  %10984 = vmatmul.mubr.bf16.gmra.mxu0 %v10704
  %v10985 = vpop.f32.mrf.mxu0
  %v10986 = vadd.f32 %v10749, %v10985
  %v10987 = vpop.f32.mrf.mxu0
  %v10988 = vpop.f32.mrf.mxu0
  %v10989 = vadd.f32 %v10749, %v10988
  %v10990 = vpop.f32.mrf.mxu0
  %10991 = vmatprep.mubr.bf16.mxu0 %v10707
  %10992 = vmatmul.mubr.bf16.gmra.mxu0 %v10706
  %v10993 = vpop.f32.mrf.mxu0
  %v10994 = vadd.f32 %v10749, %v10993
  %v10995 = vpop.f32.mrf.mxu0
  %v10996 = vpop.f32.mrf.mxu0
  %v10997 = vadd.f32 %v10749, %v10996
  %v10998 = vpop.f32.mrf.mxu0
  %10999 = vmatprep.mubr.bf16.mxu0 %v10709
  %11000 = vmatmul.mubr.bf16.gmra.mxu0 %v10708
  %v11001 = vpop.f32.mrf.mxu0
  %v11002 = vadd.f32 %v10749, %v11001
  %v11003 = vpop.f32.mrf.mxu0
  %v11004 = vpop.f32.mrf.mxu0
  %v11005 = vadd.f32 %v10749, %v11004
  %v11006 = vpop.f32.mrf.mxu0
  %11007 = vdwg.mxu0
  %v11008 = vadd.f32 %v10882, %v9751
  %v11009 = vadd.f32 %v10885, %v9752
  %v11010 = vadd.f32 %v10890, %v9753
  %v11011 = vadd.f32 %v10893, %v9754
  %v11012 = vadd.f32 %v10898, %v9755
  %v11013 = vadd.f32 %v10901, %v9756
  %v11014 = vadd.f32 %v10906, %v9757
  %v11015 = vadd.f32 %v10909, %v9758
  %v11016 = vadd.f32 %v10914, %v9759
  %v11017 = vadd.f32 %v10917, %v9760
  %v11018 = vadd.f32 %v10922, %v9761
  %v11019 = vadd.f32 %v10925, %v9762
  %v11020 = vadd.f32 %v10930, %v9763
  %v11021 = vadd.f32 %v10933, %v9764
  %v11022 = vadd.f32 %v10938, %v9765
  %v11023 = vadd.f32 %v10941, %v9766
  %v11024 = vadd.f32 %v10946, %v9767
  %v11025 = vadd.f32 %v10949, %v9768
  %v11026 = vadd.f32 %v10954, %v9769
  %v11027 = vadd.f32 %v10957, %v9770
  %v11028 = vadd.f32 %v10962, %v9771
  %v11029 = vadd.f32 %v10965, %v9772
  %v11030 = vadd.f32 %v10970, %v9773
  %v11031 = vadd.f32 %v10973, %v9774
  %v11032 = vadd.f32 %v10978, %v9775
  %v11033 = vadd.f32 %v10981, %v9776
  %v11034 = vadd.f32 %v10986, %v9777
  %v11035 = vadd.f32 %v10989, %v9778
  %v11036 = vadd.f32 %v10994, %v9779
  %v11037 = vadd.f32 %v10997, %v9780
  %v11038 = vadd.f32 %v11002, %v9781
  %v11039 = vadd.f32 %v11005, %v9782
  %s11040 = scalar_lea.vmem %s16, 1
  %v11041 = vld [vmem:[%s11040] sm:$0x1]
  %s11042 = scalar_lea.vmem %s17, 1
  %v11043 = vld [vmem:[%s11042] sm:$0x1]
  %11044 = vadd.xlane.f32.xlu0 %v11008
  %v11045 = vpop.xlane.xlu0 %11044
  %11046 = vadd.xlane.f32.xlu0 %v11009
  %v11047 = vpop.xlane.xlu0 %11046
  %11048 = vadd.xlane.f32.xlu0 %v11010
  %v11049 = vpop.xlane.xlu0 %11048
  %11050 = vadd.xlane.f32.xlu0 %v11011
  %v11051 = vpop.xlane.xlu0 %11050
  %11052 = vadd.xlane.f32.xlu0 %v11012
  %v11053 = vpop.xlane.xlu0 %11052
  %11054 = vadd.xlane.f32.xlu0 %v11013
  %v11055 = vpop.xlane.xlu0 %11054
  %11056 = vadd.xlane.f32.xlu0 %v11014
  %v11057 = vpop.xlane.xlu0 %11056
  %11058 = vadd.xlane.f32.xlu0 %v11015
  %v11059 = vpop.xlane.xlu0 %11058
  %11060 = vadd.xlane.f32.xlu0 %v11016
  %v11061 = vpop.xlane.xlu0 %11060
  %11062 = vadd.xlane.f32.xlu0 %v11017
  %v11063 = vpop.xlane.xlu0 %11062
  %11064 = vadd.xlane.f32.xlu0 %v11018
  %v11065 = vpop.xlane.xlu0 %11064
  %11066 = vadd.xlane.f32.xlu0 %v11019
  %v11067 = vpop.xlane.xlu0 %11066
  %11068 = vadd.xlane.f32.xlu0 %v11020
  %v11069 = vpop.xlane.xlu0 %11068
  %11070 = vadd.xlane.f32.xlu0 %v11021
  %v11071 = vpop.xlane.xlu0 %11070
  %11072 = vadd.xlane.f32.xlu0 %v11022
  %v11073 = vpop.xlane.xlu0 %11072
  %11074 = vadd.xlane.f32.xlu0 %v11023
  %v11075 = vpop.xlane.xlu0 %11074
  %11076 = vadd.xlane.f32.xlu0 %v11024
  %v11077 = vpop.xlane.xlu0 %11076
  %11078 = vadd.xlane.f32.xlu0 %v11025
  %v11079 = vpop.xlane.xlu0 %11078
  %11080 = vadd.xlane.f32.xlu0 %v11026
  %v11081 = vpop.xlane.xlu0 %11080
  %11082 = vadd.xlane.f32.xlu0 %v11027
  %v11083 = vpop.xlane.xlu0 %11082
  %11084 = vadd.xlane.f32.xlu0 %v11028
  %v11085 = vpop.xlane.xlu0 %11084
  %11086 = vadd.xlane.f32.xlu0 %v11029
  %v11087 = vpop.xlane.xlu0 %11086
  %11088 = vadd.xlane.f32.xlu0 %v11030
  %v11089 = vpop.xlane.xlu0 %11088
  %11090 = vadd.xlane.f32.xlu0 %v11031
  %v11091 = vpop.xlane.xlu0 %11090
  %11092 = vadd.xlane.f32.xlu0 %v11032
  %v11093 = vpop.xlane.xlu0 %11092
  %11094 = vadd.xlane.f32.xlu0 %v11033
  %v11095 = vpop.xlane.xlu0 %11094
  %11096 = vadd.xlane.f32.xlu0 %v11034
  %v11097 = vpop.xlane.xlu0 %11096
  %11098 = vadd.xlane.f32.xlu0 %v11035
  %v11099 = vpop.xlane.xlu0 %11098
  %11100 = vadd.xlane.f32.xlu0 %v11036
  %v11101 = vpop.xlane.xlu0 %11100
  %11102 = vadd.xlane.f32.xlu0 %v11037
  %v11103 = vpop.xlane.xlu0 %11102
  %11104 = vadd.xlane.f32.xlu0 %v11038
  %v11105 = vpop.xlane.xlu0 %11104
  %11106 = vadd.xlane.f32.xlu0 %v11039
  %v11107 = vpop.xlane.xlu0 %11106
  %v11108 = vmul.f32 %v11045, %v261
  %v11109 = vmul.f32 %v11047, %v261
  %v11110 = vmul.f32 %v11049, %v261
  %v11111 = vmul.f32 %v11051, %v261
  %v11112 = vmul.f32 %v11053, %v261
  %v11113 = vmul.f32 %v11055, %v261
  %v11114 = vmul.f32 %v11057, %v261
  %v11115 = vmul.f32 %v11059, %v261
  %v11116 = vmul.f32 %v11061, %v261
  %v11117 = vmul.f32 %v11063, %v261
  %v11118 = vmul.f32 %v11065, %v261
  %v11119 = vmul.f32 %v11067, %v261
  %v11120 = vmul.f32 %v11069, %v261
  %v11121 = vmul.f32 %v11071, %v261
  %v11122 = vmul.f32 %v11073, %v261
  %v11123 = vmul.f32 %v11075, %v261
  %v11124 = vmul.f32 %v11077, %v261
  %v11125 = vmul.f32 %v11079, %v261
  %v11126 = vmul.f32 %v11081, %v261
  %v11127 = vmul.f32 %v11083, %v261
  %v11128 = vmul.f32 %v11085, %v261
  %v11129 = vmul.f32 %v11087, %v261
  %v11130 = vmul.f32 %v11089, %v261
  %v11131 = vmul.f32 %v11091, %v261
  %v11132 = vmul.f32 %v11093, %v261
  %v11133 = vmul.f32 %v11095, %v261
  %v11134 = vmul.f32 %v11097, %v261
  %v11135 = vmul.f32 %v11099, %v261
  %v11136 = vmul.f32 %v11101, %v261
  %v11137 = vmul.f32 %v11103, %v261
  %v11138 = vmul.f32 %v11105, %v261
  %v11139 = vmul.f32 %v11107, %v261
  %v11140 = vmul.f32 %v11008, %v11008
  %v11141 = vmul.f32 %v11009, %v11009
  %v11142 = vmul.f32 %v11010, %v11010
  %v11143 = vmul.f32 %v11011, %v11011
  %v11144 = vmul.f32 %v11012, %v11012
  %v11145 = vmul.f32 %v11013, %v11013
  %v11146 = vmul.f32 %v11014, %v11014
  %v11147 = vmul.f32 %v11015, %v11015
  %v11148 = vmul.f32 %v11016, %v11016
  %v11149 = vmul.f32 %v11017, %v11017
  %v11150 = vmul.f32 %v11018, %v11018
  %v11151 = vmul.f32 %v11019, %v11019
  %v11152 = vmul.f32 %v11020, %v11020
  %v11153 = vmul.f32 %v11021, %v11021
  %v11154 = vmul.f32 %v11022, %v11022
  %v11155 = vmul.f32 %v11023, %v11023
  %v11156 = vmul.f32 %v11024, %v11024
  %v11157 = vmul.f32 %v11025, %v11025
  %v11158 = vmul.f32 %v11026, %v11026
  %v11159 = vmul.f32 %v11027, %v11027
  %v11160 = vmul.f32 %v11028, %v11028
  %v11161 = vmul.f32 %v11029, %v11029
  %v11162 = vmul.f32 %v11030, %v11030
  %v11163 = vmul.f32 %v11031, %v11031
  %v11164 = vmul.f32 %v11032, %v11032
  %v11165 = vmul.f32 %v11033, %v11033
  %v11166 = vmul.f32 %v11034, %v11034
  %v11167 = vmul.f32 %v11035, %v11035
  %v11168 = vmul.f32 %v11036, %v11036
  %v11169 = vmul.f32 %v11037, %v11037
  %v11170 = vmul.f32 %v11038, %v11038
  %v11171 = vmul.f32 %v11039, %v11039
  %11172 = vadd.xlane.f32.xlu0 %v11140
  %v11173 = vpop.xlane.xlu0 %11172
  %11174 = vadd.xlane.f32.xlu0 %v11141
  %v11175 = vpop.xlane.xlu0 %11174
  %11176 = vadd.xlane.f32.xlu0 %v11142
  %v11177 = vpop.xlane.xlu0 %11176
  %11178 = vadd.xlane.f32.xlu0 %v11143
  %v11179 = vpop.xlane.xlu0 %11178
  %11180 = vadd.xlane.f32.xlu0 %v11144
  %v11181 = vpop.xlane.xlu0 %11180
  %11182 = vadd.xlane.f32.xlu0 %v11145
  %v11183 = vpop.xlane.xlu0 %11182
  %11184 = vadd.xlane.f32.xlu0 %v11146
  %v11185 = vpop.xlane.xlu0 %11184
  %11186 = vadd.xlane.f32.xlu0 %v11147
  %v11187 = vpop.xlane.xlu0 %11186
  %11188 = vadd.xlane.f32.xlu0 %v11148
  %v11189 = vpop.xlane.xlu0 %11188
  %11190 = vadd.xlane.f32.xlu0 %v11149
  %v11191 = vpop.xlane.xlu0 %11190
  %11192 = vadd.xlane.f32.xlu0 %v11150
  %v11193 = vpop.xlane.xlu0 %11192
  %11194 = vadd.xlane.f32.xlu0 %v11151
  %v11195 = vpop.xlane.xlu0 %11194
  %11196 = vadd.xlane.f32.xlu0 %v11152
  %v11197 = vpop.xlane.xlu0 %11196
  %11198 = vadd.xlane.f32.xlu0 %v11153
  %v11199 = vpop.xlane.xlu0 %11198
  %11200 = vadd.xlane.f32.xlu0 %v11154
  %v11201 = vpop.xlane.xlu0 %11200
  %11202 = vadd.xlane.f32.xlu0 %v11155
  %v11203 = vpop.xlane.xlu0 %11202
  %11204 = vadd.xlane.f32.xlu0 %v11156
  %v11205 = vpop.xlane.xlu0 %11204
  %11206 = vadd.xlane.f32.xlu0 %v11157
  %v11207 = vpop.xlane.xlu0 %11206
  %11208 = vadd.xlane.f32.xlu0 %v11158
  %v11209 = vpop.xlane.xlu0 %11208
  %11210 = vadd.xlane.f32.xlu0 %v11159
  %v11211 = vpop.xlane.xlu0 %11210
  %11212 = vadd.xlane.f32.xlu0 %v11160
  %v11213 = vpop.xlane.xlu0 %11212
  %11214 = vadd.xlane.f32.xlu0 %v11161
  %v11215 = vpop.xlane.xlu0 %11214
  %11216 = vadd.xlane.f32.xlu0 %v11162
  %v11217 = vpop.xlane.xlu0 %11216
  %11218 = vadd.xlane.f32.xlu0 %v11163
  %v11219 = vpop.xlane.xlu0 %11218
  %11220 = vadd.xlane.f32.xlu0 %v11164
  %v11221 = vpop.xlane.xlu0 %11220
  %11222 = vadd.xlane.f32.xlu0 %v11165
  %v11223 = vpop.xlane.xlu0 %11222
  %11224 = vadd.xlane.f32.xlu0 %v11166
  %v11225 = vpop.xlane.xlu0 %11224
  %11226 = vadd.xlane.f32.xlu0 %v11167
  %v11227 = vpop.xlane.xlu0 %11226
  %11228 = vadd.xlane.f32.xlu0 %v11168
  %v11229 = vpop.xlane.xlu0 %11228
  %11230 = vadd.xlane.f32.xlu0 %v11169
  %v11231 = vpop.xlane.xlu0 %11230
  %11232 = vadd.xlane.f32.xlu0 %v11170
  %v11233 = vpop.xlane.xlu0 %11232
  %11234 = vadd.xlane.f32.xlu0 %v11171
  %v11235 = vpop.xlane.xlu0 %11234
  %v11236 = vmul.f32 %v11173, %v261
  %v11237 = vmul.f32 %v11175, %v261
  %v11238 = vmul.f32 %v11177, %v261
  %v11239 = vmul.f32 %v11179, %v261
  %v11240 = vmul.f32 %v11181, %v261
  %v11241 = vmul.f32 %v11183, %v261
  %v11242 = vmul.f32 %v11185, %v261
  %v11243 = vmul.f32 %v11187, %v261
  %v11244 = vmul.f32 %v11189, %v261
  %v11245 = vmul.f32 %v11191, %v261
  %v11246 = vmul.f32 %v11193, %v261
  %v11247 = vmul.f32 %v11195, %v261
  %v11248 = vmul.f32 %v11197, %v261
  %v11249 = vmul.f32 %v11199, %v261
  %v11250 = vmul.f32 %v11201, %v261
  %v11251 = vmul.f32 %v11203, %v261
  %v11252 = vmul.f32 %v11205, %v261
  %v11253 = vmul.f32 %v11207, %v261
  %v11254 = vmul.f32 %v11209, %v261
  %v11255 = vmul.f32 %v11211, %v261
  %v11256 = vmul.f32 %v11213, %v261
  %v11257 = vmul.f32 %v11215, %v261
  %v11258 = vmul.f32 %v11217, %v261
  %v11259 = vmul.f32 %v11219, %v261
  %v11260 = vmul.f32 %v11221, %v261
  %v11261 = vmul.f32 %v11223, %v261
  %v11262 = vmul.f32 %v11225, %v261
  %v11263 = vmul.f32 %v11227, %v261
  %v11264 = vmul.f32 %v11229, %v261
  %v11265 = vmul.f32 %v11231, %v261
  %v11266 = vmul.f32 %v11233, %v261
  %v11267 = vmul.f32 %v11235, %v261
  %v11268 = vmul.f32 %v11108, %v11108
  %v11269 = vmul.f32 %v11109, %v11109
  %v11270 = vmul.f32 %v11110, %v11110
  %v11271 = vmul.f32 %v11111, %v11111
  %v11272 = vmul.f32 %v11112, %v11112
  %v11273 = vmul.f32 %v11113, %v11113
  %v11274 = vmul.f32 %v11114, %v11114
  %v11275 = vmul.f32 %v11115, %v11115
  %v11276 = vmul.f32 %v11116, %v11116
  %v11277 = vmul.f32 %v11117, %v11117
  %v11278 = vmul.f32 %v11118, %v11118
  %v11279 = vmul.f32 %v11119, %v11119
  %v11280 = vmul.f32 %v11120, %v11120
  %v11281 = vmul.f32 %v11121, %v11121
  %v11282 = vmul.f32 %v11122, %v11122
  %v11283 = vmul.f32 %v11123, %v11123
  %v11284 = vmul.f32 %v11124, %v11124
  %v11285 = vmul.f32 %v11125, %v11125
  %v11286 = vmul.f32 %v11126, %v11126
  %v11287 = vmul.f32 %v11127, %v11127
  %v11288 = vmul.f32 %v11128, %v11128
  %v11289 = vmul.f32 %v11129, %v11129
  %v11290 = vmul.f32 %v11130, %v11130
  %v11291 = vmul.f32 %v11131, %v11131
  %v11292 = vmul.f32 %v11132, %v11132
  %v11293 = vmul.f32 %v11133, %v11133
  %v11294 = vmul.f32 %v11134, %v11134
  %v11295 = vmul.f32 %v11135, %v11135
  %v11296 = vmul.f32 %v11136, %v11136
  %v11297 = vmul.f32 %v11137, %v11137
  %v11298 = vmul.f32 %v11138, %v11138
  %v11299 = vmul.f32 %v11139, %v11139
  %v11300 = vsub.f32 %v11236, %v11268
  %v11301 = vsub.f32 %v11237, %v11269
  %v11302 = vsub.f32 %v11238, %v11270
  %v11303 = vsub.f32 %v11239, %v11271
  %v11304 = vsub.f32 %v11240, %v11272
  %v11305 = vsub.f32 %v11241, %v11273
  %v11306 = vsub.f32 %v11242, %v11274
  %v11307 = vsub.f32 %v11243, %v11275
  %v11308 = vsub.f32 %v11244, %v11276
  %v11309 = vsub.f32 %v11245, %v11277
  %v11310 = vsub.f32 %v11246, %v11278
  %v11311 = vsub.f32 %v11247, %v11279
  %v11312 = vsub.f32 %v11248, %v11280
  %v11313 = vsub.f32 %v11249, %v11281
  %v11314 = vsub.f32 %v11250, %v11282
  %v11315 = vsub.f32 %v11251, %v11283
  %v11316 = vsub.f32 %v11252, %v11284
  %v11317 = vsub.f32 %v11253, %v11285
  %v11318 = vsub.f32 %v11254, %v11286
  %v11319 = vsub.f32 %v11255, %v11287
  %v11320 = vsub.f32 %v11256, %v11288
  %v11321 = vsub.f32 %v11257, %v11289
  %v11322 = vsub.f32 %v11258, %v11290
  %v11323 = vsub.f32 %v11259, %v11291
  %v11324 = vsub.f32 %v11260, %v11292
  %v11325 = vsub.f32 %v11261, %v11293
  %v11326 = vsub.f32 %v11262, %v11294
  %v11327 = vsub.f32 %v11263, %v11295
  %v11328 = vsub.f32 %v11264, %v11296
  %v11329 = vsub.f32 %v11265, %v11297
  %v11330 = vsub.f32 %v11266, %v11298
  %v11331 = vsub.f32 %v11267, %v11299
  %v11332 = vsub.f32 %v11008, %v11108
  %v11333 = vsub.f32 %v11009, %v11109
  %v11334 = vsub.f32 %v11010, %v11110
  %v11335 = vsub.f32 %v11011, %v11111
  %v11336 = vsub.f32 %v11012, %v11112
  %v11337 = vsub.f32 %v11013, %v11113
  %v11338 = vsub.f32 %v11014, %v11114
  %v11339 = vsub.f32 %v11015, %v11115
  %v11340 = vsub.f32 %v11016, %v11116
  %v11341 = vsub.f32 %v11017, %v11117
  %v11342 = vsub.f32 %v11018, %v11118
  %v11343 = vsub.f32 %v11019, %v11119
  %v11344 = vsub.f32 %v11020, %v11120
  %v11345 = vsub.f32 %v11021, %v11121
  %v11346 = vsub.f32 %v11022, %v11122
  %v11347 = vsub.f32 %v11023, %v11123
  %v11348 = vsub.f32 %v11024, %v11124
  %v11349 = vsub.f32 %v11025, %v11125
  %v11350 = vsub.f32 %v11026, %v11126
  %v11351 = vsub.f32 %v11027, %v11127
  %v11352 = vsub.f32 %v11028, %v11128
  %v11353 = vsub.f32 %v11029, %v11129
  %v11354 = vsub.f32 %v11030, %v11130
  %v11355 = vsub.f32 %v11031, %v11131
  %v11356 = vsub.f32 %v11032, %v11132
  %v11357 = vsub.f32 %v11033, %v11133
  %v11358 = vsub.f32 %v11034, %v11134
  %v11359 = vsub.f32 %v11035, %v11135
  %v11360 = vsub.f32 %v11036, %v11136
  %v11361 = vsub.f32 %v11037, %v11137
  %v11362 = vsub.f32 %v11038, %v11138
  %v11363 = vsub.f32 %v11039, %v11139
  %v11364 = vadd.f32 %v11300, 1e-12
  %v11365 = vadd.f32 %v11301, 1e-12
  %v11366 = vadd.f32 %v11302, 1e-12
  %v11367 = vadd.f32 %v11303, 1e-12
  %v11368 = vadd.f32 %v11304, 1e-12
  %v11369 = vadd.f32 %v11305, 1e-12
  %v11370 = vadd.f32 %v11306, 1e-12
  %v11371 = vadd.f32 %v11307, 1e-12
  %v11372 = vadd.f32 %v11308, 1e-12
  %v11373 = vadd.f32 %v11309, 1e-12
  %v11374 = vadd.f32 %v11310, 1e-12
  %v11375 = vadd.f32 %v11311, 1e-12
  %v11376 = vadd.f32 %v11312, 1e-12
  %v11377 = vadd.f32 %v11313, 1e-12
  %v11378 = vadd.f32 %v11314, 1e-12
  %v11379 = vadd.f32 %v11315, 1e-12
  %v11380 = vadd.f32 %v11316, 1e-12
  %v11381 = vadd.f32 %v11317, 1e-12
  %v11382 = vadd.f32 %v11318, 1e-12
  %v11383 = vadd.f32 %v11319, 1e-12
  %v11384 = vadd.f32 %v11320, 1e-12
  %v11385 = vadd.f32 %v11321, 1e-12
  %v11386 = vadd.f32 %v11322, 1e-12
  %v11387 = vadd.f32 %v11323, 1e-12
  %v11388 = vadd.f32 %v11324, 1e-12
  %v11389 = vadd.f32 %v11325, 1e-12
  %v11390 = vadd.f32 %v11326, 1e-12
  %v11391 = vadd.f32 %v11327, 1e-12
  %v11392 = vadd.f32 %v11328, 1e-12
  %v11393 = vadd.f32 %v11329, 1e-12
  %v11394 = vadd.f32 %v11330, 1e-12
  %v11395 = vadd.f32 %v11331, 1e-12
  %v11396 = vrsqrt.pop %v11364
  %v11397 = vrsqrt.pop %v11365
  %v11398 = vrsqrt.pop %v11366
  %v11399 = vrsqrt.pop %v11367
  %v11400 = vrsqrt.pop %v11368
  %v11401 = vrsqrt.pop %v11369
  %v11402 = vrsqrt.pop %v11370
  %v11403 = vrsqrt.pop %v11371
  %v11404 = vrsqrt.pop %v11372
  %v11405 = vrsqrt.pop %v11373
  %v11406 = vrsqrt.pop %v11374
  %v11407 = vrsqrt.pop %v11375
  %v11408 = vrsqrt.pop %v11376
  %v11409 = vrsqrt.pop %v11377
  %v11410 = vrsqrt.pop %v11378
  %v11411 = vrsqrt.pop %v11379
  %v11412 = vrsqrt.pop %v11380
  %v11413 = vrsqrt.pop %v11381
  %v11414 = vrsqrt.pop %v11382
  %v11415 = vrsqrt.pop %v11383
  %v11416 = vrsqrt.pop %v11384
  %v11417 = vrsqrt.pop %v11385
  %v11418 = vrsqrt.pop %v11386
  %v11419 = vrsqrt.pop %v11387
  %v11420 = vrsqrt.pop %v11388
  %v11421 = vrsqrt.pop %v11389
  %v11422 = vrsqrt.pop %v11390
  %v11423 = vrsqrt.pop %v11391
  %v11424 = vrsqrt.pop %v11392
  %v11425 = vrsqrt.pop %v11393
  %v11426 = vrsqrt.pop %v11394
  %v11427 = vrsqrt.pop %v11395
  %v11428 = vmul.f32 %v11332, %v11396
  %v11429 = vmul.f32 %v11333, %v11397
  %v11430 = vmul.f32 %v11334, %v11398
  %v11431 = vmul.f32 %v11335, %v11399
  %v11432 = vmul.f32 %v11336, %v11400
  %v11433 = vmul.f32 %v11337, %v11401
  %v11434 = vmul.f32 %v11338, %v11402
  %v11435 = vmul.f32 %v11339, %v11403
  %v11436 = vmul.f32 %v11340, %v11404
  %v11437 = vmul.f32 %v11341, %v11405
  %v11438 = vmul.f32 %v11342, %v11406
  %v11439 = vmul.f32 %v11343, %v11407
  %v11440 = vmul.f32 %v11344, %v11408
  %v11441 = vmul.f32 %v11345, %v11409
  %v11442 = vmul.f32 %v11346, %v11410
  %v11443 = vmul.f32 %v11347, %v11411
  %v11444 = vmul.f32 %v11348, %v11412
  %v11445 = vmul.f32 %v11349, %v11413
  %v11446 = vmul.f32 %v11350, %v11414
  %v11447 = vmul.f32 %v11351, %v11415
  %v11448 = vmul.f32 %v11352, %v11416
  %v11449 = vmul.f32 %v11353, %v11417
  %v11450 = vmul.f32 %v11354, %v11418
  %v11451 = vmul.f32 %v11355, %v11419
  %v11452 = vmul.f32 %v11356, %v11420
  %v11453 = vmul.f32 %v11357, %v11421
  %v11454 = vmul.f32 %v11358, %v11422
  %v11455 = vmul.f32 %v11359, %v11423
  %v11456 = vmul.f32 %v11360, %v11424
  %v11457 = vmul.f32 %v11361, %v11425
  %v11458 = vmul.f32 %v11362, %v11426
  %v11459 = vmul.f32 %v11363, %v11427
  %v11461 = vlaneseq
  %v11462 = vshrl.u32 %v11461, 7
  %v11463 = vsub.s32 0, %v11462
  %v11464 = vrot.slane %v11041, %v11463
  %v11466 = vmul.f32 %v11428, %v11464
  %v11467 = vmul.f32 %v11429, %v11464
  %v11468 = vmul.f32 %v11430, %v11464
  %v11469 = vmul.f32 %v11431, %v11464
  %v11470 = vmul.f32 %v11432, %v11464
  %v11471 = vmul.f32 %v11433, %v11464
  %v11472 = vmul.f32 %v11434, %v11464
  %v11473 = vmul.f32 %v11435, %v11464
  %v11474 = vmul.f32 %v11436, %v11464
  %v11475 = vmul.f32 %v11437, %v11464
  %v11476 = vmul.f32 %v11438, %v11464
  %v11477 = vmul.f32 %v11439, %v11464
  %v11478 = vmul.f32 %v11440, %v11464
  %v11479 = vmul.f32 %v11441, %v11464
  %v11480 = vmul.f32 %v11442, %v11464
  %v11481 = vmul.f32 %v11443, %v11464
  %v11482 = vmul.f32 %v11444, %v11464
  %v11483 = vmul.f32 %v11445, %v11464
  %v11484 = vmul.f32 %v11446, %v11464
  %v11485 = vmul.f32 %v11447, %v11464
  %v11486 = vmul.f32 %v11448, %v11464
  %v11487 = vmul.f32 %v11449, %v11464
  %v11488 = vmul.f32 %v11450, %v11464
  %v11489 = vmul.f32 %v11451, %v11464
  %v11490 = vmul.f32 %v11452, %v11464
  %v11491 = vmul.f32 %v11453, %v11464
  %v11492 = vmul.f32 %v11454, %v11464
  %v11493 = vmul.f32 %v11455, %v11464
  %v11494 = vmul.f32 %v11456, %v11464
  %v11495 = vmul.f32 %v11457, %v11464
  %v11496 = vmul.f32 %v11458, %v11464
  %v11497 = vmul.f32 %v11459, %v11464
  %v11499 = vlaneseq
  %v11500 = vshrl.u32 %v11499, 7
  %v11501 = vsub.s32 0, %v11500
  %v11502 = vrot.slane %v11043, %v11501
  %v11504 = vadd.f32 %v11466, %v11502
  %v11505 = vadd.f32 %v11467, %v11502
  %v11506 = vadd.f32 %v11468, %v11502
  %v11507 = vadd.f32 %v11469, %v11502
  %v11508 = vadd.f32 %v11470, %v11502
  %v11509 = vadd.f32 %v11471, %v11502
  %v11510 = vadd.f32 %v11472, %v11502
  %v11511 = vadd.f32 %v11473, %v11502
  %v11512 = vadd.f32 %v11474, %v11502
  %v11513 = vadd.f32 %v11475, %v11502
  %v11514 = vadd.f32 %v11476, %v11502
  %v11515 = vadd.f32 %v11477, %v11502
  %v11516 = vadd.f32 %v11478, %v11502
  %v11517 = vadd.f32 %v11479, %v11502
  %v11518 = vadd.f32 %v11480, %v11502
  %v11519 = vadd.f32 %v11481, %v11502
  %v11520 = vadd.f32 %v11482, %v11502
  %v11521 = vadd.f32 %v11483, %v11502
  %v11522 = vadd.f32 %v11484, %v11502
  %v11523 = vadd.f32 %v11485, %v11502
  %v11524 = vadd.f32 %v11486, %v11502
  %v11525 = vadd.f32 %v11487, %v11502
  %v11526 = vadd.f32 %v11488, %v11502
  %v11527 = vadd.f32 %v11489, %v11502
  %v11528 = vadd.f32 %v11490, %v11502
  %v11529 = vadd.f32 %v11491, %v11502
  %v11530 = vadd.f32 %v11492, %v11502
  %v11531 = vadd.f32 %v11493, %v11502
  %v11532 = vadd.f32 %v11494, %v11502
  %v11533 = vadd.f32 %v11495, %v11502
  %v11534 = vadd.f32 %v11496, %v11502
  %v11535 = vadd.f32 %v11497, %v11502
  %v11536 = vpack.c.bf16 %v11505, %v11504
  %v11537 = vpack.c.bf16 %v11507, %v11506
  %v11538 = vpack.c.bf16 %v11509, %v11508
  %v11539 = vpack.c.bf16 %v11511, %v11510
  %v11540 = vpack.c.bf16 %v11513, %v11512
  %v11541 = vpack.c.bf16 %v11515, %v11514
  %v11542 = vpack.c.bf16 %v11517, %v11516
  %v11543 = vpack.c.bf16 %v11519, %v11518
  %v11544 = vpack.c.bf16 %v11521, %v11520
  %v11545 = vpack.c.bf16 %v11523, %v11522
  %v11546 = vpack.c.bf16 %v11525, %v11524
  %v11547 = vpack.c.bf16 %v11527, %v11526
  %v11548 = vpack.c.bf16 %v11529, %v11528
  %v11549 = vpack.c.bf16 %v11531, %v11530
  %v11550 = vpack.c.bf16 %v11533, %v11532
  %v11551 = vpack.c.bf16 %v11535, %v11534
  %v11552 = vld [vmem:[%s18] sm:$0xf]
  %v11553 = vld [vmem:[%s18 + $0x4] sm:$0xf]
  %v11554 = vld [vmem:[%s18 + $0x8] sm:$0xf]
  %v11555 = vld [vmem:[%s18 + $0xc] sm:$0xf]
  %v11556 = vld [vmem:[%s18 + $0x10] sm:$0xf]
  %v11557 = vld [vmem:[%s18 + $0x14] sm:$0xf]
  %v11558 = vld [vmem:[%s18 + $0x18] sm:$0xf]
  %v11559 = vld [vmem:[%s18 + $0x1c] sm:$0xf]
  %v11560 = vld [vmem:[%s18 + $0x20] sm:$0xf]
  %v11561 = vld [vmem:[%s18 + $0x24] sm:$0xf]
  %v11562 = vld [vmem:[%s18 + $0x28] sm:$0xf]
  %v11563 = vld [vmem:[%s18 + $0x2c] sm:$0xf]
  %v11564 = vld [vmem:[%s18 + $0x30] sm:$0xf]
  %v11565 = vld [vmem:[%s18 + $0x34] sm:$0xf]
  %v11566 = vld [vmem:[%s18 + $0x38] sm:$0xf]
  %v11567 = vld [vmem:[%s18 + $0x3c] sm:$0xf]
  %v11568 = vld [vmem:[%s19] sm:$0x1]
  %v11570 = vlaneseq
  %v11571 = vshrl.u32 %v11570, 7
  %v11572 = vsub.s32 0, %v11571
  %v11573 = vrot.slane %v11568, %v11572
  %v11591 = vunpack.c.l.b16 %v11552
  %v11592 = vunpack.c.l.b16 %v11553
  %v11593 = vunpack.c.l.b16 %v11554
  %v11594 = vunpack.c.l.b16 %v11555
  %v11595 = vunpack.c.l.b16 %v11556
  %v11596 = vunpack.c.l.b16 %v11557
  %v11597 = vunpack.c.l.b16 %v11558
  %v11598 = vunpack.c.l.b16 %v11559
  %v11599 = vunpack.c.l.b16 %v11560
  %v11600 = vunpack.c.l.b16 %v11561
  %v11601 = vunpack.c.l.b16 %v11562
  %v11602 = vunpack.c.l.b16 %v11563
  %v11603 = vunpack.c.l.b16 %v11564
  %v11604 = vunpack.c.l.b16 %v11565
  %v11605 = vunpack.c.l.b16 %v11566
  %v11606 = vunpack.c.l.b16 %v11567
  %v11607 = vpack.c.b16 %v11592, %v11591
  %v11608 = vpack.c.b16 %v11594, %v11593
  %v11609 = vpack.c.b16 %v11596, %v11595
  %v11610 = vpack.c.b16 %v11598, %v11597
  %v11611 = vpack.c.b16 %v11600, %v11599
  %v11612 = vpack.c.b16 %v11602, %v11601
  %v11613 = vpack.c.b16 %v11604, %v11603
  %v11614 = vpack.c.b16 %v11606, %v11605
  %11623 = vmatprep.subr.bf16.mxu0 0
  %11624 = vmatpush1.bf16.msra.mxu0 %v11614
  %11625 = vmatprep.subr.bf16.mxu0 0
  %11626 = vmatpush1.bf16.msra.mxu0 %v11613
  %11627 = vmatprep.subr.bf16.mxu0 0
  %11628 = vmatpush1.bf16.msra.mxu0 %v11612
  %11629 = vmatprep.subr.bf16.mxu0 0
  %11630 = vmatpush1.bf16.msra.mxu0 %v11611
  %11631 = vmatprep.subr.bf16.mxu0 0
  %11632 = vmatpush1.bf16.msra.mxu0 %v11610
  %11633 = vmatprep.subr.bf16.mxu0 0
  %11634 = vmatpush1.bf16.msra.mxu0 %v11609
  %11635 = vmatprep.subr.bf16.mxu0 0
  %11636 = vmatpush1.bf16.msra.mxu0 %v11608
  %11637 = vmatprep.subr.bf16.mxu0 0
  %11638 = vmatpush1.bf16.msra.mxu0 %v11607
  %11639 = vmatprep.subr.bf16.mxu0 0
  %11640 = vmatpush2.bf16.msra.mxu0 0
  %11641 = vmatprep.subr.bf16.mxu0 0
  %11642 = vmatpush2.bf16.msra.mxu0 0
  %11643 = vmatprep.subr.bf16.mxu0 0
  %11644 = vmatpush2.bf16.msra.mxu0 0
  %11645 = vmatprep.subr.bf16.mxu0 0
  %11646 = vmatpush2.bf16.msra.mxu0 0
  %11647 = vmatprep.subr.bf16.mxu0 0
  %11648 = vmatpush2.bf16.msra.mxu0 0
  %11649 = vmatprep.subr.bf16.mxu0 0
  %11650 = vmatpush2.bf16.msra.mxu0 0
  %11651 = vmatprep.subr.bf16.mxu0 0
  %11652 = vmatpush2.bf16.msra.mxu0 0
  %11653 = vmatprep.subr.bf16.mxu0 0
  %11654 = vmatpush2.bf16.msra.mxu0 0
  %11655 = vmatprep.mubr.bf16.mxu0 0
  %11656 = vmatmul.mubr.bf16.gmra.mxu0 %v11536
  %v11657 = vpop.f32.mrf.mxu0
  %v11658 = vadd.f32 %v11573, %v11657
  %v11659 = vpop.f32.mrf.mxu0
  %v11660 = vpop.f32.mrf.mxu0
  %v11661 = vadd.f32 %v11573, %v11660
  %v11662 = vpop.f32.mrf.mxu0
  %11663 = vmatprep.mubr.bf16.mxu0 0
  %11664 = vmatmul.mubr.bf16.gmra.mxu0 %v11537
  %v11665 = vpop.f32.mrf.mxu0
  %v11666 = vadd.f32 %v11573, %v11665
  %v11667 = vpop.f32.mrf.mxu0
  %v11668 = vpop.f32.mrf.mxu0
  %v11669 = vadd.f32 %v11573, %v11668
  %v11670 = vpop.f32.mrf.mxu0
  %11671 = vmatprep.mubr.bf16.mxu0 0
  %11672 = vmatmul.mubr.bf16.gmra.mxu0 %v11538
  %v11673 = vpop.f32.mrf.mxu0
  %v11674 = vadd.f32 %v11573, %v11673
  %v11675 = vpop.f32.mrf.mxu0
  %v11676 = vpop.f32.mrf.mxu0
  %v11677 = vadd.f32 %v11573, %v11676
  %v11678 = vpop.f32.mrf.mxu0
  %11679 = vmatprep.mubr.bf16.mxu0 0
  %11680 = vmatmul.mubr.bf16.gmra.mxu0 %v11539
  %v11681 = vpop.f32.mrf.mxu0
  %v11682 = vadd.f32 %v11573, %v11681
  %v11683 = vpop.f32.mrf.mxu0
  %v11684 = vpop.f32.mrf.mxu0
  %v11685 = vadd.f32 %v11573, %v11684
  %v11686 = vpop.f32.mrf.mxu0
  %11687 = vmatprep.mubr.bf16.mxu0 0
  %11688 = vmatmul.mubr.bf16.gmra.mxu0 %v11540
  %v11689 = vpop.f32.mrf.mxu0
  %v11690 = vadd.f32 %v11573, %v11689
  %v11691 = vpop.f32.mrf.mxu0
  %v11692 = vpop.f32.mrf.mxu0
  %v11693 = vadd.f32 %v11573, %v11692
  %v11694 = vpop.f32.mrf.mxu0
  %11695 = vmatprep.mubr.bf16.mxu0 0
  %11696 = vmatmul.mubr.bf16.gmra.mxu0 %v11541
  %v11697 = vpop.f32.mrf.mxu0
  %v11698 = vadd.f32 %v11573, %v11697
  %v11699 = vpop.f32.mrf.mxu0
  %v11700 = vpop.f32.mrf.mxu0
  %v11701 = vadd.f32 %v11573, %v11700
  %v11702 = vpop.f32.mrf.mxu0
  %11703 = vmatprep.mubr.bf16.mxu0 0
  %11704 = vmatmul.mubr.bf16.gmra.mxu0 %v11542
  %v11705 = vpop.f32.mrf.mxu0
  %v11706 = vadd.f32 %v11573, %v11705
  %v11707 = vpop.f32.mrf.mxu0
  %v11708 = vpop.f32.mrf.mxu0
  %v11709 = vadd.f32 %v11573, %v11708
  %v11710 = vpop.f32.mrf.mxu0
  %11711 = vmatprep.mubr.bf16.mxu0 0
  %11712 = vmatmul.mubr.bf16.gmra.mxu0 %v11543
  %v11713 = vpop.f32.mrf.mxu0
  %v11714 = vadd.f32 %v11573, %v11713
  %v11715 = vpop.f32.mrf.mxu0
  %v11716 = vpop.f32.mrf.mxu0
  %v11717 = vadd.f32 %v11573, %v11716
  %v11718 = vpop.f32.mrf.mxu0
  %11719 = vmatprep.mubr.bf16.mxu0 0
  %11720 = vmatmul.mubr.bf16.gmra.mxu0 %v11544
  %v11721 = vpop.f32.mrf.mxu0
  %v11722 = vadd.f32 %v11573, %v11721
  %v11723 = vpop.f32.mrf.mxu0
  %v11724 = vpop.f32.mrf.mxu0
  %v11725 = vadd.f32 %v11573, %v11724
  %v11726 = vpop.f32.mrf.mxu0
  %11727 = vmatprep.mubr.bf16.mxu0 0
  %11728 = vmatmul.mubr.bf16.gmra.mxu0 %v11545
  %v11729 = vpop.f32.mrf.mxu0
  %v11730 = vadd.f32 %v11573, %v11729
  %v11731 = vpop.f32.mrf.mxu0
  %v11732 = vpop.f32.mrf.mxu0
  %v11733 = vadd.f32 %v11573, %v11732
  %v11734 = vpop.f32.mrf.mxu0
  %11735 = vmatprep.mubr.bf16.mxu0 0
  %11736 = vmatmul.mubr.bf16.gmra.mxu0 %v11546
  %v11737 = vpop.f32.mrf.mxu0
  %v11738 = vadd.f32 %v11573, %v11737
  %v11739 = vpop.f32.mrf.mxu0
  %v11740 = vpop.f32.mrf.mxu0
  %v11741 = vadd.f32 %v11573, %v11740
  %v11742 = vpop.f32.mrf.mxu0
  %11743 = vmatprep.mubr.bf16.mxu0 0
  %11744 = vmatmul.mubr.bf16.gmra.mxu0 %v11547
  %v11745 = vpop.f32.mrf.mxu0
  %v11746 = vadd.f32 %v11573, %v11745
  %v11747 = vpop.f32.mrf.mxu0
  %v11748 = vpop.f32.mrf.mxu0
  %v11749 = vadd.f32 %v11573, %v11748
  %v11750 = vpop.f32.mrf.mxu0
  %11751 = vmatprep.mubr.bf16.mxu0 0
  %11752 = vmatmul.mubr.bf16.gmra.mxu0 %v11548
  %v11753 = vpop.f32.mrf.mxu0
  %v11754 = vadd.f32 %v11573, %v11753
  %v11755 = vpop.f32.mrf.mxu0
  %v11756 = vpop.f32.mrf.mxu0
  %v11757 = vadd.f32 %v11573, %v11756
  %v11758 = vpop.f32.mrf.mxu0
  %11759 = vmatprep.mubr.bf16.mxu0 0
  %11760 = vmatmul.mubr.bf16.gmra.mxu0 %v11549
  %v11761 = vpop.f32.mrf.mxu0
  %v11762 = vadd.f32 %v11573, %v11761
  %v11763 = vpop.f32.mrf.mxu0
  %v11764 = vpop.f32.mrf.mxu0
  %v11765 = vadd.f32 %v11573, %v11764
  %v11766 = vpop.f32.mrf.mxu0
  %11767 = vmatprep.mubr.bf16.mxu0 0
  %11768 = vmatmul.mubr.bf16.gmra.mxu0 %v11550
  %v11769 = vpop.f32.mrf.mxu0
  %v11770 = vadd.f32 %v11573, %v11769
  %v11771 = vpop.f32.mrf.mxu0
  %v11772 = vpop.f32.mrf.mxu0
  %v11773 = vadd.f32 %v11573, %v11772
  %v11774 = vpop.f32.mrf.mxu0
  %11775 = vmatprep.mubr.bf16.mxu0 0
  %11776 = vmatmul.mubr.bf16.gmra.mxu0 %v11551
  %v11777 = vpop.f32.mrf.mxu0
  %v11778 = vadd.f32 %v11573, %v11777
  %v11779 = vpop.f32.mrf.mxu0
  %v11780 = vpop.f32.mrf.mxu0
  %v11781 = vadd.f32 %v11573, %v11780
  %v11782 = vpop.f32.mrf.mxu0
  %11783 = vdwg.mxu0
  %11784 = vmax.xlane.f32.xlu0 %v11658
  %v11785 = vpop.xlane.xlu0 %11784
  %11786 = vmax.xlane.f32.xlu0 %v11661
  %v11787 = vpop.xlane.xlu0 %11786
  %11788 = vmax.xlane.f32.xlu0 %v11666
  %v11789 = vpop.xlane.xlu0 %11788
  %11790 = vmax.xlane.f32.xlu0 %v11669
  %v11791 = vpop.xlane.xlu0 %11790
  %11792 = vmax.xlane.f32.xlu0 %v11674
  %v11793 = vpop.xlane.xlu0 %11792
  %11794 = vmax.xlane.f32.xlu0 %v11677
  %v11795 = vpop.xlane.xlu0 %11794
  %11796 = vmax.xlane.f32.xlu0 %v11682
  %v11797 = vpop.xlane.xlu0 %11796
  %11798 = vmax.xlane.f32.xlu0 %v11685
  %v11799 = vpop.xlane.xlu0 %11798
  %11800 = vmax.xlane.f32.xlu0 %v11690
  %v11801 = vpop.xlane.xlu0 %11800
  %11802 = vmax.xlane.f32.xlu0 %v11693
  %v11803 = vpop.xlane.xlu0 %11802
  %11804 = vmax.xlane.f32.xlu0 %v11698
  %v11805 = vpop.xlane.xlu0 %11804
  %11806 = vmax.xlane.f32.xlu0 %v11701
  %v11807 = vpop.xlane.xlu0 %11806
  %11808 = vmax.xlane.f32.xlu0 %v11706
  %v11809 = vpop.xlane.xlu0 %11808
  %11810 = vmax.xlane.f32.xlu0 %v11709
  %v11811 = vpop.xlane.xlu0 %11810
  %11812 = vmax.xlane.f32.xlu0 %v11714
  %v11813 = vpop.xlane.xlu0 %11812
  %11814 = vmax.xlane.f32.xlu0 %v11717
  %v11815 = vpop.xlane.xlu0 %11814
  %11816 = vmax.xlane.f32.xlu0 %v11722
  %v11817 = vpop.xlane.xlu0 %11816
  %11818 = vmax.xlane.f32.xlu0 %v11725
  %v11819 = vpop.xlane.xlu0 %11818
  %11820 = vmax.xlane.f32.xlu0 %v11730
  %v11821 = vpop.xlane.xlu0 %11820
  %11822 = vmax.xlane.f32.xlu0 %v11733
  %v11823 = vpop.xlane.xlu0 %11822
  %11824 = vmax.xlane.f32.xlu0 %v11738
  %v11825 = vpop.xlane.xlu0 %11824
  %11826 = vmax.xlane.f32.xlu0 %v11741
  %v11827 = vpop.xlane.xlu0 %11826
  %11828 = vmax.xlane.f32.xlu0 %v11746
  %v11829 = vpop.xlane.xlu0 %11828
  %11830 = vmax.xlane.f32.xlu0 %v11749
  %v11831 = vpop.xlane.xlu0 %11830
  %11832 = vmax.xlane.f32.xlu0 %v11754
  %v11833 = vpop.xlane.xlu0 %11832
  %11834 = vmax.xlane.f32.xlu0 %v11757
  %v11835 = vpop.xlane.xlu0 %11834
  %11836 = vmax.xlane.f32.xlu0 %v11762
  %v11837 = vpop.xlane.xlu0 %11836
  %11838 = vmax.xlane.f32.xlu0 %v11765
  %v11839 = vpop.xlane.xlu0 %11838
  %11840 = vmax.xlane.f32.xlu0 %v11770
  %v11841 = vpop.xlane.xlu0 %11840
  %11842 = vmax.xlane.f32.xlu0 %v11773
  %v11843 = vpop.xlane.xlu0 %11842
  %11844 = vmax.xlane.f32.xlu0 %v11778
  %v11845 = vpop.xlane.xlu0 %11844
  %11846 = vmax.xlane.f32.xlu0 %v11781
  %v11847 = vpop.xlane.xlu0 %11846
  %v11848 = vsub.f32 %v11658, %v11785
  %v11849 = vsub.f32 %v11661, %v11787
  %v11850 = vsub.f32 %v11666, %v11789
  %v11851 = vsub.f32 %v11669, %v11791
  %v11852 = vsub.f32 %v11674, %v11793
  %v11853 = vsub.f32 %v11677, %v11795
  %v11854 = vsub.f32 %v11682, %v11797
  %v11855 = vsub.f32 %v11685, %v11799
  %v11856 = vsub.f32 %v11690, %v11801
  %v11857 = vsub.f32 %v11693, %v11803
  %v11858 = vsub.f32 %v11698, %v11805
  %v11859 = vsub.f32 %v11701, %v11807
  %v11860 = vsub.f32 %v11706, %v11809
  %v11861 = vsub.f32 %v11709, %v11811
  %v11862 = vsub.f32 %v11714, %v11813
  %v11863 = vsub.f32 %v11717, %v11815
  %v11864 = vsub.f32 %v11722, %v11817
  %v11865 = vsub.f32 %v11725, %v11819
  %v11866 = vsub.f32 %v11730, %v11821
  %v11867 = vsub.f32 %v11733, %v11823
  %v11868 = vsub.f32 %v11738, %v11825
  %v11869 = vsub.f32 %v11741, %v11827
  %v11870 = vsub.f32 %v11746, %v11829
  %v11871 = vsub.f32 %v11749, %v11831
  %v11872 = vsub.f32 %v11754, %v11833
  %v11873 = vsub.f32 %v11757, %v11835
  %v11874 = vsub.f32 %v11762, %v11837
  %v11875 = vsub.f32 %v11765, %v11839
  %v11876 = vsub.f32 %v11770, %v11841
  %v11877 = vsub.f32 %v11773, %v11843
  %v11878 = vsub.f32 %v11778, %v11845
  %v11879 = vsub.f32 %v11781, %v11847
  %v11880 = vmul.f32 %v11848, 1.442695
  %v11881 = vpow.pop %v11880
  %v11882 = vmul.f32 %v11849, 1.442695
  %v11883 = vpow.pop %v11882
  %v11884 = vmul.f32 %v11850, 1.442695
  %v11885 = vpow.pop %v11884
  %v11886 = vmul.f32 %v11851, 1.442695
  %v11887 = vpow.pop %v11886
  %v11888 = vmul.f32 %v11852, 1.442695
  %v11889 = vpow.pop %v11888
  %v11890 = vmul.f32 %v11853, 1.442695
  %v11891 = vpow.pop %v11890
  %v11892 = vmul.f32 %v11854, 1.442695
  %v11893 = vpow.pop %v11892
  %v11894 = vmul.f32 %v11855, 1.442695
  %v11895 = vpow.pop %v11894
  %v11896 = vmul.f32 %v11856, 1.442695
  %v11897 = vpow.pop %v11896
  %v11898 = vmul.f32 %v11857, 1.442695
  %v11899 = vpow.pop %v11898
  %v11900 = vmul.f32 %v11858, 1.442695
  %v11901 = vpow.pop %v11900
  %v11902 = vmul.f32 %v11859, 1.442695
  %v11903 = vpow.pop %v11902
  %v11904 = vmul.f32 %v11860, 1.442695
  %v11905 = vpow.pop %v11904
  %v11906 = vmul.f32 %v11861, 1.442695
  %v11907 = vpow.pop %v11906
  %v11908 = vmul.f32 %v11862, 1.442695
  %v11909 = vpow.pop %v11908
  %v11910 = vmul.f32 %v11863, 1.442695
  %v11911 = vpow.pop %v11910
  %v11912 = vmul.f32 %v11864, 1.442695
  %v11913 = vpow.pop %v11912
  %v11914 = vmul.f32 %v11865, 1.442695
  %v11915 = vpow.pop %v11914
  %v11916 = vmul.f32 %v11866, 1.442695
  %v11917 = vpow.pop %v11916
  %v11918 = vmul.f32 %v11867, 1.442695
  %v11919 = vpow.pop %v11918
  %v11920 = vmul.f32 %v11868, 1.442695
  %v11921 = vpow.pop %v11920
  %v11922 = vmul.f32 %v11869, 1.442695
  %v11923 = vpow.pop %v11922
  %v11924 = vmul.f32 %v11870, 1.442695
  %v11925 = vpow.pop %v11924
  %v11926 = vmul.f32 %v11871, 1.442695
  %v11927 = vpow.pop %v11926
  %v11928 = vmul.f32 %v11872, 1.442695
  %v11929 = vpow.pop %v11928
  %v11930 = vmul.f32 %v11873, 1.442695
  %v11931 = vpow.pop %v11930
  %v11932 = vmul.f32 %v11874, 1.442695
  %v11933 = vpow.pop %v11932
  %v11934 = vmul.f32 %v11875, 1.442695
  %v11935 = vpow.pop %v11934
  %v11936 = vmul.f32 %v11876, 1.442695
  %v11937 = vpow.pop %v11936
  %v11938 = vmul.f32 %v11877, 1.442695
  %v11939 = vpow.pop %v11938
  %v11940 = vmul.f32 %v11878, 1.442695
  %v11941 = vpow.pop %v11940
  %v11942 = vmul.f32 %v11879, 1.442695
  %v11943 = vpow.pop %v11942
  %11944 = vadd.xlane.f32.xlu0 %v11881
  %v11945 = vpop.xlane.xlu0 %11944
  %11946 = vadd.xlane.f32.xlu0 %v11883
  %v11947 = vpop.xlane.xlu0 %11946
  %11948 = vadd.xlane.f32.xlu0 %v11885
  %v11949 = vpop.xlane.xlu0 %11948
  %11950 = vadd.xlane.f32.xlu0 %v11887
  %v11951 = vpop.xlane.xlu0 %11950
  %11952 = vadd.xlane.f32.xlu0 %v11889
  %v11953 = vpop.xlane.xlu0 %11952
  %11954 = vadd.xlane.f32.xlu0 %v11891
  %v11955 = vpop.xlane.xlu0 %11954
  %11956 = vadd.xlane.f32.xlu0 %v11893
  %v11957 = vpop.xlane.xlu0 %11956
  %11958 = vadd.xlane.f32.xlu0 %v11895
  %v11959 = vpop.xlane.xlu0 %11958
  %11960 = vadd.xlane.f32.xlu0 %v11897
  %v11961 = vpop.xlane.xlu0 %11960
  %11962 = vadd.xlane.f32.xlu0 %v11899
  %v11963 = vpop.xlane.xlu0 %11962
  %11964 = vadd.xlane.f32.xlu0 %v11901
  %v11965 = vpop.xlane.xlu0 %11964
  %11966 = vadd.xlane.f32.xlu0 %v11903
  %v11967 = vpop.xlane.xlu0 %11966
  %11968 = vadd.xlane.f32.xlu0 %v11905
  %v11969 = vpop.xlane.xlu0 %11968
  %11970 = vadd.xlane.f32.xlu0 %v11907
  %v11971 = vpop.xlane.xlu0 %11970
  %11972 = vadd.xlane.f32.xlu0 %v11909
  %v11973 = vpop.xlane.xlu0 %11972
  %11974 = vadd.xlane.f32.xlu0 %v11911
  %v11975 = vpop.xlane.xlu0 %11974
  %11976 = vadd.xlane.f32.xlu0 %v11913
  %v11977 = vpop.xlane.xlu0 %11976
  %11978 = vadd.xlane.f32.xlu0 %v11915
  %v11979 = vpop.xlane.xlu0 %11978
  %11980 = vadd.xlane.f32.xlu0 %v11917
  %v11981 = vpop.xlane.xlu0 %11980
  %11982 = vadd.xlane.f32.xlu0 %v11919
  %v11983 = vpop.xlane.xlu0 %11982
  %11984 = vadd.xlane.f32.xlu0 %v11921
  %v11985 = vpop.xlane.xlu0 %11984
  %11986 = vadd.xlane.f32.xlu0 %v11923
  %v11987 = vpop.xlane.xlu0 %11986
  %11988 = vadd.xlane.f32.xlu0 %v11925
  %v11989 = vpop.xlane.xlu0 %11988
  %11990 = vadd.xlane.f32.xlu0 %v11927
  %v11991 = vpop.xlane.xlu0 %11990
  %11992 = vadd.xlane.f32.xlu0 %v11929
  %v11993 = vpop.xlane.xlu0 %11992
  %11994 = vadd.xlane.f32.xlu0 %v11931
  %v11995 = vpop.xlane.xlu0 %11994
  %11996 = vadd.xlane.f32.xlu0 %v11933
  %v11997 = vpop.xlane.xlu0 %11996
  %11998 = vadd.xlane.f32.xlu0 %v11935
  %v11999 = vpop.xlane.xlu0 %11998
  %12000 = vadd.xlane.f32.xlu0 %v11937
  %v12001 = vpop.xlane.xlu0 %12000
  %12002 = vadd.xlane.f32.xlu0 %v11939
  %v12003 = vpop.xlane.xlu0 %12002
  %12004 = vadd.xlane.f32.xlu0 %v11941
  %v12005 = vpop.xlane.xlu0 %12004
  %12006 = vadd.xlane.f32.xlu0 %v11943
  %v12007 = vpop.xlane.xlu0 %12006
  %v12008 = vrcp.pop %v11945
  %v12009 = vmul.f32 %v11881, %v12008
  %v12010 = vrcp.pop %v11947
  %v12011 = vmul.f32 %v11883, %v12010
  %v12012 = vrcp.pop %v11949
  %v12013 = vmul.f32 %v11885, %v12012
  %v12014 = vrcp.pop %v11951
  %v12015 = vmul.f32 %v11887, %v12014
  %v12016 = vrcp.pop %v11953
  %v12017 = vmul.f32 %v11889, %v12016
  %v12018 = vrcp.pop %v11955
  %v12019 = vmul.f32 %v11891, %v12018
  %v12020 = vrcp.pop %v11957
  %v12021 = vmul.f32 %v11893, %v12020
  %v12022 = vrcp.pop %v11959
  %v12023 = vmul.f32 %v11895, %v12022
  %v12024 = vrcp.pop %v11961
  %v12025 = vmul.f32 %v11897, %v12024
  %v12026 = vrcp.pop %v11963
  %v12027 = vmul.f32 %v11899, %v12026
  %v12028 = vrcp.pop %v11965
  %v12029 = vmul.f32 %v11901, %v12028
  %v12030 = vrcp.pop %v11967
  %v12031 = vmul.f32 %v11903, %v12030
  %v12032 = vrcp.pop %v11969
  %v12033 = vmul.f32 %v11905, %v12032
  %v12034 = vrcp.pop %v11971
  %v12035 = vmul.f32 %v11907, %v12034
  %v12036 = vrcp.pop %v11973
  %v12037 = vmul.f32 %v11909, %v12036
  %v12038 = vrcp.pop %v11975
  %v12039 = vmul.f32 %v11911, %v12038
  %v12040 = vrcp.pop %v11977
  %v12041 = vmul.f32 %v11913, %v12040
  %v12042 = vrcp.pop %v11979
  %v12043 = vmul.f32 %v11915, %v12042
  %v12044 = vrcp.pop %v11981
  %v12045 = vmul.f32 %v11917, %v12044
  %v12046 = vrcp.pop %v11983
  %v12047 = vmul.f32 %v11919, %v12046
  %v12048 = vrcp.pop %v11985
  %v12049 = vmul.f32 %v11921, %v12048
  %v12050 = vrcp.pop %v11987
  %v12051 = vmul.f32 %v11923, %v12050
  %v12052 = vrcp.pop %v11989
  %v12053 = vmul.f32 %v11925, %v12052
  %v12054 = vrcp.pop %v11991
  %v12055 = vmul.f32 %v11927, %v12054
  %v12056 = vrcp.pop %v11993
  %v12057 = vmul.f32 %v11929, %v12056
  %v12058 = vrcp.pop %v11995
  %v12059 = vmul.f32 %v11931, %v12058
  %v12060 = vrcp.pop %v11997
  %v12061 = vmul.f32 %v11933, %v12060
  %v12062 = vrcp.pop %v11999
  %v12063 = vmul.f32 %v11935, %v12062
  %v12064 = vrcp.pop %v12001
  %v12065 = vmul.f32 %v11937, %v12064
  %v12066 = vrcp.pop %v12003
  %v12067 = vmul.f32 %v11939, %v12066
  %v12068 = vrcp.pop %v12005
  %v12069 = vmul.f32 %v11941, %v12068
  %v12070 = vrcp.pop %v12007
  %v12071 = vmul.f32 %v11943, %v12070
  %12072 = vst [vmem:[%s20] sm:$0xff] %v12009
  %12073 = vst [vmem:[%s20 + $0x8] sm:$0xff] %v12011
  %12074 = vst [vmem:[%s20 + $0x10] sm:$0xff] %v12013
  %12075 = vst [vmem:[%s20 + $0x18] sm:$0xff] %v12015
  %12076 = vst [vmem:[%s20 + $0x20] sm:$0xff] %v12017
  %12077 = vst [vmem:[%s20 + $0x28] sm:$0xff] %v12019
  %12078 = vst [vmem:[%s20 + $0x30] sm:$0xff] %v12021
  %12079 = vst [vmem:[%s20 + $0x38] sm:$0xff] %v12023
  %12080 = vst [vmem:[%s20 + $0x40] sm:$0xff] %v12025
  %12081 = vst [vmem:[%s20 + $0x48] sm:$0xff] %v12027
  %12082 = vst [vmem:[%s20 + $0x50] sm:$0xff] %v12029
  %12083 = vst [vmem:[%s20 + $0x58] sm:$0xff] %v12031
  %12084 = vst [vmem:[%s20 + $0x60] sm:$0xff] %v12033
  %12085 = vst [vmem:[%s20 + $0x68] sm:$0xff] %v12035
  %12086 = vst [vmem:[%s20 + $0x70] sm:$0xff] %v12037
  %12087 = vst [vmem:[%s20 + $0x78] sm:$0xff] %v12039
  %s12088 = scalar_lea.vmem %s20, 128
  %12089 = vst [vmem:[%s12088] sm:$0xff] %v12041
  %12090 = vst [vmem:[%s12088 + $0x8] sm:$0xff] %v12043
  %12091 = vst [vmem:[%s12088 + $0x10] sm:$0xff] %v12045
  %12092 = vst [vmem:[%s12088 + $0x18] sm:$0xff] %v12047
  %12093 = vst [vmem:[%s12088 + $0x20] sm:$0xff] %v12049
  %12094 = vst [vmem:[%s12088 + $0x28] sm:$0xff] %v12051
  %12095 = vst [vmem:[%s12088 + $0x30] sm:$0xff] %v12053
  %12096 = vst [vmem:[%s12088 + $0x38] sm:$0xff] %v12055
  %12097 = vst [vmem:[%s12088 + $0x40] sm:$0xff] %v12057
  %12098 = vst [vmem:[%s12088 + $0x48] sm:$0xff] %v12059
  %12099 = vst [vmem:[%s12088 + $0x50] sm:$0xff] %v12061
  %12100 = vst [vmem:[%s12088 + $0x58] sm:$0xff] %v12063
  %12101 = vst [vmem:[%s12088 + $0x60] sm:$0xff] %v12065
  %12102 = vst [vmem:[%s12088 + $0x68] sm:$0xff] %v12067
  %12103 = vst [vmem:[%s12088 + $0x70] sm:$0xff] %v12069
  %12104 = vst [vmem:[%s12088 + $0x78] sm:$0xff] %v12071
  // Predicated region
  $region82: #{forward.1} parent=0 // pred_check
    _
  $region83: #{forward.1} parent=0 // pred_check_branch
    %12106 = sbr.rel (0) target = $region85
  $region84: #{forward.1} parent=0 // pred_region
    _
  $region85: #{forward.1} parent=0 // pred_fallthru
    _
  // Predicated region
  $region86: #{forward.1} parent=0 // pred_check
    _
  $region87: #{forward.1} parent=0 // pred_check_branch
    %12108 = sbr.rel (0) target = $region89
  $region88: #{forward.1} parent=0 // pred_region
    _
  $region89: #{forward.1} parent=0 // pred_fallthru
    _

</llo_original>
